<compile_context>
chip_gen: v7x
topology: tpu7x:2x2x1
jax: 0.10.0
libtpu: 0.0.40
codegen_flags: <defaults>
</compile_context>

<pallas_src>
from functools import partial

import numpy as np
import jax
import jax.numpy as jnp
from jax.experimental import pallas as pl
from jax.experimental.pallas import tpu as pltpu


LANE = 128

_PARALLEL_1D = pltpu.CompilerParams(dimension_semantics=("parallel",))
_VMEM_SPEC = pl.BlockSpec(memory_space=pltpu.MemorySpace.VMEM)


def _pad_to_lane(c):
    return ((c + LANE - 1) // LANE) * LANE


def _row_tile(m, target=256):
    """Largest row-tile <= target that divides m and is a multiple of 8."""
    if m <= target:
        return m
    for t in range(target, 7, -1):
        if m % t == 0 and t % 8 == 0:
            return t
    return m


# ----------------------------------------------------------------------------
# Pallas kernels
# ----------------------------------------------------------------------------

def _mm_bn_relu_kernel(x_ref, w_ref, s_ref, b_ref, o_ref):
    # x: [tm, K] bf16, w: [K, N] bf16, s/b: [1, N] f32 -> bf16 out.
    acc = jnp.dot(x_ref[...], w_ref[...], preferred_element_type=jnp.float32)
    o_ref[...] = jnp.maximum(acc * s_ref[...] + b_ref[...], 0.0).astype(o_ref.dtype)


def matmul_bn_relu(x2d, w, scale, bias):
    """Row-tiled [M,K]@[K,N] + folded BN + ReLU, bf16 in / bf16 out."""
    m, k = x2d.shape
    n = w.shape[1]
    tm = _row_tile(m)
    return pl.pallas_call(
        _mm_bn_relu_kernel,
        out_shape=jax.ShapeDtypeStruct((m, n), jnp.bfloat16),
        grid=(m // tm,),
        in_specs=[
            pl.BlockSpec((tm, k), lambda i: (i, 0)),
            pl.BlockSpec((k, n), lambda i: (0, 0)),
            pl.BlockSpec((1, n), lambda i: (0, 0)),
            pl.BlockSpec((1, n), lambda i: (0, 0)),
        ],
        out_specs=pl.BlockSpec((tm, n), lambda i: (i, 0)),
        compiler_params=_PARALLEL_1D,
    )(x2d, w, scale, bias)


def _bottleneck_kernel(x_ref, shift_ref, w1_ref, s1_ref, b1_ref,
                       w2_ref, s2_ref, b2_ref, w3_ref, s3_ref, b3_ref,
                       *rest, stride2):
    """One fused ShuffleNet bottleneck for one batch image.

    x:     [HW, Cin_p]  bf16 (spatial flattened, channels lane-padded)
    shift: [9, HoWo, HW] bf16 0/1 spatial shift matrices (pad+stride folded in)
    w1:    [Cin_p, Mid_p] bf16 group-dense 1x1
    w2:    [9, 1, Mid_p]  f32  depthwise taps (channel shuffle folded in)
    w3:    [Mid_p, Cout_p] bf16 group-dense 1x1 (shuffle folded into rows)
    s*/b*: folded BatchNorm scale / bias (f32, zero on padded lanes)
    stride-2 extras: savg [HoWo, HW] (sum of taps), pres [Cin_p, Cout_p]
                     0/1 channel-placement matrix (fused torch.cat).
    """
    if stride2:
        savg_ref, pres_ref, o_ref = rest
    else:
        (o_ref,) = rest

    x = x_ref[0]                                                    # [HW, Cin_p]

    # conv1 (group-dense 1x1) + BN + ReLU
    mid = jnp.dot(x, w1_ref[...], preferred_element_type=jnp.float32)
    mid = jnp.maximum(mid * s1_ref[...] + b1_ref[...], 0.0)
    mid_b = mid.astype(jnp.bfloat16)

    # depthwise 3x3 (+stride, +pad) as 9 shift-matrix matmuls, + BN + ReLU
    acc = None
    for k in range(9):
        tap = jnp.dot(shift_ref[k], mid_b, preferred_element_type=jnp.float32)
        term = tap * w2_ref[k]
        acc = term if acc is None else acc + term
    dw = jnp.maximum(acc * s2_ref[...] + b2_ref[...], 0.0).astype(jnp.bfloat16)

    # conv3 (group-dense 1x1) + BN
    out = jnp.dot(dw, w3_ref[...], preferred_element_type=jnp.float32)
    out = out * s3_ref[...] + b3_ref[...]

    # shortcut
    if stride2:
        # AvgPool2d(3, stride=2, pad=1), count_include_pad=True (/9 always),
        # then place the pooled input channels after the conv3 channels
        # (fused torch.cat) via a 0/1 placement matmul.
        pooled = jnp.dot(savg_ref[...], x, preferred_element_type=jnp.float32)
        pooled = pooled * (1.0 / 9.0)
        res = jnp.dot(pooled.astype(jnp.bfloat16), pres_ref[...],
                      preferred_element_type=jnp.float32)
        out = out + res
    else:
        out = out + x.astype(jnp.float32)

    o_ref[0] = jnp.maximum(out, 0.0).astype(o_ref.dtype)


def bottleneck_fused(act, p):
    """act: [N, HW, Cin_p] bf16 -> [N, HoWo, Cout_p] bf16 in one pallas_call."""
    n, hw, cinp = act.shape
    howo = p['shift'].shape[1]
    midp = p['w1'].shape[1]
    coutp = p['w3'].shape[1]
    stride2 = 'savg' in p          # static pytree-structure check (jit-safe)

    in_specs = [
        pl.BlockSpec((1, hw, cinp), lambda i: (i, 0, 0)),
        pl.BlockSpec((9, howo, hw), lambda i: (0, 0, 0)),
        pl.BlockSpec((cinp, midp), lambda i: (0, 0)),
        pl.BlockSpec((1, midp), lambda i: (0, 0)),
        pl.BlockSpec((1, midp), lambda i: (0, 0)),
        pl.BlockSpec((9, 1, midp), lambda i: (0, 0, 0)),
        pl.BlockSpec((1, midp), lambda i: (0, 0)),
        pl.BlockSpec((1, midp), lambda i: (0, 0)),
        pl.BlockSpec((midp, coutp), lambda i: (0, 0)),
        pl.BlockSpec((1, coutp), lambda i: (0, 0)),
        pl.BlockSpec((1, coutp), lambda i: (0, 0)),
    ]
    args = [act, p['shift'], p['w1'], p['s1'], p['b1'],
            p['w2'], p['s2'], p['b2'], p['w3'], p['s3'], p['b3']]
    if stride2:
        in_specs += [pl.BlockSpec((howo, hw), lambda i: (0, 0)),
                     pl.BlockSpec((cinp, coutp), lambda i: (0, 0))]
        args += [p['savg'], p['pres']]

    return pl.pallas_call(
        partial(_bottleneck_kernel, stride2=stride2),
        out_shape=jax.ShapeDtypeStruct((n, howo, coutp), jnp.bfloat16),
        grid=(n,),
        in_specs=in_specs,
        out_specs=pl.BlockSpec((1, howo, coutp), lambda i: (i, 0, 0)),
        compiler_params=_PARALLEL_1D,
    )(*args)


def _pool_fc_kernel(x_ref, w_ref, b_ref, o_ref):
    # x: [N, HoWo, C_p] bf16 -> global average pool over spatial -> FC.
    pooled = jnp.mean(x_ref[...].astype(jnp.float32), axis=1)       # [N, C_p]
    o_ref[...] = (jnp.dot(pooled.astype(jnp.bfloat16), w_ref[...],
                          preferred_element_type=jnp.float32) + b_ref[...])


def pool_fc(x, fc_wT, fc_b):
    n = x.shape[0]
    num_classes = fc_wT.shape[1]
    return pl.pallas_call(
        _pool_fc_kernel,
        out_shape=jax.ShapeDtypeStruct((n, num_classes), jnp.float32),
        in_specs=[_VMEM_SPEC, _VMEM_SPEC, _VMEM_SPEC],
        out_specs=_VMEM_SPEC,
    )(x, fc_wT, fc_b)


# ----------------------------------------------------------------------------
# Forward
# ----------------------------------------------------------------------------

def shufflenet_forward(x_nchw, params):
    n, c, h, w = x_nchw.shape
    x = jnp.transpose(x_nchw, (0, 2, 3, 1)).astype(jnp.float32)      # NHWC
    cinp = params['conv1_w'].shape[0]
    x = jnp.pad(x, ((0, 0), (0, 0), (0, 0), (0, cinp - c))).astype(jnp.bfloat16)
    act = matmul_bn_relu(x.reshape(n * h * w, cinp),
                         params['conv1_w'], params['s1'], params['b1'])
    act = act.reshape(n, h * w, act.shape[-1])
    for layer_name in ('layer1', 'layer2', 'layer3'):
        for bp in params[layer_name]:
            act = bottleneck_fused(act, bp)
    return pool_fc(act, params['fc_w'], params['fc_b'])


# ----------------------------------------------------------------------------
# Parameter init (torch-like raw params)
# ----------------------------------------------------------------------------

class _KeyGen:
    def __init__(self, key):
        self.key = key

    def __call__(self):
        self.key, sub = jax.random.split(self.key)
        return sub


def _bn_params(key, c):
    k1, k2, k3, k4 = jax.random.split(key, 4)
    gamma = 1.0 + 0.1 * jax.random.normal(k1, (c,), jnp.float32)
    beta = 0.1 * jax.random.normal(k2, (c,), jnp.float32)
    mean = 0.1 * jax.random.normal(k3, (c,), jnp.float32)
    var = 0.5 + jax.random.uniform(k4, (c,), jnp.float32)
    scale = gamma * jax.lax.rsqrt(var + 1e-5)
    bias = beta - mean * scale
    return scale, bias


def _block_raw(key, in_planes, out_planes_b, stride, groups):
    mid = out_planes_b // 4
    g1 = 1 if in_planes == 24 else groups
    ks = jax.random.split(key, 6)
    return {
        'w1': 0.1 * jax.random.normal(ks[0], (mid, in_planes // g1), jnp.float32),
        'w2': 0.1 * jax.random.normal(ks[1], (mid, 3, 3), jnp.float32),
        'w3': 0.1 * jax.random.normal(ks[2], (out_planes_b, mid // groups), jnp.float32),
        'bn1': _bn_params(ks[3], mid),
        'bn2': _bn_params(ks[4], mid),
        'bn3': _bn_params(ks[5], out_planes_b),
        'stride': stride, 'groups': groups, 'g1': g1,
        'in_planes': in_planes, 'mid': mid, 'out': out_planes_b,
    }


def init_raw_params(key, out_planes, num_blocks, groups, img_c, num_classes):
    kg = _KeyGen(key)
    params = {
        'conv1_w': 0.1 * jax.random.normal(kg(), (24, img_c), jnp.float32),
        'bn1': _bn_params(kg(), 24),
    }
    in_planes = 24
    for li, (op, nb) in enumerate(zip(out_planes, num_blocks), start=1):
        blocks = []
        for i in range(nb):
            stride = 2 if i == 0 else 1
            cat_planes = in_planes if i == 0 else 0
            blocks.append(_block_raw(kg(), in_planes, op - cat_planes,
                                     stride, groups))
            in_planes = op
        params[f'layer{li}'] = blocks
    params['fc_w'] = 0.1 * jax.random.normal(kg(), (num_classes, out_planes[2]),
                                             jnp.float32)
    params['fc_b'] = 0.1 * jax.random.normal(kg(), (num_classes,), jnp.float32)
    return params


# ----------------------------------------------------------------------------
# One-time parameter prep: fold groups / shuffle / BN / stride / pad / concat
# into lane-padded dense weights and 0/1 spatial shift matrices.
# ----------------------------------------------------------------------------

def _shuffle_pos(c, g):
    """Position of (un-shuffled) channel i after ShuffleBlock(groups=g)."""
    idx = np.arange(c)
    cpg = c // g
    return (idx % cpg) * g + idx // cpg


def _make_shift_mats(h, w, stride):
    """0/1 matrices S[k] with (S[k] @ x_flat) == tap k of a 3x3, pad=1 conv."""
    ho = (h - 1) // stride + 1
    wo = (w - 1) // stride + 1
    s = np.zeros((9, ho * wo, h * w), np.float32)
    for kh in range(3):
        for kw in range(3):
            k = kh * 3 + kw
            for i in range(ho):
                r = stride * i + kh - 1
                if r < 0 or r >= h:
                    continue
                for j in range(wo):
                    c = stride * j + kw - 1
                    if c < 0 or c >= w:
                        continue
                    s[k, i * wo + j, r * w + c] = 1.0
    return s, ho, wo


def _dense_group_weight(w, groups):
    """Torch grouped 1x1 weight [cout, cin//groups] -> dense [cin, cout]."""
    w = np.asarray(w, np.float32)
    cout, cig = w.shape
    cog = cout // groups
    cin = cig * groups
    dense = np.zeros((cin, cout), np.float32)
    for g in range(groups):
        dense[g * cig:(g + 1) * cig, g * cog:(g + 1) * cog] = \
            w[g * cog:(g + 1) * cog, :].T
    return dense


def _pad2(a, rows, cols):
    out = np.zeros((rows, cols), np.float32)
    out[:a.shape[0], :a.shape[1]] = a
    return out


def _pad_row_vec(v, n):
    out = np.zeros((1, n), np.float32)
    v = np.asarray(v, np.float32)
    out[0, :v.shape[0]] = v
    return jnp.asarray(out)


def _prep_block(raw, h, w):
    mid, g1, groups = raw['mid'], raw['g1'], raw['groups']
    cin, out_b, stride = raw['in_planes'], raw['out'], raw['stride']
    cinp, midp = _pad_to_lane(cin), _pad_to_lane(mid)
    out_total = out_b + (cin if stride == 2 else 0)
    coutp = _pad_to_lane(out_total)
    pos = _shuffle_pos(mid, g1)

    # conv1: grouped 1x1 -> dense [cin, mid], lane-padded.
    w1 = _pad2(_dense_group_weight(raw['w1'], g1), cinp, midp)
    s1 = np.asarray(raw['bn1'][0])
    b1 = np.asarray(raw['bn1'][1])

    # conv2 depthwise: fold the channel shuffle into the per-tap weights + bn2.
    w2 = np.asarray(raw['w2'], np.float32).reshape(mid, 9)[pos]     # [mid, 9]
    w2p = np.zeros((9, 1, midp), np.float32)
    w2p[:, 0, :mid] = w2.T
    s2 = np.asarray(raw['bn2'][0])[pos]
    b2 = np.asarray(raw['bn2'][1])[pos]

    # conv3: grouped 1x1 -> dense [mid, out_b], shuffle folded into its rows.
    w3 = _pad2(_dense_group_weight(raw['w3'], groups)[pos], midp, coutp)
    s3 = np.asarray(raw['bn3'][0])
    b3 = np.asarray(raw['bn3'][1])

    shift, ho, wo = _make_shift_mats(h, w, stride)

    p = {
        'w1': jnp.asarray(w1, jnp.bfloat16),
        's1': _pad_row_vec(s1, midp), 'b1': _pad_row_vec(b1, midp),
        'w2': jnp.asarray(w2p, jnp.float32),
        's2': _pad_row_vec(s2, midp), 'b2': _pad_row_vec(b2, midp),
        'w3': jnp.asarray(w3, jnp.bfloat16),
        's3': _pad_row_vec(s3, coutp), 'b3': _pad_row_vec(b3, coutp),
        'shift': jnp.asarray(shift, jnp.bfloat16),
    }
    if stride == 2:
        # AvgPool shortcut: summed taps (0/1 entries, exact in bf16); the /9
        # happens in f32 inside the kernel.  Channel placement matrix fuses
        # the torch.cat([out, res], 1).
        p['savg'] = jnp.asarray(shift.sum(0), jnp.bfloat16)
        pres = np.zeros((cinp, coutp), np.float32)
        pres[np.arange(cin), out_b + np.arange(cin)] = 1.0
        p['pres'] = jnp.asarray(pres, jnp.bfloat16)
    return p, ho, wo


def prepare_params(raw, img_hw):
    conv1 = np.asarray(raw['conv1_w'], np.float32)         # [24, img_c]
    img_c = conv1.shape[1]
    cinp = _pad_to_lane(img_c)
    c0p = _pad_to_lane(24)
    params = {
        'conv1_w': jnp.asarray(_pad2(conv1.T, cinp, c0p), jnp.bfloat16),
        's1': _pad_row_vec(np.asarray(raw['bn1'][0]), c0p),
        'b1': _pad_row_vec(np.asarray(raw['bn1'][1]), c0p),
    }
    h, w = img_hw
    for ln in ('layer1', 'layer2', 'layer3'):
        blocks = []
        for b in raw[ln]:
            bp, h, w = _prep_block(b, h, w)
            blocks.append(bp)
        params[ln] = blocks
    fc_w = np.asarray(raw['fc_w'], np.float32)              # [classes, C_last]
    clp = _pad_to_lane(fc_w.shape[1])
    params['fc_w'] = jnp.asarray(_pad2(fc_w.T, clp, fc_w.shape[0]), jnp.bfloat16)
    params['fc_b'] = jnp.asarray(np.asarray(raw['fc_b'], np.float32).reshape(1, -1))
    return params


# ----------------------------------------------------------------------------
# Main
# ----------------------------------------------------------------------------

if __name__ == "__main__":
    key = jax.random.PRNGKey(0)
    k_params, k_x = jax.random.split(key)

    # Small ShuffleNet config (same _make_layer construction rules as PyTorch).
    out_planes = [40, 80, 160]
    num_blocks = [1, 2, 1]       # includes a stride-1 block (fused residual path)
    groups = 2
    img_shape = (3, 16, 16)
    num_classes = 10
    batch = 2

    raw = init_raw_params(k_params, out_planes, num_blocks, groups,
                          img_shape[0], num_classes)
    params = prepare_params(raw, img_shape[1:])   # one-time fold / pad / bf16
    x = jax.random.normal(k_x, (batch,) + img_shape, jnp.float32)   # NCHW input

    fwd = jax.jit(shufflenet_forward)
    y = jax.block_until_ready(fwd(x, params))
    assert y.shape == (batch, num_classes)
    assert bool(jnp.all(jnp.isfinite(y)))
    print("KERNEL_OK")
</pallas_src>

<mosaic_0001>
module attributes {stable_mosaic.version = 11 : i64} {
  func.func @_mm_bn_relu_kernel(%arg0: i32, %arg1: memref<256x128xbf16, #tpu.memory_space<vmem>>, %arg2: memref<128x128xbf16, #tpu.memory_space<vmem>>, %arg3: memref<1x128xf32, #tpu.memory_space<vmem>>, %arg4: memref<1x128xf32, #tpu.memory_space<vmem>>, %arg5: memref<256x128xbf16, #tpu.memory_space<vmem>>) attributes {dimension_semantics = [#tpu.dimension_semantics<parallel>], iteration_bounds = array<i64: 2>, scalar_prefetch = 0 : i64, scratch_operands = 0 : i64, tpu.core_type = #tpu.core_type<tc>, window_params = [{transform_indices = @transform_0, window_bounds = array<i64: 256, 128>}, {pipeline_mode = #tpu.pipeline_mode<synchronous>, transform_indices = @transform_1, window_bounds = array<i64: 128, 128>}, {pipeline_mode = #tpu.pipeline_mode<synchronous>, transform_indices = @transform_2, window_bounds = array<i64: 1, 128>}, {pipeline_mode = #tpu.pipeline_mode<synchronous>, transform_indices = @transform_3, window_bounds = array<i64: 1, 128>}, {transform_indices = @transform_4, window_bounds = array<i64: 256, 128>}]} {
    %c0 = arith.constant 0 : index
    %c0_0 = arith.constant 0 : index
    %0 = vector.load %arg1[%c0, %c0_0] : memref<256x128xbf16, #tpu.memory_space<vmem>>, vector<256x128xbf16>
    %c0_1 = arith.constant 0 : index
    %c0_2 = arith.constant 0 : index
    %1 = vector.load %arg2[%c0_1, %c0_2] : memref<128x128xbf16, #tpu.memory_space<vmem>>, vector<128x128xbf16>
    %cst = arith.constant dense<0.000000e+00> : vector<256x128xf32>
    %2 = tpu.matmul %0, %1, %cst {dimension_numbers = #tpu.dot_dimension_numbers<[1], [0], [0], [1], [0, 0, 1, 1], [], []>} : vector<256x128xbf16>, vector<128x128xbf16>, vector<256x128xf32> -> vector<256x128xf32>
    %c0_3 = arith.constant 0 : index
    %c0_4 = arith.constant 0 : index
    %3 = vector.load %arg3[%c0_3, %c0_4] : memref<1x128xf32, #tpu.memory_space<vmem>>, vector<1x128xf32>
    %4 = vector.broadcast %3 : vector<1x128xf32> to vector<256x128xf32>
    %5 = arith.mulf %2, %4 : vector<256x128xf32>
    %c0_5 = arith.constant 0 : index
    %c0_6 = arith.constant 0 : index
    %6 = vector.load %arg4[%c0_5, %c0_6] : memref<1x128xf32, #tpu.memory_space<vmem>>, vector<1x128xf32>
    %7 = vector.broadcast %6 : vector<1x128xf32> to vector<256x128xf32>
    %8 = arith.addf %5, %7 : vector<256x128xf32>
    %cst_7 = arith.constant 0.000000e+00 : f32
    %9 = vector.broadcast %cst_7 : f32 to vector<256x128xf32>
    %10 = arith.maximumf %8, %9 : vector<256x128xf32>
    %11 = arith.truncf %10 : vector<256x128xf32> to vector<256x128xbf16>
    %c0_8 = arith.constant 0 : index
    %c0_9 = arith.constant 0 : index
    %12 = vector.load %arg5[%c0_8, %c0_9] : memref<256x128xbf16, #tpu.memory_space<vmem>>, vector<256x128xbf16>
    tpu.vector_store %arg5[%c0_8, %c0_9], %11 {strides = array<i32>} : memref<256x128xbf16, #tpu.memory_space<vmem>>, vector<256x128xbf16>,
    return
  }
  func.func @transform_0(%arg0: i32) -> (i32, i32) {
    %c0_i32 = arith.constant 0 : i32
    %c0_i32_0 = arith.constant 0 : i32
    return %arg0, %c0_i32 : i32, i32
  }
  func.func @transform_1(%arg0: i32) -> (i32, i32) {
    %c0_i32 = arith.constant 0 : i32
    %c0_i32_0 = arith.constant 0 : i32
    %c0_i32_1 = arith.constant 0 : i32
    return %c0_i32, %c0_i32_0 : i32, i32
  }
  func.func @transform_2(%arg0: i32) -> (i32, i32) {
    %c0_i32 = arith.constant 0 : i32
    %c0_i32_0 = arith.constant 0 : i32
    %c0_i32_1 = arith.constant 0 : i32
    return %c0_i32, %c0_i32_0 : i32, i32
  }
  func.func @transform_3(%arg0: i32) -> (i32, i32) {
    %c0_i32 = arith.constant 0 : i32
    %c0_i32_0 = arith.constant 0 : i32
    %c0_i32_1 = arith.constant 0 : i32
    return %c0_i32, %c0_i32_0 : i32, i32
  }
  func.func @transform_4(%arg0: i32) -> (i32, i32) {
    %c0_i32 = arith.constant 0 : i32
    %c0_i32_0 = arith.constant 0 : i32
    return %arg0, %c0_i32 : i32, i32
  }
}

module attributes {stable_mosaic.version = 11 : i64} {
  func.func @_bottleneck_kernel(%arg0: i32, %arg1: memref<1x256x128xbf16, #tpu.memory_space<vmem>>, %arg2: memref<9x64x256xbf16, #tpu.memory_space<vmem>>, %arg3: memref<128x128xbf16, #tpu.memory_space<vmem>>, %arg4: memref<1x128xf32, #tpu.memory_space<vmem>>, %arg5: memref<1x128xf32, #tpu.memory_space<vmem>>, %arg6: memref<9x1x128xf32, #tpu.memory_space<vmem>>, %arg7: memref<1x128xf32, #tpu.memory_space<vmem>>, %arg8: memref<1x128xf32, #tpu.memory_space<vmem>>, %arg9: memref<128x128xbf16, #tpu.memory_space<vmem>>, %arg10: memref<1x128xf32, #tpu.memory_space<vmem>>, %arg11: memref<1x128xf32, #tpu.memory_space<vmem>>, %arg12: memref<64x256xbf16, #tpu.memory_space<vmem>>, %arg13: memref<128x128xbf16, #tpu.memory_space<vmem>>, %arg14: memref<1x64x128xbf16, #tpu.memory_space<vmem>>) attributes {dimension_semantics = [#tpu.dimension_semantics<parallel>], iteration_bounds = array<i64: 2>, scalar_prefetch = 0 : i64, scratch_operands = 0 : i64, tpu.core_type = #tpu.core_type<tc>, window_params = [{transform_indices = @transform_0, window_bounds = array<i64: 1, 256, 128>}, {pipeline_mode = #tpu.pipeline_mode<synchronous>, transform_indices = @transform_1, window_bounds = array<i64: 9, 64, 256>}, {pipeline_mode = #tpu.pipeline_mode<synchronous>, transform_indices = @transform_2, window_bounds = array<i64: 128, 128>}, {pipeline_mode = #tpu.pipeline_mode<synchronous>, transform_indices = @transform_3, window_bounds = array<i64: 1, 128>}, {pipeline_mode = #tpu.pipeline_mode<synchronous>, transform_indices = @transform_4, window_bounds = array<i64: 1, 128>}, {pipeline_mode = #tpu.pipeline_mode<synchronous>, transform_indices = @transform_5, window_bounds = array<i64: 9, 1, 128>}, {pipeline_mode = #tpu.pipeline_mode<synchronous>, transform_indices = @transform_6, window_bounds = array<i64: 1, 128>}, {pipeline_mode = #tpu.pipeline_mode<synchronous>, transform_indices = @transform_7, window_bounds = array<i64: 1, 128>}, {pipeline_mode = #tpu.pipeline_mode<synchronous>, transform_indices = @transform_8, window_bounds = array<i64: 128, 128>}, {pipeline_mode = #tpu.pipeline_mode<synchronous>, transform_indices = @transform_9, window_bounds = array<i64: 1, 128>}, {pipeline_mode = #tpu.pipeline_mode<synchronous>, transform_indices = @transform_10, window_bounds = array<i64: 1, 128>}, {pipeline_mode = #tpu.pipeline_mode<synchronous>, transform_indices = @transform_11, window_bounds = array<i64: 64, 256>}, {pipeline_mode = #tpu.pipeline_mode<synchronous>, transform_indices = @transform_12, window_bounds = array<i64: 128, 128>}, {transform_indices = @transform_13, window_bounds = array<i64: 1, 64, 128>}]} {
    %c0 = arith.constant 0 : index
    %c0_0 = arith.constant 0 : index
    %c0_1 = arith.constant 0 : index
    %0 = vector.load %arg1[%c0, %c0_0, %c0_1] : memref<1x256x128xbf16, #tpu.memory_space<vmem>>, vector<1x256x128xbf16>
    %1 = vector.shape_cast %0 : vector<1x256x128xbf16> to vector<256x128xbf16>
    %c0_2 = arith.constant 0 : index
    %c0_3 = arith.constant 0 : index
    %2 = vector.load %arg3[%c0_2, %c0_3] : memref<128x128xbf16, #tpu.memory_space<vmem>>, vector<128x128xbf16>
    %cst = arith.constant dense<0.000000e+00> : vector<256x128xf32>
    %3 = tpu.matmul %1, %2, %cst {dimension_numbers = #tpu.dot_dimension_numbers<[1], [0], [0], [1], [0, 0, 1, 1], [], []>} : vector<256x128xbf16>, vector<128x128xbf16>, vector<256x128xf32> -> vector<256x128xf32>
    %c0_4 = arith.constant 0 : index
    %c0_5 = arith.constant 0 : index
    %4 = vector.load %arg4[%c0_4, %c0_5] : memref<1x128xf32, #tpu.memory_space<vmem>>, vector<1x128xf32>
    %5 = vector.broadcast %4 : vector<1x128xf32> to vector<256x128xf32>
    %6 = arith.mulf %3, %5 : vector<256x128xf32>
    %c0_6 = arith.constant 0 : index
    %c0_7 = arith.constant 0 : index
    %7 = vector.load %arg5[%c0_6, %c0_7] : memref<1x128xf32, #tpu.memory_space<vmem>>, vector<1x128xf32>
    %8 = vector.broadcast %7 : vector<1x128xf32> to vector<256x128xf32>
    %9 = arith.addf %6, %8 : vector<256x128xf32>
    %cst_8 = arith.constant 0.000000e+00 : f32
    %10 = vector.broadcast %cst_8 : f32 to vector<256x128xf32>
    %11 = arith.maximumf %9, %10 : vector<256x128xf32>
    %12 = arith.truncf %11 : vector<256x128xf32> to vector<256x128xbf16>
    %c0_9 = arith.constant 0 : index
    %c0_10 = arith.constant 0 : index
    %c0_11 = arith.constant 0 : index
    %13 = vector.load %arg2[%c0_9, %c0_10, %c0_11] : memref<9x64x256xbf16, #tpu.memory_space<vmem>>, vector<1x64x256xbf16>
    %14 = vector.shape_cast %13 : vector<1x64x256xbf16> to vector<64x256xbf16>
    %cst_12 = arith.constant dense<0.000000e+00> : vector<64x128xf32>
    %15 = tpu.matmul %14, %12, %cst_12 {dimension_numbers = #tpu.dot_dimension_numbers<[1], [0], [0], [1], [0, 0, 1, 1], [], []>} : vector<64x256xbf16>, vector<256x128xbf16>, vector<64x128xf32> -> vector<64x128xf32>
    %c0_13 = arith.constant 0 : index
    %c0_14 = arith.constant 0 : index
    %c0_15 = arith.constant 0 : index
    %16 = vector.load %arg6[%c0_13, %c0_14, %c0_15] : memref<9x1x128xf32, #tpu.memory_space<vmem>>, vector<1x1x128xf32>
    %17 = vector.shape_cast %16 : vector<1x1x128xf32> to vector<1x128xf32>
    %18 = vector.broadcast %17 : vector<1x128xf32> to vector<64x128xf32>
    %19 = arith.mulf %15, %18 : vector<64x128xf32>
    %c1 = arith.constant 1 : index
    %c0_16 = arith.constant 0 : index
    %c0_17 = arith.constant 0 : index
    %20 = vector.load %arg2[%c1, %c0_16, %c0_17] : memref<9x64x256xbf16, #tpu.memory_space<vmem>>, vector<1x64x256xbf16>
    %21 = vector.shape_cast %20 : vector<1x64x256xbf16> to vector<64x256xbf16>
    %cst_18 = arith.constant dense<0.000000e+00> : vector<64x128xf32>
    %22 = tpu.matmul %21, %12, %cst_18 {dimension_numbers = #tpu.dot_dimension_numbers<[1], [0], [0], [1], [0, 0, 1, 1], [], []>} : vector<64x256xbf16>, vector<256x128xbf16>, vector<64x128xf32> -> vector<64x128xf32>
    %c1_19 = arith.constant 1 : index
    %c0_20 = arith.constant 0 : index
    %c0_21 = arith.constant 0 : index
    %23 = vector.load %arg6[%c1_19, %c0_20, %c0_21] : memref<9x1x128xf32, #tpu.memory_space<vmem>>, vector<1x1x128xf32>
    %24 = vector.shape_cast %23 : vector<1x1x128xf32> to vector<1x128xf32>
    %25 = vector.broadcast %24 : vector<1x128xf32> to vector<64x128xf32>
    %26 = arith.mulf %22, %25 : vector<64x128xf32>
    %27 = arith.addf %19, %26 : vector<64x128xf32>
    %c2 = arith.constant 2 : index
    %c0_22 = arith.constant 0 : index
    %c0_23 = arith.constant 0 : index
    %28 = vector.load %arg2[%c2, %c0_22, %c0_23] : memref<9x64x256xbf16, #tpu.memory_space<vmem>>, vector<1x64x256xbf16>
    %29 = vector.shape_cast %28 : vector<1x64x256xbf16> to vector<64x256xbf16>
    %cst_24 = arith.constant dense<0.000000e+00> : vector<64x128xf32>
    %30 = tpu.matmul %29, %12, %cst_24 {dimension_numbers = #tpu.dot_dimension_numbers<[1], [0], [0], [1], [0, 0, 1, 1], [], []>} : vector<64x256xbf16>, vector<256x128xbf16>, vector<64x128xf32> -> vector<64x128xf32>
    %c2_25 = arith.constant 2 : index
    %c0_26 = arith.constant 0 : index
    %c0_27 = arith.constant 0 : index
    %31 = vector.load %arg6[%c2_25, %c0_26, %c0_27] : memref<9x1x128xf32, #tpu.memory_space<vmem>>, vector<1x1x128xf32>
    %32 = vector.shape_cast %31 : vector<1x1x128xf32> to vector<1x128xf32>
    %33 = vector.broadcast %32 : vector<1x128xf32> to vector<64x128xf32>
    %34 = arith.mulf %30, %33 : vector<64x128xf32>
    %35 = arith.addf %27, %34 : vector<64x128xf32>
    %c3 = arith.constant 3 : index
    %c0_28 = arith.constant 0 : index
    %c0_29 = arith.constant 0 : index
    %36 = vector.load %arg2[%c3, %c0_28, %c0_29] : memref<9x64x256xbf16, #tpu.memory_space<vmem>>, vector<1x64x256xbf16>
    %37 = vector.shape_cast %36 : vector<1x64x256xbf16> to vector<64x256xbf16>
    %cst_30 = arith.constant dense<0.000000e+00> : vector<64x128xf32>
    %38 = tpu.matmul %37, %12, %cst_30 {dimension_numbers = #tpu.dot_dimension_numbers<[1], [0], [0], [1], [0, 0, 1, 1], [], []>} : vector<64x256xbf16>, vector<256x128xbf16>, vector<64x128xf32> -> vector<64x128xf32>
    %c3_31 = arith.constant 3 : index
    %c0_32 = arith.constant 0 : index
    %c0_33 = arith.constant 0 : index
    %39 = vector.load %arg6[%c3_31, %c0_32, %c0_33] : memref<9x1x128xf32, #tpu.memory_space<vmem>>, vector<1x1x128xf32>
    %40 = vector.shape_cast %39 : vector<1x1x128xf32> to vector<1x128xf32>
    %41 = vector.broadcast %40 : vector<1x128xf32> to vector<64x128xf32>
    %42 = arith.mulf %38, %41 : vector<64x128xf32>
    %43 = arith.addf %35, %42 : vector<64x128xf32>
    %c4 = arith.constant 4 : index
    %c0_34 = arith.constant 0 : index
    %c0_35 = arith.constant 0 : index
    %44 = vector.load %arg2[%c4, %c0_34, %c0_35] : memref<9x64x256xbf16, #tpu.memory_space<vmem>>, vector<1x64x256xbf16>
    %45 = vector.shape_cast %44 : vector<1x64x256xbf16> to vector<64x256xbf16>
    %cst_36 = arith.constant dense<0.000000e+00> : vector<64x128xf32>
    %46 = tpu.matmul %45, %12, %cst_36 {dimension_numbers = #tpu.dot_dimension_numbers<[1], [0], [0], [1], [0, 0, 1, 1], [], []>} : vector<64x256xbf16>, vector<256x128xbf16>, vector<64x128xf32> -> vector<64x128xf32>
    %c4_37 = arith.constant 4 : index
    %c0_38 = arith.constant 0 : index
    %c0_39 = arith.constant 0 : index
    %47 = vector.load %arg6[%c4_37, %c0_38, %c0_39] : memref<9x1x128xf32, #tpu.memory_space<vmem>>, vector<1x1x128xf32>
    %48 = vector.shape_cast %47 : vector<1x1x128xf32> to vector<1x128xf32>
    %49 = vector.broadcast %48 : vector<1x128xf32> to vector<64x128xf32>
    %50 = arith.mulf %46, %49 : vector<64x128xf32>
    %51 = arith.addf %43, %50 : vector<64x128xf32>
    %c5 = arith.constant 5 : index
    %c0_40 = arith.constant 0 : index
    %c0_41 = arith.constant 0 : index
    %52 = vector.load %arg2[%c5, %c0_40, %c0_41] : memref<9x64x256xbf16, #tpu.memory_space<vmem>>, vector<1x64x256xbf16>
    %53 = vector.shape_cast %52 : vector<1x64x256xbf16> to vector<64x256xbf16>
    %cst_42 = arith.constant dense<0.000000e+00> : vector<64x128xf32>
    %54 = tpu.matmul %53, %12, %cst_42 {dimension_numbers = #tpu.dot_dimension_numbers<[1], [0], [0], [1], [0, 0, 1, 1], [], []>} : vector<64x256xbf16>, vector<256x128xbf16>, vector<64x128xf32> -> vector<64x128xf32>
    %c5_43 = arith.constant 5 : index
    %c0_44 = arith.constant 0 : index
    %c0_45 = arith.constant 0 : index
    %55 = vector.load %arg6[%c5_43, %c0_44, %c0_45] : memref<9x1x128xf32, #tpu.memory_space<vmem>>, vector<1x1x128xf32>
    %56 = vector.shape_cast %55 : vector<1x1x128xf32> to vector<1x128xf32>
    %57 = vector.broadcast %56 : vector<1x128xf32> to vector<64x128xf32>
    %58 = arith.mulf %54, %57 : vector<64x128xf32>
    %59 = arith.addf %51, %58 : vector<64x128xf32>
    %c6 = arith.constant 6 : index
    %c0_46 = arith.constant 0 : index
    %c0_47 = arith.constant 0 : index
    %60 = vector.load %arg2[%c6, %c0_46, %c0_47] : memref<9x64x256xbf16, #tpu.memory_space<vmem>>, vector<1x64x256xbf16>
    %61 = vector.shape_cast %60 : vector<1x64x256xbf16> to vector<64x256xbf16>
    %cst_48 = arith.constant dense<0.000000e+00> : vector<64x128xf32>
    %62 = tpu.matmul %61, %12, %cst_48 {dimension_numbers = #tpu.dot_dimension_numbers<[1], [0], [0], [1], [0, 0, 1, 1], [], []>} : vector<64x256xbf16>, vector<256x128xbf16>, vector<64x128xf32> -> vector<64x128xf32>
    %c6_49 = arith.constant 6 : index
    %c0_50 = arith.constant 0 : index
    %c0_51 = arith.constant 0 : index
    %63 = vector.load %arg6[%c6_49, %c0_50, %c0_51] : memref<9x1x128xf32, #tpu.memory_space<vmem>>, vector<1x1x128xf32>
    %64 = vector.shape_cast %63 : vector<1x1x128xf32> to vector<1x128xf32>
    %65 = vector.broadcast %64 : vector<1x128xf32> to vector<64x128xf32>
    %66 = arith.mulf %62, %65 : vector<64x128xf32>
    %67 = arith.addf %59, %66 : vector<64x128xf32>
    %c7 = arith.constant 7 : index
    %c0_52 = arith.constant 0 : index
    %c0_53 = arith.constant 0 : index
    %68 = vector.load %arg2[%c7, %c0_52, %c0_53] : memref<9x64x256xbf16, #tpu.memory_space<vmem>>, vector<1x64x256xbf16>
    %69 = vector.shape_cast %68 : vector<1x64x256xbf16> to vector<64x256xbf16>
    %cst_54 = arith.constant dense<0.000000e+00> : vector<64x128xf32>
    %70 = tpu.matmul %69, %12, %cst_54 {dimension_numbers = #tpu.dot_dimension_numbers<[1], [0], [0], [1], [0, 0, 1, 1], [], []>} : vector<64x256xbf16>, vector<256x128xbf16>, vector<64x128xf32> -> vector<64x128xf32>
    %c7_55 = arith.constant 7 : index
    %c0_56 = arith.constant 0 : index
    %c0_57 = arith.constant 0 : index
    %71 = vector.load %arg6[%c7_55, %c0_56, %c0_57] : memref<9x1x128xf32, #tpu.memory_space<vmem>>, vector<1x1x128xf32>
    %72 = vector.shape_cast %71 : vector<1x1x128xf32> to vector<1x128xf32>
    %73 = vector.broadcast %72 : vector<1x128xf32> to vector<64x128xf32>
    %74 = arith.mulf %70, %73 : vector<64x128xf32>
    %75 = arith.addf %67, %74 : vector<64x128xf32>
    %c8 = arith.constant 8 : index
    %c0_58 = arith.constant 0 : index
    %c0_59 = arith.constant 0 : index
    %76 = vector.load %arg2[%c8, %c0_58, %c0_59] : memref<9x64x256xbf16, #tpu.memory_space<vmem>>, vector<1x64x256xbf16>
    %77 = vector.shape_cast %76 : vector<1x64x256xbf16> to vector<64x256xbf16>
    %cst_60 = arith.constant dense<0.000000e+00> : vector<64x128xf32>
    %78 = tpu.matmul %77, %12, %cst_60 {dimension_numbers = #tpu.dot_dimension_numbers<[1], [0], [0], [1], [0, 0, 1, 1], [], []>} : vector<64x256xbf16>, vector<256x128xbf16>, vector<64x128xf32> -> vector<64x128xf32>
    %c8_61 = arith.constant 8 : index
    %c0_62 = arith.constant 0 : index
    %c0_63 = arith.constant 0 : index
    %79 = vector.load %arg6[%c8_61, %c0_62, %c0_63] : memref<9x1x128xf32, #tpu.memory_space<vmem>>, vector<1x1x128xf32>
    %80 = vector.shape_cast %79 : vector<1x1x128xf32> to vector<1x128xf32>
    %81 = vector.broadcast %80 : vector<1x128xf32> to vector<64x128xf32>
    %82 = arith.mulf %78, %81 : vector<64x128xf32>
    %83 = arith.addf %75, %82 : vector<64x128xf32>
    %c0_64 = arith.constant 0 : index
    %c0_65 = arith.constant 0 : index
    %84 = vector.load %arg7[%c0_64, %c0_65] : memref<1x128xf32, #tpu.memory_space<vmem>>, vector<1x128xf32>
    %85 = vector.broadcast %84 : vector<1x128xf32> to vector<64x128xf32>
    %86 = arith.mulf %83, %85 : vector<64x128xf32>
    %c0_66 = arith.constant 0 : index
    %c0_67 = arith.constant 0 : index
    %87 = vector.load %arg8[%c0_66, %c0_67] : memref<1x128xf32, #tpu.memory_space<vmem>>, vector<1x128xf32>
    %88 = vector.broadcast %87 : vector<1x128xf32> to vector<64x128xf32>
    %89 = arith.addf %86, %88 : vector<64x128xf32>
    %cst_68 = arith.constant 0.000000e+00 : f32
    %90 = vector.broadcast %cst_68 : f32 to vector<64x128xf32>
    %91 = arith.maximumf %89, %90 : vector<64x128xf32>
    %92 = arith.truncf %91 : vector<64x128xf32> to vector<64x128xbf16>
    %c0_69 = arith.constant 0 : index
    %c0_70 = arith.constant 0 : index
    %93 = vector.load %arg9[%c0_69, %c0_70] : memref<128x128xbf16, #tpu.memory_space<vmem>>, vector<128x128xbf16>
    %cst_71 = arith.constant dense<0.000000e+00> : vector<64x128xf32>
    %94 = tpu.matmul %92, %93, %cst_71 {dimension_numbers = #tpu.dot_dimension_numbers<[1], [0], [0], [1], [0, 0, 1, 1], [], []>} : vector<64x128xbf16>, vector<128x128xbf16>, vector<64x128xf32> -> vector<64x128xf32>
    %c0_72 = arith.constant 0 : index
    %c0_73 = arith.constant 0 : index
    %95 = vector.load %arg10[%c0_72, %c0_73] : memref<1x128xf32, #tpu.memory_space<vmem>>, vector<1x128xf32>
    %96 = vector.broadcast %95 : vector<1x128xf32> to vector<64x128xf32>
    %97 = arith.mulf %94, %96 : vector<64x128xf32>
    %c0_74 = arith.constant 0 : index
    %c0_75 = arith.constant 0 : index
    %98 = vector.load %arg11[%c0_74, %c0_75] : memref<1x128xf32, #tpu.memory_space<vmem>>, vector<1x128xf32>
    %99 = vector.broadcast %98 : vector<1x128xf32> to vector<64x128xf32>
    %100 = arith.addf %97, %99 : vector<64x128xf32>
    %c0_76 = arith.constant 0 : index
    %c0_77 = arith.constant 0 : index
    %101 = vector.load %arg12[%c0_76, %c0_77] : memref<64x256xbf16, #tpu.memory_space<vmem>>, vector<64x256xbf16>
    %cst_78 = arith.constant dense<0.000000e+00> : vector<64x128xf32>
    %102 = tpu.matmul %101, %1, %cst_78 {dimension_numbers = #tpu.dot_dimension_numbers<[1], [0], [0], [1], [0, 0, 1, 1], [], []>} : vector<64x256xbf16>, vector<256x128xbf16>, vector<64x128xf32> -> vector<64x128xf32>
    %cst_79 = arith.constant 0.111111112 : f32
    %103 = vector.broadcast %cst_79 : f32 to vector<64x128xf32>
    %104 = arith.mulf %102, %103 : vector<64x128xf32>
    %105 = arith.truncf %104 : vector<64x128xf32> to vector<64x128xbf16>
    %c0_80 = arith.constant 0 : index
    %c0_81 = arith.constant 0 : index
    %106 = vector.load %arg13[%c0_80, %c0_81] : memref<128x128xbf16, #tpu.memory_space<vmem>>, vector<128x128xbf16>
    %cst_82 = arith.constant dense<0.000000e+00> : vector<64x128xf32>
    %107 = tpu.matmul %105, %106, %cst_82 {dimension_numbers = #tpu.dot_dimension_numbers<[1], [0], [0], [1], [0, 0, 1, 1], [], []>} : vector<64x128xbf16>, vector<128x128xbf16>, vector<64x128xf32> -> vector<64x128xf32>
    %108 = arith.addf %100, %107 : vector<64x128xf32>
    %cst_83 = arith.constant 0.000000e+00 : f32
    %109 = vector.broadcast %cst_83 : f32 to vector<64x128xf32>
    %110 = arith.maximumf %108, %109 : vector<64x128xf32>
    %111 = arith.truncf %110 : vector<64x128xf32> to vector<64x128xbf16>
    %c0_84 = arith.constant 0 : index
    %c0_85 = arith.constant 0 : index
    %c0_86 = arith.constant 0 : index
    %112 = vector.load %arg14[%c0_84, %c0_85, %c0_86] : memref<1x64x128xbf16, #tpu.memory_space<vmem>>, vector<1x64x128xbf16>
    %113 = vector.shape_cast %112 : vector<1x64x128xbf16> to vector<64x128xbf16>
    %114 = vector.shape_cast %111 : vector<64x128xbf16> to vector<1x64x128xbf16>
    tpu.vector_store %arg14[%c0_84, %c0_85, %c0_86], %114 {strides = array<i32>} : memref<1x64x128xbf16, #tpu.memory_space<vmem>>, vector<1x64x128xbf16>,
    return
  }
  func.func @transform_0(%arg0: i32) -> (i32, i32, i32) {
    %c0_i32 = arith.constant 0 : i32
    %c0_i32_0 = arith.constant 0 : i32
    %c0_i32_1 = arith.constant 0 : i32
    return %arg0, %c0_i32, %c0_i32_0 : i32, i32, i32
  }
  func.func @transform_1(%arg0: i32) -> (i32, i32, i32) {
    %c0_i32 = arith.constant 0 : i32
    %c0_i32_0 = arith.constant 0 : i32
    %c0_i32_1 = arith.constant 0 : i32
    %c0_i32_2 = arith.constant 0 : i32
    return %c0_i32, %c0_i32_0, %c0_i32_1 : i32, i32, i32
  }
  func.func @transform_2(%arg0: i32) -> (i32, i32) {
    %c0_i32 = arith.constant 0 : i32
    %c0_i32_0 = arith.constant 0 : i32
    %c0_i32_1 = arith.constant 0 : i32
    return %c0_i32, %c0_i32_0 : i32, i32
  }
  func.func @transform_3(%arg0: i32) -> (i32, i32) {
    %c0_i32 = arith.constant 0 : i32
    %c0_i32_0 = arith.constant 0 : i32
    %c0_i32_1 = arith.constant 0 : i32
    return %c0_i32, %c0_i32_0 : i32, i32
  }
  func.func @transform_4(%arg0: i32) -> (i32, i32) {
    %c0_i32 = arith.constant 0 : i32
    %c0_i32_0 = arith.constant 0 : i32
    %c0_i32_1 = arith.constant 0 : i32
    return %c0_i32, %c0_i32_0 : i32, i32
  }
  func.func @transform_5(%arg0: i32) -> (i32, i32, i32) {
    %c0_i32 = arith.constant 0 : i32
    %c0_i32_0 = arith.constant 0 : i32
    %c0_i32_1 = arith.constant 0 : i32
    %c0_i32_2 = arith.constant 0 : i32
    return %c0_i32, %c0_i32_0, %c0_i32_1 : i32, i32, i32
  }
  func.func @transform_6(%arg0: i32) -> (i32, i32) {
    %c0_i32 = arith.constant 0 : i32
    %c0_i32_0 = arith.constant 0 : i32
    %c0_i32_1 = arith.constant 0 : i32
    return %c0_i32, %c0_i32_0 : i32, i32
  }
  func.func @transform_7(%arg0: i32) -> (i32, i32) {
    %c0_i32 = arith.constant 0 : i32
    %c0_i32_0 = arith.constant 0 : i32
    %c0_i32_1 = arith.constant 0 : i32
    return %c0_i32, %c0_i32_0 : i32, i32
  }
  func.func @transform_8(%arg0: i32) -> (i32, i32) {
    %c0_i32 = arith.constant 0 : i32
    %c0_i32_0 = arith.constant 0 : i32
    %c0_i32_1 = arith.constant 0 : i32
    return %c0_i32, %c0_i32_0 : i32, i32
  }
  func.func @transform_9(%arg0: i32) -> (i32, i32) {
    %c0_i32 = arith.constant 0 : i32
    %c0_i32_0 = arith.constant 0 : i32
    %c0_i32_1 = arith.constant 0 : i32
    return %c0_i32, %c0_i32_0 : i32, i32
  }
  func.func @transform_10(%arg0: i32) -> (i32, i32) {
    %c0_i32 = arith.constant 0 : i32
    %c0_i32_0 = arith.constant 0 : i32
    %c0_i32_1 = arith.constant 0 : i32
    return %c0_i32, %c0_i32_0 : i32, i32
  }
  func.func @transform_11(%arg0: i32) -> (i32, i32) {
    %c0_i32 = arith.constant 0 : i32
    %c0_i32_0 = arith.constant 0 : i32
    %c0_i32_1 = arith.constant 0 : i32
    return %c0_i32, %c0_i32_0 : i32, i32
  }
  func.func @transform_12(%arg0: i32) -> (i32, i32) {
    %c0_i32 = arith.constant 0 : i32
    %c0_i32_0 = arith.constant 0 : i32
    %c0_i32_1 = arith.constant 0 : i32
    return %c0_i32, %c0_i32_0 : i32, i32
  }
  func.func @transform_13(%arg0: i32) -> (i32, i32, i32) {
    %c0_i32 = arith.constant 0 : i32
    %c0_i32_0 = arith.constant 0 : i32
    %c0_i32_1 = arith.constant 0 : i32
    return %arg0, %c0_i32, %c0_i32_0 : i32, i32, i32
  }
}

module attributes {stable_mosaic.version = 11 : i64} {
  func.func @_bottleneck_kernel(%arg0: i32, %arg1: memref<1x16x128xbf16, #tpu.memory_space<vmem>>, %arg2: memref<9x16x16xbf16, #tpu.memory_space<vmem>>, %arg3: memref<128x128xbf16, #tpu.memory_space<vmem>>, %arg4: memref<1x128xf32, #tpu.memory_space<vmem>>, %arg5: memref<1x128xf32, #tpu.memory_space<vmem>>, %arg6: memref<9x1x128xf32, #tpu.memory_space<vmem>>, %arg7: memref<1x128xf32, #tpu.memory_space<vmem>>, %arg8: memref<1x128xf32, #tpu.memory_space<vmem>>, %arg9: memref<128x128xbf16, #tpu.memory_space<vmem>>, %arg10: memref<1x128xf32, #tpu.memory_space<vmem>>, %arg11: memref<1x128xf32, #tpu.memory_space<vmem>>, %arg12: memref<1x16x128xbf16, #tpu.memory_space<vmem>>) attributes {dimension_semantics = [#tpu.dimension_semantics<parallel>], iteration_bounds = array<i64: 2>, scalar_prefetch = 0 : i64, scratch_operands = 0 : i64, tpu.core_type = #tpu.core_type<tc>, window_params = [{transform_indices = @transform_0, window_bounds = array<i64: 1, 16, 128>}, {pipeline_mode = #tpu.pipeline_mode<synchronous>, transform_indices = @transform_1, window_bounds = array<i64: 9, 16, 16>}, {pipeline_mode = #tpu.pipeline_mode<synchronous>, transform_indices = @transform_2, window_bounds = array<i64: 128, 128>}, {pipeline_mode = #tpu.pipeline_mode<synchronous>, transform_indices = @transform_3, window_bounds = array<i64: 1, 128>}, {pipeline_mode = #tpu.pipeline_mode<synchronous>, transform_indices = @transform_4, window_bounds = array<i64: 1, 128>}, {pipeline_mode = #tpu.pipeline_mode<synchronous>, transform_indices = @transform_5, window_bounds = array<i64: 9, 1, 128>}, {pipeline_mode = #tpu.pipeline_mode<synchronous>, transform_indices = @transform_6, window_bounds = array<i64: 1, 128>}, {pipeline_mode = #tpu.pipeline_mode<synchronous>, transform_indices = @transform_7, window_bounds = array<i64: 1, 128>}, {pipeline_mode = #tpu.pipeline_mode<synchronous>, transform_indices = @transform_8, window_bounds = array<i64: 128, 128>}, {pipeline_mode = #tpu.pipeline_mode<synchronous>, transform_indices = @transform_9, window_bounds = array<i64: 1, 128>}, {pipeline_mode = #tpu.pipeline_mode<synchronous>, transform_indices = @transform_10, window_bounds = array<i64: 1, 128>}, {transform_indices = @transform_11, window_bounds = array<i64: 1, 16, 128>}]} {
    %c0 = arith.constant 0 : index
    %c0_0 = arith.constant 0 : index
    %c0_1 = arith.constant 0 : index
    %0 = vector.load %arg1[%c0, %c0_0, %c0_1] : memref<1x16x128xbf16, #tpu.memory_space<vmem>>, vector<1x16x128xbf16>
    %1 = vector.shape_cast %0 : vector<1x16x128xbf16> to vector<16x128xbf16>
    %c0_2 = arith.constant 0 : index
    %c0_3 = arith.constant 0 : index
    %2 = vector.load %arg3[%c0_2, %c0_3] : memref<128x128xbf16, #tpu.memory_space<vmem>>, vector<128x128xbf16>
    %cst = arith.constant dense<0.000000e+00> : vector<16x128xf32>
    %3 = tpu.matmul %1, %2, %cst {dimension_numbers = #tpu.dot_dimension_numbers<[1], [0], [0], [1], [0, 0, 1, 1], [], []>} : vector<16x128xbf16>, vector<128x128xbf16>, vector<16x128xf32> -> vector<16x128xf32>
    %c0_4 = arith.constant 0 : index
    %c0_5 = arith.constant 0 : index
    %4 = vector.load %arg4[%c0_4, %c0_5] : memref<1x128xf32, #tpu.memory_space<vmem>>, vector<1x128xf32>
    %5 = vector.broadcast %4 : vector<1x128xf32> to vector<16x128xf32>
    %6 = arith.mulf %3, %5 : vector<16x128xf32>
    %c0_6 = arith.constant 0 : index
    %c0_7 = arith.constant 0 : index
    %7 = vector.load %arg5[%c0_6, %c0_7] : memref<1x128xf32, #tpu.memory_space<vmem>>, vector<1x128xf32>
    %8 = vector.broadcast %7 : vector<1x128xf32> to vector<16x128xf32>
    %9 = arith.addf %6, %8 : vector<16x128xf32>
    %cst_8 = arith.constant 0.000000e+00 : f32
    %10 = vector.broadcast %cst_8 : f32 to vector<16x128xf32>
    %11 = arith.maximumf %9, %10 : vector<16x128xf32>
    %12 = arith.truncf %11 : vector<16x128xf32> to vector<16x128xbf16>
    %c0_9 = arith.constant 0 : index
    %c0_10 = arith.constant 0 : index
    %c0_11 = arith.constant 0 : index
    %13 = vector.load %arg2[%c0_9, %c0_10, %c0_11] : memref<9x16x16xbf16, #tpu.memory_space<vmem>>, vector<1x16x16xbf16>
    %14 = vector.shape_cast %13 : vector<1x16x16xbf16> to vector<16x16xbf16>
    %cst_12 = arith.constant dense<0.000000e+00> : vector<16x128xf32>
    %15 = tpu.matmul %14, %12, %cst_12 {dimension_numbers = #tpu.dot_dimension_numbers<[1], [0], [0], [1], [0, 0, 1, 1], [], []>} : vector<16x16xbf16>, vector<16x128xbf16>, vector<16x128xf32> -> vector<16x128xf32>
    %c0_13 = arith.constant 0 : index
    %c0_14 = arith.constant 0 : index
    %c0_15 = arith.constant 0 : index
    %16 = vector.load %arg6[%c0_13, %c0_14, %c0_15] : memref<9x1x128xf32, #tpu.memory_space<vmem>>, vector<1x1x128xf32>
    %17 = vector.shape_cast %16 : vector<1x1x128xf32> to vector<1x128xf32>
    %18 = vector.broadcast %17 : vector<1x128xf32> to vector<16x128xf32>
    %19 = arith.mulf %15, %18 : vector<16x128xf32>
    %c1 = arith.constant 1 : index
    %c0_16 = arith.constant 0 : index
    %c0_17 = arith.constant 0 : index
    %20 = vector.load %arg2[%c1, %c0_16, %c0_17] : memref<9x16x16xbf16, #tpu.memory_space<vmem>>, vector<1x16x16xbf16>
    %21 = vector.shape_cast %20 : vector<1x16x16xbf16> to vector<16x16xbf16>
    %cst_18 = arith.constant dense<0.000000e+00> : vector<16x128xf32>
    %22 = tpu.matmul %21, %12, %cst_18 {dimension_numbers = #tpu.dot_dimension_numbers<[1], [0], [0], [1], [0, 0, 1, 1], [], []>} : vector<16x16xbf16>, vector<16x128xbf16>, vector<16x128xf32> -> vector<16x128xf32>
    %c1_19 = arith.constant 1 : index
    %c0_20 = arith.constant 0 : index
    %c0_21 = arith.constant 0 : index
    %23 = vector.load %arg6[%c1_19, %c0_20, %c0_21] : memref<9x1x128xf32, #tpu.memory_space<vmem>>, vector<1x1x128xf32>
    %24 = vector.shape_cast %23 : vector<1x1x128xf32> to vector<1x128xf32>
    %25 = vector.broadcast %24 : vector<1x128xf32> to vector<16x128xf32>
    %26 = arith.mulf %22, %25 : vector<16x128xf32>
    %27 = arith.addf %19, %26 : vector<16x128xf32>
    %c2 = arith.constant 2 : index
    %c0_22 = arith.constant 0 : index
    %c0_23 = arith.constant 0 : index
    %28 = vector.load %arg2[%c2, %c0_22, %c0_23] : memref<9x16x16xbf16, #tpu.memory_space<vmem>>, vector<1x16x16xbf16>
    %29 = vector.shape_cast %28 : vector<1x16x16xbf16> to vector<16x16xbf16>
    %cst_24 = arith.constant dense<0.000000e+00> : vector<16x128xf32>
    %30 = tpu.matmul %29, %12, %cst_24 {dimension_numbers = #tpu.dot_dimension_numbers<[1], [0], [0], [1], [0, 0, 1, 1], [], []>} : vector<16x16xbf16>, vector<16x128xbf16>, vector<16x128xf32> -> vector<16x128xf32>
    %c2_25 = arith.constant 2 : index
    %c0_26 = arith.constant 0 : index
    %c0_27 = arith.constant 0 : index
    %31 = vector.load %arg6[%c2_25, %c0_26, %c0_27] : memref<9x1x128xf32, #tpu.memory_space<vmem>>, vector<1x1x128xf32>
    %32 = vector.shape_cast %31 : vector<1x1x128xf32> to vector<1x128xf32>
    %33 = vector.broadcast %32 : vector<1x128xf32> to vector<16x128xf32>
    %34 = arith.mulf %30, %33 : vector<16x128xf32>
    %35 = arith.addf %27, %34 : vector<16x128xf32>
    %c3 = arith.constant 3 : index
    %c0_28 = arith.constant 0 : index
    %c0_29 = arith.constant 0 : index
    %36 = vector.load %arg2[%c3, %c0_28, %c0_29] : memref<9x16x16xbf16, #tpu.memory_space<vmem>>, vector<1x16x16xbf16>
    %37 = vector.shape_cast %36 : vector<1x16x16xbf16> to vector<16x16xbf16>
    %cst_30 = arith.constant dense<0.000000e+00> : vector<16x128xf32>
    %38 = tpu.matmul %37, %12, %cst_30 {dimension_numbers = #tpu.dot_dimension_numbers<[1], [0], [0], [1], [0, 0, 1, 1], [], []>} : vector<16x16xbf16>, vector<16x128xbf16>, vector<16x128xf32> -> vector<16x128xf32>
    %c3_31 = arith.constant 3 : index
    %c0_32 = arith.constant 0 : index
    %c0_33 = arith.constant 0 : index
    %39 = vector.load %arg6[%c3_31, %c0_32, %c0_33] : memref<9x1x128xf32, #tpu.memory_space<vmem>>, vector<1x1x128xf32>
    %40 = vector.shape_cast %39 : vector<1x1x128xf32> to vector<1x128xf32>
    %41 = vector.broadcast %40 : vector<1x128xf32> to vector<16x128xf32>
    %42 = arith.mulf %38, %41 : vector<16x128xf32>
    %43 = arith.addf %35, %42 : vector<16x128xf32>
    %c4 = arith.constant 4 : index
    %c0_34 = arith.constant 0 : index
    %c0_35 = arith.constant 0 : index
    %44 = vector.load %arg2[%c4, %c0_34, %c0_35] : memref<9x16x16xbf16, #tpu.memory_space<vmem>>, vector<1x16x16xbf16>
    %45 = vector.shape_cast %44 : vector<1x16x16xbf16> to vector<16x16xbf16>
    %cst_36 = arith.constant dense<0.000000e+00> : vector<16x128xf32>
    %46 = tpu.matmul %45, %12, %cst_36 {dimension_numbers = #tpu.dot_dimension_numbers<[1], [0], [0], [1], [0, 0, 1, 1], [], []>} : vector<16x16xbf16>, vector<16x128xbf16>, vector<16x128xf32> -> vector<16x128xf32>
    %c4_37 = arith.constant 4 : index
    %c0_38 = arith.constant 0 : index
    %c0_39 = arith.constant 0 : index
    %47 = vector.load %arg6[%c4_37, %c0_38, %c0_39] : memref<9x1x128xf32, #tpu.memory_space<vmem>>, vector<1x1x128xf32>
    %48 = vector.shape_cast %47 : vector<1x1x128xf32> to vector<1x128xf32>
    %49 = vector.broadcast %48 : vector<1x128xf32> to vector<16x128xf32>
    %50 = arith.mulf %46, %49 : vector<16x128xf32>
    %51 = arith.addf %43, %50 : vector<16x128xf32>
    %c5 = arith.constant 5 : index
    %c0_40 = arith.constant 0 : index
    %c0_41 = arith.constant 0 : index
    %52 = vector.load %arg2[%c5, %c0_40, %c0_41] : memref<9x16x16xbf16, #tpu.memory_space<vmem>>, vector<1x16x16xbf16>
    %53 = vector.shape_cast %52 : vector<1x16x16xbf16> to vector<16x16xbf16>
    %cst_42 = arith.constant dense<0.000000e+00> : vector<16x128xf32>
    %54 = tpu.matmul %53, %12, %cst_42 {dimension_numbers = #tpu.dot_dimension_numbers<[1], [0], [0], [1], [0, 0, 1, 1], [], []>} : vector<16x16xbf16>, vector<16x128xbf16>, vector<16x128xf32> -> vector<16x128xf32>
    %c5_43 = arith.constant 5 : index
    %c0_44 = arith.constant 0 : index
    %c0_45 = arith.constant 0 : index
    %55 = vector.load %arg6[%c5_43, %c0_44, %c0_45] : memref<9x1x128xf32, #tpu.memory_space<vmem>>, vector<1x1x128xf32>
    %56 = vector.shape_cast %55 : vector<1x1x128xf32> to vector<1x128xf32>
    %57 = vector.broadcast %56 : vector<1x128xf32> to vector<16x128xf32>
    %58 = arith.mulf %54, %57 : vector<16x128xf32>
    %59 = arith.addf %51, %58 : vector<16x128xf32>
    %c6 = arith.constant 6 : index
    %c0_46 = arith.constant 0 : index
    %c0_47 = arith.constant 0 : index
    %60 = vector.load %arg2[%c6, %c0_46, %c0_47] : memref<9x16x16xbf16, #tpu.memory_space<vmem>>, vector<1x16x16xbf16>
    %61 = vector.shape_cast %60 : vector<1x16x16xbf16> to vector<16x16xbf16>
    %cst_48 = arith.constant dense<0.000000e+00> : vector<16x128xf32>
    %62 = tpu.matmul %61, %12, %cst_48 {dimension_numbers = #tpu.dot_dimension_numbers<[1], [0], [0], [1], [0, 0, 1, 1], [], []>} : vector<16x16xbf16>, vector<16x128xbf16>, vector<16x128xf32> -> vector<16x128xf32>
    %c6_49 = arith.constant 6 : index
    %c0_50 = arith.constant 0 : index
    %c0_51 = arith.constant 0 : index
    %63 = vector.load %arg6[%c6_49, %c0_50, %c0_51] : memref<9x1x128xf32, #tpu.memory_space<vmem>>, vector<1x1x128xf32>
    %64 = vector.shape_cast %63 : vector<1x1x128xf32> to vector<1x128xf32>
    %65 = vector.broadcast %64 : vector<1x128xf32> to vector<16x128xf32>
    %66 = arith.mulf %62, %65 : vector<16x128xf32>
    %67 = arith.addf %59, %66 : vector<16x128xf32>
    %c7 = arith.constant 7 : index
    %c0_52 = arith.constant 0 : index
    %c0_53 = arith.constant 0 : index
    %68 = vector.load %arg2[%c7, %c0_52, %c0_53] : memref<9x16x16xbf16, #tpu.memory_space<vmem>>, vector<1x16x16xbf16>
    %69 = vector.shape_cast %68 : vector<1x16x16xbf16> to vector<16x16xbf16>
    %cst_54 = arith.constant dense<0.000000e+00> : vector<16x128xf32>
    %70 = tpu.matmul %69, %12, %cst_54 {dimension_numbers = #tpu.dot_dimension_numbers<[1], [0], [0], [1], [0, 0, 1, 1], [], []>} : vector<16x16xbf16>, vector<16x128xbf16>, vector<16x128xf32> -> vector<16x128xf32>
    %c7_55 = arith.constant 7 : index
    %c0_56 = arith.constant 0 : index
    %c0_57 = arith.constant 0 : index
    %71 = vector.load %arg6[%c7_55, %c0_56, %c0_57] : memref<9x1x128xf32, #tpu.memory_space<vmem>>, vector<1x1x128xf32>
    %72 = vector.shape_cast %71 : vector<1x1x128xf32> to vector<1x128xf32>
    %73 = vector.broadcast %72 : vector<1x128xf32> to vector<16x128xf32>
    %74 = arith.mulf %70, %73 : vector<16x128xf32>
    %75 = arith.addf %67, %74 : vector<16x128xf32>
    %c8 = arith.constant 8 : index
    %c0_58 = arith.constant 0 : index
    %c0_59 = arith.constant 0 : index
    %76 = vector.load %arg2[%c8, %c0_58, %c0_59] : memref<9x16x16xbf16, #tpu.memory_space<vmem>>, vector<1x16x16xbf16>
    %77 = vector.shape_cast %76 : vector<1x16x16xbf16> to vector<16x16xbf16>
    %cst_60 = arith.constant dense<0.000000e+00> : vector<16x128xf32>
    %78 = tpu.matmul %77, %12, %cst_60 {dimension_numbers = #tpu.dot_dimension_numbers<[1], [0], [0], [1], [0, 0, 1, 1], [], []>} : vector<16x16xbf16>, vector<16x128xbf16>, vector<16x128xf32> -> vector<16x128xf32>
    %c8_61 = arith.constant 8 : index
    %c0_62 = arith.constant 0 : index
    %c0_63 = arith.constant 0 : index
    %79 = vector.load %arg6[%c8_61, %c0_62, %c0_63] : memref<9x1x128xf32, #tpu.memory_space<vmem>>, vector<1x1x128xf32>
    %80 = vector.shape_cast %79 : vector<1x1x128xf32> to vector<1x128xf32>
    %81 = vector.broadcast %80 : vector<1x128xf32> to vector<16x128xf32>
    %82 = arith.mulf %78, %81 : vector<16x128xf32>
    %83 = arith.addf %75, %82 : vector<16x128xf32>
    %c0_64 = arith.constant 0 : index
    %c0_65 = arith.constant 0 : index
    %84 = vector.load %arg7[%c0_64, %c0_65] : memref<1x128xf32, #tpu.memory_space<vmem>>, vector<1x128xf32>
    %85 = vector.broadcast %84 : vector<1x128xf32> to vector<16x128xf32>
    %86 = arith.mulf %83, %85 : vector<16x128xf32>
    %c0_66 = arith.constant 0 : index
    %c0_67 = arith.constant 0 : index
    %87 = vector.load %arg8[%c0_66, %c0_67] : memref<1x128xf32, #tpu.memory_space<vmem>>, vector<1x128xf32>
    %88 = vector.broadcast %87 : vector<1x128xf32> to vector<16x128xf32>
    %89 = arith.addf %86, %88 : vector<16x128xf32>
    %cst_68 = arith.constant 0.000000e+00 : f32
    %90 = vector.broadcast %cst_68 : f32 to vector<16x128xf32>
    %91 = arith.maximumf %89, %90 : vector<16x128xf32>
    %92 = arith.truncf %91 : vector<16x128xf32> to vector<16x128xbf16>
    %c0_69 = arith.constant 0 : index
    %c0_70 = arith.constant 0 : index
    %93 = vector.load %arg9[%c0_69, %c0_70] : memref<128x128xbf16, #tpu.memory_space<vmem>>, vector<128x128xbf16>
    %cst_71 = arith.constant dense<0.000000e+00> : vector<16x128xf32>
    %94 = tpu.matmul %92, %93, %cst_71 {dimension_numbers = #tpu.dot_dimension_numbers<[1], [0], [0], [1], [0, 0, 1, 1], [], []>} : vector<16x128xbf16>, vector<128x128xbf16>, vector<16x128xf32> -> vector<16x128xf32>
    %c0_72 = arith.constant 0 : index
    %c0_73 = arith.constant 0 : index
    %95 = vector.load %arg10[%c0_72, %c0_73] : memref<1x128xf32, #tpu.memory_space<vmem>>, vector<1x128xf32>
    %96 = vector.broadcast %95 : vector<1x128xf32> to vector<16x128xf32>
    %97 = arith.mulf %94, %96 : vector<16x128xf32>
    %c0_74 = arith.constant 0 : index
    %c0_75 = arith.constant 0 : index
    %98 = vector.load %arg11[%c0_74, %c0_75] : memref<1x128xf32, #tpu.memory_space<vmem>>, vector<1x128xf32>
    %99 = vector.broadcast %98 : vector<1x128xf32> to vector<16x128xf32>
    %100 = arith.addf %97, %99 : vector<16x128xf32>
    %101 = arith.extf %1 : vector<16x128xbf16> to vector<16x128xf32>
    %102 = arith.addf %100, %101 : vector<16x128xf32>
    %cst_76 = arith.constant 0.000000e+00 : f32
    %103 = vector.broadcast %cst_76 : f32 to vector<16x128xf32>
    %104 = arith.maximumf %102, %103 : vector<16x128xf32>
    %105 = arith.truncf %104 : vector<16x128xf32> to vector<16x128xbf16>
    %c0_77 = arith.constant 0 : index
    %c0_78 = arith.constant 0 : index
    %c0_79 = arith.constant 0 : index
    %106 = vector.load %arg12[%c0_77, %c0_78, %c0_79] : memref<1x16x128xbf16, #tpu.memory_space<vmem>>, vector<1x16x128xbf16>
    %107 = vector.shape_cast %106 : vector<1x16x128xbf16> to vector<16x128xbf16>
    %108 = vector.shape_cast %105 : vector<16x128xbf16> to vector<1x16x128xbf16>
    tpu.vector_store %arg12[%c0_77, %c0_78, %c0_79], %108 {strides = array<i32>} : memref<1x16x128xbf16, #tpu.memory_space<vmem>>, vector<1x16x128xbf16>,
    return
  }
  func.func @transform_0(%arg0: i32) -> (i32, i32, i32) {
    %c0_i32 = arith.constant 0 : i32
    %c0_i32_0 = arith.constant 0 : i32
    %c0_i32_1 = arith.constant 0 : i32
    return %arg0, %c0_i32, %c0_i32_0 : i32, i32, i32
  }
  func.func @transform_1(%arg0: i32) -> (i32, i32, i32) {
    %c0_i32 = arith.constant 0 : i32
    %c0_i32_0 = arith.constant 0 : i32
    %c0_i32_1 = arith.constant 0 : i32
    %c0_i32_2 = arith.constant 0 : i32
    return %c0_i32, %c0_i32_0, %c0_i32_1 : i32, i32, i32
  }
  func.func @transform_2(%arg0: i32) -> (i32, i32) {
    %c0_i32 = arith.constant 0 : i32
    %c0_i32_0 = arith.constant 0 : i32
    %c0_i32_1 = arith.constant 0 : i32
    return %c0_i32, %c0_i32_0 : i32, i32
  }
  func.func @transform_3(%arg0: i32) -> (i32, i32) {
    %c0_i32 = arith.constant 0 : i32
    %c0_i32_0 = arith.constant 0 : i32
    %c0_i32_1 = arith.constant 0 : i32
    return %c0_i32, %c0_i32_0 : i32, i32
  }
  func.func @transform_4(%arg0: i32) -> (i32, i32) {
    %c0_i32 = arith.constant 0 : i32
    %c0_i32_0 = arith.constant 0 : i32
    %c0_i32_1 = arith.constant 0 : i32
    return %c0_i32, %c0_i32_0 : i32, i32
  }
  func.func @transform_5(%arg0: i32) -> (i32, i32, i32) {
    %c0_i32 = arith.constant 0 : i32
    %c0_i32_0 = arith.constant 0 : i32
    %c0_i32_1 = arith.constant 0 : i32
    %c0_i32_2 = arith.constant 0 : i32
    return %c0_i32, %c0_i32_0, %c0_i32_1 : i32, i32, i32
  }
  func.func @transform_6(%arg0: i32) -> (i32, i32) {
    %c0_i32 = arith.constant 0 : i32
    %c0_i32_0 = arith.constant 0 : i32
    %c0_i32_1 = arith.constant 0 : i32
    return %c0_i32, %c0_i32_0 : i32, i32
  }
  func.func @transform_7(%arg0: i32) -> (i32, i32) {
    %c0_i32 = arith.constant 0 : i32
    %c0_i32_0 = arith.constant 0 : i32
    %c0_i32_1 = arith.constant 0 : i32
    return %c0_i32, %c0_i32_0 : i32, i32
  }
  func.func @transform_8(%arg0: i32) -> (i32, i32) {
    %c0_i32 = arith.constant 0 : i32
    %c0_i32_0 = arith.constant 0 : i32
    %c0_i32_1 = arith.constant 0 : i32
    return %c0_i32, %c0_i32_0 : i32, i32
  }
  func.func @transform_9(%arg0: i32) -> (i32, i32) {
    %c0_i32 = arith.constant 0 : i32
    %c0_i32_0 = arith.constant 0 : i32
    %c0_i32_1 = arith.constant 0 : i32
    return %c0_i32, %c0_i32_0 : i32, i32
  }
  func.func @transform_10(%arg0: i32) -> (i32, i32) {
    %c0_i32 = arith.constant 0 : i32
    %c0_i32_0 = arith.constant 0 : i32
    %c0_i32_1 = arith.constant 0 : i32
    return %c0_i32, %c0_i32_0 : i32, i32
  }
  func.func @transform_11(%arg0: i32) -> (i32, i32, i32) {
    %c0_i32 = arith.constant 0 : i32
    %c0_i32_0 = arith.constant 0 : i32
    %c0_i32_1 = arith.constant 0 : i32
    return %arg0, %c0_i32, %c0_i32_0 : i32, i32, i32
  }
}

module attributes {stable_mosaic.version = 11 : i64} {
  func.func @_bottleneck_kernel(%arg0: i32, %arg1: memref<1x64x128xbf16, #tpu.memory_space<vmem>>, %arg2: memref<9x16x64xbf16, #tpu.memory_space<vmem>>, %arg3: memref<128x128xbf16, #tpu.memory_space<vmem>>, %arg4: memref<1x128xf32, #tpu.memory_space<vmem>>, %arg5: memref<1x128xf32, #tpu.memory_space<vmem>>, %arg6: memref<9x1x128xf32, #tpu.memory_space<vmem>>, %arg7: memref<1x128xf32, #tpu.memory_space<vmem>>, %arg8: memref<1x128xf32, #tpu.memory_space<vmem>>, %arg9: memref<128x128xbf16, #tpu.memory_space<vmem>>, %arg10: memref<1x128xf32, #tpu.memory_space<vmem>>, %arg11: memref<1x128xf32, #tpu.memory_space<vmem>>, %arg12: memref<16x64xbf16, #tpu.memory_space<vmem>>, %arg13: memref<128x128xbf16, #tpu.memory_space<vmem>>, %arg14: memref<1x16x128xbf16, #tpu.memory_space<vmem>>) attributes {dimension_semantics = [#tpu.dimension_semantics<parallel>], iteration_bounds = array<i64: 2>, scalar_prefetch = 0 : i64, scratch_operands = 0 : i64, tpu.core_type = #tpu.core_type<tc>, window_params = [{transform_indices = @transform_0, window_bounds = array<i64: 1, 64, 128>}, {pipeline_mode = #tpu.pipeline_mode<synchronous>, transform_indices = @transform_1, window_bounds = array<i64: 9, 16, 64>}, {pipeline_mode = #tpu.pipeline_mode<synchronous>, transform_indices = @transform_2, window_bounds = array<i64: 128, 128>}, {pipeline_mode = #tpu.pipeline_mode<synchronous>, transform_indices = @transform_3, window_bounds = array<i64: 1, 128>}, {pipeline_mode = #tpu.pipeline_mode<synchronous>, transform_indices = @transform_4, window_bounds = array<i64: 1, 128>}, {pipeline_mode = #tpu.pipeline_mode<synchronous>, transform_indices = @transform_5, window_bounds = array<i64: 9, 1, 128>}, {pipeline_mode = #tpu.pipeline_mode<synchronous>, transform_indices = @transform_6, window_bounds = array<i64: 1, 128>}, {pipeline_mode = #tpu.pipeline_mode<synchronous>, transform_indices = @transform_7, window_bounds = array<i64: 1, 128>}, {pipeline_mode = #tpu.pipeline_mode<synchronous>, transform_indices = @transform_8, window_bounds = array<i64: 128, 128>}, {pipeline_mode = #tpu.pipeline_mode<synchronous>, transform_indices = @transform_9, window_bounds = array<i64: 1, 128>}, {pipeline_mode = #tpu.pipeline_mode<synchronous>, transform_indices = @transform_10, window_bounds = array<i64: 1, 128>}, {pipeline_mode = #tpu.pipeline_mode<synchronous>, transform_indices = @transform_11, window_bounds = array<i64: 16, 64>}, {pipeline_mode = #tpu.pipeline_mode<synchronous>, transform_indices = @transform_12, window_bounds = array<i64: 128, 128>}, {transform_indices = @transform_13, window_bounds = array<i64: 1, 16, 128>}]} {
    %c0 = arith.constant 0 : index
    %c0_0 = arith.constant 0 : index
    %c0_1 = arith.constant 0 : index
    %0 = vector.load %arg1[%c0, %c0_0, %c0_1] : memref<1x64x128xbf16, #tpu.memory_space<vmem>>, vector<1x64x128xbf16>
    %1 = vector.shape_cast %0 : vector<1x64x128xbf16> to vector<64x128xbf16>
    %c0_2 = arith.constant 0 : index
    %c0_3 = arith.constant 0 : index
    %2 = vector.load %arg3[%c0_2, %c0_3] : memref<128x128xbf16, #tpu.memory_space<vmem>>, vector<128x128xbf16>
    %cst = arith.constant dense<0.000000e+00> : vector<64x128xf32>
    %3 = tpu.matmul %1, %2, %cst {dimension_numbers = #tpu.dot_dimension_numbers<[1], [0], [0], [1], [0, 0, 1, 1], [], []>} : vector<64x128xbf16>, vector<128x128xbf16>, vector<64x128xf32> -> vector<64x128xf32>
    %c0_4 = arith.constant 0 : index
    %c0_5 = arith.constant 0 : index
    %4 = vector.load %arg4[%c0_4, %c0_5] : memref<1x128xf32, #tpu.memory_space<vmem>>, vector<1x128xf32>
    %5 = vector.broadcast %4 : vector<1x128xf32> to vector<64x128xf32>
    %6 = arith.mulf %3, %5 : vector<64x128xf32>
    %c0_6 = arith.constant 0 : index
    %c0_7 = arith.constant 0 : index
    %7 = vector.load %arg5[%c0_6, %c0_7] : memref<1x128xf32, #tpu.memory_space<vmem>>, vector<1x128xf32>
    %8 = vector.broadcast %7 : vector<1x128xf32> to vector<64x128xf32>
    %9 = arith.addf %6, %8 : vector<64x128xf32>
    %cst_8 = arith.constant 0.000000e+00 : f32
    %10 = vector.broadcast %cst_8 : f32 to vector<64x128xf32>
    %11 = arith.maximumf %9, %10 : vector<64x128xf32>
    %12 = arith.truncf %11 : vector<64x128xf32> to vector<64x128xbf16>
    %c0_9 = arith.constant 0 : index
    %c0_10 = arith.constant 0 : index
    %c0_11 = arith.constant 0 : index
    %13 = vector.load %arg2[%c0_9, %c0_10, %c0_11] : memref<9x16x64xbf16, #tpu.memory_space<vmem>>, vector<1x16x64xbf16>
    %14 = vector.shape_cast %13 : vector<1x16x64xbf16> to vector<16x64xbf16>
    %cst_12 = arith.constant dense<0.000000e+00> : vector<16x128xf32>
    %15 = tpu.matmul %14, %12, %cst_12 {dimension_numbers = #tpu.dot_dimension_numbers<[1], [0], [0], [1], [0, 0, 1, 1], [], []>} : vector<16x64xbf16>, vector<64x128xbf16>, vector<16x128xf32> -> vector<16x128xf32>
    %c0_13 = arith.constant 0 : index
    %c0_14 = arith.constant 0 : index
    %c0_15 = arith.constant 0 : index
    %16 = vector.load %arg6[%c0_13, %c0_14, %c0_15] : memref<9x1x128xf32, #tpu.memory_space<vmem>>, vector<1x1x128xf32>
    %17 = vector.shape_cast %16 : vector<1x1x128xf32> to vector<1x128xf32>
    %18 = vector.broadcast %17 : vector<1x128xf32> to vector<16x128xf32>
    %19 = arith.mulf %15, %18 : vector<16x128xf32>
    %c1 = arith.constant 1 : index
    %c0_16 = arith.constant 0 : index
    %c0_17 = arith.constant 0 : index
    %20 = vector.load %arg2[%c1, %c0_16, %c0_17] : memref<9x16x64xbf16, #tpu.memory_space<vmem>>, vector<1x16x64xbf16>
    %21 = vector.shape_cast %20 : vector<1x16x64xbf16> to vector<16x64xbf16>
    %cst_18 = arith.constant dense<0.000000e+00> : vector<16x128xf32>
    %22 = tpu.matmul %21, %12, %cst_18 {dimension_numbers = #tpu.dot_dimension_numbers<[1], [0], [0], [1], [0, 0, 1, 1], [], []>} : vector<16x64xbf16>, vector<64x128xbf16>, vector<16x128xf32> -> vector<16x128xf32>
    %c1_19 = arith.constant 1 : index
    %c0_20 = arith.constant 0 : index
    %c0_21 = arith.constant 0 : index
    %23 = vector.load %arg6[%c1_19, %c0_20, %c0_21] : memref<9x1x128xf32, #tpu.memory_space<vmem>>, vector<1x1x128xf32>
    %24 = vector.shape_cast %23 : vector<1x1x128xf32> to vector<1x128xf32>
    %25 = vector.broadcast %24 : vector<1x128xf32> to vector<16x128xf32>
    %26 = arith.mulf %22, %25 : vector<16x128xf32>
    %27 = arith.addf %19, %26 : vector<16x128xf32>
    %c2 = arith.constant 2 : index
    %c0_22 = arith.constant 0 : index
    %c0_23 = arith.constant 0 : index
    %28 = vector.load %arg2[%c2, %c0_22, %c0_23] : memref<9x16x64xbf16, #tpu.memory_space<vmem>>, vector<1x16x64xbf16>
    %29 = vector.shape_cast %28 : vector<1x16x64xbf16> to vector<16x64xbf16>
    %cst_24 = arith.constant dense<0.000000e+00> : vector<16x128xf32>
    %30 = tpu.matmul %29, %12, %cst_24 {dimension_numbers = #tpu.dot_dimension_numbers<[1], [0], [0], [1], [0, 0, 1, 1], [], []>} : vector<16x64xbf16>, vector<64x128xbf16>, vector<16x128xf32> -> vector<16x128xf32>
    %c2_25 = arith.constant 2 : index
    %c0_26 = arith.constant 0 : index
    %c0_27 = arith.constant 0 : index
    %31 = vector.load %arg6[%c2_25, %c0_26, %c0_27] : memref<9x1x128xf32, #tpu.memory_space<vmem>>, vector<1x1x128xf32>
    %32 = vector.shape_cast %31 : vector<1x1x128xf32> to vector<1x128xf32>
    %33 = vector.broadcast %32 : vector<1x128xf32> to vector<16x128xf32>
    %34 = arith.mulf %30, %33 : vector<16x128xf32>
    %35 = arith.addf %27, %34 : vector<16x128xf32>
    %c3 = arith.constant 3 : index
    %c0_28 = arith.constant 0 : index
    %c0_29 = arith.constant 0 : index
    %36 = vector.load %arg2[%c3, %c0_28, %c0_29] : memref<9x16x64xbf16, #tpu.memory_space<vmem>>, vector<1x16x64xbf16>
    %37 = vector.shape_cast %36 : vector<1x16x64xbf16> to vector<16x64xbf16>
    %cst_30 = arith.constant dense<0.000000e+00> : vector<16x128xf32>
    %38 = tpu.matmul %37, %12, %cst_30 {dimension_numbers = #tpu.dot_dimension_numbers<[1], [0], [0], [1], [0, 0, 1, 1], [], []>} : vector<16x64xbf16>, vector<64x128xbf16>, vector<16x128xf32> -> vector<16x128xf32>
    %c3_31 = arith.constant 3 : index
    %c0_32 = arith.constant 0 : index
    %c0_33 = arith.constant 0 : index
    %39 = vector.load %arg6[%c3_31, %c0_32, %c0_33] : memref<9x1x128xf32, #tpu.memory_space<vmem>>, vector<1x1x128xf32>
    %40 = vector.shape_cast %39 : vector<1x1x128xf32> to vector<1x128xf32>
    %41 = vector.broadcast %40 : vector<1x128xf32> to vector<16x128xf32>
    %42 = arith.mulf %38, %41 : vector<16x128xf32>
    %43 = arith.addf %35, %42 : vector<16x128xf32>
    %c4 = arith.constant 4 : index
    %c0_34 = arith.constant 0 : index
    %c0_35 = arith.constant 0 : index
    %44 = vector.load %arg2[%c4, %c0_34, %c0_35] : memref<9x16x64xbf16, #tpu.memory_space<vmem>>, vector<1x16x64xbf16>
    %45 = vector.shape_cast %44 : vector<1x16x64xbf16> to vector<16x64xbf16>
    %cst_36 = arith.constant dense<0.000000e+00> : vector<16x128xf32>
    %46 = tpu.matmul %45, %12, %cst_36 {dimension_numbers = #tpu.dot_dimension_numbers<[1], [0], [0], [1], [0, 0, 1, 1], [], []>} : vector<16x64xbf16>, vector<64x128xbf16>, vector<16x128xf32> -> vector<16x128xf32>
    %c4_37 = arith.constant 4 : index
    %c0_38 = arith.constant 0 : index
    %c0_39 = arith.constant 0 : index
    %47 = vector.load %arg6[%c4_37, %c0_38, %c0_39] : memref<9x1x128xf32, #tpu.memory_space<vmem>>, vector<1x1x128xf32>
    %48 = vector.shape_cast %47 : vector<1x1x128xf32> to vector<1x128xf32>
    %49 = vector.broadcast %48 : vector<1x128xf32> to vector<16x128xf32>
    %50 = arith.mulf %46, %49 : vector<16x128xf32>
    %51 = arith.addf %43, %50 : vector<16x128xf32>
    %c5 = arith.constant 5 : index
    %c0_40 = arith.constant 0 : index
    %c0_41 = arith.constant 0 : index
    %52 = vector.load %arg2[%c5, %c0_40, %c0_41] : memref<9x16x64xbf16, #tpu.memory_space<vmem>>, vector<1x16x64xbf16>
    %53 = vector.shape_cast %52 : vector<1x16x64xbf16> to vector<16x64xbf16>
    %cst_42 = arith.constant dense<0.000000e+00> : vector<16x128xf32>
    %54 = tpu.matmul %53, %12, %cst_42 {dimension_numbers = #tpu.dot_dimension_numbers<[1], [0], [0], [1], [0, 0, 1, 1], [], []>} : vector<16x64xbf16>, vector<64x128xbf16>, vector<16x128xf32> -> vector<16x128xf32>
    %c5_43 = arith.constant 5 : index
    %c0_44 = arith.constant 0 : index
    %c0_45 = arith.constant 0 : index
    %55 = vector.load %arg6[%c5_43, %c0_44, %c0_45] : memref<9x1x128xf32, #tpu.memory_space<vmem>>, vector<1x1x128xf32>
    %56 = vector.shape_cast %55 : vector<1x1x128xf32> to vector<1x128xf32>
    %57 = vector.broadcast %56 : vector<1x128xf32> to vector<16x128xf32>
    %58 = arith.mulf %54, %57 : vector<16x128xf32>
    %59 = arith.addf %51, %58 : vector<16x128xf32>
    %c6 = arith.constant 6 : index
    %c0_46 = arith.constant 0 : index
    %c0_47 = arith.constant 0 : index
    %60 = vector.load %arg2[%c6, %c0_46, %c0_47] : memref<9x16x64xbf16, #tpu.memory_space<vmem>>, vector<1x16x64xbf16>
    %61 = vector.shape_cast %60 : vector<1x16x64xbf16> to vector<16x64xbf16>
    %cst_48 = arith.constant dense<0.000000e+00> : vector<16x128xf32>
    %62 = tpu.matmul %61, %12, %cst_48 {dimension_numbers = #tpu.dot_dimension_numbers<[1], [0], [0], [1], [0, 0, 1, 1], [], []>} : vector<16x64xbf16>, vector<64x128xbf16>, vector<16x128xf32> -> vector<16x128xf32>
    %c6_49 = arith.constant 6 : index
    %c0_50 = arith.constant 0 : index
    %c0_51 = arith.constant 0 : index
    %63 = vector.load %arg6[%c6_49, %c0_50, %c0_51] : memref<9x1x128xf32, #tpu.memory_space<vmem>>, vector<1x1x128xf32>
    %64 = vector.shape_cast %63 : vector<1x1x128xf32> to vector<1x128xf32>
    %65 = vector.broadcast %64 : vector<1x128xf32> to vector<16x128xf32>
    %66 = arith.mulf %62, %65 : vector<16x128xf32>
    %67 = arith.addf %59, %66 : vector<16x128xf32>
    %c7 = arith.constant 7 : index
    %c0_52 = arith.constant 0 : index
    %c0_53 = arith.constant 0 : index
    %68 = vector.load %arg2[%c7, %c0_52, %c0_53] : memref<9x16x64xbf16, #tpu.memory_space<vmem>>, vector<1x16x64xbf16>
    %69 = vector.shape_cast %68 : vector<1x16x64xbf16> to vector<16x64xbf16>
    %cst_54 = arith.constant dense<0.000000e+00> : vector<16x128xf32>
    %70 = tpu.matmul %69, %12, %cst_54 {dimension_numbers = #tpu.dot_dimension_numbers<[1], [0], [0], [1], [0, 0, 1, 1], [], []>} : vector<16x64xbf16>, vector<64x128xbf16>, vector<16x128xf32> -> vector<16x128xf32>
    %c7_55 = arith.constant 7 : index
    %c0_56 = arith.constant 0 : index
    %c0_57 = arith.constant 0 : index
    %71 = vector.load %arg6[%c7_55, %c0_56, %c0_57] : memref<9x1x128xf32, #tpu.memory_space<vmem>>, vector<1x1x128xf32>
    %72 = vector.shape_cast %71 : vector<1x1x128xf32> to vector<1x128xf32>
    %73 = vector.broadcast %72 : vector<1x128xf32> to vector<16x128xf32>
    %74 = arith.mulf %70, %73 : vector<16x128xf32>
    %75 = arith.addf %67, %74 : vector<16x128xf32>
    %c8 = arith.constant 8 : index
    %c0_58 = arith.constant 0 : index
    %c0_59 = arith.constant 0 : index
    %76 = vector.load %arg2[%c8, %c0_58, %c0_59] : memref<9x16x64xbf16, #tpu.memory_space<vmem>>, vector<1x16x64xbf16>
    %77 = vector.shape_cast %76 : vector<1x16x64xbf16> to vector<16x64xbf16>
    %cst_60 = arith.constant dense<0.000000e+00> : vector<16x128xf32>
    %78 = tpu.matmul %77, %12, %cst_60 {dimension_numbers = #tpu.dot_dimension_numbers<[1], [0], [0], [1], [0, 0, 1, 1], [], []>} : vector<16x64xbf16>, vector<64x128xbf16>, vector<16x128xf32> -> vector<16x128xf32>
    %c8_61 = arith.constant 8 : index
    %c0_62 = arith.constant 0 : index
    %c0_63 = arith.constant 0 : index
    %79 = vector.load %arg6[%c8_61, %c0_62, %c0_63] : memref<9x1x128xf32, #tpu.memory_space<vmem>>, vector<1x1x128xf32>
    %80 = vector.shape_cast %79 : vector<1x1x128xf32> to vector<1x128xf32>
    %81 = vector.broadcast %80 : vector<1x128xf32> to vector<16x128xf32>
    %82 = arith.mulf %78, %81 : vector<16x128xf32>
    %83 = arith.addf %75, %82 : vector<16x128xf32>
    %c0_64 = arith.constant 0 : index
    %c0_65 = arith.constant 0 : index
    %84 = vector.load %arg7[%c0_64, %c0_65] : memref<1x128xf32, #tpu.memory_space<vmem>>, vector<1x128xf32>
    %85 = vector.broadcast %84 : vector<1x128xf32> to vector<16x128xf32>
    %86 = arith.mulf %83, %85 : vector<16x128xf32>
    %c0_66 = arith.constant 0 : index
    %c0_67 = arith.constant 0 : index
    %87 = vector.load %arg8[%c0_66, %c0_67] : memref<1x128xf32, #tpu.memory_space<vmem>>, vector<1x128xf32>
    %88 = vector.broadcast %87 : vector<1x128xf32> to vector<16x128xf32>
    %89 = arith.addf %86, %88 : vector<16x128xf32>
    %cst_68 = arith.constant 0.000000e+00 : f32
    %90 = vector.broadcast %cst_68 : f32 to vector<16x128xf32>
    %91 = arith.maximumf %89, %90 : vector<16x128xf32>
    %92 = arith.truncf %91 : vector<16x128xf32> to vector<16x128xbf16>
    %c0_69 = arith.constant 0 : index
    %c0_70 = arith.constant 0 : index
    %93 = vector.load %arg9[%c0_69, %c0_70] : memref<128x128xbf16, #tpu.memory_space<vmem>>, vector<128x128xbf16>
    %cst_71 = arith.constant dense<0.000000e+00> : vector<16x128xf32>
    %94 = tpu.matmul %92, %93, %cst_71 {dimension_numbers = #tpu.dot_dimension_numbers<[1], [0], [0], [1], [0, 0, 1, 1], [], []>} : vector<16x128xbf16>, vector<128x128xbf16>, vector<16x128xf32> -> vector<16x128xf32>
    %c0_72 = arith.constant 0 : index
    %c0_73 = arith.constant 0 : index
    %95 = vector.load %arg10[%c0_72, %c0_73] : memref<1x128xf32, #tpu.memory_space<vmem>>, vector<1x128xf32>
    %96 = vector.broadcast %95 : vector<1x128xf32> to vector<16x128xf32>
    %97 = arith.mulf %94, %96 : vector<16x128xf32>
    %c0_74 = arith.constant 0 : index
    %c0_75 = arith.constant 0 : index
    %98 = vector.load %arg11[%c0_74, %c0_75] : memref<1x128xf32, #tpu.memory_space<vmem>>, vector<1x128xf32>
    %99 = vector.broadcast %98 : vector<1x128xf32> to vector<16x128xf32>
    %100 = arith.addf %97, %99 : vector<16x128xf32>
    %c0_76 = arith.constant 0 : index
    %c0_77 = arith.constant 0 : index
    %101 = vector.load %arg12[%c0_76, %c0_77] : memref<16x64xbf16, #tpu.memory_space<vmem>>, vector<16x64xbf16>
    %cst_78 = arith.constant dense<0.000000e+00> : vector<16x128xf32>
    %102 = tpu.matmul %101, %1, %cst_78 {dimension_numbers = #tpu.dot_dimension_numbers<[1], [0], [0], [1], [0, 0, 1, 1], [], []>} : vector<16x64xbf16>, vector<64x128xbf16>, vector<16x128xf32> -> vector<16x128xf32>
    %cst_79 = arith.constant 0.111111112 : f32
    %103 = vector.broadcast %cst_79 : f32 to vector<16x128xf32>
    %104 = arith.mulf %102, %103 : vector<16x128xf32>
    %105 = arith.truncf %104 : vector<16x128xf32> to vector<16x128xbf16>
    %c0_80 = arith.constant 0 : index
    %c0_81 = arith.constant 0 : index
    %106 = vector.load %arg13[%c0_80, %c0_81] : memref<128x128xbf16, #tpu.memory_space<vmem>>, vector<128x128xbf16>
    %cst_82 = arith.constant dense<0.000000e+00> : vector<16x128xf32>
    %107 = tpu.matmul %105, %106, %cst_82 {dimension_numbers = #tpu.dot_dimension_numbers<[1], [0], [0], [1], [0, 0, 1, 1], [], []>} : vector<16x128xbf16>, vector<128x128xbf16>, vector<16x128xf32> -> vector<16x128xf32>
    %108 = arith.addf %100, %107 : vector<16x128xf32>
    %cst_83 = arith.constant 0.000000e+00 : f32
    %109 = vector.broadcast %cst_83 : f32 to vector<16x128xf32>
    %110 = arith.maximumf %108, %109 : vector<16x128xf32>
    %111 = arith.truncf %110 : vector<16x128xf32> to vector<16x128xbf16>
    %c0_84 = arith.constant 0 : index
    %c0_85 = arith.constant 0 : index
    %c0_86 = arith.constant 0 : index
    %112 = vector.load %arg14[%c0_84, %c0_85, %c0_86] : memref<1x16x128xbf16, #tpu.memory_space<vmem>>, vector<1x16x128xbf16>
    %113 = vector.shape_cast %112 : vector<1x16x128xbf16> to vector<16x128xbf16>
    %114 = vector.shape_cast %111 : vector<16x128xbf16> to vector<1x16x128xbf16>
    tpu.vector_store %arg14[%c0_84, %c0_85, %c0_86], %114 {strides = array<i32>} : memref<1x16x128xbf16, #tpu.memory_space<vmem>>, vector<1x16x128xbf16>,
    return
  }
  func.func @transform_0(%arg0: i32) -> (i32, i32, i32) {
    %c0_i32 = arith.constant 0 : i32
    %c0_i32_0 = arith.constant 0 : i32
    %c0_i32_1 = arith.constant 0 : i32
    return %arg0, %c0_i32, %c0_i32_0 : i32, i32, i32
  }
  func.func @transform_1(%arg0: i32) -> (i32, i32, i32) {
    %c0_i32 = arith.constant 0 : i32
    %c0_i32_0 = arith.constant 0 : i32
    %c0_i32_1 = arith.constant 0 : i32
    %c0_i32_2 = arith.constant 0 : i32
    return %c0_i32, %c0_i32_0, %c0_i32_1 : i32, i32, i32
  }
  func.func @transform_2(%arg0: i32) -> (i32, i32) {
    %c0_i32 = arith.constant 0 : i32
    %c0_i32_0 = arith.constant 0 : i32
    %c0_i32_1 = arith.constant 0 : i32
    return %c0_i32, %c0_i32_0 : i32, i32
  }
  func.func @transform_3(%arg0: i32) -> (i32, i32) {
    %c0_i32 = arith.constant 0 : i32
    %c0_i32_0 = arith.constant 0 : i32
    %c0_i32_1 = arith.constant 0 : i32
    return %c0_i32, %c0_i32_0 : i32, i32
  }
  func.func @transform_4(%arg0: i32) -> (i32, i32) {
    %c0_i32 = arith.constant 0 : i32
    %c0_i32_0 = arith.constant 0 : i32
    %c0_i32_1 = arith.constant 0 : i32
    return %c0_i32, %c0_i32_0 : i32, i32
  }
  func.func @transform_5(%arg0: i32) -> (i32, i32, i32) {
    %c0_i32 = arith.constant 0 : i32
    %c0_i32_0 = arith.constant 0 : i32
    %c0_i32_1 = arith.constant 0 : i32
    %c0_i32_2 = arith.constant 0 : i32
    return %c0_i32, %c0_i32_0, %c0_i32_1 : i32, i32, i32
  }
  func.func @transform_6(%arg0: i32) -> (i32, i32) {
    %c0_i32 = arith.constant 0 : i32
    %c0_i32_0 = arith.constant 0 : i32
    %c0_i32_1 = arith.constant 0 : i32
    return %c0_i32, %c0_i32_0 : i32, i32
  }
  func.func @transform_7(%arg0: i32) -> (i32, i32) {
    %c0_i32 = arith.constant 0 : i32
    %c0_i32_0 = arith.constant 0 : i32
    %c0_i32_1 = arith.constant 0 : i32
    return %c0_i32, %c0_i32_0 : i32, i32
  }
  func.func @transform_8(%arg0: i32) -> (i32, i32) {
    %c0_i32 = arith.constant 0 : i32
    %c0_i32_0 = arith.constant 0 : i32
    %c0_i32_1 = arith.constant 0 : i32
    return %c0_i32, %c0_i32_0 : i32, i32
  }
  func.func @transform_9(%arg0: i32) -> (i32, i32) {
    %c0_i32 = arith.constant 0 : i32
    %c0_i32_0 = arith.constant 0 : i32
    %c0_i32_1 = arith.constant 0 : i32
    return %c0_i32, %c0_i32_0 : i32, i32
  }
  func.func @transform_10(%arg0: i32) -> (i32, i32) {
    %c0_i32 = arith.constant 0 : i32
    %c0_i32_0 = arith.constant 0 : i32
    %c0_i32_1 = arith.constant 0 : i32
    return %c0_i32, %c0_i32_0 : i32, i32
  }
  func.func @transform_11(%arg0: i32) -> (i32, i32) {
    %c0_i32 = arith.constant 0 : i32
    %c0_i32_0 = arith.constant 0 : i32
    %c0_i32_1 = arith.constant 0 : i32
    return %c0_i32, %c0_i32_0 : i32, i32
  }
  func.func @transform_12(%arg0: i32) -> (i32, i32) {
    %c0_i32 = arith.constant 0 : i32
    %c0_i32_0 = arith.constant 0 : i32
    %c0_i32_1 = arith.constant 0 : i32
    return %c0_i32, %c0_i32_0 : i32, i32
  }
  func.func @transform_13(%arg0: i32) -> (i32, i32, i32) {
    %c0_i32 = arith.constant 0 : i32
    %c0_i32_0 = arith.constant 0 : i32
    %c0_i32_1 = arith.constant 0 : i32
    return %arg0, %c0_i32, %c0_i32_0 : i32, i32, i32
  }
}

module attributes {stable_mosaic.version = 11 : i64} {
  func.func @_bottleneck_kernel(%arg0: i32, %arg1: memref<1x16x128xbf16, #tpu.memory_space<vmem>>, %arg2: memref<9x4x16xbf16, #tpu.memory_space<vmem>>, %arg3: memref<128x128xbf16, #tpu.memory_space<vmem>>, %arg4: memref<1x128xf32, #tpu.memory_space<vmem>>, %arg5: memref<1x128xf32, #tpu.memory_space<vmem>>, %arg6: memref<9x1x128xf32, #tpu.memory_space<vmem>>, %arg7: memref<1x128xf32, #tpu.memory_space<vmem>>, %arg8: memref<1x128xf32, #tpu.memory_space<vmem>>, %arg9: memref<128x256xbf16, #tpu.memory_space<vmem>>, %arg10: memref<1x256xf32, #tpu.memory_space<vmem>>, %arg11: memref<1x256xf32, #tpu.memory_space<vmem>>, %arg12: memref<4x16xbf16, #tpu.memory_space<vmem>>, %arg13: memref<128x256xbf16, #tpu.memory_space<vmem>>, %arg14: memref<1x4x256xbf16, #tpu.memory_space<vmem>>) attributes {dimension_semantics = [#tpu.dimension_semantics<parallel>], iteration_bounds = array<i64: 2>, scalar_prefetch = 0 : i64, scratch_operands = 0 : i64, tpu.core_type = #tpu.core_type<tc>, window_params = [{transform_indices = @transform_0, window_bounds = array<i64: 1, 16, 128>}, {pipeline_mode = #tpu.pipeline_mode<synchronous>, transform_indices = @transform_1, window_bounds = array<i64: 9, 4, 16>}, {pipeline_mode = #tpu.pipeline_mode<synchronous>, transform_indices = @transform_2, window_bounds = array<i64: 128, 128>}, {pipeline_mode = #tpu.pipeline_mode<synchronous>, transform_indices = @transform_3, window_bounds = array<i64: 1, 128>}, {pipeline_mode = #tpu.pipeline_mode<synchronous>, transform_indices = @transform_4, window_bounds = array<i64: 1, 128>}, {pipeline_mode = #tpu.pipeline_mode<synchronous>, transform_indices = @transform_5, window_bounds = array<i64: 9, 1, 128>}, {pipeline_mode = #tpu.pipeline_mode<synchronous>, transform_indices = @transform_6, window_bounds = array<i64: 1, 128>}, {pipeline_mode = #tpu.pipeline_mode<synchronous>, transform_indices = @transform_7, window_bounds = array<i64: 1, 128>}, {pipeline_mode = #tpu.pipeline_mode<synchronous>, transform_indices = @transform_8, window_bounds = array<i64: 128, 256>}, {pipeline_mode = #tpu.pipeline_mode<synchronous>, transform_indices = @transform_9, window_bounds = array<i64: 1, 256>}, {pipeline_mode = #tpu.pipeline_mode<synchronous>, transform_indices = @transform_10, window_bounds = array<i64: 1, 256>}, {pipeline_mode = #tpu.pipeline_mode<synchronous>, transform_indices = @transform_11, window_bounds = array<i64: 4, 16>}, {pipeline_mode = #tpu.pipeline_mode<synchronous>, transform_indices = @transform_12, window_bounds = array<i64: 128, 256>}, {transform_indices = @transform_13, window_bounds = array<i64: 1, 4, 256>}]} {
    %c0 = arith.constant 0 : index
    %c0_0 = arith.constant 0 : index
    %c0_1 = arith.constant 0 : index
    %0 = vector.load %arg1[%c0, %c0_0, %c0_1] : memref<1x16x128xbf16, #tpu.memory_space<vmem>>, vector<1x16x128xbf16>
    %1 = vector.shape_cast %0 : vector<1x16x128xbf16> to vector<16x128xbf16>
    %c0_2 = arith.constant 0 : index
    %c0_3 = arith.constant 0 : index
    %2 = vector.load %arg3[%c0_2, %c0_3] : memref<128x128xbf16, #tpu.memory_space<vmem>>, vector<128x128xbf16>
    %cst = arith.constant dense<0.000000e+00> : vector<16x128xf32>
    %3 = tpu.matmul %1, %2, %cst {dimension_numbers = #tpu.dot_dimension_numbers<[1], [0], [0], [1], [0, 0, 1, 1], [], []>} : vector<16x128xbf16>, vector<128x128xbf16>, vector<16x128xf32> -> vector<16x128xf32>
    %c0_4 = arith.constant 0 : index
    %c0_5 = arith.constant 0 : index
    %4 = vector.load %arg4[%c0_4, %c0_5] : memref<1x128xf32, #tpu.memory_space<vmem>>, vector<1x128xf32>
    %5 = vector.broadcast %4 : vector<1x128xf32> to vector<16x128xf32>
    %6 = arith.mulf %3, %5 : vector<16x128xf32>
    %c0_6 = arith.constant 0 : index
    %c0_7 = arith.constant 0 : index
    %7 = vector.load %arg5[%c0_6, %c0_7] : memref<1x128xf32, #tpu.memory_space<vmem>>, vector<1x128xf32>
    %8 = vector.broadcast %7 : vector<1x128xf32> to vector<16x128xf32>
    %9 = arith.addf %6, %8 : vector<16x128xf32>
    %cst_8 = arith.constant 0.000000e+00 : f32
    %10 = vector.broadcast %cst_8 : f32 to vector<16x128xf32>
    %11 = arith.maximumf %9, %10 : vector<16x128xf32>
    %12 = arith.truncf %11 : vector<16x128xf32> to vector<16x128xbf16>
    %c0_9 = arith.constant 0 : index
    %c0_10 = arith.constant 0 : index
    %c0_11 = arith.constant 0 : index
    %13 = vector.load %arg2[%c0_9, %c0_10, %c0_11] : memref<9x4x16xbf16, #tpu.memory_space<vmem>>, vector<1x4x16xbf16>
    %14 = vector.shape_cast %13 : vector<1x4x16xbf16> to vector<4x16xbf16>
    %cst_12 = arith.constant dense<0.000000e+00> : vector<4x128xf32>
    %15 = tpu.matmul %14, %12, %cst_12 {dimension_numbers = #tpu.dot_dimension_numbers<[1], [0], [0], [1], [0, 0, 1, 1], [], []>} : vector<4x16xbf16>, vector<16x128xbf16>, vector<4x128xf32> -> vector<4x128xf32>
    %c0_13 = arith.constant 0 : index
    %c0_14 = arith.constant 0 : index
    %c0_15 = arith.constant 0 : index
    %16 = vector.load %arg6[%c0_13, %c0_14, %c0_15] : memref<9x1x128xf32, #tpu.memory_space<vmem>>, vector<1x1x128xf32>
    %17 = vector.shape_cast %16 : vector<1x1x128xf32> to vector<1x128xf32>
    %18 = vector.broadcast %17 : vector<1x128xf32> to vector<4x128xf32>
    %19 = arith.mulf %15, %18 : vector<4x128xf32>
    %c1 = arith.constant 1 : index
    %c0_16 = arith.constant 0 : index
    %c0_17 = arith.constant 0 : index
    %20 = vector.load %arg2[%c1, %c0_16, %c0_17] : memref<9x4x16xbf16, #tpu.memory_space<vmem>>, vector<1x4x16xbf16>
    %21 = vector.shape_cast %20 : vector<1x4x16xbf16> to vector<4x16xbf16>
    %cst_18 = arith.constant dense<0.000000e+00> : vector<4x128xf32>
    %22 = tpu.matmul %21, %12, %cst_18 {dimension_numbers = #tpu.dot_dimension_numbers<[1], [0], [0], [1], [0, 0, 1, 1], [], []>} : vector<4x16xbf16>, vector<16x128xbf16>, vector<4x128xf32> -> vector<4x128xf32>
    %c1_19 = arith.constant 1 : index
    %c0_20 = arith.constant 0 : index
    %c0_21 = arith.constant 0 : index
    %23 = vector.load %arg6[%c1_19, %c0_20, %c0_21] : memref<9x1x128xf32, #tpu.memory_space<vmem>>, vector<1x1x128xf32>
    %24 = vector.shape_cast %23 : vector<1x1x128xf32> to vector<1x128xf32>
    %25 = vector.broadcast %24 : vector<1x128xf32> to vector<4x128xf32>
    %26 = arith.mulf %22, %25 : vector<4x128xf32>
    %27 = arith.addf %19, %26 : vector<4x128xf32>
    %c2 = arith.constant 2 : index
    %c0_22 = arith.constant 0 : index
    %c0_23 = arith.constant 0 : index
    %28 = vector.load %arg2[%c2, %c0_22, %c0_23] : memref<9x4x16xbf16, #tpu.memory_space<vmem>>, vector<1x4x16xbf16>
    %29 = vector.shape_cast %28 : vector<1x4x16xbf16> to vector<4x16xbf16>
    %cst_24 = arith.constant dense<0.000000e+00> : vector<4x128xf32>
    %30 = tpu.matmul %29, %12, %cst_24 {dimension_numbers = #tpu.dot_dimension_numbers<[1], [0], [0], [1], [0, 0, 1, 1], [], []>} : vector<4x16xbf16>, vector<16x128xbf16>, vector<4x128xf32> -> vector<4x128xf32>
    %c2_25 = arith.constant 2 : index
    %c0_26 = arith.constant 0 : index
    %c0_27 = arith.constant 0 : index
    %31 = vector.load %arg6[%c2_25, %c0_26, %c0_27] : memref<9x1x128xf32, #tpu.memory_space<vmem>>, vector<1x1x128xf32>
    %32 = vector.shape_cast %31 : vector<1x1x128xf32> to vector<1x128xf32>
    %33 = vector.broadcast %32 : vector<1x128xf32> to vector<4x128xf32>
    %34 = arith.mulf %30, %33 : vector<4x128xf32>
    %35 = arith.addf %27, %34 : vector<4x128xf32>
    %c3 = arith.constant 3 : index
    %c0_28 = arith.constant 0 : index
    %c0_29 = arith.constant 0 : index
    %36 = vector.load %arg2[%c3, %c0_28, %c0_29] : memref<9x4x16xbf16, #tpu.memory_space<vmem>>, vector<1x4x16xbf16>
    %37 = vector.shape_cast %36 : vector<1x4x16xbf16> to vector<4x16xbf16>
    %cst_30 = arith.constant dense<0.000000e+00> : vector<4x128xf32>
    %38 = tpu.matmul %37, %12, %cst_30 {dimension_numbers = #tpu.dot_dimension_numbers<[1], [0], [0], [1], [0, 0, 1, 1], [], []>} : vector<4x16xbf16>, vector<16x128xbf16>, vector<4x128xf32> -> vector<4x128xf32>
    %c3_31 = arith.constant 3 : index
    %c0_32 = arith.constant 0 : index
    %c0_33 = arith.constant 0 : index
    %39 = vector.load %arg6[%c3_31, %c0_32, %c0_33] : memref<9x1x128xf32, #tpu.memory_space<vmem>>, vector<1x1x128xf32>
    %40 = vector.shape_cast %39 : vector<1x1x128xf32> to vector<1x128xf32>
    %41 = vector.broadcast %40 : vector<1x128xf32> to vector<4x128xf32>
    %42 = arith.mulf %38, %41 : vector<4x128xf32>
    %43 = arith.addf %35, %42 : vector<4x128xf32>
    %c4 = arith.constant 4 : index
    %c0_34 = arith.constant 0 : index
    %c0_35 = arith.constant 0 : index
    %44 = vector.load %arg2[%c4, %c0_34, %c0_35] : memref<9x4x16xbf16, #tpu.memory_space<vmem>>, vector<1x4x16xbf16>
    %45 = vector.shape_cast %44 : vector<1x4x16xbf16> to vector<4x16xbf16>
    %cst_36 = arith.constant dense<0.000000e+00> : vector<4x128xf32>
    %46 = tpu.matmul %45, %12, %cst_36 {dimension_numbers = #tpu.dot_dimension_numbers<[1], [0], [0], [1], [0, 0, 1, 1], [], []>} : vector<4x16xbf16>, vector<16x128xbf16>, vector<4x128xf32> -> vector<4x128xf32>
    %c4_37 = arith.constant 4 : index
    %c0_38 = arith.constant 0 : index
    %c0_39 = arith.constant 0 : index
    %47 = vector.load %arg6[%c4_37, %c0_38, %c0_39] : memref<9x1x128xf32, #tpu.memory_space<vmem>>, vector<1x1x128xf32>
    %48 = vector.shape_cast %47 : vector<1x1x128xf32> to vector<1x128xf32>
    %49 = vector.broadcast %48 : vector<1x128xf32> to vector<4x128xf32>
    %50 = arith.mulf %46, %49 : vector<4x128xf32>
    %51 = arith.addf %43, %50 : vector<4x128xf32>
    %c5 = arith.constant 5 : index
    %c0_40 = arith.constant 0 : index
    %c0_41 = arith.constant 0 : index
    %52 = vector.load %arg2[%c5, %c0_40, %c0_41] : memref<9x4x16xbf16, #tpu.memory_space<vmem>>, vector<1x4x16xbf16>
    %53 = vector.shape_cast %52 : vector<1x4x16xbf16> to vector<4x16xbf16>
    %cst_42 = arith.constant dense<0.000000e+00> : vector<4x128xf32>
    %54 = tpu.matmul %53, %12, %cst_42 {dimension_numbers = #tpu.dot_dimension_numbers<[1], [0], [0], [1], [0, 0, 1, 1], [], []>} : vector<4x16xbf16>, vector<16x128xbf16>, vector<4x128xf32> -> vector<4x128xf32>
    %c5_43 = arith.constant 5 : index
    %c0_44 = arith.constant 0 : index
    %c0_45 = arith.constant 0 : index
    %55 = vector.load %arg6[%c5_43, %c0_44, %c0_45] : memref<9x1x128xf32, #tpu.memory_space<vmem>>, vector<1x1x128xf32>
    %56 = vector.shape_cast %55 : vector<1x1x128xf32> to vector<1x128xf32>
    %57 = vector.broadcast %56 : vector<1x128xf32> to vector<4x128xf32>
    %58 = arith.mulf %54, %57 : vector<4x128xf32>
    %59 = arith.addf %51, %58 : vector<4x128xf32>
    %c6 = arith.constant 6 : index
    %c0_46 = arith.constant 0 : index
    %c0_47 = arith.constant 0 : index
    %60 = vector.load %arg2[%c6, %c0_46, %c0_47] : memref<9x4x16xbf16, #tpu.memory_space<vmem>>, vector<1x4x16xbf16>
    %61 = vector.shape_cast %60 : vector<1x4x16xbf16> to vector<4x16xbf16>
    %cst_48 = arith.constant dense<0.000000e+00> : vector<4x128xf32>
    %62 = tpu.matmul %61, %12, %cst_48 {dimension_numbers = #tpu.dot_dimension_numbers<[1], [0], [0], [1], [0, 0, 1, 1], [], []>} : vector<4x16xbf16>, vector<16x128xbf16>, vector<4x128xf32> -> vector<4x128xf32>
    %c6_49 = arith.constant 6 : index
    %c0_50 = arith.constant 0 : index
    %c0_51 = arith.constant 0 : index
    %63 = vector.load %arg6[%c6_49, %c0_50, %c0_51] : memref<9x1x128xf32, #tpu.memory_space<vmem>>, vector<1x1x128xf32>
    %64 = vector.shape_cast %63 : vector<1x1x128xf32> to vector<1x128xf32>
    %65 = vector.broadcast %64 : vector<1x128xf32> to vector<4x128xf32>
    %66 = arith.mulf %62, %65 : vector<4x128xf32>
    %67 = arith.addf %59, %66 : vector<4x128xf32>
    %c7 = arith.constant 7 : index
    %c0_52 = arith.constant 0 : index
    %c0_53 = arith.constant 0 : index
    %68 = vector.load %arg2[%c7, %c0_52, %c0_53] : memref<9x4x16xbf16, #tpu.memory_space<vmem>>, vector<1x4x16xbf16>
    %69 = vector.shape_cast %68 : vector<1x4x16xbf16> to vector<4x16xbf16>
    %cst_54 = arith.constant dense<0.000000e+00> : vector<4x128xf32>
    %70 = tpu.matmul %69, %12, %cst_54 {dimension_numbers = #tpu.dot_dimension_numbers<[1], [0], [0], [1], [0, 0, 1, 1], [], []>} : vector<4x16xbf16>, vector<16x128xbf16>, vector<4x128xf32> -> vector<4x128xf32>
    %c7_55 = arith.constant 7 : index
    %c0_56 = arith.constant 0 : index
    %c0_57 = arith.constant 0 : index
    %71 = vector.load %arg6[%c7_55, %c0_56, %c0_57] : memref<9x1x128xf32, #tpu.memory_space<vmem>>, vector<1x1x128xf32>
    %72 = vector.shape_cast %71 : vector<1x1x128xf32> to vector<1x128xf32>
    %73 = vector.broadcast %72 : vector<1x128xf32> to vector<4x128xf32>
    %74 = arith.mulf %70, %73 : vector<4x128xf32>
    %75 = arith.addf %67, %74 : vector<4x128xf32>
    %c8 = arith.constant 8 : index
    %c0_58 = arith.constant 0 : index
    %c0_59 = arith.constant 0 : index
    %76 = vector.load %arg2[%c8, %c0_58, %c0_59] : memref<9x4x16xbf16, #tpu.memory_space<vmem>>, vector<1x4x16xbf16>
    %77 = vector.shape_cast %76 : vector<1x4x16xbf16> to vector<4x16xbf16>
    %cst_60 = arith.constant dense<0.000000e+00> : vector<4x128xf32>
    %78 = tpu.matmul %77, %12, %cst_60 {dimension_numbers = #tpu.dot_dimension_numbers<[1], [0], [0], [1], [0, 0, 1, 1], [], []>} : vector<4x16xbf16>, vector<16x128xbf16>, vector<4x128xf32> -> vector<4x128xf32>
    %c8_61 = arith.constant 8 : index
    %c0_62 = arith.constant 0 : index
    %c0_63 = arith.constant 0 : index
    %79 = vector.load %arg6[%c8_61, %c0_62, %c0_63] : memref<9x1x128xf32, #tpu.memory_space<vmem>>, vector<1x1x128xf32>
    %80 = vector.shape_cast %79 : vector<1x1x128xf32> to vector<1x128xf32>
    %81 = vector.broadcast %80 : vector<1x128xf32> to vector<4x128xf32>
    %82 = arith.mulf %78, %81 : vector<4x128xf32>
    %83 = arith.addf %75, %82 : vector<4x128xf32>
    %c0_64 = arith.constant 0 : index
    %c0_65 = arith.constant 0 : index
    %84 = vector.load %arg7[%c0_64, %c0_65] : memref<1x128xf32, #tpu.memory_space<vmem>>, vector<1x128xf32>
    %85 = vector.broadcast %84 : vector<1x128xf32> to vector<4x128xf32>
    %86 = arith.mulf %83, %85 : vector<4x128xf32>
    %c0_66 = arith.constant 0 : index
    %c0_67 = arith.constant 0 : index
    %87 = vector.load %arg8[%c0_66, %c0_67] : memref<1x128xf32, #tpu.memory_space<vmem>>, vector<1x128xf32>
    %88 = vector.broadcast %87 : vector<1x128xf32> to vector<4x128xf32>
    %89 = arith.addf %86, %88 : vector<4x128xf32>
    %cst_68 = arith.constant 0.000000e+00 : f32
    %90 = vector.broadcast %cst_68 : f32 to vector<4x128xf32>
    %91 = arith.maximumf %89, %90 : vector<4x128xf32>
    %92 = arith.truncf %91 : vector<4x128xf32> to vector<4x128xbf16>
    %c0_69 = arith.constant 0 : index
    %c0_70 = arith.constant 0 : index
    %93 = vector.load %arg9[%c0_69, %c0_70] : memref<128x256xbf16, #tpu.memory_space<vmem>>, vector<128x256xbf16>
    %cst_71 = arith.constant dense<0.000000e+00> : vector<4x256xf32>
    %94 = tpu.matmul %92, %93, %cst_71 {dimension_numbers = #tpu.dot_dimension_numbers<[1], [0], [0], [1], [0, 0, 1, 1], [], []>} : vector<4x128xbf16>, vector<128x256xbf16>, vector<4x256xf32> -> vector<4x256xf32>
    %c0_72 = arith.constant 0 : index
    %c0_73 = arith.constant 0 : index
    %95 = vector.load %arg10[%c0_72, %c0_73] : memref<1x256xf32, #tpu.memory_space<vmem>>, vector<1x256xf32>
    %96 = vector.broadcast %95 : vector<1x256xf32> to vector<4x256xf32>
    %97 = arith.mulf %94, %96 : vector<4x256xf32>
    %c0_74 = arith.constant 0 : index
    %c0_75 = arith.constant 0 : index
    %98 = vector.load %arg11[%c0_74, %c0_75] : memref<1x256xf32, #tpu.memory_space<vmem>>, vector<1x256xf32>
    %99 = vector.broadcast %98 : vector<1x256xf32> to vector<4x256xf32>
    %100 = arith.addf %97, %99 : vector<4x256xf32>
    %c0_76 = arith.constant 0 : index
    %c0_77 = arith.constant 0 : index
    %101 = vector.load %arg12[%c0_76, %c0_77] : memref<4x16xbf16, #tpu.memory_space<vmem>>, vector<4x16xbf16>
    %cst_78 = arith.constant dense<0.000000e+00> : vector<4x128xf32>
    %102 = tpu.matmul %101, %1, %cst_78 {dimension_numbers = #tpu.dot_dimension_numbers<[1], [0], [0], [1], [0, 0, 1, 1], [], []>} : vector<4x16xbf16>, vector<16x128xbf16>, vector<4x128xf32> -> vector<4x128xf32>
    %cst_79 = arith.constant 0.111111112 : f32
    %103 = vector.broadcast %cst_79 : f32 to vector<4x128xf32>
    %104 = arith.mulf %102, %103 : vector<4x128xf32>
    %105 = arith.truncf %104 : vector<4x128xf32> to vector<4x128xbf16>
    %c0_80 = arith.constant 0 : index
    %c0_81 = arith.constant 0 : index
    %106 = vector.load %arg13[%c0_80, %c0_81] : memref<128x256xbf16, #tpu.memory_space<vmem>>, vector<128x256xbf16>
    %cst_82 = arith.constant dense<0.000000e+00> : vector<4x256xf32>
    %107 = tpu.matmul %105, %106, %cst_82 {dimension_numbers = #tpu.dot_dimension_numbers<[1], [0], [0], [1], [0, 0, 1, 1], [], []>} : vector<4x128xbf16>, vector<128x256xbf16>, vector<4x256xf32> -> vector<4x256xf32>
    %108 = arith.addf %100, %107 : vector<4x256xf32>
    %cst_83 = arith.constant 0.000000e+00 : f32
    %109 = vector.broadcast %cst_83 : f32 to vector<4x256xf32>
    %110 = arith.maximumf %108, %109 : vector<4x256xf32>
    %111 = arith.truncf %110 : vector<4x256xf32> to vector<4x256xbf16>
    %c0_84 = arith.constant 0 : index
    %c0_85 = arith.constant 0 : index
    %c0_86 = arith.constant 0 : index
    %112 = vector.load %arg14[%c0_84, %c0_85, %c0_86] : memref<1x4x256xbf16, #tpu.memory_space<vmem>>, vector<1x4x256xbf16>
    %113 = vector.shape_cast %112 : vector<1x4x256xbf16> to vector<4x256xbf16>
    %114 = vector.shape_cast %111 : vector<4x256xbf16> to vector<1x4x256xbf16>
    tpu.vector_store %arg14[%c0_84, %c0_85, %c0_86], %114 {strides = array<i32>} : memref<1x4x256xbf16, #tpu.memory_space<vmem>>, vector<1x4x256xbf16>,
    return
  }
  func.func @transform_0(%arg0: i32) -> (i32, i32, i32) {
    %c0_i32 = arith.constant 0 : i32
    %c0_i32_0 = arith.constant 0 : i32
    %c0_i32_1 = arith.constant 0 : i32
    return %arg0, %c0_i32, %c0_i32_0 : i32, i32, i32
  }
  func.func @transform_1(%arg0: i32) -> (i32, i32, i32) {
    %c0_i32 = arith.constant 0 : i32
    %c0_i32_0 = arith.constant 0 : i32
    %c0_i32_1 = arith.constant 0 : i32
    %c0_i32_2 = arith.constant 0 : i32
    return %c0_i32, %c0_i32_0, %c0_i32_1 : i32, i32, i32
  }
  func.func @transform_2(%arg0: i32) -> (i32, i32) {
    %c0_i32 = arith.constant 0 : i32
    %c0_i32_0 = arith.constant 0 : i32
    %c0_i32_1 = arith.constant 0 : i32
    return %c0_i32, %c0_i32_0 : i32, i32
  }
  func.func @transform_3(%arg0: i32) -> (i32, i32) {
    %c0_i32 = arith.constant 0 : i32
    %c0_i32_0 = arith.constant 0 : i32
    %c0_i32_1 = arith.constant 0 : i32
    return %c0_i32, %c0_i32_0 : i32, i32
  }
  func.func @transform_4(%arg0: i32) -> (i32, i32) {
    %c0_i32 = arith.constant 0 : i32
    %c0_i32_0 = arith.constant 0 : i32
    %c0_i32_1 = arith.constant 0 : i32
    return %c0_i32, %c0_i32_0 : i32, i32
  }
  func.func @transform_5(%arg0: i32) -> (i32, i32, i32) {
    %c0_i32 = arith.constant 0 : i32
    %c0_i32_0 = arith.constant 0 : i32
    %c0_i32_1 = arith.constant 0 : i32
    %c0_i32_2 = arith.constant 0 : i32
    return %c0_i32, %c0_i32_0, %c0_i32_1 : i32, i32, i32
  }
  func.func @transform_6(%arg0: i32) -> (i32, i32) {
    %c0_i32 = arith.constant 0 : i32
    %c0_i32_0 = arith.constant 0 : i32
    %c0_i32_1 = arith.constant 0 : i32
    return %c0_i32, %c0_i32_0 : i32, i32
  }
  func.func @transform_7(%arg0: i32) -> (i32, i32) {
    %c0_i32 = arith.constant 0 : i32
    %c0_i32_0 = arith.constant 0 : i32
    %c0_i32_1 = arith.constant 0 : i32
    return %c0_i32, %c0_i32_0 : i32, i32
  }
  func.func @transform_8(%arg0: i32) -> (i32, i32) {
    %c0_i32 = arith.constant 0 : i32
    %c0_i32_0 = arith.constant 0 : i32
    %c0_i32_1 = arith.constant 0 : i32
    return %c0_i32, %c0_i32_0 : i32, i32
  }
  func.func @transform_9(%arg0: i32) -> (i32, i32) {
    %c0_i32 = arith.constant 0 : i32
    %c0_i32_0 = arith.constant 0 : i32
    %c0_i32_1 = arith.constant 0 : i32
    return %c0_i32, %c0_i32_0 : i32, i32
  }
  func.func @transform_10(%arg0: i32) -> (i32, i32) {
    %c0_i32 = arith.constant 0 : i32
    %c0_i32_0 = arith.constant 0 : i32
    %c0_i32_1 = arith.constant 0 : i32
    return %c0_i32, %c0_i32_0 : i32, i32
  }
  func.func @transform_11(%arg0: i32) -> (i32, i32) {
    %c0_i32 = arith.constant 0 : i32
    %c0_i32_0 = arith.constant 0 : i32
    %c0_i32_1 = arith.constant 0 : i32
    return %c0_i32, %c0_i32_0 : i32, i32
  }
  func.func @transform_12(%arg0: i32) -> (i32, i32) {
    %c0_i32 = arith.constant 0 : i32
    %c0_i32_0 = arith.constant 0 : i32
    %c0_i32_1 = arith.constant 0 : i32
    return %c0_i32, %c0_i32_0 : i32, i32
  }
  func.func @transform_13(%arg0: i32) -> (i32, i32, i32) {
    %c0_i32 = arith.constant 0 : i32
    %c0_i32_0 = arith.constant 0 : i32
    %c0_i32_1 = arith.constant 0 : i32
    return %arg0, %c0_i32, %c0_i32_0 : i32, i32, i32
  }
}

module attributes {stable_mosaic.version = 11 : i64} {
  func.func @_pool_fc_kernel(%arg0: memref<2x4x256xbf16, #tpu.memory_space<vmem>>, %arg1: memref<256x10xbf16, #tpu.memory_space<vmem>>, %arg2: memref<1x10xf32, #tpu.memory_space<vmem>>, %arg3: memref<2x10xf32, #tpu.memory_space<vmem>>) attributes {dimension_semantics = [], scalar_prefetch = 0 : i64, scratch_operands = 0 : i64, tpu.core_type = #tpu.core_type<tc>} {
    %c0 = arith.constant 0 : index
    %c0_0 = arith.constant 0 : index
    %c0_1 = arith.constant 0 : index
    %0 = vector.load %arg0[%c0, %c0_0, %c0_1] : memref<2x4x256xbf16, #tpu.memory_space<vmem>>, vector<2x4x256xbf16>
    %1 = arith.extf %0 : vector<2x4x256xbf16> to vector<2x4x256xf32>
    %cst = arith.constant dense<0.000000e+00> : vector<2x256xf32>
    %2 = vector.multi_reduction <add>, %1, %cst [1] : vector<2x4x256xf32> to vector<2x256xf32>
    %cst_2 = arith.constant 4.000000e+00 : f32
    %3 = vector.broadcast %cst_2 : f32 to vector<2x256xf32>
    %4 = arith.divf %2, %3 : vector<2x256xf32>
    %5 = arith.truncf %4 : vector<2x256xf32> to vector<2x256xbf16>
    %c0_3 = arith.constant 0 : index
    %c0_4 = arith.constant 0 : index
    %6 = vector.load %arg1[%c0_3, %c0_4] : memref<256x10xbf16, #tpu.memory_space<vmem>>, vector<256x10xbf16>
    %cst_5 = arith.constant dense<0.000000e+00> : vector<2x10xf32>
    %7 = tpu.matmul %5, %6, %cst_5 {dimension_numbers = #tpu.dot_dimension_numbers<[1], [0], [0], [1], [0, 0, 1, 1], [], []>} : vector<2x256xbf16>, vector<256x10xbf16>, vector<2x10xf32> -> vector<2x10xf32>
    %c0_6 = arith.constant 0 : index
    %c0_7 = arith.constant 0 : index
    %8 = vector.load %arg2[%c0_6, %c0_7] : memref<1x10xf32, #tpu.memory_space<vmem>>, vector<1x10xf32>
    %9 = vector.broadcast %8 : vector<1x10xf32> to vector<2x10xf32>
    %10 = arith.addf %7, %9 : vector<2x10xf32>
    %c0_8 = arith.constant 0 : index
    %c0_9 = arith.constant 0 : index
    %11 = vector.load %arg3[%c0_8, %c0_9] : memref<2x10xf32, #tpu.memory_space<vmem>>, vector<2x10xf32>
    tpu.vector_store %arg3[%c0_8, %c0_9], %10 {strides = array<i32>} : memref<2x10xf32, #tpu.memory_space<vmem>>, vector<2x10xf32>,
    return
  }
}

</mosaic_0001>

<llo_original>
// kernel: shufflenet_forward.6
$region0: #{shufflenet_forward.6}
  #allocation0 [shape = 'u32[]', space=smem, size = 0x4, offset = 0x4, fixed_abs, tag = 'smem constant byte address 0x4 - core index']
  #allocation1 [shape = 'u32[144,128]{1,0:T(1,128)}', space=vmem, size = 0x12000, scoped, tag = 'internal scratch']
  %s0 = inlined_call_operand.vmem [shape: bf16[512,128], index: 0, kind: input, shape index: {}]
  %s1 = inlined_call_operand.vmem [shape: bf16[128,128], index: 1, kind: input, shape index: {}]
  %s2 = inlined_call_operand.vmem [shape: f32[1,128], index: 2, kind: input, shape index: {}]
  %s3 = inlined_call_operand.vmem [shape: f32[1,128], index: 3, kind: input, shape index: {}]
  %s4 = inlined_call_operand.vmem [shape: bf16[512,128], index: 4, kind: output, shape index: {}]
  %s5 = sld [smem:[#allocation0]]
  $region49: #{shufflenet_forward.6} parent=0
    _
  %s7 = ssub.s32 1, %s5
  %s8 = scalar_select 0, %s7, %s5
  loop: start=0, step=1, limit=4
  $region2: #{shufflenet_forward.6} parent=0 // loop_pre_header
    _
  $region3: #{shufflenet_forward.6} parent=0 // loop_header
    %s10 = sphi 0, %s14
    %p11 = scmp.ge.s32.totalorder %s10, 4
    %s20 = sphi 0, %s22
    %s23 = sphi 0, %s20
    %s24 = sphi 0, %s23
    %s40 = sphi 0, %s24
    %s44 = sphi 0, %s44
    %s46 = sphi 0, %s44
    %s47 = sphi 0, %s46
    %s61 = sphi 0, %s47
    %s65 = sphi 0, %s65
    %s67 = sphi 0, %s65
    %s68 = sphi 0, %s67
    %s82 = sphi 0, %s68
    %s86 = sphi 0, %s86
    %s88 = sphi 0, %s86
    %s89 = sphi 0, %s88
    %s103 = sphi 0, %s89
    %s109 = sphi 0, %s111
    %s112 = sphi 0, %s109
    %s113 = sphi 0, %s112
    %s129 = sphi 0, %s113
  $region4: #{shufflenet_forward.6} parent=0 // loop_header_branch
    %13 = sbr.rel (%p11) target = $region8
  $region5: #{shufflenet_forward.6} parent=0 // loop_body
    %s15 = ssub.s32 %s10, 1
    %s16 = ssub.s32 %s10, 2
    %s17 = sadd.s32 %s10, 1
    %s18 = ssub.s32 %s10, %s17
    %p19 = scmp.eq.s32.totalorder %s18, 0
    %s21 = sadd.s32 %s20, 1
    %s22 = scalar_select %p19, %s20, %s21
    %p25 = pneg %p19
    %p26 = scmp.eq.s32.totalorder %s10, 1
    %p27 = por %p25, %p26
    %p28 = scmp.ne.s32.totalorder %s20, %s23
    %p29 = scmp.eq.s32.totalorder %s10, 0
    %p30 = por %p28, %p29
    %p31 = scmp.ne.s32.totalorder %s20, %s23
    %p32 = scmp.eq.s32.totalorder %s15, 1
    %p33 = por %p31, %p32
    %p34 = scmp.ne.s32.totalorder %s23, %s24
    %p35 = scmp.eq.s32.totalorder %s15, 0
    %p36 = por %p34, %p35
    %p37 = scmp.ne.s32.totalorder %s23, %s24
    %p38 = scmp.eq.s32.totalorder %s16, 1
    %p39 = por %p37, %p38
    %p41 = scmp.ne.s32.totalorder %s24, %s40
    %p42 = scmp.eq.s32.totalorder %s16, 0
    %p43 = por %p41, %p42
    %s45 = sadd.s32 %s44, 1
    %p48 = scmp.eq.s32.totalorder %s10, 1
    %p49 = scmp.ne.s32.totalorder %s44, %s46
    %p50 = scmp.eq.s32.totalorder %s10, 0
    %p51 = por %p49, %p50
    %p52 = scmp.ne.s32.totalorder %s44, %s46
    %p53 = scmp.eq.s32.totalorder %s15, 1
    %p54 = por %p52, %p53
    %p55 = scmp.ne.s32.totalorder %s46, %s47
    %p56 = scmp.eq.s32.totalorder %s15, 0
    %p57 = por %p55, %p56
    %p58 = scmp.ne.s32.totalorder %s46, %s47
    %p59 = scmp.eq.s32.totalorder %s16, 1
    %p60 = por %p58, %p59
    %p62 = scmp.ne.s32.totalorder %s47, %s61
    %p63 = scmp.eq.s32.totalorder %s16, 0
    %p64 = por %p62, %p63
    %s66 = sadd.s32 %s65, 1
    %p69 = scmp.eq.s32.totalorder %s10, 1
    %p70 = scmp.ne.s32.totalorder %s65, %s67
    %p71 = scmp.eq.s32.totalorder %s10, 0
    %p72 = por %p70, %p71
    %p73 = scmp.ne.s32.totalorder %s65, %s67
    %p74 = scmp.eq.s32.totalorder %s15, 1
    %p75 = por %p73, %p74
    %p76 = scmp.ne.s32.totalorder %s67, %s68
    %p77 = scmp.eq.s32.totalorder %s15, 0
    %p78 = por %p76, %p77
    %p79 = scmp.ne.s32.totalorder %s67, %s68
    %p80 = scmp.eq.s32.totalorder %s16, 1
    %p81 = por %p79, %p80
    %p83 = scmp.ne.s32.totalorder %s68, %s82
    %p84 = scmp.eq.s32.totalorder %s16, 0
    %p85 = por %p83, %p84
    %s87 = sadd.s32 %s86, 1
    %p90 = scmp.eq.s32.totalorder %s10, 1
    %p91 = scmp.ne.s32.totalorder %s86, %s88
    %p92 = scmp.eq.s32.totalorder %s10, 0
    %p93 = por %p91, %p92
    %p94 = scmp.ne.s32.totalorder %s86, %s88
    %p95 = scmp.eq.s32.totalorder %s15, 1
    %p96 = por %p94, %p95
    %p97 = scmp.ne.s32.totalorder %s88, %s89
    %p98 = scmp.eq.s32.totalorder %s15, 0
    %p99 = por %p97, %p98
    %p100 = scmp.ne.s32.totalorder %s88, %s89
    %p101 = scmp.eq.s32.totalorder %s16, 1
    %p102 = por %p100, %p101
    %p104 = scmp.ne.s32.totalorder %s89, %s103
    %p105 = scmp.eq.s32.totalorder %s16, 0
    %p106 = por %p104, %p105
    %s107 = ssub.s32 %s10, %s17
    %p108 = scmp.eq.s32.totalorder %s107, 0
    %s110 = sadd.s32 %s109, 1
    %s111 = scalar_select %p108, %s109, %s110
    %p114 = pneg %p108
    %p115 = scmp.eq.s32.totalorder %s10, 1
    %p116 = por %p114, %p115
    %p117 = scmp.ne.s32.totalorder %s109, %s112
    %p118 = scmp.eq.s32.totalorder %s10, 0
    %p119 = por %p117, %p118
    %p120 = scmp.ne.s32.totalorder %s109, %s112
    %p121 = scmp.eq.s32.totalorder %s15, 1
    %p122 = por %p120, %p121
    %p123 = scmp.ne.s32.totalorder %s112, %s113
    %p124 = scmp.eq.s32.totalorder %s15, 0
    %p125 = por %p123, %p124
    %p126 = scmp.ne.s32.totalorder %s112, %s113
    %p127 = scmp.eq.s32.totalorder %s16, 1
    %p128 = por %p126, %p127
    %p130 = scmp.ne.s32.totalorder %s113, %s129
    %p131 = scmp.eq.s32.totalorder %s16, 0
    %p132 = por %p130, %p131
    %p133 = scmp.le.s32.totalorder 1, %s10
    %p134 = scmp.lt.s32.totalorder %s10, 3
    %p135 = pnand %p133, %p134
    %p136 = pneg %p135
    // Predicated region
    $region9: #{shufflenet_forward.6} parent=5 // pred_check
      _
    $region10: #{shufflenet_forward.6} parent=5 // pred_check_branch
      %138 = sbr.rel (%p135) target = $region12
    $region11: #{shufflenet_forward.6} parent=5 // pred_region
      %s139 = ssub.s32 %s10, 1
      // Predicated region
      $region13: #{shufflenet_forward.6} parent=11 // pred_check
        %p140 = pneg %p57
      $region14: #{shufflenet_forward.6} parent=11 // pred_check_branch
        %142 = sbr.rel (%p140) target = $region16
      $region15: #{shufflenet_forward.6} parent=11 // pred_region
        _
      $region16: #{shufflenet_forward.6} parent=11 // pred_fallthru
        _
      // Predicated region
      $region17: #{shufflenet_forward.6} parent=11 // pred_check
        %p143 = pneg %p78
      $region18: #{shufflenet_forward.6} parent=11 // pred_check_branch
        %145 = sbr.rel (%p143) target = $region20
      $region19: #{shufflenet_forward.6} parent=11 // pred_region
        _
      $region20: #{shufflenet_forward.6} parent=11 // pred_fallthru
        _
      // Predicated region
      $region21: #{shufflenet_forward.6} parent=11 // pred_check
        %p146 = pneg %p99
      $region22: #{shufflenet_forward.6} parent=11 // pred_check_branch
        %148 = sbr.rel (%p146) target = $region24
      $region23: #{shufflenet_forward.6} parent=11 // pred_region
        _
      $region24: #{shufflenet_forward.6} parent=11 // pred_fallthru
        _
    $region12: #{shufflenet_forward.6} parent=5 // pred_fallthru
      _
    %p149 = scmp.lt.s32.totalorder %s10, 2
    // Predicated region
    $region25: #{shufflenet_forward.6} parent=5 // pred_check
      %p150 = pneg %p149
    $region26: #{shufflenet_forward.6} parent=5 // pred_check_branch
      %152 = sbr.rel (%p150) target = $region28
    $region27: #{shufflenet_forward.6} parent=5 // pred_region
      // Predicated region
      $region29: #{shufflenet_forward.6} parent=27 // pred_check
        %p153 = pneg %p30
      $region30: #{shufflenet_forward.6} parent=27 // pred_check_branch
        %155 = sbr.rel (%p153) target = $region32
      $region31: #{shufflenet_forward.6} parent=27 // pred_region
        %s156 = smul.u32 32, %s10
        %p157 = scmp.lt.s32.totalorder %s156, 63
        %s158 = scalar_select %p157, %s156, 63
        %s159 = smul.addr %s158, 4
        %s160 = scalar_lea.vmem %s0, %s159
        %s161 = smul.u32 32, %s10
      $region32: #{shufflenet_forward.6} parent=27 // pred_fallthru
        _
    $region28: #{shufflenet_forward.6} parent=5 // pred_fallthru
      _
    %p162 = scmp.le.s32.totalorder 1, %s10
    %p163 = scmp.lt.s32.totalorder %s10, 3
    %p164 = pnand %p162, %p163
    %p165 = pneg %p164
    // Predicated region
    $region33: #{shufflenet_forward.6} parent=5 // pred_check
      _
    $region34: #{shufflenet_forward.6} parent=5 // pred_check_branch
      %167 = sbr.rel (%p164) target = $region36
    $region35: #{shufflenet_forward.6} parent=5 // pred_region
      %s168 = ssub.s32 %s10, 1
      %s169 = smul.u32 32, %s15
      %p170 = scmp.lt.s32.totalorder %s169, 63
      %s171 = scalar_select %p170, %s169, 63
      %s172 = smul.addr %s171, 4
      %s173 = scalar_lea.vmem %s0, %s172
      %p174 = pneg %p36
      %p175 = pneg %p33
      %p176 = pneg %p57
      %p177 = pneg %p54
      %p178 = pneg %p78
      %p179 = pneg %p75
      %p180 = pneg %p99
      %p181 = pneg %p96
      %p182 = pneg %p125
      %p183 = pneg %p122
      %s184 = smul.u32 32, %s15
      %p185 = scmp.lt.s32.totalorder %s184, 63
      %s186 = scalar_select %p185, %s184, 63
      %s187 = smul.addr %s186, 4
      %s188 = scalar_lea.vmem %s4, %s187
      %s189 = smul.u32 32, %s15
      %p190 = scmp.lt.s32.totalorder %s189, 63
      %s191 = scalar_select %p190, %s189, 63
      %s192 = smul.addr %s191, 4
      %s193 = scalar_lea.vmem %s0, %s192
      %s194 = smul.u32 32, %s15
      %s195 = smul.u32 32, %s15
      %p196 = scmp.lt.s32.totalorder %s195, 63
      %s197 = scalar_select %p196, %s195, 63
      %s198 = smul.addr %s197, 4
      %s199 = scalar_lea.vmem %s4, %s198
      %s200 = smul.u32 32, %s15
      %v202 = vld [vmem:[%s193] sm:$0xf]
      %v203 = vld [vmem:[%s193 + $0x4] sm:$0xf]
      %v204 = vld [vmem:[%s193 + $0x8] sm:$0xf]
      %v205 = vld [vmem:[%s193 + $0xc] sm:$0xf]
      %v206 = vld [vmem:[%s193 + $0x10] sm:$0xf]
      %v207 = vld [vmem:[%s193 + $0x14] sm:$0xf]
      %v208 = vld [vmem:[%s193 + $0x18] sm:$0xf]
      %v209 = vld [vmem:[%s193 + $0x1c] sm:$0xf]
      %v210 = vld [vmem:[%s193 + $0x20] sm:$0xf]
      %v211 = vld [vmem:[%s193 + $0x24] sm:$0xf]
      %v212 = vld [vmem:[%s193 + $0x28] sm:$0xf]
      %v213 = vld [vmem:[%s193 + $0x2c] sm:$0xf]
      %v214 = vld [vmem:[%s193 + $0x30] sm:$0xf]
      %v215 = vld [vmem:[%s193 + $0x34] sm:$0xf]
      %v216 = vld [vmem:[%s193 + $0x38] sm:$0xf]
      %v217 = vld [vmem:[%s193 + $0x3c] sm:$0xf]
      %v218 = vld [vmem:[%s193 + $0x40] sm:$0xf]
      %v219 = vld [vmem:[%s193 + $0x44] sm:$0xf]
      %v220 = vld [vmem:[%s193 + $0x48] sm:$0xf]
      %v221 = vld [vmem:[%s193 + $0x4c] sm:$0xf]
      %v222 = vld [vmem:[%s193 + $0x50] sm:$0xf]
      %v223 = vld [vmem:[%s193 + $0x54] sm:$0xf]
      %v224 = vld [vmem:[%s193 + $0x58] sm:$0xf]
      %v225 = vld [vmem:[%s193 + $0x5c] sm:$0xf]
      %v226 = vld [vmem:[%s193 + $0x60] sm:$0xf]
      %v227 = vld [vmem:[%s193 + $0x64] sm:$0xf]
      %v228 = vld [vmem:[%s193 + $0x68] sm:$0xf]
      %v229 = vld [vmem:[%s193 + $0x6c] sm:$0xf]
      %v230 = vld [vmem:[%s193 + $0x70] sm:$0xf]
      %v231 = vld [vmem:[%s193 + $0x74] sm:$0xf]
      %v232 = vld [vmem:[%s193 + $0x78] sm:$0xf]
      %v233 = vld [vmem:[%s193 + $0x7c] sm:$0xf]
      %v234 = vld [vmem:[%s1] sm:$0xf]
      %v235 = vld [vmem:[%s1 + $0x4] sm:$0xf]
      %v236 = vld [vmem:[%s1 + $0x8] sm:$0xf]
      %v237 = vld [vmem:[%s1 + $0xc] sm:$0xf]
      %v238 = vld [vmem:[%s1 + $0x10] sm:$0xf]
      %v239 = vld [vmem:[%s1 + $0x14] sm:$0xf]
      %v240 = vld [vmem:[%s1 + $0x18] sm:$0xf]
      %v241 = vld [vmem:[%s1 + $0x1c] sm:$0xf]
      %v242 = vld [vmem:[%s1 + $0x20] sm:$0xf]
      %v243 = vld [vmem:[%s1 + $0x24] sm:$0xf]
      %v244 = vld [vmem:[%s1 + $0x28] sm:$0xf]
      %v245 = vld [vmem:[%s1 + $0x2c] sm:$0xf]
      %v246 = vld [vmem:[%s1 + $0x30] sm:$0xf]
      %v247 = vld [vmem:[%s1 + $0x34] sm:$0xf]
      %v248 = vld [vmem:[%s1 + $0x38] sm:$0xf]
      %v249 = vld [vmem:[%s1 + $0x3c] sm:$0xf]
      %v282 = vunpack.c.l.b16 %v202
      %v283 = vunpack.c.l.b16 %v203
      %v284 = vunpack.c.l.b16 %v204
      %v285 = vunpack.c.l.b16 %v205
      %v286 = vunpack.c.l.b16 %v206
      %v287 = vunpack.c.l.b16 %v207
      %v288 = vunpack.c.l.b16 %v208
      %v289 = vunpack.c.l.b16 %v209
      %v290 = vunpack.c.l.b16 %v210
      %v291 = vunpack.c.l.b16 %v211
      %v292 = vunpack.c.l.b16 %v212
      %v293 = vunpack.c.l.b16 %v213
      %v294 = vunpack.c.l.b16 %v214
      %v295 = vunpack.c.l.b16 %v215
      %v296 = vunpack.c.l.b16 %v216
      %v297 = vunpack.c.l.b16 %v217
      %v298 = vunpack.c.l.b16 %v218
      %v299 = vunpack.c.l.b16 %v219
      %v300 = vunpack.c.l.b16 %v220
      %v301 = vunpack.c.l.b16 %v221
      %v302 = vunpack.c.l.b16 %v222
      %v303 = vunpack.c.l.b16 %v223
      %v304 = vunpack.c.l.b16 %v224
      %v305 = vunpack.c.l.b16 %v225
      %v306 = vunpack.c.l.b16 %v226
      %v307 = vunpack.c.l.b16 %v227
      %v308 = vunpack.c.l.b16 %v228
      %v309 = vunpack.c.l.b16 %v229
      %v310 = vunpack.c.l.b16 %v230
      %v311 = vunpack.c.l.b16 %v231
      %v312 = vunpack.c.l.b16 %v232
      %v313 = vunpack.c.l.b16 %v233
      %v314 = vpack.c.b16 %v283, %v282
      %v315 = vpack.c.b16 %v285, %v284
      %v316 = vpack.c.b16 %v287, %v286
      %v317 = vpack.c.b16 %v289, %v288
      %v318 = vpack.c.b16 %v291, %v290
      %v319 = vpack.c.b16 %v293, %v292
      %v320 = vpack.c.b16 %v295, %v294
      %v321 = vpack.c.b16 %v297, %v296
      %v322 = vpack.c.b16 %v299, %v298
      %v323 = vpack.c.b16 %v301, %v300
      %v324 = vpack.c.b16 %v303, %v302
      %v325 = vpack.c.b16 %v305, %v304
      %v326 = vpack.c.b16 %v307, %v306
      %v327 = vpack.c.b16 %v309, %v308
      %v328 = vpack.c.b16 %v311, %v310
      %v329 = vpack.c.b16 %v313, %v312
      %v362 = vunpack.c.l.b16 %v234
      %v363 = vunpack.c.l.b16 %v235
      %v364 = vunpack.c.l.b16 %v236
      %v365 = vunpack.c.l.b16 %v237
      %v366 = vunpack.c.l.b16 %v238
      %v367 = vunpack.c.l.b16 %v239
      %v368 = vunpack.c.l.b16 %v240
      %v369 = vunpack.c.l.b16 %v241
      %v370 = vunpack.c.l.b16 %v242
      %v371 = vunpack.c.l.b16 %v243
      %v372 = vunpack.c.l.b16 %v244
      %v373 = vunpack.c.l.b16 %v245
      %v374 = vunpack.c.l.b16 %v246
      %v375 = vunpack.c.l.b16 %v247
      %v376 = vunpack.c.l.b16 %v248
      %v377 = vunpack.c.l.b16 %v249
      %v378 = vpack.c.b16 %v363, %v362
      %v379 = vpack.c.b16 %v365, %v364
      %v380 = vpack.c.b16 %v367, %v366
      %v381 = vpack.c.b16 %v369, %v368
      %v382 = vpack.c.b16 %v371, %v370
      %v383 = vpack.c.b16 %v373, %v372
      %v384 = vpack.c.b16 %v375, %v374
      %v385 = vpack.c.b16 %v377, %v376
      %394 = vmatprep.subr.bf16.mxu0 0
      %395 = vmatpush1.bf16.msra.mxu0 %v378
      %396 = vmatprep.subr.bf16.mxu0 0
      %397 = vmatpush1.bf16.msra.mxu0 %v379
      %398 = vmatprep.subr.bf16.mxu0 0
      %399 = vmatpush1.bf16.msra.mxu0 %v380
      %400 = vmatprep.subr.bf16.mxu0 0
      %401 = vmatpush1.bf16.msra.mxu0 %v381
      %402 = vmatprep.subr.bf16.mxu0 0
      %403 = vmatpush1.bf16.msra.mxu0 %v382
      %404 = vmatprep.subr.bf16.mxu0 0
      %405 = vmatpush1.bf16.msra.mxu0 %v383
      %406 = vmatprep.subr.bf16.mxu0 0
      %407 = vmatpush1.bf16.msra.mxu0 %v384
      %408 = vmatprep.subr.bf16.mxu0 0
      %409 = vmatpush1.bf16.msra.mxu0 %v385
      %410 = vmatprep.subr.bf16.mxu0 0
      %411 = vmatpush1.bf16.msra.mxu0 0
      %412 = vmatprep.subr.bf16.mxu0 0
      %413 = vmatpush1.bf16.msra.mxu0 0
      %414 = vmatprep.subr.bf16.mxu0 0
      %415 = vmatpush1.bf16.msra.mxu0 0
      %416 = vmatprep.subr.bf16.mxu0 0
      %417 = vmatpush1.bf16.msra.mxu0 0
      %418 = vmatprep.subr.bf16.mxu0 0
      %419 = vmatpush1.bf16.msra.mxu0 0
      %420 = vmatprep.subr.bf16.mxu0 0
      %421 = vmatpush1.bf16.msra.mxu0 0
      %422 = vmatprep.subr.bf16.mxu0 0
      %423 = vmatpush1.bf16.msra.mxu0 0
      %424 = vmatprep.subr.bf16.mxu0 0
      %425 = vmatpush1.bf16.msra.mxu0 0
      %426 = vmatprep.mubr.bf16.mxu0 0
      %427 = vmatmul.mubr.bf16.gmra.mrb[0].mxu0 %v314
      %v428 = vpop.f32.mrb[0].mxu0
      %v429 = vadd.f32 0.0, %v428
      %v430 = vpop.f32.mrb[0].mxu0
      %v431 = vpop.f32.mrb[0].mxu0
      %v432 = vadd.f32 0.0, %v431
      %v433 = vpop.f32.mrb[0].mxu0
      %434 = vmatprep.mubr.bf16.mxu0 0
      %435 = vmatmul.mubr.bf16.gmra.mrb[0].mxu0 %v315
      %v436 = vpop.f32.mrb[0].mxu0
      %v437 = vadd.f32 0.0, %v436
      %v438 = vpop.f32.mrb[0].mxu0
      %v439 = vpop.f32.mrb[0].mxu0
      %v440 = vadd.f32 0.0, %v439
      %v441 = vpop.f32.mrb[0].mxu0
      %442 = vmatprep.mubr.bf16.mxu0 0
      %443 = vmatmul.mubr.bf16.gmra.mrb[0].mxu0 %v316
      %v444 = vpop.f32.mrb[0].mxu0
      %v445 = vadd.f32 0.0, %v444
      %v446 = vpop.f32.mrb[0].mxu0
      %v447 = vpop.f32.mrb[0].mxu0
      %v448 = vadd.f32 0.0, %v447
      %v449 = vpop.f32.mrb[0].mxu0
      %450 = vmatprep.mubr.bf16.mxu0 0
      %451 = vmatmul.mubr.bf16.gmra.mrb[0].mxu0 %v317
      %v452 = vpop.f32.mrb[0].mxu0
      %v453 = vadd.f32 0.0, %v452
      %v454 = vpop.f32.mrb[0].mxu0
      %v455 = vpop.f32.mrb[0].mxu0
      %v456 = vadd.f32 0.0, %v455
      %v457 = vpop.f32.mrb[0].mxu0
      %458 = vmatprep.mubr.bf16.mxu0 0
      %459 = vmatmul.mubr.bf16.gmra.mrb[0].mxu0 %v318
      %v460 = vpop.f32.mrb[0].mxu0
      %v461 = vadd.f32 0.0, %v460
      %v462 = vpop.f32.mrb[0].mxu0
      %v463 = vpop.f32.mrb[0].mxu0
      %v464 = vadd.f32 0.0, %v463
      %v465 = vpop.f32.mrb[0].mxu0
      %466 = vmatprep.mubr.bf16.mxu0 0
      %467 = vmatmul.mubr.bf16.gmra.mrb[0].mxu0 %v319
      %v468 = vpop.f32.mrb[0].mxu0
      %v469 = vadd.f32 0.0, %v468
      %v470 = vpop.f32.mrb[0].mxu0
      %v471 = vpop.f32.mrb[0].mxu0
      %v472 = vadd.f32 0.0, %v471
      %v473 = vpop.f32.mrb[0].mxu0
      %474 = vmatprep.mubr.bf16.mxu0 0
      %475 = vmatmul.mubr.bf16.gmra.mrb[0].mxu0 %v320
      %v476 = vpop.f32.mrb[0].mxu0
      %v477 = vadd.f32 0.0, %v476
      %v478 = vpop.f32.mrb[0].mxu0
      %v479 = vpop.f32.mrb[0].mxu0
      %v480 = vadd.f32 0.0, %v479
      %v481 = vpop.f32.mrb[0].mxu0
      %482 = vmatprep.mubr.bf16.mxu0 0
      %483 = vmatmul.mubr.bf16.gmra.mrb[0].mxu0 %v321
      %v484 = vpop.f32.mrb[0].mxu0
      %v485 = vadd.f32 0.0, %v484
      %v486 = vpop.f32.mrb[0].mxu0
      %v487 = vpop.f32.mrb[0].mxu0
      %v488 = vadd.f32 0.0, %v487
      %v489 = vpop.f32.mrb[0].mxu0
      %490 = vmatprep.mubr.bf16.mxu0 0
      %491 = vmatmul.mubr.bf16.gmra.mrb[0].mxu0 %v322
      %v492 = vpop.f32.mrb[0].mxu0
      %v493 = vadd.f32 0.0, %v492
      %v494 = vpop.f32.mrb[0].mxu0
      %v495 = vpop.f32.mrb[0].mxu0
      %v496 = vadd.f32 0.0, %v495
      %v497 = vpop.f32.mrb[0].mxu0
      %498 = vmatprep.mubr.bf16.mxu0 0
      %499 = vmatmul.mubr.bf16.gmra.mrb[0].mxu0 %v323
      %v500 = vpop.f32.mrb[0].mxu0
      %v501 = vadd.f32 0.0, %v500
      %v502 = vpop.f32.mrb[0].mxu0
      %v503 = vpop.f32.mrb[0].mxu0
      %v504 = vadd.f32 0.0, %v503
      %v505 = vpop.f32.mrb[0].mxu0
      %506 = vmatprep.mubr.bf16.mxu0 0
      %507 = vmatmul.mubr.bf16.gmra.mrb[0].mxu0 %v324
      %v508 = vpop.f32.mrb[0].mxu0
      %v509 = vadd.f32 0.0, %v508
      %v510 = vpop.f32.mrb[0].mxu0
      %v511 = vpop.f32.mrb[0].mxu0
      %v512 = vadd.f32 0.0, %v511
      %v513 = vpop.f32.mrb[0].mxu0
      %514 = vmatprep.mubr.bf16.mxu0 0
      %515 = vmatmul.mubr.bf16.gmra.mrb[0].mxu0 %v325
      %v516 = vpop.f32.mrb[0].mxu0
      %v517 = vadd.f32 0.0, %v516
      %v518 = vpop.f32.mrb[0].mxu0
      %v519 = vpop.f32.mrb[0].mxu0
      %v520 = vadd.f32 0.0, %v519
      %v521 = vpop.f32.mrb[0].mxu0
      %522 = vmatprep.mubr.bf16.mxu0 0
      %523 = vmatmul.mubr.bf16.gmra.mrb[0].mxu0 %v326
      %v524 = vpop.f32.mrb[0].mxu0
      %v525 = vadd.f32 0.0, %v524
      %v526 = vpop.f32.mrb[0].mxu0
      %v527 = vpop.f32.mrb[0].mxu0
      %v528 = vadd.f32 0.0, %v527
      %v529 = vpop.f32.mrb[0].mxu0
      %530 = vmatprep.mubr.bf16.mxu0 0
      %531 = vmatmul.mubr.bf16.gmra.mrb[0].mxu0 %v327
      %v532 = vpop.f32.mrb[0].mxu0
      %v533 = vadd.f32 0.0, %v532
      %v534 = vpop.f32.mrb[0].mxu0
      %v535 = vpop.f32.mrb[0].mxu0
      %v536 = vadd.f32 0.0, %v535
      %v537 = vpop.f32.mrb[0].mxu0
      %538 = vmatprep.mubr.bf16.mxu0 0
      %539 = vmatmul.mubr.bf16.gmra.mrb[0].mxu0 %v328
      %v540 = vpop.f32.mrb[0].mxu0
      %v541 = vadd.f32 0.0, %v540
      %v542 = vpop.f32.mrb[0].mxu0
      %v543 = vpop.f32.mrb[0].mxu0
      %v544 = vadd.f32 0.0, %v543
      %v545 = vpop.f32.mrb[0].mxu0
      %546 = vmatprep.mubr.bf16.mxu0 0
      %547 = vmatmul.mubr.bf16.gmra.mrb[0].mxu0 %v329
      %v548 = vpop.f32.mrb[0].mxu0
      %v549 = vadd.f32 0.0, %v548
      %v550 = vpop.f32.mrb[0].mxu0
      %v551 = vpop.f32.mrb[0].mxu0
      %v552 = vadd.f32 0.0, %v551
      %v553 = vpop.f32.mrb[0].mxu0
      %554 = vdwg.mxu0
      %v555 = vld [vmem:[%s2] sm:$0x1]
      %v557 = vlaneseq
      %v558 = vshrl.u32 %v557, 7
      %v559 = vsub.s32 0, %v558
      %v560 = vrot.slane %v555, %v559
      %v562 = vmul.f32 %v429, %v560
      %v563 = vmul.f32 %v432, %v560
      %v564 = vmul.f32 %v437, %v560
      %v565 = vmul.f32 %v440, %v560
      %v566 = vmul.f32 %v445, %v560
      %v567 = vmul.f32 %v448, %v560
      %v568 = vmul.f32 %v453, %v560
      %v569 = vmul.f32 %v456, %v560
      %v570 = vmul.f32 %v461, %v560
      %v571 = vmul.f32 %v464, %v560
      %v572 = vmul.f32 %v469, %v560
      %v573 = vmul.f32 %v472, %v560
      %v574 = vmul.f32 %v477, %v560
      %v575 = vmul.f32 %v480, %v560
      %v576 = vmul.f32 %v485, %v560
      %v577 = vmul.f32 %v488, %v560
      %v578 = vmul.f32 %v493, %v560
      %v579 = vmul.f32 %v496, %v560
      %v580 = vmul.f32 %v501, %v560
      %v581 = vmul.f32 %v504, %v560
      %v582 = vmul.f32 %v509, %v560
      %v583 = vmul.f32 %v512, %v560
      %v584 = vmul.f32 %v517, %v560
      %v585 = vmul.f32 %v520, %v560
      %v586 = vmul.f32 %v525, %v560
      %v587 = vmul.f32 %v528, %v560
      %v588 = vmul.f32 %v533, %v560
      %v589 = vmul.f32 %v536, %v560
      %v590 = vmul.f32 %v541, %v560
      %v591 = vmul.f32 %v544, %v560
      %v592 = vmul.f32 %v549, %v560
      %v593 = vmul.f32 %v552, %v560
      %v594 = vld [vmem:[%s3] sm:$0x1]
      %v596 = vlaneseq
      %v597 = vshrl.u32 %v596, 7
      %v598 = vsub.s32 0, %v597
      %v599 = vrot.slane %v594, %v598
      %v601 = vadd.f32 %v562, %v599
      %v602 = vadd.f32 %v563, %v599
      %v603 = vadd.f32 %v564, %v599
      %v604 = vadd.f32 %v565, %v599
      %v605 = vadd.f32 %v566, %v599
      %v606 = vadd.f32 %v567, %v599
      %v607 = vadd.f32 %v568, %v599
      %v608 = vadd.f32 %v569, %v599
      %v609 = vadd.f32 %v570, %v599
      %v610 = vadd.f32 %v571, %v599
      %v611 = vadd.f32 %v572, %v599
      %v612 = vadd.f32 %v573, %v599
      %v613 = vadd.f32 %v574, %v599
      %v614 = vadd.f32 %v575, %v599
      %v615 = vadd.f32 %v576, %v599
      %v616 = vadd.f32 %v577, %v599
      %v617 = vadd.f32 %v578, %v599
      %v618 = vadd.f32 %v579, %v599
      %v619 = vadd.f32 %v580, %v599
      %v620 = vadd.f32 %v581, %v599
      %v621 = vadd.f32 %v582, %v599
      %v622 = vadd.f32 %v583, %v599
      %v623 = vadd.f32 %v584, %v599
      %v624 = vadd.f32 %v585, %v599
      %v625 = vadd.f32 %v586, %v599
      %v626 = vadd.f32 %v587, %v599
      %v627 = vadd.f32 %v588, %v599
      %v628 = vadd.f32 %v589, %v599
      %v629 = vadd.f32 %v590, %v599
      %v630 = vadd.f32 %v591, %v599
      %v631 = vadd.f32 %v592, %v599
      %v632 = vadd.f32 %v593, %v599
      %v633 = vmax.f32 %v601, 0.0
      %v634 = vmax.f32 %v602, 0.0
      %v635 = vmax.f32 %v603, 0.0
      %v636 = vmax.f32 %v604, 0.0
      %v637 = vmax.f32 %v605, 0.0
      %v638 = vmax.f32 %v606, 0.0
      %v639 = vmax.f32 %v607, 0.0
      %v640 = vmax.f32 %v608, 0.0
      %v641 = vmax.f32 %v609, 0.0
      %v642 = vmax.f32 %v610, 0.0
      %v643 = vmax.f32 %v611, 0.0
      %v644 = vmax.f32 %v612, 0.0
      %v645 = vmax.f32 %v613, 0.0
      %v646 = vmax.f32 %v614, 0.0
      %v647 = vmax.f32 %v615, 0.0
      %v648 = vmax.f32 %v616, 0.0
      %v649 = vmax.f32 %v617, 0.0
      %v650 = vmax.f32 %v618, 0.0
      %v651 = vmax.f32 %v619, 0.0
      %v652 = vmax.f32 %v620, 0.0
      %v653 = vmax.f32 %v621, 0.0
      %v654 = vmax.f32 %v622, 0.0
      %v655 = vmax.f32 %v623, 0.0
      %v656 = vmax.f32 %v624, 0.0
      %v657 = vmax.f32 %v625, 0.0
      %v658 = vmax.f32 %v626, 0.0
      %v659 = vmax.f32 %v627, 0.0
      %v660 = vmax.f32 %v628, 0.0
      %v661 = vmax.f32 %v629, 0.0
      %v662 = vmax.f32 %v630, 0.0
      %v663 = vmax.f32 %v631, 0.0
      %v664 = vmax.f32 %v632, 0.0
      %v665 = vpack.c.bf16 %v634, %v633
      %v666 = vpack.c.bf16 %v636, %v635
      %v667 = vpack.c.bf16 %v638, %v637
      %v668 = vpack.c.bf16 %v640, %v639
      %v669 = vpack.c.bf16 %v642, %v641
      %v670 = vpack.c.bf16 %v644, %v643
      %v671 = vpack.c.bf16 %v646, %v645
      %v672 = vpack.c.bf16 %v648, %v647
      %v673 = vpack.c.bf16 %v650, %v649
      %v674 = vpack.c.bf16 %v652, %v651
      %v675 = vpack.c.bf16 %v654, %v653
      %v676 = vpack.c.bf16 %v656, %v655
      %v677 = vpack.c.bf16 %v658, %v657
      %v678 = vpack.c.bf16 %v660, %v659
      %v679 = vpack.c.bf16 %v662, %v661
      %v680 = vpack.c.bf16 %v664, %v663
      %v697 = vunpack.c.l.b16 %v665
      %v698 = vunpack.c.h.b16 %v665
      %v699 = vunpack.c.l.b16 %v666
      %v700 = vunpack.c.h.b16 %v666
      %v701 = vunpack.c.l.b16 %v667
      %v702 = vunpack.c.h.b16 %v667
      %v703 = vunpack.c.l.b16 %v668
      %v704 = vunpack.c.h.b16 %v668
      %v705 = vunpack.c.l.b16 %v669
      %v706 = vunpack.c.h.b16 %v669
      %v707 = vunpack.c.l.b16 %v670
      %v708 = vunpack.c.h.b16 %v670
      %v709 = vunpack.c.l.b16 %v671
      %v710 = vunpack.c.h.b16 %v671
      %v711 = vunpack.c.l.b16 %v672
      %v712 = vunpack.c.h.b16 %v672
      %v713 = vunpack.c.l.b16 %v673
      %v714 = vunpack.c.h.b16 %v673
      %v715 = vunpack.c.l.b16 %v674
      %v716 = vunpack.c.h.b16 %v674
      %v717 = vunpack.c.l.b16 %v675
      %v718 = vunpack.c.h.b16 %v675
      %v719 = vunpack.c.l.b16 %v676
      %v720 = vunpack.c.h.b16 %v676
      %v721 = vunpack.c.l.b16 %v677
      %v722 = vunpack.c.h.b16 %v677
      %v723 = vunpack.c.l.b16 %v678
      %v724 = vunpack.c.h.b16 %v678
      %v725 = vunpack.c.l.b16 %v679
      %v726 = vunpack.c.h.b16 %v679
      %v727 = vunpack.c.l.b16 %v680
      %v728 = vunpack.c.h.b16 %v680
      %v729 = vpack.c.b16 %v697, %v697
      %v730 = vpack.c.b16 %v698, %v698
      %v731 = vpack.c.b16 %v699, %v699
      %v732 = vpack.c.b16 %v700, %v700
      %v733 = vpack.c.b16 %v701, %v701
      %v734 = vpack.c.b16 %v702, %v702
      %v735 = vpack.c.b16 %v703, %v703
      %v736 = vpack.c.b16 %v704, %v704
      %v737 = vpack.c.b16 %v705, %v705
      %v738 = vpack.c.b16 %v706, %v706
      %v739 = vpack.c.b16 %v707, %v707
      %v740 = vpack.c.b16 %v708, %v708
      %v741 = vpack.c.b16 %v709, %v709
      %v742 = vpack.c.b16 %v710, %v710
      %v743 = vpack.c.b16 %v711, %v711
      %v744 = vpack.c.b16 %v712, %v712
      %v745 = vpack.c.b16 %v713, %v713
      %v746 = vpack.c.b16 %v714, %v714
      %v747 = vpack.c.b16 %v715, %v715
      %v748 = vpack.c.b16 %v716, %v716
      %v749 = vpack.c.b16 %v717, %v717
      %v750 = vpack.c.b16 %v718, %v718
      %v751 = vpack.c.b16 %v719, %v719
      %v752 = vpack.c.b16 %v720, %v720
      %v753 = vpack.c.b16 %v721, %v721
      %v754 = vpack.c.b16 %v722, %v722
      %v755 = vpack.c.b16 %v723, %v723
      %v756 = vpack.c.b16 %v724, %v724
      %v757 = vpack.c.b16 %v725, %v725
      %v758 = vpack.c.b16 %v726, %v726
      %v759 = vpack.c.b16 %v727, %v727
      %v760 = vpack.c.b16 %v728, %v728
      %793 = vst [vmem:[%s199] sm:$0xf] %v729
      %794 = vst [vmem:[%s199 + $0x4] sm:$0xf] %v730
      %795 = vst [vmem:[%s199 + $0x8] sm:$0xf] %v731
      %796 = vst [vmem:[%s199 + $0xc] sm:$0xf] %v732
      %797 = vst [vmem:[%s199 + $0x10] sm:$0xf] %v733
      %798 = vst [vmem:[%s199 + $0x14] sm:$0xf] %v734
      %799 = vst [vmem:[%s199 + $0x18] sm:$0xf] %v735
      %800 = vst [vmem:[%s199 + $0x1c] sm:$0xf] %v736
      %801 = vst [vmem:[%s199 + $0x20] sm:$0xf] %v737
      %802 = vst [vmem:[%s199 + $0x24] sm:$0xf] %v738
      %803 = vst [vmem:[%s199 + $0x28] sm:$0xf] %v739
      %804 = vst [vmem:[%s199 + $0x2c] sm:$0xf] %v740
      %805 = vst [vmem:[%s199 + $0x30] sm:$0xf] %v741
      %806 = vst [vmem:[%s199 + $0x34] sm:$0xf] %v742
      %807 = vst [vmem:[%s199 + $0x38] sm:$0xf] %v743
      %808 = vst [vmem:[%s199 + $0x3c] sm:$0xf] %v744
      %809 = vst [vmem:[%s199 + $0x40] sm:$0xf] %v745
      %810 = vst [vmem:[%s199 + $0x44] sm:$0xf] %v746
      %811 = vst [vmem:[%s199 + $0x48] sm:$0xf] %v747
      %812 = vst [vmem:[%s199 + $0x4c] sm:$0xf] %v748
      %813 = vst [vmem:[%s199 + $0x50] sm:$0xf] %v749
      %814 = vst [vmem:[%s199 + $0x54] sm:$0xf] %v750
      %815 = vst [vmem:[%s199 + $0x58] sm:$0xf] %v751
      %816 = vst [vmem:[%s199 + $0x5c] sm:$0xf] %v752
      %817 = vst [vmem:[%s199 + $0x60] sm:$0xf] %v753
      %818 = vst [vmem:[%s199 + $0x64] sm:$0xf] %v754
      %819 = vst [vmem:[%s199 + $0x68] sm:$0xf] %v755
      %820 = vst [vmem:[%s199 + $0x6c] sm:$0xf] %v756
      %821 = vst [vmem:[%s199 + $0x70] sm:$0xf] %v757
      %822 = vst [vmem:[%s199 + $0x74] sm:$0xf] %v758
      %823 = vst [vmem:[%s199 + $0x78] sm:$0xf] %v759
      %824 = vst [vmem:[%s199 + $0x7c] sm:$0xf] %v760
      %s825 = smul.u32 32, %s15
      %p826 = scmp.lt.s32.totalorder %s825, 63
      %s827 = scalar_select %p826, %s825, 63
      %s828 = smul.addr %s827, 4
      %s829 = scalar_lea.vmem %s4, %s828
      // Predicated region
      $region37: #{shufflenet_forward.6} parent=35 // pred_check
        %p830 = pneg %p122
      $region38: #{shufflenet_forward.6} parent=35 // pred_check_branch
        %832 = sbr.rel (%p830) target = $region40
      $region39: #{shufflenet_forward.6} parent=35 // pred_region
        %s833 = smul.u32 32, %s15
      $region40: #{shufflenet_forward.6} parent=35 // pred_fallthru
        _
    $region36: #{shufflenet_forward.6} parent=5 // pred_fallthru
      _
    %p834 = scmp.le.s32.totalorder 2, %s10
    // Predicated region
    $region41: #{shufflenet_forward.6} parent=5 // pred_check
      %p835 = pneg %p834
    $region42: #{shufflenet_forward.6} parent=5 // pred_check_branch
      %837 = sbr.rel (%p835) target = $region44
    $region43: #{shufflenet_forward.6} parent=5 // pred_region
      %s838 = ssub.s32 %s10, 2
      // Predicated region
      $region45: #{shufflenet_forward.6} parent=43 // pred_check
        %p839 = pneg %p128
      $region46: #{shufflenet_forward.6} parent=43 // pred_check_branch
        %841 = sbr.rel (%p839) target = $region48
      $region47: #{shufflenet_forward.6} parent=43 // pred_region
        %s842 = smul.u32 32, %s16
        %p843 = scmp.lt.s32.totalorder %s842, 63
        %s844 = scalar_select %p843, %s842, 63
        %s845 = smul.addr %s844, 4
        %s846 = scalar_lea.vmem %s4, %s845
      $region48: #{shufflenet_forward.6} parent=43 // pred_fallthru
        _
    $region44: #{shufflenet_forward.6} parent=5 // pred_fallthru
      _
  $region6: #{shufflenet_forward.6} parent=0 // loop_footer
    %s14 = sadd.s32 1, %s10
  $region7: #{shufflenet_forward.6} parent=0 // loop_footer_branch
    %9 = sbr.rel target = $region3
  $region8: #{shufflenet_forward.6} parent=0 // loop_exit
    _

// kernel: shufflenet_forward.9
$region0: #{shufflenet_forward.9}
  #allocation0 [shape = 'u32[]', space=smem, size = 0x4, offset = 0x4, fixed_abs, tag = 'smem constant byte address 0x4 - core index']
  #allocation1 [shape = 'u32[144,128]{1,0:T(1,128)}', space=vmem, size = 0x12000, scoped, tag = 'internal scratch']
  %s0 = inlined_call_operand.vmem [shape: bf16[2,16,128], index: 0, kind: input, shape index: {}]
  %s1 = inlined_call_operand.vmem [shape: bf16[9,16,16], index: 1, kind: input, shape index: {}]
  %s2 = inlined_call_operand.vmem [shape: bf16[128,128], index: 2, kind: input, shape index: {}]
  %s3 = inlined_call_operand.vmem [shape: f32[1,128], index: 3, kind: input, shape index: {}]
  %s4 = inlined_call_operand.vmem [shape: f32[1,128], index: 4, kind: input, shape index: {}]
  %s5 = inlined_call_operand.vmem [shape: f32[9,1,128], index: 5, kind: input, shape index: {}]
  %s6 = inlined_call_operand.vmem [shape: f32[1,128], index: 6, kind: input, shape index: {}]
  %s7 = inlined_call_operand.vmem [shape: f32[1,128], index: 7, kind: input, shape index: {}]
  %s8 = inlined_call_operand.vmem [shape: bf16[128,128], index: 8, kind: input, shape index: {}]
  %s9 = inlined_call_operand.vmem [shape: f32[1,128], index: 9, kind: input, shape index: {}]
  %s10 = inlined_call_operand.vmem [shape: f32[1,128], index: 10, kind: input, shape index: {}]
  %s11 = inlined_call_operand.vmem [shape: bf16[2,16,128], index: 11, kind: output, shape index: {}]
  %s12 = sld [smem:[#allocation0]]
  $region77: #{shufflenet_forward.9} parent=0
    _
  %s14 = ssub.s32 1, %s12
  %s15 = scalar_select 0, %s14, %s12
  loop: start=0, step=1, limit=4
  $region2: #{shufflenet_forward.9} parent=0 // loop_pre_header
    _
  $region3: #{shufflenet_forward.9} parent=0 // loop_header
    %s17 = sphi 0, %s21
    %p18 = scmp.ge.s32.totalorder %s17, 4
    %s27 = sphi 0, %s29
    %s30 = sphi 0, %s27
    %s31 = sphi 0, %s30
    %s47 = sphi 0, %s31
    %s51 = sphi 0, %s51
    %s53 = sphi 0, %s51
    %s54 = sphi 0, %s53
    %s68 = sphi 0, %s54
    %s72 = sphi 0, %s72
    %s74 = sphi 0, %s72
    %s75 = sphi 0, %s74
    %s89 = sphi 0, %s75
    %s93 = sphi 0, %s93
    %s95 = sphi 0, %s93
    %s96 = sphi 0, %s95
    %s110 = sphi 0, %s96
    %s114 = sphi 0, %s114
    %s116 = sphi 0, %s114
    %s117 = sphi 0, %s116
    %s131 = sphi 0, %s117
    %s135 = sphi 0, %s135
    %s137 = sphi 0, %s135
    %s138 = sphi 0, %s137
    %s152 = sphi 0, %s138
    %s156 = sphi 0, %s156
    %s158 = sphi 0, %s156
    %s159 = sphi 0, %s158
    %s173 = sphi 0, %s159
    %s177 = sphi 0, %s177
    %s179 = sphi 0, %s177
    %s180 = sphi 0, %s179
    %s194 = sphi 0, %s180
    %s198 = sphi 0, %s198
    %s200 = sphi 0, %s198
    %s201 = sphi 0, %s200
    %s215 = sphi 0, %s201
    %s219 = sphi 0, %s219
    %s221 = sphi 0, %s219
    %s222 = sphi 0, %s221
    %s236 = sphi 0, %s222
    %s240 = sphi 0, %s240
    %s242 = sphi 0, %s240
    %s243 = sphi 0, %s242
    %s257 = sphi 0, %s243
    %s263 = sphi 0, %s265
    %s266 = sphi 0, %s263
    %s267 = sphi 0, %s266
    %s283 = sphi 0, %s267
  $region4: #{shufflenet_forward.9} parent=0 // loop_header_branch
    %20 = sbr.rel (%p18) target = $region8
  $region5: #{shufflenet_forward.9} parent=0 // loop_body
    %s22 = ssub.s32 %s17, 1
    %s23 = ssub.s32 %s17, 2
    %s24 = sadd.s32 %s17, 1
    %s25 = ssub.s32 %s17, %s24
    %p26 = scmp.eq.s32.totalorder %s25, 0
    %s28 = sadd.s32 %s27, 1
    %s29 = scalar_select %p26, %s27, %s28
    %p32 = pneg %p26
    %p33 = scmp.eq.s32.totalorder %s17, 1
    %p34 = por %p32, %p33
    %p35 = scmp.ne.s32.totalorder %s27, %s30
    %p36 = scmp.eq.s32.totalorder %s17, 0
    %p37 = por %p35, %p36
    %p38 = scmp.ne.s32.totalorder %s27, %s30
    %p39 = scmp.eq.s32.totalorder %s22, 1
    %p40 = por %p38, %p39
    %p41 = scmp.ne.s32.totalorder %s30, %s31
    %p42 = scmp.eq.s32.totalorder %s22, 0
    %p43 = por %p41, %p42
    %p44 = scmp.ne.s32.totalorder %s30, %s31
    %p45 = scmp.eq.s32.totalorder %s23, 1
    %p46 = por %p44, %p45
    %p48 = scmp.ne.s32.totalorder %s31, %s47
    %p49 = scmp.eq.s32.totalorder %s23, 0
    %p50 = por %p48, %p49
    %s52 = sadd.s32 %s51, 1
    %p55 = scmp.eq.s32.totalorder %s17, 1
    %p56 = scmp.ne.s32.totalorder %s51, %s53
    %p57 = scmp.eq.s32.totalorder %s17, 0
    %p58 = por %p56, %p57
    %p59 = scmp.ne.s32.totalorder %s51, %s53
    %p60 = scmp.eq.s32.totalorder %s22, 1
    %p61 = por %p59, %p60
    %p62 = scmp.ne.s32.totalorder %s53, %s54
    %p63 = scmp.eq.s32.totalorder %s22, 0
    %p64 = por %p62, %p63
    %p65 = scmp.ne.s32.totalorder %s53, %s54
    %p66 = scmp.eq.s32.totalorder %s23, 1
    %p67 = por %p65, %p66
    %p69 = scmp.ne.s32.totalorder %s54, %s68
    %p70 = scmp.eq.s32.totalorder %s23, 0
    %p71 = por %p69, %p70
    %s73 = sadd.s32 %s72, 1
    %p76 = scmp.eq.s32.totalorder %s17, 1
    %p77 = scmp.ne.s32.totalorder %s72, %s74
    %p78 = scmp.eq.s32.totalorder %s17, 0
    %p79 = por %p77, %p78
    %p80 = scmp.ne.s32.totalorder %s72, %s74
    %p81 = scmp.eq.s32.totalorder %s22, 1
    %p82 = por %p80, %p81
    %p83 = scmp.ne.s32.totalorder %s74, %s75
    %p84 = scmp.eq.s32.totalorder %s22, 0
    %p85 = por %p83, %p84
    %p86 = scmp.ne.s32.totalorder %s74, %s75
    %p87 = scmp.eq.s32.totalorder %s23, 1
    %p88 = por %p86, %p87
    %p90 = scmp.ne.s32.totalorder %s75, %s89
    %p91 = scmp.eq.s32.totalorder %s23, 0
    %p92 = por %p90, %p91
    %s94 = sadd.s32 %s93, 1
    %p97 = scmp.eq.s32.totalorder %s17, 1
    %p98 = scmp.ne.s32.totalorder %s93, %s95
    %p99 = scmp.eq.s32.totalorder %s17, 0
    %p100 = por %p98, %p99
    %p101 = scmp.ne.s32.totalorder %s93, %s95
    %p102 = scmp.eq.s32.totalorder %s22, 1
    %p103 = por %p101, %p102
    %p104 = scmp.ne.s32.totalorder %s95, %s96
    %p105 = scmp.eq.s32.totalorder %s22, 0
    %p106 = por %p104, %p105
    %p107 = scmp.ne.s32.totalorder %s95, %s96
    %p108 = scmp.eq.s32.totalorder %s23, 1
    %p109 = por %p107, %p108
    %p111 = scmp.ne.s32.totalorder %s96, %s110
    %p112 = scmp.eq.s32.totalorder %s23, 0
    %p113 = por %p111, %p112
    %s115 = sadd.s32 %s114, 1
    %p118 = scmp.eq.s32.totalorder %s17, 1
    %p119 = scmp.ne.s32.totalorder %s114, %s116
    %p120 = scmp.eq.s32.totalorder %s17, 0
    %p121 = por %p119, %p120
    %p122 = scmp.ne.s32.totalorder %s114, %s116
    %p123 = scmp.eq.s32.totalorder %s22, 1
    %p124 = por %p122, %p123
    %p125 = scmp.ne.s32.totalorder %s116, %s117
    %p126 = scmp.eq.s32.totalorder %s22, 0
    %p127 = por %p125, %p126
    %p128 = scmp.ne.s32.totalorder %s116, %s117
    %p129 = scmp.eq.s32.totalorder %s23, 1
    %p130 = por %p128, %p129
    %p132 = scmp.ne.s32.totalorder %s117, %s131
    %p133 = scmp.eq.s32.totalorder %s23, 0
    %p134 = por %p132, %p133
    %s136 = sadd.s32 %s135, 1
    %p139 = scmp.eq.s32.totalorder %s17, 1
    %p140 = scmp.ne.s32.totalorder %s135, %s137
    %p141 = scmp.eq.s32.totalorder %s17, 0
    %p142 = por %p140, %p141
    %p143 = scmp.ne.s32.totalorder %s135, %s137
    %p144 = scmp.eq.s32.totalorder %s22, 1
    %p145 = por %p143, %p144
    %p146 = scmp.ne.s32.totalorder %s137, %s138
    %p147 = scmp.eq.s32.totalorder %s22, 0
    %p148 = por %p146, %p147
    %p149 = scmp.ne.s32.totalorder %s137, %s138
    %p150 = scmp.eq.s32.totalorder %s23, 1
    %p151 = por %p149, %p150
    %p153 = scmp.ne.s32.totalorder %s138, %s152
    %p154 = scmp.eq.s32.totalorder %s23, 0
    %p155 = por %p153, %p154
    %s157 = sadd.s32 %s156, 1
    %p160 = scmp.eq.s32.totalorder %s17, 1
    %p161 = scmp.ne.s32.totalorder %s156, %s158
    %p162 = scmp.eq.s32.totalorder %s17, 0
    %p163 = por %p161, %p162
    %p164 = scmp.ne.s32.totalorder %s156, %s158
    %p165 = scmp.eq.s32.totalorder %s22, 1
    %p166 = por %p164, %p165
    %p167 = scmp.ne.s32.totalorder %s158, %s159
    %p168 = scmp.eq.s32.totalorder %s22, 0
    %p169 = por %p167, %p168
    %p170 = scmp.ne.s32.totalorder %s158, %s159
    %p171 = scmp.eq.s32.totalorder %s23, 1
    %p172 = por %p170, %p171
    %p174 = scmp.ne.s32.totalorder %s159, %s173
    %p175 = scmp.eq.s32.totalorder %s23, 0
    %p176 = por %p174, %p175
    %s178 = sadd.s32 %s177, 1
    %p181 = scmp.eq.s32.totalorder %s17, 1
    %p182 = scmp.ne.s32.totalorder %s177, %s179
    %p183 = scmp.eq.s32.totalorder %s17, 0
    %p184 = por %p182, %p183
    %p185 = scmp.ne.s32.totalorder %s177, %s179
    %p186 = scmp.eq.s32.totalorder %s22, 1
    %p187 = por %p185, %p186
    %p188 = scmp.ne.s32.totalorder %s179, %s180
    %p189 = scmp.eq.s32.totalorder %s22, 0
    %p190 = por %p188, %p189
    %p191 = scmp.ne.s32.totalorder %s179, %s180
    %p192 = scmp.eq.s32.totalorder %s23, 1
    %p193 = por %p191, %p192
    %p195 = scmp.ne.s32.totalorder %s180, %s194
    %p196 = scmp.eq.s32.totalorder %s23, 0
    %p197 = por %p195, %p196
    %s199 = sadd.s32 %s198, 1
    %p202 = scmp.eq.s32.totalorder %s17, 1
    %p203 = scmp.ne.s32.totalorder %s198, %s200
    %p204 = scmp.eq.s32.totalorder %s17, 0
    %p205 = por %p203, %p204
    %p206 = scmp.ne.s32.totalorder %s198, %s200
    %p207 = scmp.eq.s32.totalorder %s22, 1
    %p208 = por %p206, %p207
    %p209 = scmp.ne.s32.totalorder %s200, %s201
    %p210 = scmp.eq.s32.totalorder %s22, 0
    %p211 = por %p209, %p210
    %p212 = scmp.ne.s32.totalorder %s200, %s201
    %p213 = scmp.eq.s32.totalorder %s23, 1
    %p214 = por %p212, %p213
    %p216 = scmp.ne.s32.totalorder %s201, %s215
    %p217 = scmp.eq.s32.totalorder %s23, 0
    %p218 = por %p216, %p217
    %s220 = sadd.s32 %s219, 1
    %p223 = scmp.eq.s32.totalorder %s17, 1
    %p224 = scmp.ne.s32.totalorder %s219, %s221
    %p225 = scmp.eq.s32.totalorder %s17, 0
    %p226 = por %p224, %p225
    %p227 = scmp.ne.s32.totalorder %s219, %s221
    %p228 = scmp.eq.s32.totalorder %s22, 1
    %p229 = por %p227, %p228
    %p230 = scmp.ne.s32.totalorder %s221, %s222
    %p231 = scmp.eq.s32.totalorder %s22, 0
    %p232 = por %p230, %p231
    %p233 = scmp.ne.s32.totalorder %s221, %s222
    %p234 = scmp.eq.s32.totalorder %s23, 1
    %p235 = por %p233, %p234
    %p237 = scmp.ne.s32.totalorder %s222, %s236
    %p238 = scmp.eq.s32.totalorder %s23, 0
    %p239 = por %p237, %p238
    %s241 = sadd.s32 %s240, 1
    %p244 = scmp.eq.s32.totalorder %s17, 1
    %p245 = scmp.ne.s32.totalorder %s240, %s242
    %p246 = scmp.eq.s32.totalorder %s17, 0
    %p247 = por %p245, %p246
    %p248 = scmp.ne.s32.totalorder %s240, %s242
    %p249 = scmp.eq.s32.totalorder %s22, 1
    %p250 = por %p248, %p249
    %p251 = scmp.ne.s32.totalorder %s242, %s243
    %p252 = scmp.eq.s32.totalorder %s22, 0
    %p253 = por %p251, %p252
    %p254 = scmp.ne.s32.totalorder %s242, %s243
    %p255 = scmp.eq.s32.totalorder %s23, 1
    %p256 = por %p254, %p255
    %p258 = scmp.ne.s32.totalorder %s243, %s257
    %p259 = scmp.eq.s32.totalorder %s23, 0
    %p260 = por %p258, %p259
    %s261 = ssub.s32 %s17, %s24
    %p262 = scmp.eq.s32.totalorder %s261, 0
    %s264 = sadd.s32 %s263, 1
    %s265 = scalar_select %p262, %s263, %s264
    %p268 = pneg %p262
    %p269 = scmp.eq.s32.totalorder %s17, 1
    %p270 = por %p268, %p269
    %p271 = scmp.ne.s32.totalorder %s263, %s266
    %p272 = scmp.eq.s32.totalorder %s17, 0
    %p273 = por %p271, %p272
    %p274 = scmp.ne.s32.totalorder %s263, %s266
    %p275 = scmp.eq.s32.totalorder %s22, 1
    %p276 = por %p274, %p275
    %p277 = scmp.ne.s32.totalorder %s266, %s267
    %p278 = scmp.eq.s32.totalorder %s22, 0
    %p279 = por %p277, %p278
    %p280 = scmp.ne.s32.totalorder %s266, %s267
    %p281 = scmp.eq.s32.totalorder %s23, 1
    %p282 = por %p280, %p281
    %p284 = scmp.ne.s32.totalorder %s267, %s283
    %p285 = scmp.eq.s32.totalorder %s23, 0
    %p286 = por %p284, %p285
    %p287 = scmp.le.s32.totalorder 1, %s17
    %p288 = scmp.lt.s32.totalorder %s17, 3
    %p289 = pnand %p287, %p288
    %p290 = pneg %p289
    // Predicated region
    $region9: #{shufflenet_forward.9} parent=5 // pred_check
      _
    $region10: #{shufflenet_forward.9} parent=5 // pred_check_branch
      %292 = sbr.rel (%p289) target = $region12
    $region11: #{shufflenet_forward.9} parent=5 // pred_region
      %s293 = ssub.s32 %s17, 1
      // Predicated region
      $region13: #{shufflenet_forward.9} parent=11 // pred_check
        %p294 = pneg %p64
      $region14: #{shufflenet_forward.9} parent=11 // pred_check_branch
        %296 = sbr.rel (%p294) target = $region16
      $region15: #{shufflenet_forward.9} parent=11 // pred_region
        _
      $region16: #{shufflenet_forward.9} parent=11 // pred_fallthru
        _
      // Predicated region
      $region17: #{shufflenet_forward.9} parent=11 // pred_check
        %p297 = pneg %p85
      $region18: #{shufflenet_forward.9} parent=11 // pred_check_branch
        %299 = sbr.rel (%p297) target = $region20
      $region19: #{shufflenet_forward.9} parent=11 // pred_region
        _
      $region20: #{shufflenet_forward.9} parent=11 // pred_fallthru
        _
      // Predicated region
      $region21: #{shufflenet_forward.9} parent=11 // pred_check
        %p300 = pneg %p106
      $region22: #{shufflenet_forward.9} parent=11 // pred_check_branch
        %302 = sbr.rel (%p300) target = $region24
      $region23: #{shufflenet_forward.9} parent=11 // pred_region
        _
      $region24: #{shufflenet_forward.9} parent=11 // pred_fallthru
        _
      // Predicated region
      $region25: #{shufflenet_forward.9} parent=11 // pred_check
        %p303 = pneg %p127
      $region26: #{shufflenet_forward.9} parent=11 // pred_check_branch
        %305 = sbr.rel (%p303) target = $region28
      $region27: #{shufflenet_forward.9} parent=11 // pred_region
        _
      $region28: #{shufflenet_forward.9} parent=11 // pred_fallthru
        _
      // Predicated region
      $region29: #{shufflenet_forward.9} parent=11 // pred_check
        %p306 = pneg %p148
      $region30: #{shufflenet_forward.9} parent=11 // pred_check_branch
        %308 = sbr.rel (%p306) target = $region32
      $region31: #{shufflenet_forward.9} parent=11 // pred_region
        _
      $region32: #{shufflenet_forward.9} parent=11 // pred_fallthru
        _
      // Predicated region
      $region33: #{shufflenet_forward.9} parent=11 // pred_check
        %p309 = pneg %p169
      $region34: #{shufflenet_forward.9} parent=11 // pred_check_branch
        %311 = sbr.rel (%p309) target = $region36
      $region35: #{shufflenet_forward.9} parent=11 // pred_region
        _
      $region36: #{shufflenet_forward.9} parent=11 // pred_fallthru
        _
      // Predicated region
      $region37: #{shufflenet_forward.9} parent=11 // pred_check
        %p312 = pneg %p190
      $region38: #{shufflenet_forward.9} parent=11 // pred_check_branch
        %314 = sbr.rel (%p312) target = $region40
      $region39: #{shufflenet_forward.9} parent=11 // pred_region
        _
      $region40: #{shufflenet_forward.9} parent=11 // pred_fallthru
        _
      // Predicated region
      $region41: #{shufflenet_forward.9} parent=11 // pred_check
        %p315 = pneg %p211
      $region42: #{shufflenet_forward.9} parent=11 // pred_check_branch
        %317 = sbr.rel (%p315) target = $region44
      $region43: #{shufflenet_forward.9} parent=11 // pred_region
        _
      $region44: #{shufflenet_forward.9} parent=11 // pred_fallthru
        _
      // Predicated region
      $region45: #{shufflenet_forward.9} parent=11 // pred_check
        %p318 = pneg %p232
      $region46: #{shufflenet_forward.9} parent=11 // pred_check_branch
        %320 = sbr.rel (%p318) target = $region48
      $region47: #{shufflenet_forward.9} parent=11 // pred_region
        _
      $region48: #{shufflenet_forward.9} parent=11 // pred_fallthru
        _
      // Predicated region
      $region49: #{shufflenet_forward.9} parent=11 // pred_check
        %p321 = pneg %p253
      $region50: #{shufflenet_forward.9} parent=11 // pred_check_branch
        %323 = sbr.rel (%p321) target = $region52
      $region51: #{shufflenet_forward.9} parent=11 // pred_region
        _
      $region52: #{shufflenet_forward.9} parent=11 // pred_fallthru
        _
    $region12: #{shufflenet_forward.9} parent=5 // pred_fallthru
      _
    %p324 = scmp.lt.s32.totalorder %s17, 2
    // Predicated region
    $region53: #{shufflenet_forward.9} parent=5 // pred_check
      %p325 = pneg %p324
    $region54: #{shufflenet_forward.9} parent=5 // pred_check_branch
      %327 = sbr.rel (%p325) target = $region56
    $region55: #{shufflenet_forward.9} parent=5 // pred_region
      // Predicated region
      $region57: #{shufflenet_forward.9} parent=55 // pred_check
        %p328 = pneg %p37
      $region58: #{shufflenet_forward.9} parent=55 // pred_check_branch
        %330 = sbr.rel (%p328) target = $region60
      $region59: #{shufflenet_forward.9} parent=55 // pred_region
        %p331 = scmp.lt.s32.totalorder %s17, 1
        %s332 = scalar_select %p331, %s17, 1
        %s333 = smul.addr %s332, 2
        %s334 = smul.addr %s333, 4
        %s335 = scalar_lea.vmem %s0, %s334
      $region60: #{shufflenet_forward.9} parent=55 // pred_fallthru
        _
    $region56: #{shufflenet_forward.9} parent=5 // pred_fallthru
      _
    %p336 = scmp.le.s32.totalorder 1, %s17
    %p337 = scmp.lt.s32.totalorder %s17, 3
    %p338 = pnand %p336, %p337
    %p339 = pneg %p338
    // Predicated region
    $region61: #{shufflenet_forward.9} parent=5 // pred_check
      _
    $region62: #{shufflenet_forward.9} parent=5 // pred_check_branch
      %341 = sbr.rel (%p338) target = $region64
    $region63: #{shufflenet_forward.9} parent=5 // pred_region
      %s342 = ssub.s32 %s17, 1
      %p343 = scmp.lt.s32.totalorder %s22, 1
      %s344 = scalar_select %p343, %s22, 1
      %s345 = smul.addr %s344, 2
      %s346 = smul.addr %s345, 4
      %s347 = scalar_lea.vmem %s0, %s346
      %p348 = pneg %p43
      %p349 = pneg %p40
      %p350 = pneg %p64
      %p351 = pneg %p61
      %p352 = pneg %p85
      %p353 = pneg %p82
      %p354 = pneg %p106
      %p355 = pneg %p103
      %p356 = pneg %p127
      %p357 = pneg %p124
      %p358 = pneg %p148
      %p359 = pneg %p145
      %p360 = pneg %p169
      %p361 = pneg %p166
      %p362 = pneg %p190
      %p363 = pneg %p187
      %p364 = pneg %p211
      %p365 = pneg %p208
      %p366 = pneg %p232
      %p367 = pneg %p229
      %p368 = pneg %p253
      %p369 = pneg %p250
      %p370 = pneg %p279
      %p371 = pneg %p276
      %p372 = scmp.lt.s32.totalorder %s22, 1
      %s373 = scalar_select %p372, %s22, 1
      %s374 = smul.addr %s373, 2
      %s375 = smul.addr %s374, 4
      %s376 = scalar_lea.vmem %s11, %s375
      %p377 = scmp.lt.s32.totalorder %s22, 1
      %s378 = scalar_select %p377, %s22, 1
      %s379 = smul.addr %s378, 2
      %s380 = smul.addr %s379, 4
      %s381 = scalar_lea.vmem %s0, %s380
      %p382 = scmp.lt.s32.totalorder %s22, 1
      %s383 = scalar_select %p382, %s22, 1
      %s384 = smul.addr %s383, 2
      %s385 = smul.addr %s384, 4
      %s386 = scalar_lea.vmem %s11, %s385
      %v388 = vld [vmem:[%s381] sm:$0xf]
      %v389 = vld [vmem:[%s381 + $0x4] sm:$0xf]
      %v390 = vld [vmem:[%s2] sm:$0xf]
      %v391 = vld [vmem:[%s2 + $0x4] sm:$0xf]
      %v392 = vld [vmem:[%s2 + $0x8] sm:$0xf]
      %v393 = vld [vmem:[%s2 + $0xc] sm:$0xf]
      %v394 = vld [vmem:[%s2 + $0x10] sm:$0xf]
      %v395 = vld [vmem:[%s2 + $0x14] sm:$0xf]
      %v396 = vld [vmem:[%s2 + $0x18] sm:$0xf]
      %v397 = vld [vmem:[%s2 + $0x1c] sm:$0xf]
      %v398 = vld [vmem:[%s2 + $0x20] sm:$0xf]
      %v399 = vld [vmem:[%s2 + $0x24] sm:$0xf]
      %v400 = vld [vmem:[%s2 + $0x28] sm:$0xf]
      %v401 = vld [vmem:[%s2 + $0x2c] sm:$0xf]
      %v402 = vld [vmem:[%s2 + $0x30] sm:$0xf]
      %v403 = vld [vmem:[%s2 + $0x34] sm:$0xf]
      %v404 = vld [vmem:[%s2 + $0x38] sm:$0xf]
      %v405 = vld [vmem:[%s2 + $0x3c] sm:$0xf]
      %v408 = vunpack.c.l.b16 %v388
      %v409 = vunpack.c.l.b16 %v389
      %v410 = vpack.c.b16 %v409, %v408
      %v428 = vunpack.c.l.b16 %v390
      %v429 = vunpack.c.l.b16 %v391
      %v430 = vunpack.c.l.b16 %v392
      %v431 = vunpack.c.l.b16 %v393
      %v432 = vunpack.c.l.b16 %v394
      %v433 = vunpack.c.l.b16 %v395
      %v434 = vunpack.c.l.b16 %v396
      %v435 = vunpack.c.l.b16 %v397
      %v436 = vunpack.c.l.b16 %v398
      %v437 = vunpack.c.l.b16 %v399
      %v438 = vunpack.c.l.b16 %v400
      %v439 = vunpack.c.l.b16 %v401
      %v440 = vunpack.c.l.b16 %v402
      %v441 = vunpack.c.l.b16 %v403
      %v442 = vunpack.c.l.b16 %v404
      %v443 = vunpack.c.l.b16 %v405
      %v444 = vpack.c.b16 %v429, %v428
      %v445 = vpack.c.b16 %v431, %v430
      %v446 = vpack.c.b16 %v433, %v432
      %v447 = vpack.c.b16 %v435, %v434
      %v448 = vpack.c.b16 %v437, %v436
      %v449 = vpack.c.b16 %v439, %v438
      %v450 = vpack.c.b16 %v441, %v440
      %v451 = vpack.c.b16 %v443, %v442
      %460 = vmatprep.subr.bf16.mxu0 0
      %461 = vmatpush1.bf16.msra.mxu0 %v444
      %462 = vmatprep.subr.bf16.mxu0 0
      %463 = vmatpush1.bf16.msra.mxu0 %v445
      %464 = vmatprep.subr.bf16.mxu0 0
      %465 = vmatpush1.bf16.msra.mxu0 %v446
      %466 = vmatprep.subr.bf16.mxu0 0
      %467 = vmatpush1.bf16.msra.mxu0 %v447
      %468 = vmatprep.subr.bf16.mxu0 0
      %469 = vmatpush1.bf16.msra.mxu0 %v448
      %470 = vmatprep.subr.bf16.mxu0 0
      %471 = vmatpush1.bf16.msra.mxu0 %v449
      %472 = vmatprep.subr.bf16.mxu0 0
      %473 = vmatpush1.bf16.msra.mxu0 %v450
      %474 = vmatprep.subr.bf16.mxu0 0
      %475 = vmatpush1.bf16.msra.mxu0 %v451
      %476 = vmatprep.subr.bf16.mxu0 0
      %477 = vmatpush1.bf16.msra.mxu0 0
      %478 = vmatprep.subr.bf16.mxu0 0
      %479 = vmatpush1.bf16.msra.mxu0 0
      %480 = vmatprep.subr.bf16.mxu0 0
      %481 = vmatpush1.bf16.msra.mxu0 0
      %482 = vmatprep.subr.bf16.mxu0 0
      %483 = vmatpush1.bf16.msra.mxu0 0
      %484 = vmatprep.subr.bf16.mxu0 0
      %485 = vmatpush1.bf16.msra.mxu0 0
      %486 = vmatprep.subr.bf16.mxu0 0
      %487 = vmatpush1.bf16.msra.mxu0 0
      %488 = vmatprep.subr.bf16.mxu0 0
      %489 = vmatpush1.bf16.msra.mxu0 0
      %490 = vmatprep.subr.bf16.mxu0 0
      %491 = vmatpush1.bf16.msra.mxu0 0
      %492 = vmatprep.mubr.bf16.mxu0 0
      %493 = vmatmul.mubr.bf16.gmra.mrb[0].mxu0 %v410
      %v494 = vpop.f32.mrb[0].mxu0
      %v495 = vadd.f32 0.0, %v494
      %v496 = vpop.f32.mrb[0].mxu0
      %v497 = vpop.f32.mrb[0].mxu0
      %v498 = vadd.f32 0.0, %v497
      %v499 = vpop.f32.mrb[0].mxu0
      %500 = vdwg.mxu0
      %v501 = vld [vmem:[%s3] sm:$0x1]
      %v503 = vlaneseq
      %v504 = vshrl.u32 %v503, 7
      %v505 = vsub.s32 0, %v504
      %v506 = vrot.slane %v501, %v505
      %v508 = vmul.f32 %v495, %v506
      %v509 = vmul.f32 %v498, %v506
      %v510 = vld [vmem:[%s4] sm:$0x1]
      %v512 = vlaneseq
      %v513 = vshrl.u32 %v512, 7
      %v514 = vsub.s32 0, %v513
      %v515 = vrot.slane %v510, %v514
      %v517 = vadd.f32 %v508, %v515
      %v518 = vadd.f32 %v509, %v515
      %v519 = vmax.f32 %v517, 0.0
      %v520 = vmax.f32 %v518, 0.0
      %v521 = vpack.c.bf16 %v520, %v519
      %v522 = vld [vmem:[%s1] sm:$0xf]
      %v523 = vld [vmem:[%s1 + $0x4] sm:$0xf]
      %v526 = vunpack.c.l.b16 %v522
      %v527 = vunpack.c.l.b16 %v523
      %v528 = vpack.c.b16 %v527, %v526
      %vm529 = vcmask 130048
      %v531 = vsel %vm529, %v528, 0
      %533 = vmatprep.subr.bf16.mxu0 0
      %534 = vmatpush1.bf16.msra.mxu0 %v521
      %535 = vmatprep.subr.bf16.mxu0 0
      %536 = vmatpush1.bf16.msra.mxu0 0
      %537 = vmatprep.subr.bf16.mxu0 0
      %538 = vmatpush1.bf16.msra.mxu0 0
      %539 = vmatprep.subr.bf16.mxu0 0
      %540 = vmatpush1.bf16.msra.mxu0 0
      %541 = vmatprep.subr.bf16.mxu0 0
      %542 = vmatpush1.bf16.msra.mxu0 0
      %543 = vmatprep.subr.bf16.mxu0 0
      %544 = vmatpush1.bf16.msra.mxu0 0
      %545 = vmatprep.subr.bf16.mxu0 0
      %546 = vmatpush1.bf16.msra.mxu0 0
      %547 = vmatprep.subr.bf16.mxu0 0
      %548 = vmatpush1.bf16.msra.mxu0 0
      %549 = vmatprep.subr.bf16.mxu0 0
      %550 = vmatpush1.bf16.msra.mxu0 0
      %551 = vmatprep.subr.bf16.mxu0 0
      %552 = vmatpush1.bf16.msra.mxu0 0
      %553 = vmatprep.subr.bf16.mxu0 0
      %554 = vmatpush1.bf16.msra.mxu0 0
      %555 = vmatprep.subr.bf16.mxu0 0
      %556 = vmatpush1.bf16.msra.mxu0 0
      %557 = vmatprep.subr.bf16.mxu0 0
      %558 = vmatpush1.bf16.msra.mxu0 0
      %559 = vmatprep.subr.bf16.mxu0 0
      %560 = vmatpush1.bf16.msra.mxu0 0
      %561 = vmatprep.subr.bf16.mxu0 0
      %562 = vmatpush1.bf16.msra.mxu0 0
      %563 = vmatprep.subr.bf16.mxu0 0
      %564 = vmatpush1.bf16.msra.mxu0 0
      %565 = vmatprep.mubr.bf16.mxu0 0
      %566 = vmatmul.mubr.bf16.gmra.mrb[0].mxu0 %v531
      %v567 = vpop.f32.mrb[0].mxu0
      %v568 = vadd.f32 0.0, %v567
      %v569 = vpop.f32.mrb[0].mxu0
      %v570 = vpop.f32.mrb[0].mxu0
      %v571 = vadd.f32 0.0, %v570
      %v572 = vpop.f32.mrb[0].mxu0
      %573 = vdwg.mxu0
      %v574 = vld [vmem:[%s5] sm:$0x1]
      %v576 = vlaneseq
      %v577 = vshrl.u32 %v576, 7
      %v578 = vsub.s32 0, %v577
      %v579 = vrot.slane %v574, %v578
      %v581 = vmul.f32 %v568, %v579
      %v582 = vmul.f32 %v571, %v579
      %s583 = scalar_lea.vmem %s1, 8
      %v584 = vld [vmem:[%s583] sm:$0xf]
      %v585 = vld [vmem:[%s583 + $0x4] sm:$0xf]
      %v588 = vunpack.c.l.b16 %v584
      %v589 = vunpack.c.l.b16 %v585
      %v590 = vpack.c.b16 %v589, %v588
      %v592 = vsel %vm529, %v590, 0
      %594 = vmatprep.subr.bf16.mxu0 0
      %595 = vmatpush1.bf16.msra.mxu0 %v521
      %596 = vmatprep.subr.bf16.mxu0 0
      %597 = vmatpush1.bf16.msra.mxu0 0
      %598 = vmatprep.subr.bf16.mxu0 0
      %599 = vmatpush1.bf16.msra.mxu0 0
      %600 = vmatprep.subr.bf16.mxu0 0
      %601 = vmatpush1.bf16.msra.mxu0 0
      %602 = vmatprep.subr.bf16.mxu0 0
      %603 = vmatpush1.bf16.msra.mxu0 0
      %604 = vmatprep.subr.bf16.mxu0 0
      %605 = vmatpush1.bf16.msra.mxu0 0
      %606 = vmatprep.subr.bf16.mxu0 0
      %607 = vmatpush1.bf16.msra.mxu0 0
      %608 = vmatprep.subr.bf16.mxu0 0
      %609 = vmatpush1.bf16.msra.mxu0 0
      %610 = vmatprep.subr.bf16.mxu0 0
      %611 = vmatpush1.bf16.msra.mxu0 0
      %612 = vmatprep.subr.bf16.mxu0 0
      %613 = vmatpush1.bf16.msra.mxu0 0
      %614 = vmatprep.subr.bf16.mxu0 0
      %615 = vmatpush1.bf16.msra.mxu0 0
      %616 = vmatprep.subr.bf16.mxu0 0
      %617 = vmatpush1.bf16.msra.mxu0 0
      %618 = vmatprep.subr.bf16.mxu0 0
      %619 = vmatpush1.bf16.msra.mxu0 0
      %620 = vmatprep.subr.bf16.mxu0 0
      %621 = vmatpush1.bf16.msra.mxu0 0
      %622 = vmatprep.subr.bf16.mxu0 0
      %623 = vmatpush1.bf16.msra.mxu0 0
      %624 = vmatprep.subr.bf16.mxu0 0
      %625 = vmatpush1.bf16.msra.mxu0 0
      %626 = vmatprep.mubr.bf16.mxu0 0
      %627 = vmatmul.mubr.bf16.gmra.mrb[0].mxu0 %v592
      %v628 = vpop.f32.mrb[0].mxu0
      %v629 = vadd.f32 0.0, %v628
      %v630 = vpop.f32.mrb[0].mxu0
      %v631 = vpop.f32.mrb[0].mxu0
      %v632 = vadd.f32 0.0, %v631
      %v633 = vpop.f32.mrb[0].mxu0
      %634 = vdwg.mxu0
      %s635 = scalar_lea.vmem %s5, 1
      %v636 = vld [vmem:[%s635] sm:$0x1]
      %v638 = vlaneseq
      %v639 = vshrl.u32 %v638, 7
      %v640 = vsub.s32 0, %v639
      %v641 = vrot.slane %v636, %v640
      %v643 = vmul.f32 %v629, %v641
      %v644 = vmul.f32 %v632, %v641
      %v645 = vadd.f32 %v581, %v643
      %v646 = vadd.f32 %v582, %v644
      %s647 = scalar_lea.vmem %s1, 16
      %v648 = vld [vmem:[%s647] sm:$0xf]
      %v649 = vld [vmem:[%s647 + $0x4] sm:$0xf]
      %v652 = vunpack.c.l.b16 %v648
      %v653 = vunpack.c.l.b16 %v649
      %v654 = vpack.c.b16 %v653, %v652
      %v656 = vsel %vm529, %v654, 0
      %658 = vmatprep.subr.bf16.mxu0 0
      %659 = vmatpush1.bf16.msra.mxu0 %v521
      %660 = vmatprep.subr.bf16.mxu0 0
      %661 = vmatpush1.bf16.msra.mxu0 0
      %662 = vmatprep.subr.bf16.mxu0 0
      %663 = vmatpush1.bf16.msra.mxu0 0
      %664 = vmatprep.subr.bf16.mxu0 0
      %665 = vmatpush1.bf16.msra.mxu0 0
      %666 = vmatprep.subr.bf16.mxu0 0
      %667 = vmatpush1.bf16.msra.mxu0 0
      %668 = vmatprep.subr.bf16.mxu0 0
      %669 = vmatpush1.bf16.msra.mxu0 0
      %670 = vmatprep.subr.bf16.mxu0 0
      %671 = vmatpush1.bf16.msra.mxu0 0
      %672 = vmatprep.subr.bf16.mxu0 0
      %673 = vmatpush1.bf16.msra.mxu0 0
      %674 = vmatprep.subr.bf16.mxu0 0
      %675 = vmatpush1.bf16.msra.mxu0 0
      %676 = vmatprep.subr.bf16.mxu0 0
      %677 = vmatpush1.bf16.msra.mxu0 0
      %678 = vmatprep.subr.bf16.mxu0 0
      %679 = vmatpush1.bf16.msra.mxu0 0
      %680 = vmatprep.subr.bf16.mxu0 0
      %681 = vmatpush1.bf16.msra.mxu0 0
      %682 = vmatprep.subr.bf16.mxu0 0
      %683 = vmatpush1.bf16.msra.mxu0 0
      %684 = vmatprep.subr.bf16.mxu0 0
      %685 = vmatpush1.bf16.msra.mxu0 0
      %686 = vmatprep.subr.bf16.mxu0 0
      %687 = vmatpush1.bf16.msra.mxu0 0
      %688 = vmatprep.subr.bf16.mxu0 0
      %689 = vmatpush1.bf16.msra.mxu0 0
      %690 = vmatprep.mubr.bf16.mxu0 0
      %691 = vmatmul.mubr.bf16.gmra.mrb[0].mxu0 %v656
      %v692 = vpop.f32.mrb[0].mxu0
      %v693 = vadd.f32 0.0, %v692
      %v694 = vpop.f32.mrb[0].mxu0
      %v695 = vpop.f32.mrb[0].mxu0
      %v696 = vadd.f32 0.0, %v695
      %v697 = vpop.f32.mrb[0].mxu0
      %698 = vdwg.mxu0
      %s699 = scalar_lea.vmem %s5, 2
      %v700 = vld [vmem:[%s699] sm:$0x1]
      %v702 = vlaneseq
      %v703 = vshrl.u32 %v702, 7
      %v704 = vsub.s32 0, %v703
      %v705 = vrot.slane %v700, %v704
      %v707 = vmul.f32 %v693, %v705
      %v708 = vmul.f32 %v696, %v705
      %v709 = vadd.f32 %v645, %v707
      %v710 = vadd.f32 %v646, %v708
      %s711 = scalar_lea.vmem %s1, 24
      %v712 = vld [vmem:[%s711] sm:$0xf]
      %v713 = vld [vmem:[%s711 + $0x4] sm:$0xf]
      %v716 = vunpack.c.l.b16 %v712
      %v717 = vunpack.c.l.b16 %v713
      %v718 = vpack.c.b16 %v717, %v716
      %v720 = vsel %vm529, %v718, 0
      %722 = vmatprep.subr.bf16.mxu0 0
      %723 = vmatpush1.bf16.msra.mxu0 %v521
      %724 = vmatprep.subr.bf16.mxu0 0
      %725 = vmatpush1.bf16.msra.mxu0 0
      %726 = vmatprep.subr.bf16.mxu0 0
      %727 = vmatpush1.bf16.msra.mxu0 0
      %728 = vmatprep.subr.bf16.mxu0 0
      %729 = vmatpush1.bf16.msra.mxu0 0
      %730 = vmatprep.subr.bf16.mxu0 0
      %731 = vmatpush1.bf16.msra.mxu0 0
      %732 = vmatprep.subr.bf16.mxu0 0
      %733 = vmatpush1.bf16.msra.mxu0 0
      %734 = vmatprep.subr.bf16.mxu0 0
      %735 = vmatpush1.bf16.msra.mxu0 0
      %736 = vmatprep.subr.bf16.mxu0 0
      %737 = vmatpush1.bf16.msra.mxu0 0
      %738 = vmatprep.subr.bf16.mxu0 0
      %739 = vmatpush1.bf16.msra.mxu0 0
      %740 = vmatprep.subr.bf16.mxu0 0
      %741 = vmatpush1.bf16.msra.mxu0 0
      %742 = vmatprep.subr.bf16.mxu0 0
      %743 = vmatpush1.bf16.msra.mxu0 0
      %744 = vmatprep.subr.bf16.mxu0 0
      %745 = vmatpush1.bf16.msra.mxu0 0
      %746 = vmatprep.subr.bf16.mxu0 0
      %747 = vmatpush1.bf16.msra.mxu0 0
      %748 = vmatprep.subr.bf16.mxu0 0
      %749 = vmatpush1.bf16.msra.mxu0 0
      %750 = vmatprep.subr.bf16.mxu0 0
      %751 = vmatpush1.bf16.msra.mxu0 0
      %752 = vmatprep.subr.bf16.mxu0 0
      %753 = vmatpush1.bf16.msra.mxu0 0
      %754 = vmatprep.mubr.bf16.mxu0 0
      %755 = vmatmul.mubr.bf16.gmra.mrb[0].mxu0 %v720
      %v756 = vpop.f32.mrb[0].mxu0
      %v757 = vadd.f32 0.0, %v756
      %v758 = vpop.f32.mrb[0].mxu0
      %v759 = vpop.f32.mrb[0].mxu0
      %v760 = vadd.f32 0.0, %v759
      %v761 = vpop.f32.mrb[0].mxu0
      %762 = vdwg.mxu0
      %s763 = scalar_lea.vmem %s5, 3
      %v764 = vld [vmem:[%s763] sm:$0x1]
      %v766 = vlaneseq
      %v767 = vshrl.u32 %v766, 7
      %v768 = vsub.s32 0, %v767
      %v769 = vrot.slane %v764, %v768
      %v771 = vmul.f32 %v757, %v769
      %v772 = vmul.f32 %v760, %v769
      %v773 = vadd.f32 %v709, %v771
      %v774 = vadd.f32 %v710, %v772
      %s775 = scalar_lea.vmem %s1, 32
      %v776 = vld [vmem:[%s775] sm:$0xf]
      %v777 = vld [vmem:[%s775 + $0x4] sm:$0xf]
      %v780 = vunpack.c.l.b16 %v776
      %v781 = vunpack.c.l.b16 %v777
      %v782 = vpack.c.b16 %v781, %v780
      %v784 = vsel %vm529, %v782, 0
      %786 = vmatprep.subr.bf16.mxu0 0
      %787 = vmatpush1.bf16.msra.mxu0 %v521
      %788 = vmatprep.subr.bf16.mxu0 0
      %789 = vmatpush1.bf16.msra.mxu0 0
      %790 = vmatprep.subr.bf16.mxu0 0
      %791 = vmatpush1.bf16.msra.mxu0 0
      %792 = vmatprep.subr.bf16.mxu0 0
      %793 = vmatpush1.bf16.msra.mxu0 0
      %794 = vmatprep.subr.bf16.mxu0 0
      %795 = vmatpush1.bf16.msra.mxu0 0
      %796 = vmatprep.subr.bf16.mxu0 0
      %797 = vmatpush1.bf16.msra.mxu0 0
      %798 = vmatprep.subr.bf16.mxu0 0
      %799 = vmatpush1.bf16.msra.mxu0 0
      %800 = vmatprep.subr.bf16.mxu0 0
      %801 = vmatpush1.bf16.msra.mxu0 0
      %802 = vmatprep.subr.bf16.mxu0 0
      %803 = vmatpush1.bf16.msra.mxu0 0
      %804 = vmatprep.subr.bf16.mxu0 0
      %805 = vmatpush1.bf16.msra.mxu0 0
      %806 = vmatprep.subr.bf16.mxu0 0
      %807 = vmatpush1.bf16.msra.mxu0 0
      %808 = vmatprep.subr.bf16.mxu0 0
      %809 = vmatpush1.bf16.msra.mxu0 0
      %810 = vmatprep.subr.bf16.mxu0 0
      %811 = vmatpush1.bf16.msra.mxu0 0
      %812 = vmatprep.subr.bf16.mxu0 0
      %813 = vmatpush1.bf16.msra.mxu0 0
      %814 = vmatprep.subr.bf16.mxu0 0
      %815 = vmatpush1.bf16.msra.mxu0 0
      %816 = vmatprep.subr.bf16.mxu0 0
      %817 = vmatpush1.bf16.msra.mxu0 0
      %818 = vmatprep.mubr.bf16.mxu0 0
      %819 = vmatmul.mubr.bf16.gmra.mrb[0].mxu0 %v784
      %v820 = vpop.f32.mrb[0].mxu0
      %v821 = vadd.f32 0.0, %v820
      %v822 = vpop.f32.mrb[0].mxu0
      %v823 = vpop.f32.mrb[0].mxu0
      %v824 = vadd.f32 0.0, %v823
      %v825 = vpop.f32.mrb[0].mxu0
      %826 = vdwg.mxu0
      %s827 = scalar_lea.vmem %s5, 4
      %v828 = vld [vmem:[%s827] sm:$0x1]
      %v830 = vlaneseq
      %v831 = vshrl.u32 %v830, 7
      %v832 = vsub.s32 0, %v831
      %v833 = vrot.slane %v828, %v832
      %v835 = vmul.f32 %v821, %v833
      %v836 = vmul.f32 %v824, %v833
      %v837 = vadd.f32 %v773, %v835
      %v838 = vadd.f32 %v774, %v836
      %s839 = scalar_lea.vmem %s1, 40
      %v840 = vld [vmem:[%s839] sm:$0xf]
      %v841 = vld [vmem:[%s839 + $0x4] sm:$0xf]
      %v844 = vunpack.c.l.b16 %v840
      %v845 = vunpack.c.l.b16 %v841
      %v846 = vpack.c.b16 %v845, %v844
      %v848 = vsel %vm529, %v846, 0
      %850 = vmatprep.subr.bf16.mxu0 0
      %851 = vmatpush1.bf16.msra.mxu0 %v521
      %852 = vmatprep.subr.bf16.mxu0 0
      %853 = vmatpush1.bf16.msra.mxu0 0
      %854 = vmatprep.subr.bf16.mxu0 0
      %855 = vmatpush1.bf16.msra.mxu0 0
      %856 = vmatprep.subr.bf16.mxu0 0
      %857 = vmatpush1.bf16.msra.mxu0 0
      %858 = vmatprep.subr.bf16.mxu0 0
      %859 = vmatpush1.bf16.msra.mxu0 0
      %860 = vmatprep.subr.bf16.mxu0 0
      %861 = vmatpush1.bf16.msra.mxu0 0
      %862 = vmatprep.subr.bf16.mxu0 0
      %863 = vmatpush1.bf16.msra.mxu0 0
      %864 = vmatprep.subr.bf16.mxu0 0
      %865 = vmatpush1.bf16.msra.mxu0 0
      %866 = vmatprep.subr.bf16.mxu0 0
      %867 = vmatpush1.bf16.msra.mxu0 0
      %868 = vmatprep.subr.bf16.mxu0 0
      %869 = vmatpush1.bf16.msra.mxu0 0
      %870 = vmatprep.subr.bf16.mxu0 0
      %871 = vmatpush1.bf16.msra.mxu0 0
      %872 = vmatprep.subr.bf16.mxu0 0
      %873 = vmatpush1.bf16.msra.mxu0 0
      %874 = vmatprep.subr.bf16.mxu0 0
      %875 = vmatpush1.bf16.msra.mxu0 0
      %876 = vmatprep.subr.bf16.mxu0 0
      %877 = vmatpush1.bf16.msra.mxu0 0
      %878 = vmatprep.subr.bf16.mxu0 0
      %879 = vmatpush1.bf16.msra.mxu0 0
      %880 = vmatprep.subr.bf16.mxu0 0
      %881 = vmatpush1.bf16.msra.mxu0 0
      %882 = vmatprep.mubr.bf16.mxu0 0
      %883 = vmatmul.mubr.bf16.gmra.mrb[0].mxu0 %v848
      %v884 = vpop.f32.mrb[0].mxu0
      %v885 = vadd.f32 0.0, %v884
      %v886 = vpop.f32.mrb[0].mxu0
      %v887 = vpop.f32.mrb[0].mxu0
      %v888 = vadd.f32 0.0, %v887
      %v889 = vpop.f32.mrb[0].mxu0
      %890 = vdwg.mxu0
      %s891 = scalar_lea.vmem %s5, 5
      %v892 = vld [vmem:[%s891] sm:$0x1]
      %v894 = vlaneseq
      %v895 = vshrl.u32 %v894, 7
      %v896 = vsub.s32 0, %v895
      %v897 = vrot.slane %v892, %v896
      %v899 = vmul.f32 %v885, %v897
      %v900 = vmul.f32 %v888, %v897
      %v901 = vadd.f32 %v837, %v899
      %v902 = vadd.f32 %v838, %v900
      %s903 = scalar_lea.vmem %s1, 48
      %v904 = vld [vmem:[%s903] sm:$0xf]
      %v905 = vld [vmem:[%s903 + $0x4] sm:$0xf]
      %v908 = vunpack.c.l.b16 %v904
      %v909 = vunpack.c.l.b16 %v905
      %v910 = vpack.c.b16 %v909, %v908
      %v912 = vsel %vm529, %v910, 0
      %914 = vmatprep.subr.bf16.mxu0 0
      %915 = vmatpush1.bf16.msra.mxu0 %v521
      %916 = vmatprep.subr.bf16.mxu0 0
      %917 = vmatpush1.bf16.msra.mxu0 0
      %918 = vmatprep.subr.bf16.mxu0 0
      %919 = vmatpush1.bf16.msra.mxu0 0
      %920 = vmatprep.subr.bf16.mxu0 0
      %921 = vmatpush1.bf16.msra.mxu0 0
      %922 = vmatprep.subr.bf16.mxu0 0
      %923 = vmatpush1.bf16.msra.mxu0 0
      %924 = vmatprep.subr.bf16.mxu0 0
      %925 = vmatpush1.bf16.msra.mxu0 0
      %926 = vmatprep.subr.bf16.mxu0 0
      %927 = vmatpush1.bf16.msra.mxu0 0
      %928 = vmatprep.subr.bf16.mxu0 0
      %929 = vmatpush1.bf16.msra.mxu0 0
      %930 = vmatprep.subr.bf16.mxu0 0
      %931 = vmatpush1.bf16.msra.mxu0 0
      %932 = vmatprep.subr.bf16.mxu0 0
      %933 = vmatpush1.bf16.msra.mxu0 0
      %934 = vmatprep.subr.bf16.mxu0 0
      %935 = vmatpush1.bf16.msra.mxu0 0
      %936 = vmatprep.subr.bf16.mxu0 0
      %937 = vmatpush1.bf16.msra.mxu0 0
      %938 = vmatprep.subr.bf16.mxu0 0
      %939 = vmatpush1.bf16.msra.mxu0 0
      %940 = vmatprep.subr.bf16.mxu0 0
      %941 = vmatpush1.bf16.msra.mxu0 0
      %942 = vmatprep.subr.bf16.mxu0 0
      %943 = vmatpush1.bf16.msra.mxu0 0
      %944 = vmatprep.subr.bf16.mxu0 0
      %945 = vmatpush1.bf16.msra.mxu0 0
      %946 = vmatprep.mubr.bf16.mxu0 0
      %947 = vmatmul.mubr.bf16.gmra.mrb[0].mxu0 %v912
      %v948 = vpop.f32.mrb[0].mxu0
      %v949 = vadd.f32 0.0, %v948
      %v950 = vpop.f32.mrb[0].mxu0
      %v951 = vpop.f32.mrb[0].mxu0
      %v952 = vadd.f32 0.0, %v951
      %v953 = vpop.f32.mrb[0].mxu0
      %954 = vdwg.mxu0
      %s955 = scalar_lea.vmem %s5, 6
      %v956 = vld [vmem:[%s955] sm:$0x1]
      %v958 = vlaneseq
      %v959 = vshrl.u32 %v958, 7
      %v960 = vsub.s32 0, %v959
      %v961 = vrot.slane %v956, %v960
      %v963 = vmul.f32 %v949, %v961
      %v964 = vmul.f32 %v952, %v961
      %v965 = vadd.f32 %v901, %v963
      %v966 = vadd.f32 %v902, %v964
      %s967 = scalar_lea.vmem %s1, 56
      %v968 = vld [vmem:[%s967] sm:$0xf]
      %v969 = vld [vmem:[%s967 + $0x4] sm:$0xf]
      %v972 = vunpack.c.l.b16 %v968
      %v973 = vunpack.c.l.b16 %v969
      %v974 = vpack.c.b16 %v973, %v972
      %v976 = vsel %vm529, %v974, 0
      %978 = vmatprep.subr.bf16.mxu0 0
      %979 = vmatpush1.bf16.msra.mxu0 %v521
      %980 = vmatprep.subr.bf16.mxu0 0
      %981 = vmatpush1.bf16.msra.mxu0 0
      %982 = vmatprep.subr.bf16.mxu0 0
      %983 = vmatpush1.bf16.msra.mxu0 0
      %984 = vmatprep.subr.bf16.mxu0 0
      %985 = vmatpush1.bf16.msra.mxu0 0
      %986 = vmatprep.subr.bf16.mxu0 0
      %987 = vmatpush1.bf16.msra.mxu0 0
      %988 = vmatprep.subr.bf16.mxu0 0
      %989 = vmatpush1.bf16.msra.mxu0 0
      %990 = vmatprep.subr.bf16.mxu0 0
      %991 = vmatpush1.bf16.msra.mxu0 0
      %992 = vmatprep.subr.bf16.mxu0 0
      %993 = vmatpush1.bf16.msra.mxu0 0
      %994 = vmatprep.subr.bf16.mxu0 0
      %995 = vmatpush1.bf16.msra.mxu0 0
      %996 = vmatprep.subr.bf16.mxu0 0
      %997 = vmatpush1.bf16.msra.mxu0 0
      %998 = vmatprep.subr.bf16.mxu0 0
      %999 = vmatpush1.bf16.msra.mxu0 0
      %1000 = vmatprep.subr.bf16.mxu0 0
      %1001 = vmatpush1.bf16.msra.mxu0 0
      %1002 = vmatprep.subr.bf16.mxu0 0
      %1003 = vmatpush1.bf16.msra.mxu0 0
      %1004 = vmatprep.subr.bf16.mxu0 0
      %1005 = vmatpush1.bf16.msra.mxu0 0
      %1006 = vmatprep.subr.bf16.mxu0 0
      %1007 = vmatpush1.bf16.msra.mxu0 0
      %1008 = vmatprep.subr.bf16.mxu0 0
      %1009 = vmatpush1.bf16.msra.mxu0 0
      %1010 = vmatprep.mubr.bf16.mxu0 0
      %1011 = vmatmul.mubr.bf16.gmra.mrb[0].mxu0 %v976
      %v1012 = vpop.f32.mrb[0].mxu0
      %v1013 = vadd.f32 0.0, %v1012
      %v1014 = vpop.f32.mrb[0].mxu0
      %v1015 = vpop.f32.mrb[0].mxu0
      %v1016 = vadd.f32 0.0, %v1015
      %v1017 = vpop.f32.mrb[0].mxu0
      %1018 = vdwg.mxu0
      %s1019 = scalar_lea.vmem %s5, 7
      %v1020 = vld [vmem:[%s1019] sm:$0x1]
      %v1022 = vlaneseq
      %v1023 = vshrl.u32 %v1022, 7
      %v1024 = vsub.s32 0, %v1023
      %v1025 = vrot.slane %v1020, %v1024
      %v1027 = vmul.f32 %v1013, %v1025
      %v1028 = vmul.f32 %v1016, %v1025
      %v1029 = vadd.f32 %v965, %v1027
      %v1030 = vadd.f32 %v966, %v1028
      %s1031 = scalar_lea.vmem %s1, 64
      %v1032 = vld [vmem:[%s1031] sm:$0xf]
      %v1033 = vld [vmem:[%s1031 + $0x4] sm:$0xf]
      %v1036 = vunpack.c.l.b16 %v1032
      %v1037 = vunpack.c.l.b16 %v1033
      %v1038 = vpack.c.b16 %v1037, %v1036
      %v1040 = vsel %vm529, %v1038, 0
      %1042 = vmatprep.subr.bf16.mxu0 0
      %1043 = vmatpush1.bf16.msra.mxu0 %v521
      %1044 = vmatprep.subr.bf16.mxu0 0
      %1045 = vmatpush1.bf16.msra.mxu0 0
      %1046 = vmatprep.subr.bf16.mxu0 0
      %1047 = vmatpush1.bf16.msra.mxu0 0
      %1048 = vmatprep.subr.bf16.mxu0 0
      %1049 = vmatpush1.bf16.msra.mxu0 0
      %1050 = vmatprep.subr.bf16.mxu0 0
      %1051 = vmatpush1.bf16.msra.mxu0 0
      %1052 = vmatprep.subr.bf16.mxu0 0
      %1053 = vmatpush1.bf16.msra.mxu0 0
      %1054 = vmatprep.subr.bf16.mxu0 0
      %1055 = vmatpush1.bf16.msra.mxu0 0
      %1056 = vmatprep.subr.bf16.mxu0 0
      %1057 = vmatpush1.bf16.msra.mxu0 0
      %1058 = vmatprep.subr.bf16.mxu0 0
      %1059 = vmatpush1.bf16.msra.mxu0 0
      %1060 = vmatprep.subr.bf16.mxu0 0
      %1061 = vmatpush1.bf16.msra.mxu0 0
      %1062 = vmatprep.subr.bf16.mxu0 0
      %1063 = vmatpush1.bf16.msra.mxu0 0
      %1064 = vmatprep.subr.bf16.mxu0 0
      %1065 = vmatpush1.bf16.msra.mxu0 0
      %1066 = vmatprep.subr.bf16.mxu0 0
      %1067 = vmatpush1.bf16.msra.mxu0 0
      %1068 = vmatprep.subr.bf16.mxu0 0
      %1069 = vmatpush1.bf16.msra.mxu0 0
      %1070 = vmatprep.subr.bf16.mxu0 0
      %1071 = vmatpush1.bf16.msra.mxu0 0
      %1072 = vmatprep.subr.bf16.mxu0 0
      %1073 = vmatpush1.bf16.msra.mxu0 0
      %1074 = vmatprep.mubr.bf16.mxu0 0
      %1075 = vmatmul.mubr.bf16.gmra.mrb[0].mxu0 %v1040
      %v1076 = vpop.f32.mrb[0].mxu0
      %v1077 = vadd.f32 0.0, %v1076
      %v1078 = vpop.f32.mrb[0].mxu0
      %v1079 = vpop.f32.mrb[0].mxu0
      %v1080 = vadd.f32 0.0, %v1079
      %v1081 = vpop.f32.mrb[0].mxu0
      %1082 = vdwg.mxu0
      %s1083 = scalar_lea.vmem %s5, 8
      %v1084 = vld [vmem:[%s1083] sm:$0x1]
      %v1086 = vlaneseq
      %v1087 = vshrl.u32 %v1086, 7
      %v1088 = vsub.s32 0, %v1087
      %v1089 = vrot.slane %v1084, %v1088
      %v1091 = vmul.f32 %v1077, %v1089
      %v1092 = vmul.f32 %v1080, %v1089
      %v1093 = vadd.f32 %v1029, %v1091
      %v1094 = vadd.f32 %v1030, %v1092
      %v1095 = vld [vmem:[%s6] sm:$0x1]
      %v1097 = vlaneseq
      %v1098 = vshrl.u32 %v1097, 7
      %v1099 = vsub.s32 0, %v1098
      %v1100 = vrot.slane %v1095, %v1099
      %v1102 = vmul.f32 %v1093, %v1100
      %v1103 = vmul.f32 %v1094, %v1100
      %v1104 = vld [vmem:[%s7] sm:$0x1]
      %v1106 = vlaneseq
      %v1107 = vshrl.u32 %v1106, 7
      %v1108 = vsub.s32 0, %v1107
      %v1109 = vrot.slane %v1104, %v1108
      %v1111 = vadd.f32 %v1102, %v1109
      %v1112 = vadd.f32 %v1103, %v1109
      %v1113 = vmax.f32 %v1111, 0.0
      %v1114 = vmax.f32 %v1112, 0.0
      %v1115 = vpack.c.bf16 %v1114, %v1113
      %v1116 = vld [vmem:[%s8] sm:$0xf]
      %v1117 = vld [vmem:[%s8 + $0x4] sm:$0xf]
      %v1118 = vld [vmem:[%s8 + $0x8] sm:$0xf]
      %v1119 = vld [vmem:[%s8 + $0xc] sm:$0xf]
      %v1120 = vld [vmem:[%s8 + $0x10] sm:$0xf]
      %v1121 = vld [vmem:[%s8 + $0x14] sm:$0xf]
      %v1122 = vld [vmem:[%s8 + $0x18] sm:$0xf]
      %v1123 = vld [vmem:[%s8 + $0x1c] sm:$0xf]
      %v1124 = vld [vmem:[%s8 + $0x20] sm:$0xf]
      %v1125 = vld [vmem:[%s8 + $0x24] sm:$0xf]
      %v1126 = vld [vmem:[%s8 + $0x28] sm:$0xf]
      %v1127 = vld [vmem:[%s8 + $0x2c] sm:$0xf]
      %v1128 = vld [vmem:[%s8 + $0x30] sm:$0xf]
      %v1129 = vld [vmem:[%s8 + $0x34] sm:$0xf]
      %v1130 = vld [vmem:[%s8 + $0x38] sm:$0xf]
      %v1131 = vld [vmem:[%s8 + $0x3c] sm:$0xf]
      %v1148 = vunpack.c.l.b16 %v1116
      %v1149 = vunpack.c.l.b16 %v1117
      %v1150 = vunpack.c.l.b16 %v1118
      %v1151 = vunpack.c.l.b16 %v1119
      %v1152 = vunpack.c.l.b16 %v1120
      %v1153 = vunpack.c.l.b16 %v1121
      %v1154 = vunpack.c.l.b16 %v1122
      %v1155 = vunpack.c.l.b16 %v1123
      %v1156 = vunpack.c.l.b16 %v1124
      %v1157 = vunpack.c.l.b16 %v1125
      %v1158 = vunpack.c.l.b16 %v1126
      %v1159 = vunpack.c.l.b16 %v1127
      %v1160 = vunpack.c.l.b16 %v1128
      %v1161 = vunpack.c.l.b16 %v1129
      %v1162 = vunpack.c.l.b16 %v1130
      %v1163 = vunpack.c.l.b16 %v1131
      %v1164 = vpack.c.b16 %v1149, %v1148
      %v1165 = vpack.c.b16 %v1151, %v1150
      %v1166 = vpack.c.b16 %v1153, %v1152
      %v1167 = vpack.c.b16 %v1155, %v1154
      %v1168 = vpack.c.b16 %v1157, %v1156
      %v1169 = vpack.c.b16 %v1159, %v1158
      %v1170 = vpack.c.b16 %v1161, %v1160
      %v1171 = vpack.c.b16 %v1163, %v1162
      %1180 = vmatprep.subr.bf16.mxu0 0
      %1181 = vmatpush1.bf16.msra.mxu0 %v1164
      %1182 = vmatprep.subr.bf16.mxu0 0
      %1183 = vmatpush1.bf16.msra.mxu0 %v1165
      %1184 = vmatprep.subr.bf16.mxu0 0
      %1185 = vmatpush1.bf16.msra.mxu0 %v1166
      %1186 = vmatprep.subr.bf16.mxu0 0
      %1187 = vmatpush1.bf16.msra.mxu0 %v1167
      %1188 = vmatprep.subr.bf16.mxu0 0
      %1189 = vmatpush1.bf16.msra.mxu0 %v1168
      %1190 = vmatprep.subr.bf16.mxu0 0
      %1191 = vmatpush1.bf16.msra.mxu0 %v1169
      %1192 = vmatprep.subr.bf16.mxu0 0
      %1193 = vmatpush1.bf16.msra.mxu0 %v1170
      %1194 = vmatprep.subr.bf16.mxu0 0
      %1195 = vmatpush1.bf16.msra.mxu0 %v1171
      %1196 = vmatprep.subr.bf16.mxu0 0
      %1197 = vmatpush1.bf16.msra.mxu0 0
      %1198 = vmatprep.subr.bf16.mxu0 0
      %1199 = vmatpush1.bf16.msra.mxu0 0
      %1200 = vmatprep.subr.bf16.mxu0 0
      %1201 = vmatpush1.bf16.msra.mxu0 0
      %1202 = vmatprep.subr.bf16.mxu0 0
      %1203 = vmatpush1.bf16.msra.mxu0 0
      %1204 = vmatprep.subr.bf16.mxu0 0
      %1205 = vmatpush1.bf16.msra.mxu0 0
      %1206 = vmatprep.subr.bf16.mxu0 0
      %1207 = vmatpush1.bf16.msra.mxu0 0
      %1208 = vmatprep.subr.bf16.mxu0 0
      %1209 = vmatpush1.bf16.msra.mxu0 0
      %1210 = vmatprep.subr.bf16.mxu0 0
      %1211 = vmatpush1.bf16.msra.mxu0 0
      %1212 = vmatprep.mubr.bf16.mxu0 0
      %1213 = vmatmul.mubr.bf16.gmra.mrb[0].mxu0 %v1115
      %v1214 = vpop.f32.mrb[0].mxu0
      %v1215 = vadd.f32 0.0, %v1214
      %v1216 = vpop.f32.mrb[0].mxu0
      %v1217 = vpop.f32.mrb[0].mxu0
      %v1218 = vadd.f32 0.0, %v1217
      %v1219 = vpop.f32.mrb[0].mxu0
      %1220 = vdwg.mxu0
      %v1221 = vld [vmem:[%s9] sm:$0x1]
      %v1223 = vlaneseq
      %v1224 = vshrl.u32 %v1223, 7
      %v1225 = vsub.s32 0, %v1224
      %v1226 = vrot.slane %v1221, %v1225
      %v1228 = vmul.f32 %v1215, %v1226
      %v1229 = vmul.f32 %v1218, %v1226
      %v1230 = vld [vmem:[%s10] sm:$0x1]
      %v1232 = vlaneseq
      %v1233 = vshrl.u32 %v1232, 7
      %v1234 = vsub.s32 0, %v1233
      %v1235 = vrot.slane %v1230, %v1234
      %v1237 = vadd.f32 %v1228, %v1235
      %v1238 = vadd.f32 %v1229, %v1235
      %v1239 = vunpack.c.l.bf16 %v388
      %v1240 = vunpack.c.l.bf16 %v389
      %v1241 = vadd.f32 %v1237, %v1239
      %v1242 = vadd.f32 %v1238, %v1240
      %v1243 = vmax.f32 %v1241, 0.0
      %v1244 = vmax.f32 %v1242, 0.0
      %v1245 = vpack.c.bf16 %v1244, %v1243
      %v1247 = vunpack.c.l.b16 %v1245
      %v1248 = vunpack.c.h.b16 %v1245
      %v1249 = vpack.c.b16 %v1247, %v1247
      %v1250 = vpack.c.b16 %v1248, %v1248
      %1253 = vst [vmem:[%s386] sm:$0xf] %v1249
      %1254 = vst [vmem:[%s386 + $0x4] sm:$0xf] %v1250
      %p1255 = scmp.lt.s32.totalorder %s22, 1
      %s1256 = scalar_select %p1255, %s22, 1
      %s1257 = smul.addr %s1256, 2
      %s1258 = smul.addr %s1257, 4
      %s1259 = scalar_lea.vmem %s11, %s1258
      // Predicated region
      $region65: #{shufflenet_forward.9} parent=63 // pred_check
        %p1260 = pneg %p276
      $region66: #{shufflenet_forward.9} parent=63 // pred_check_branch
        %1262 = sbr.rel (%p1260) target = $region68
      $region67: #{shufflenet_forward.9} parent=63 // pred_region
        _
      $region68: #{shufflenet_forward.9} parent=63 // pred_fallthru
        _
    $region64: #{shufflenet_forward.9} parent=5 // pred_fallthru
      _
    %p1263 = scmp.le.s32.totalorder 2, %s17
    // Predicated region
    $region69: #{shufflenet_forward.9} parent=5 // pred_check
      %p1264 = pneg %p1263
    $region70: #{shufflenet_forward.9} parent=5 // pred_check_branch
      %1266 = sbr.rel (%p1264) target = $region72
    $region71: #{shufflenet_forward.9} parent=5 // pred_region
      %s1267 = ssub.s32 %s17, 2
      // Predicated region
      $region73: #{shufflenet_forward.9} parent=71 // pred_check
        %p1268 = pneg %p282
      $region74: #{shufflenet_forward.9} parent=71 // pred_check_branch
        %1270 = sbr.rel (%p1268) target = $region76
      $region75: #{shufflenet_forward.9} parent=71 // pred_region
        %p1271 = scmp.lt.s32.totalorder %s23, 1
        %s1272 = scalar_select %p1271, %s23, 1
        %s1273 = smul.addr %s1272, 2
        %s1274 = smul.addr %s1273, 4
        %s1275 = scalar_lea.vmem %s11, %s1274
      $region76: #{shufflenet_forward.9} parent=71 // pred_fallthru
        _
    $region72: #{shufflenet_forward.9} parent=5 // pred_fallthru
      _
  $region6: #{shufflenet_forward.9} parent=0 // loop_footer
    %s21 = sadd.s32 1, %s17
  $region7: #{shufflenet_forward.9} parent=0 // loop_footer_branch
    %16 = sbr.rel target = $region3
  $region8: #{shufflenet_forward.9} parent=0 // loop_exit
    _

// kernel: shufflenet_forward.8
$region0: #{shufflenet_forward.8}
  #allocation0 [shape = 'u32[]', space=smem, size = 0x4, offset = 0x4, fixed_abs, tag = 'smem constant byte address 0x4 - core index']
  #allocation1 [shape = 'u32[144,128]{1,0:T(1,128)}', space=vmem, size = 0x12000, scoped, tag = 'internal scratch']
  %s0 = inlined_call_operand.vmem [shape: bf16[2,64,128], index: 0, kind: input, shape index: {}]
  %s1 = inlined_call_operand.vmem [shape: bf16[9,16,64], index: 1, kind: input, shape index: {}]
  %s2 = inlined_call_operand.vmem [shape: bf16[128,128], index: 2, kind: input, shape index: {}]
  %s3 = inlined_call_operand.vmem [shape: f32[1,128], index: 3, kind: input, shape index: {}]
  %s4 = inlined_call_operand.vmem [shape: f32[1,128], index: 4, kind: input, shape index: {}]
  %s5 = inlined_call_operand.vmem [shape: f32[9,1,128], index: 5, kind: input, shape index: {}]
  %s6 = inlined_call_operand.vmem [shape: f32[1,128], index: 6, kind: input, shape index: {}]
  %s7 = inlined_call_operand.vmem [shape: f32[1,128], index: 7, kind: input, shape index: {}]
  %s8 = inlined_call_operand.vmem [shape: bf16[128,128], index: 8, kind: input, shape index: {}]
  %s9 = inlined_call_operand.vmem [shape: f32[1,128], index: 9, kind: input, shape index: {}]
  %s10 = inlined_call_operand.vmem [shape: f32[1,128], index: 10, kind: input, shape index: {}]
  %s11 = inlined_call_operand.vmem [shape: bf16[16,64], index: 11, kind: input, shape index: {}]
  %s12 = inlined_call_operand.vmem [shape: bf16[128,128], index: 12, kind: input, shape index: {}]
  %s13 = inlined_call_operand.vmem [shape: bf16[2,16,128], index: 13, kind: output, shape index: {}]
  %s14 = sld [smem:[#allocation0]]
  $region85: #{shufflenet_forward.8} parent=0
    _
  %s16 = ssub.s32 1, %s14
  %s17 = scalar_select 0, %s16, %s14
  loop: start=0, step=1, limit=4
  $region2: #{shufflenet_forward.8} parent=0 // loop_pre_header
    _
  $region3: #{shufflenet_forward.8} parent=0 // loop_header
    %s19 = sphi 0, %s23
    %p20 = scmp.ge.s32.totalorder %s19, 4
    %s29 = sphi 0, %s31
    %s32 = sphi 0, %s29
    %s33 = sphi 0, %s32
    %s49 = sphi 0, %s33
    %s53 = sphi 0, %s53
    %s55 = sphi 0, %s53
    %s56 = sphi 0, %s55
    %s70 = sphi 0, %s56
    %s74 = sphi 0, %s74
    %s76 = sphi 0, %s74
    %s77 = sphi 0, %s76
    %s91 = sphi 0, %s77
    %s95 = sphi 0, %s95
    %s97 = sphi 0, %s95
    %s98 = sphi 0, %s97
    %s112 = sphi 0, %s98
    %s116 = sphi 0, %s116
    %s118 = sphi 0, %s116
    %s119 = sphi 0, %s118
    %s133 = sphi 0, %s119
    %s137 = sphi 0, %s137
    %s139 = sphi 0, %s137
    %s140 = sphi 0, %s139
    %s154 = sphi 0, %s140
    %s158 = sphi 0, %s158
    %s160 = sphi 0, %s158
    %s161 = sphi 0, %s160
    %s175 = sphi 0, %s161
    %s179 = sphi 0, %s179
    %s181 = sphi 0, %s179
    %s182 = sphi 0, %s181
    %s196 = sphi 0, %s182
    %s200 = sphi 0, %s200
    %s202 = sphi 0, %s200
    %s203 = sphi 0, %s202
    %s217 = sphi 0, %s203
    %s221 = sphi 0, %s221
    %s223 = sphi 0, %s221
    %s224 = sphi 0, %s223
    %s238 = sphi 0, %s224
    %s242 = sphi 0, %s242
    %s244 = sphi 0, %s242
    %s245 = sphi 0, %s244
    %s259 = sphi 0, %s245
    %s263 = sphi 0, %s263
    %s265 = sphi 0, %s263
    %s266 = sphi 0, %s265
    %s280 = sphi 0, %s266
    %s284 = sphi 0, %s284
    %s286 = sphi 0, %s284
    %s287 = sphi 0, %s286
    %s301 = sphi 0, %s287
    %s307 = sphi 0, %s309
    %s310 = sphi 0, %s307
    %s311 = sphi 0, %s310
    %s327 = sphi 0, %s311
  $region4: #{shufflenet_forward.8} parent=0 // loop_header_branch
    %22 = sbr.rel (%p20) target = $region8
  $region5: #{shufflenet_forward.8} parent=0 // loop_body
    %s24 = ssub.s32 %s19, 1
    %s25 = ssub.s32 %s19, 2
    %s26 = sadd.s32 %s19, 1
    %s27 = ssub.s32 %s19, %s26
    %p28 = scmp.eq.s32.totalorder %s27, 0
    %s30 = sadd.s32 %s29, 1
    %s31 = scalar_select %p28, %s29, %s30
    %p34 = pneg %p28
    %p35 = scmp.eq.s32.totalorder %s19, 1
    %p36 = por %p34, %p35
    %p37 = scmp.ne.s32.totalorder %s29, %s32
    %p38 = scmp.eq.s32.totalorder %s19, 0
    %p39 = por %p37, %p38
    %p40 = scmp.ne.s32.totalorder %s29, %s32
    %p41 = scmp.eq.s32.totalorder %s24, 1
    %p42 = por %p40, %p41
    %p43 = scmp.ne.s32.totalorder %s32, %s33
    %p44 = scmp.eq.s32.totalorder %s24, 0
    %p45 = por %p43, %p44
    %p46 = scmp.ne.s32.totalorder %s32, %s33
    %p47 = scmp.eq.s32.totalorder %s25, 1
    %p48 = por %p46, %p47
    %p50 = scmp.ne.s32.totalorder %s33, %s49
    %p51 = scmp.eq.s32.totalorder %s25, 0
    %p52 = por %p50, %p51
    %s54 = sadd.s32 %s53, 1
    %p57 = scmp.eq.s32.totalorder %s19, 1
    %p58 = scmp.ne.s32.totalorder %s53, %s55
    %p59 = scmp.eq.s32.totalorder %s19, 0
    %p60 = por %p58, %p59
    %p61 = scmp.ne.s32.totalorder %s53, %s55
    %p62 = scmp.eq.s32.totalorder %s24, 1
    %p63 = por %p61, %p62
    %p64 = scmp.ne.s32.totalorder %s55, %s56
    %p65 = scmp.eq.s32.totalorder %s24, 0
    %p66 = por %p64, %p65
    %p67 = scmp.ne.s32.totalorder %s55, %s56
    %p68 = scmp.eq.s32.totalorder %s25, 1
    %p69 = por %p67, %p68
    %p71 = scmp.ne.s32.totalorder %s56, %s70
    %p72 = scmp.eq.s32.totalorder %s25, 0
    %p73 = por %p71, %p72
    %s75 = sadd.s32 %s74, 1
    %p78 = scmp.eq.s32.totalorder %s19, 1
    %p79 = scmp.ne.s32.totalorder %s74, %s76
    %p80 = scmp.eq.s32.totalorder %s19, 0
    %p81 = por %p79, %p80
    %p82 = scmp.ne.s32.totalorder %s74, %s76
    %p83 = scmp.eq.s32.totalorder %s24, 1
    %p84 = por %p82, %p83
    %p85 = scmp.ne.s32.totalorder %s76, %s77
    %p86 = scmp.eq.s32.totalorder %s24, 0
    %p87 = por %p85, %p86
    %p88 = scmp.ne.s32.totalorder %s76, %s77
    %p89 = scmp.eq.s32.totalorder %s25, 1
    %p90 = por %p88, %p89
    %p92 = scmp.ne.s32.totalorder %s77, %s91
    %p93 = scmp.eq.s32.totalorder %s25, 0
    %p94 = por %p92, %p93
    %s96 = sadd.s32 %s95, 1
    %p99 = scmp.eq.s32.totalorder %s19, 1
    %p100 = scmp.ne.s32.totalorder %s95, %s97
    %p101 = scmp.eq.s32.totalorder %s19, 0
    %p102 = por %p100, %p101
    %p103 = scmp.ne.s32.totalorder %s95, %s97
    %p104 = scmp.eq.s32.totalorder %s24, 1
    %p105 = por %p103, %p104
    %p106 = scmp.ne.s32.totalorder %s97, %s98
    %p107 = scmp.eq.s32.totalorder %s24, 0
    %p108 = por %p106, %p107
    %p109 = scmp.ne.s32.totalorder %s97, %s98
    %p110 = scmp.eq.s32.totalorder %s25, 1
    %p111 = por %p109, %p110
    %p113 = scmp.ne.s32.totalorder %s98, %s112
    %p114 = scmp.eq.s32.totalorder %s25, 0
    %p115 = por %p113, %p114
    %s117 = sadd.s32 %s116, 1
    %p120 = scmp.eq.s32.totalorder %s19, 1
    %p121 = scmp.ne.s32.totalorder %s116, %s118
    %p122 = scmp.eq.s32.totalorder %s19, 0
    %p123 = por %p121, %p122
    %p124 = scmp.ne.s32.totalorder %s116, %s118
    %p125 = scmp.eq.s32.totalorder %s24, 1
    %p126 = por %p124, %p125
    %p127 = scmp.ne.s32.totalorder %s118, %s119
    %p128 = scmp.eq.s32.totalorder %s24, 0
    %p129 = por %p127, %p128
    %p130 = scmp.ne.s32.totalorder %s118, %s119
    %p131 = scmp.eq.s32.totalorder %s25, 1
    %p132 = por %p130, %p131
    %p134 = scmp.ne.s32.totalorder %s119, %s133
    %p135 = scmp.eq.s32.totalorder %s25, 0
    %p136 = por %p134, %p135
    %s138 = sadd.s32 %s137, 1
    %p141 = scmp.eq.s32.totalorder %s19, 1
    %p142 = scmp.ne.s32.totalorder %s137, %s139
    %p143 = scmp.eq.s32.totalorder %s19, 0
    %p144 = por %p142, %p143
    %p145 = scmp.ne.s32.totalorder %s137, %s139
    %p146 = scmp.eq.s32.totalorder %s24, 1
    %p147 = por %p145, %p146
    %p148 = scmp.ne.s32.totalorder %s139, %s140
    %p149 = scmp.eq.s32.totalorder %s24, 0
    %p150 = por %p148, %p149
    %p151 = scmp.ne.s32.totalorder %s139, %s140
    %p152 = scmp.eq.s32.totalorder %s25, 1
    %p153 = por %p151, %p152
    %p155 = scmp.ne.s32.totalorder %s140, %s154
    %p156 = scmp.eq.s32.totalorder %s25, 0
    %p157 = por %p155, %p156
    %s159 = sadd.s32 %s158, 1
    %p162 = scmp.eq.s32.totalorder %s19, 1
    %p163 = scmp.ne.s32.totalorder %s158, %s160
    %p164 = scmp.eq.s32.totalorder %s19, 0
    %p165 = por %p163, %p164
    %p166 = scmp.ne.s32.totalorder %s158, %s160
    %p167 = scmp.eq.s32.totalorder %s24, 1
    %p168 = por %p166, %p167
    %p169 = scmp.ne.s32.totalorder %s160, %s161
    %p170 = scmp.eq.s32.totalorder %s24, 0
    %p171 = por %p169, %p170
    %p172 = scmp.ne.s32.totalorder %s160, %s161
    %p173 = scmp.eq.s32.totalorder %s25, 1
    %p174 = por %p172, %p173
    %p176 = scmp.ne.s32.totalorder %s161, %s175
    %p177 = scmp.eq.s32.totalorder %s25, 0
    %p178 = por %p176, %p177
    %s180 = sadd.s32 %s179, 1
    %p183 = scmp.eq.s32.totalorder %s19, 1
    %p184 = scmp.ne.s32.totalorder %s179, %s181
    %p185 = scmp.eq.s32.totalorder %s19, 0
    %p186 = por %p184, %p185
    %p187 = scmp.ne.s32.totalorder %s179, %s181
    %p188 = scmp.eq.s32.totalorder %s24, 1
    %p189 = por %p187, %p188
    %p190 = scmp.ne.s32.totalorder %s181, %s182
    %p191 = scmp.eq.s32.totalorder %s24, 0
    %p192 = por %p190, %p191
    %p193 = scmp.ne.s32.totalorder %s181, %s182
    %p194 = scmp.eq.s32.totalorder %s25, 1
    %p195 = por %p193, %p194
    %p197 = scmp.ne.s32.totalorder %s182, %s196
    %p198 = scmp.eq.s32.totalorder %s25, 0
    %p199 = por %p197, %p198
    %s201 = sadd.s32 %s200, 1
    %p204 = scmp.eq.s32.totalorder %s19, 1
    %p205 = scmp.ne.s32.totalorder %s200, %s202
    %p206 = scmp.eq.s32.totalorder %s19, 0
    %p207 = por %p205, %p206
    %p208 = scmp.ne.s32.totalorder %s200, %s202
    %p209 = scmp.eq.s32.totalorder %s24, 1
    %p210 = por %p208, %p209
    %p211 = scmp.ne.s32.totalorder %s202, %s203
    %p212 = scmp.eq.s32.totalorder %s24, 0
    %p213 = por %p211, %p212
    %p214 = scmp.ne.s32.totalorder %s202, %s203
    %p215 = scmp.eq.s32.totalorder %s25, 1
    %p216 = por %p214, %p215
    %p218 = scmp.ne.s32.totalorder %s203, %s217
    %p219 = scmp.eq.s32.totalorder %s25, 0
    %p220 = por %p218, %p219
    %s222 = sadd.s32 %s221, 1
    %p225 = scmp.eq.s32.totalorder %s19, 1
    %p226 = scmp.ne.s32.totalorder %s221, %s223
    %p227 = scmp.eq.s32.totalorder %s19, 0
    %p228 = por %p226, %p227
    %p229 = scmp.ne.s32.totalorder %s221, %s223
    %p230 = scmp.eq.s32.totalorder %s24, 1
    %p231 = por %p229, %p230
    %p232 = scmp.ne.s32.totalorder %s223, %s224
    %p233 = scmp.eq.s32.totalorder %s24, 0
    %p234 = por %p232, %p233
    %p235 = scmp.ne.s32.totalorder %s223, %s224
    %p236 = scmp.eq.s32.totalorder %s25, 1
    %p237 = por %p235, %p236
    %p239 = scmp.ne.s32.totalorder %s224, %s238
    %p240 = scmp.eq.s32.totalorder %s25, 0
    %p241 = por %p239, %p240
    %s243 = sadd.s32 %s242, 1
    %p246 = scmp.eq.s32.totalorder %s19, 1
    %p247 = scmp.ne.s32.totalorder %s242, %s244
    %p248 = scmp.eq.s32.totalorder %s19, 0
    %p249 = por %p247, %p248
    %p250 = scmp.ne.s32.totalorder %s242, %s244
    %p251 = scmp.eq.s32.totalorder %s24, 1
    %p252 = por %p250, %p251
    %p253 = scmp.ne.s32.totalorder %s244, %s245
    %p254 = scmp.eq.s32.totalorder %s24, 0
    %p255 = por %p253, %p254
    %p256 = scmp.ne.s32.totalorder %s244, %s245
    %p257 = scmp.eq.s32.totalorder %s25, 1
    %p258 = por %p256, %p257
    %p260 = scmp.ne.s32.totalorder %s245, %s259
    %p261 = scmp.eq.s32.totalorder %s25, 0
    %p262 = por %p260, %p261
    %s264 = sadd.s32 %s263, 1
    %p267 = scmp.eq.s32.totalorder %s19, 1
    %p268 = scmp.ne.s32.totalorder %s263, %s265
    %p269 = scmp.eq.s32.totalorder %s19, 0
    %p270 = por %p268, %p269
    %p271 = scmp.ne.s32.totalorder %s263, %s265
    %p272 = scmp.eq.s32.totalorder %s24, 1
    %p273 = por %p271, %p272
    %p274 = scmp.ne.s32.totalorder %s265, %s266
    %p275 = scmp.eq.s32.totalorder %s24, 0
    %p276 = por %p274, %p275
    %p277 = scmp.ne.s32.totalorder %s265, %s266
    %p278 = scmp.eq.s32.totalorder %s25, 1
    %p279 = por %p277, %p278
    %p281 = scmp.ne.s32.totalorder %s266, %s280
    %p282 = scmp.eq.s32.totalorder %s25, 0
    %p283 = por %p281, %p282
    %s285 = sadd.s32 %s284, 1
    %p288 = scmp.eq.s32.totalorder %s19, 1
    %p289 = scmp.ne.s32.totalorder %s284, %s286
    %p290 = scmp.eq.s32.totalorder %s19, 0
    %p291 = por %p289, %p290
    %p292 = scmp.ne.s32.totalorder %s284, %s286
    %p293 = scmp.eq.s32.totalorder %s24, 1
    %p294 = por %p292, %p293
    %p295 = scmp.ne.s32.totalorder %s286, %s287
    %p296 = scmp.eq.s32.totalorder %s24, 0
    %p297 = por %p295, %p296
    %p298 = scmp.ne.s32.totalorder %s286, %s287
    %p299 = scmp.eq.s32.totalorder %s25, 1
    %p300 = por %p298, %p299
    %p302 = scmp.ne.s32.totalorder %s287, %s301
    %p303 = scmp.eq.s32.totalorder %s25, 0
    %p304 = por %p302, %p303
    %s305 = ssub.s32 %s19, %s26
    %p306 = scmp.eq.s32.totalorder %s305, 0
    %s308 = sadd.s32 %s307, 1
    %s309 = scalar_select %p306, %s307, %s308
    %p312 = pneg %p306
    %p313 = scmp.eq.s32.totalorder %s19, 1
    %p314 = por %p312, %p313
    %p315 = scmp.ne.s32.totalorder %s307, %s310
    %p316 = scmp.eq.s32.totalorder %s19, 0
    %p317 = por %p315, %p316
    %p318 = scmp.ne.s32.totalorder %s307, %s310
    %p319 = scmp.eq.s32.totalorder %s24, 1
    %p320 = por %p318, %p319
    %p321 = scmp.ne.s32.totalorder %s310, %s311
    %p322 = scmp.eq.s32.totalorder %s24, 0
    %p323 = por %p321, %p322
    %p324 = scmp.ne.s32.totalorder %s310, %s311
    %p325 = scmp.eq.s32.totalorder %s25, 1
    %p326 = por %p324, %p325
    %p328 = scmp.ne.s32.totalorder %s311, %s327
    %p329 = scmp.eq.s32.totalorder %s25, 0
    %p330 = por %p328, %p329
    %p331 = scmp.le.s32.totalorder 1, %s19
    %p332 = scmp.lt.s32.totalorder %s19, 3
    %p333 = pnand %p331, %p332
    %p334 = pneg %p333
    // Predicated region
    $region9: #{shufflenet_forward.8} parent=5 // pred_check
      _
    $region10: #{shufflenet_forward.8} parent=5 // pred_check_branch
      %336 = sbr.rel (%p333) target = $region12
    $region11: #{shufflenet_forward.8} parent=5 // pred_region
      %s337 = ssub.s32 %s19, 1
      // Predicated region
      $region13: #{shufflenet_forward.8} parent=11 // pred_check
        %p338 = pneg %p66
      $region14: #{shufflenet_forward.8} parent=11 // pred_check_branch
        %340 = sbr.rel (%p338) target = $region16
      $region15: #{shufflenet_forward.8} parent=11 // pred_region
        _
      $region16: #{shufflenet_forward.8} parent=11 // pred_fallthru
        _
      // Predicated region
      $region17: #{shufflenet_forward.8} parent=11 // pred_check
        %p341 = pneg %p87
      $region18: #{shufflenet_forward.8} parent=11 // pred_check_branch
        %343 = sbr.rel (%p341) target = $region20
      $region19: #{shufflenet_forward.8} parent=11 // pred_region
        _
      $region20: #{shufflenet_forward.8} parent=11 // pred_fallthru
        _
      // Predicated region
      $region21: #{shufflenet_forward.8} parent=11 // pred_check
        %p344 = pneg %p108
      $region22: #{shufflenet_forward.8} parent=11 // pred_check_branch
        %346 = sbr.rel (%p344) target = $region24
      $region23: #{shufflenet_forward.8} parent=11 // pred_region
        _
      $region24: #{shufflenet_forward.8} parent=11 // pred_fallthru
        _
      // Predicated region
      $region25: #{shufflenet_forward.8} parent=11 // pred_check
        %p347 = pneg %p129
      $region26: #{shufflenet_forward.8} parent=11 // pred_check_branch
        %349 = sbr.rel (%p347) target = $region28
      $region27: #{shufflenet_forward.8} parent=11 // pred_region
        _
      $region28: #{shufflenet_forward.8} parent=11 // pred_fallthru
        _
      // Predicated region
      $region29: #{shufflenet_forward.8} parent=11 // pred_check
        %p350 = pneg %p150
      $region30: #{shufflenet_forward.8} parent=11 // pred_check_branch
        %352 = sbr.rel (%p350) target = $region32
      $region31: #{shufflenet_forward.8} parent=11 // pred_region
        _
      $region32: #{shufflenet_forward.8} parent=11 // pred_fallthru
        _
      // Predicated region
      $region33: #{shufflenet_forward.8} parent=11 // pred_check
        %p353 = pneg %p171
      $region34: #{shufflenet_forward.8} parent=11 // pred_check_branch
        %355 = sbr.rel (%p353) target = $region36
      $region35: #{shufflenet_forward.8} parent=11 // pred_region
        _
      $region36: #{shufflenet_forward.8} parent=11 // pred_fallthru
        _
      // Predicated region
      $region37: #{shufflenet_forward.8} parent=11 // pred_check
        %p356 = pneg %p192
      $region38: #{shufflenet_forward.8} parent=11 // pred_check_branch
        %358 = sbr.rel (%p356) target = $region40
      $region39: #{shufflenet_forward.8} parent=11 // pred_region
        _
      $region40: #{shufflenet_forward.8} parent=11 // pred_fallthru
        _
      // Predicated region
      $region41: #{shufflenet_forward.8} parent=11 // pred_check
        %p359 = pneg %p213
      $region42: #{shufflenet_forward.8} parent=11 // pred_check_branch
        %361 = sbr.rel (%p359) target = $region44
      $region43: #{shufflenet_forward.8} parent=11 // pred_region
        _
      $region44: #{shufflenet_forward.8} parent=11 // pred_fallthru
        _
      // Predicated region
      $region45: #{shufflenet_forward.8} parent=11 // pred_check
        %p362 = pneg %p234
      $region46: #{shufflenet_forward.8} parent=11 // pred_check_branch
        %364 = sbr.rel (%p362) target = $region48
      $region47: #{shufflenet_forward.8} parent=11 // pred_region
        _
      $region48: #{shufflenet_forward.8} parent=11 // pred_fallthru
        _
      // Predicated region
      $region49: #{shufflenet_forward.8} parent=11 // pred_check
        %p365 = pneg %p255
      $region50: #{shufflenet_forward.8} parent=11 // pred_check_branch
        %367 = sbr.rel (%p365) target = $region52
      $region51: #{shufflenet_forward.8} parent=11 // pred_region
        _
      $region52: #{shufflenet_forward.8} parent=11 // pred_fallthru
        _
      // Predicated region
      $region53: #{shufflenet_forward.8} parent=11 // pred_check
        %p368 = pneg %p276
      $region54: #{shufflenet_forward.8} parent=11 // pred_check_branch
        %370 = sbr.rel (%p368) target = $region56
      $region55: #{shufflenet_forward.8} parent=11 // pred_region
        _
      $region56: #{shufflenet_forward.8} parent=11 // pred_fallthru
        _
      // Predicated region
      $region57: #{shufflenet_forward.8} parent=11 // pred_check
        %p371 = pneg %p297
      $region58: #{shufflenet_forward.8} parent=11 // pred_check_branch
        %373 = sbr.rel (%p371) target = $region60
      $region59: #{shufflenet_forward.8} parent=11 // pred_region
        _
      $region60: #{shufflenet_forward.8} parent=11 // pred_fallthru
        _
    $region12: #{shufflenet_forward.8} parent=5 // pred_fallthru
      _
    %p374 = scmp.lt.s32.totalorder %s19, 2
    // Predicated region
    $region61: #{shufflenet_forward.8} parent=5 // pred_check
      %p375 = pneg %p374
    $region62: #{shufflenet_forward.8} parent=5 // pred_check_branch
      %377 = sbr.rel (%p375) target = $region64
    $region63: #{shufflenet_forward.8} parent=5 // pred_region
      // Predicated region
      $region65: #{shufflenet_forward.8} parent=63 // pred_check
        %p378 = pneg %p39
      $region66: #{shufflenet_forward.8} parent=63 // pred_check_branch
        %380 = sbr.rel (%p378) target = $region68
      $region67: #{shufflenet_forward.8} parent=63 // pred_region
        %p381 = scmp.lt.s32.totalorder %s19, 1
        %s382 = scalar_select %p381, %s19, 1
        %s383 = smul.addr %s382, 8
        %s384 = smul.addr %s383, 4
        %s385 = scalar_lea.vmem %s0, %s384
      $region68: #{shufflenet_forward.8} parent=63 // pred_fallthru
        _
    $region64: #{shufflenet_forward.8} parent=5 // pred_fallthru
      _
    %p386 = scmp.le.s32.totalorder 1, %s19
    %p387 = scmp.lt.s32.totalorder %s19, 3
    %p388 = pnand %p386, %p387
    %p389 = pneg %p388
    // Predicated region
    $region69: #{shufflenet_forward.8} parent=5 // pred_check
      _
    $region70: #{shufflenet_forward.8} parent=5 // pred_check_branch
      %391 = sbr.rel (%p388) target = $region72
    $region71: #{shufflenet_forward.8} parent=5 // pred_region
      %s392 = ssub.s32 %s19, 1
      %p393 = scmp.lt.s32.totalorder %s24, 1
      %s394 = scalar_select %p393, %s24, 1
      %s395 = smul.addr %s394, 8
      %s396 = smul.addr %s395, 4
      %s397 = scalar_lea.vmem %s0, %s396
      %p398 = pneg %p45
      %p399 = pneg %p42
      %p400 = pneg %p66
      %p401 = pneg %p63
      %p402 = pneg %p87
      %p403 = pneg %p84
      %p404 = pneg %p108
      %p405 = pneg %p105
      %p406 = pneg %p129
      %p407 = pneg %p126
      %p408 = pneg %p150
      %p409 = pneg %p147
      %p410 = pneg %p171
      %p411 = pneg %p168
      %p412 = pneg %p192
      %p413 = pneg %p189
      %p414 = pneg %p213
      %p415 = pneg %p210
      %p416 = pneg %p234
      %p417 = pneg %p231
      %p418 = pneg %p255
      %p419 = pneg %p252
      %p420 = pneg %p276
      %p421 = pneg %p273
      %p422 = pneg %p297
      %p423 = pneg %p294
      %p424 = pneg %p323
      %p425 = pneg %p320
      %p426 = scmp.lt.s32.totalorder %s24, 1
      %s427 = scalar_select %p426, %s24, 1
      %s428 = smul.addr %s427, 2
      %s429 = smul.addr %s428, 4
      %s430 = scalar_lea.vmem %s13, %s429
      %p431 = scmp.lt.s32.totalorder %s24, 1
      %s432 = scalar_select %p431, %s24, 1
      %s433 = smul.addr %s432, 8
      %s434 = smul.addr %s433, 4
      %s435 = scalar_lea.vmem %s0, %s434
      %p436 = scmp.lt.s32.totalorder %s24, 1
      %s437 = scalar_select %p436, %s24, 1
      %s438 = smul.addr %s437, 2
      %s439 = smul.addr %s438, 4
      %s440 = scalar_lea.vmem %s13, %s439
      %v442 = vld [vmem:[%s435] sm:$0xf]
      %v443 = vld [vmem:[%s435 + $0x4] sm:$0xf]
      %v444 = vld [vmem:[%s435 + $0x8] sm:$0xf]
      %v445 = vld [vmem:[%s435 + $0xc] sm:$0xf]
      %v446 = vld [vmem:[%s435 + $0x10] sm:$0xf]
      %v447 = vld [vmem:[%s435 + $0x14] sm:$0xf]
      %v448 = vld [vmem:[%s435 + $0x18] sm:$0xf]
      %v449 = vld [vmem:[%s435 + $0x1c] sm:$0xf]
      %v450 = vld [vmem:[%s2] sm:$0xf]
      %v451 = vld [vmem:[%s2 + $0x4] sm:$0xf]
      %v452 = vld [vmem:[%s2 + $0x8] sm:$0xf]
      %v453 = vld [vmem:[%s2 + $0xc] sm:$0xf]
      %v454 = vld [vmem:[%s2 + $0x10] sm:$0xf]
      %v455 = vld [vmem:[%s2 + $0x14] sm:$0xf]
      %v456 = vld [vmem:[%s2 + $0x18] sm:$0xf]
      %v457 = vld [vmem:[%s2 + $0x1c] sm:$0xf]
      %v458 = vld [vmem:[%s2 + $0x20] sm:$0xf]
      %v459 = vld [vmem:[%s2 + $0x24] sm:$0xf]
      %v460 = vld [vmem:[%s2 + $0x28] sm:$0xf]
      %v461 = vld [vmem:[%s2 + $0x2c] sm:$0xf]
      %v462 = vld [vmem:[%s2 + $0x30] sm:$0xf]
      %v463 = vld [vmem:[%s2 + $0x34] sm:$0xf]
      %v464 = vld [vmem:[%s2 + $0x38] sm:$0xf]
      %v465 = vld [vmem:[%s2 + $0x3c] sm:$0xf]
      %v474 = vunpack.c.l.b16 %v442
      %v475 = vunpack.c.l.b16 %v443
      %v476 = vunpack.c.l.b16 %v444
      %v477 = vunpack.c.l.b16 %v445
      %v478 = vunpack.c.l.b16 %v446
      %v479 = vunpack.c.l.b16 %v447
      %v480 = vunpack.c.l.b16 %v448
      %v481 = vunpack.c.l.b16 %v449
      %v482 = vpack.c.b16 %v475, %v474
      %v483 = vpack.c.b16 %v477, %v476
      %v484 = vpack.c.b16 %v479, %v478
      %v485 = vpack.c.b16 %v481, %v480
      %v506 = vunpack.c.l.b16 %v450
      %v507 = vunpack.c.l.b16 %v451
      %v508 = vunpack.c.l.b16 %v452
      %v509 = vunpack.c.l.b16 %v453
      %v510 = vunpack.c.l.b16 %v454
      %v511 = vunpack.c.l.b16 %v455
      %v512 = vunpack.c.l.b16 %v456
      %v513 = vunpack.c.l.b16 %v457
      %v514 = vunpack.c.l.b16 %v458
      %v515 = vunpack.c.l.b16 %v459
      %v516 = vunpack.c.l.b16 %v460
      %v517 = vunpack.c.l.b16 %v461
      %v518 = vunpack.c.l.b16 %v462
      %v519 = vunpack.c.l.b16 %v463
      %v520 = vunpack.c.l.b16 %v464
      %v521 = vunpack.c.l.b16 %v465
      %v522 = vpack.c.b16 %v507, %v506
      %v523 = vpack.c.b16 %v509, %v508
      %v524 = vpack.c.b16 %v511, %v510
      %v525 = vpack.c.b16 %v513, %v512
      %v526 = vpack.c.b16 %v515, %v514
      %v527 = vpack.c.b16 %v517, %v516
      %v528 = vpack.c.b16 %v519, %v518
      %v529 = vpack.c.b16 %v521, %v520
      %538 = vmatprep.subr.bf16.mxu0 0
      %539 = vmatpush1.bf16.msra.mxu0 %v522
      %540 = vmatprep.subr.bf16.mxu0 0
      %541 = vmatpush1.bf16.msra.mxu0 %v523
      %542 = vmatprep.subr.bf16.mxu0 0
      %543 = vmatpush1.bf16.msra.mxu0 %v524
      %544 = vmatprep.subr.bf16.mxu0 0
      %545 = vmatpush1.bf16.msra.mxu0 %v525
      %546 = vmatprep.subr.bf16.mxu0 0
      %547 = vmatpush1.bf16.msra.mxu0 %v526
      %548 = vmatprep.subr.bf16.mxu0 0
      %549 = vmatpush1.bf16.msra.mxu0 %v527
      %550 = vmatprep.subr.bf16.mxu0 0
      %551 = vmatpush1.bf16.msra.mxu0 %v528
      %552 = vmatprep.subr.bf16.mxu0 0
      %553 = vmatpush1.bf16.msra.mxu0 %v529
      %554 = vmatprep.subr.bf16.mxu0 0
      %555 = vmatpush1.bf16.msra.mxu0 0
      %556 = vmatprep.subr.bf16.mxu0 0
      %557 = vmatpush1.bf16.msra.mxu0 0
      %558 = vmatprep.subr.bf16.mxu0 0
      %559 = vmatpush1.bf16.msra.mxu0 0
      %560 = vmatprep.subr.bf16.mxu0 0
      %561 = vmatpush1.bf16.msra.mxu0 0
      %562 = vmatprep.subr.bf16.mxu0 0
      %563 = vmatpush1.bf16.msra.mxu0 0
      %564 = vmatprep.subr.bf16.mxu0 0
      %565 = vmatpush1.bf16.msra.mxu0 0
      %566 = vmatprep.subr.bf16.mxu0 0
      %567 = vmatpush1.bf16.msra.mxu0 0
      %568 = vmatprep.subr.bf16.mxu0 0
      %569 = vmatpush1.bf16.msra.mxu0 0
      %570 = vmatprep.mubr.bf16.mxu0 0
      %571 = vmatmul.mubr.bf16.gmra.mrb[0].mxu0 %v482
      %v572 = vpop.f32.mrb[0].mxu0
      %v573 = vadd.f32 0.0, %v572
      %v574 = vpop.f32.mrb[0].mxu0
      %v575 = vpop.f32.mrb[0].mxu0
      %v576 = vadd.f32 0.0, %v575
      %v577 = vpop.f32.mrb[0].mxu0
      %578 = vmatprep.mubr.bf16.mxu0 0
      %579 = vmatmul.mubr.bf16.gmra.mrb[0].mxu0 %v483
      %v580 = vpop.f32.mrb[0].mxu0
      %v581 = vadd.f32 0.0, %v580
      %v582 = vpop.f32.mrb[0].mxu0
      %v583 = vpop.f32.mrb[0].mxu0
      %v584 = vadd.f32 0.0, %v583
      %v585 = vpop.f32.mrb[0].mxu0
      %586 = vmatprep.mubr.bf16.mxu0 0
      %587 = vmatmul.mubr.bf16.gmra.mrb[0].mxu0 %v484
      %v588 = vpop.f32.mrb[0].mxu0
      %v589 = vadd.f32 0.0, %v588
      %v590 = vpop.f32.mrb[0].mxu0
      %v591 = vpop.f32.mrb[0].mxu0
      %v592 = vadd.f32 0.0, %v591
      %v593 = vpop.f32.mrb[0].mxu0
      %594 = vmatprep.mubr.bf16.mxu0 0
      %595 = vmatmul.mubr.bf16.gmra.mrb[0].mxu0 %v485
      %v596 = vpop.f32.mrb[0].mxu0
      %v597 = vadd.f32 0.0, %v596
      %v598 = vpop.f32.mrb[0].mxu0
      %v599 = vpop.f32.mrb[0].mxu0
      %v600 = vadd.f32 0.0, %v599
      %v601 = vpop.f32.mrb[0].mxu0
      %602 = vdwg.mxu0
      %v603 = vld [vmem:[%s3] sm:$0x1]
      %v605 = vlaneseq
      %v606 = vshrl.u32 %v605, 7
      %v607 = vsub.s32 0, %v606
      %v608 = vrot.slane %v603, %v607
      %v610 = vmul.f32 %v573, %v608
      %v611 = vmul.f32 %v576, %v608
      %v612 = vmul.f32 %v581, %v608
      %v613 = vmul.f32 %v584, %v608
      %v614 = vmul.f32 %v589, %v608
      %v615 = vmul.f32 %v592, %v608
      %v616 = vmul.f32 %v597, %v608
      %v617 = vmul.f32 %v600, %v608
      %v618 = vld [vmem:[%s4] sm:$0x1]
      %v620 = vlaneseq
      %v621 = vshrl.u32 %v620, 7
      %v622 = vsub.s32 0, %v621
      %v623 = vrot.slane %v618, %v622
      %v625 = vadd.f32 %v610, %v623
      %v626 = vadd.f32 %v611, %v623
      %v627 = vadd.f32 %v612, %v623
      %v628 = vadd.f32 %v613, %v623
      %v629 = vadd.f32 %v614, %v623
      %v630 = vadd.f32 %v615, %v623
      %v631 = vadd.f32 %v616, %v623
      %v632 = vadd.f32 %v617, %v623
      %v633 = vmax.f32 %v625, 0.0
      %v634 = vmax.f32 %v626, 0.0
      %v635 = vmax.f32 %v627, 0.0
      %v636 = vmax.f32 %v628, 0.0
      %v637 = vmax.f32 %v629, 0.0
      %v638 = vmax.f32 %v630, 0.0
      %v639 = vmax.f32 %v631, 0.0
      %v640 = vmax.f32 %v632, 0.0
      %v641 = vpack.c.bf16 %v634, %v633
      %v642 = vpack.c.bf16 %v636, %v635
      %v643 = vpack.c.bf16 %v638, %v637
      %v644 = vpack.c.bf16 %v640, %v639
      %v645 = vld [vmem:[%s1] sm:$0xf]
      %v646 = vld [vmem:[%s1 + $0x4] sm:$0xf]
      %v649 = vunpack.c.l.b16 %v645
      %v650 = vunpack.c.l.b16 %v646
      %v651 = vpack.c.b16 %v650, %v649
      %vm652 = vcmask 523264
      %v654 = vsel %vm652, %v651, 0
      %656 = vmatprep.subr.bf16.mxu0 0
      %657 = vmatpush1.bf16.msra.mxu0 %v641
      %658 = vmatprep.subr.bf16.mxu0 0
      %659 = vmatpush1.bf16.msra.mxu0 %v642
      %660 = vmatprep.subr.bf16.mxu0 0
      %661 = vmatpush1.bf16.msra.mxu0 %v643
      %662 = vmatprep.subr.bf16.mxu0 0
      %663 = vmatpush1.bf16.msra.mxu0 %v644
      %664 = vmatprep.subr.bf16.mxu0 0
      %665 = vmatpush1.bf16.msra.mxu0 0
      %666 = vmatprep.subr.bf16.mxu0 0
      %667 = vmatpush1.bf16.msra.mxu0 0
      %668 = vmatprep.subr.bf16.mxu0 0
      %669 = vmatpush1.bf16.msra.mxu0 0
      %670 = vmatprep.subr.bf16.mxu0 0
      %671 = vmatpush1.bf16.msra.mxu0 0
      %672 = vmatprep.subr.bf16.mxu0 0
      %673 = vmatpush1.bf16.msra.mxu0 0
      %674 = vmatprep.subr.bf16.mxu0 0
      %675 = vmatpush1.bf16.msra.mxu0 0
      %676 = vmatprep.subr.bf16.mxu0 0
      %677 = vmatpush1.bf16.msra.mxu0 0
      %678 = vmatprep.subr.bf16.mxu0 0
      %679 = vmatpush1.bf16.msra.mxu0 0
      %680 = vmatprep.subr.bf16.mxu0 0
      %681 = vmatpush1.bf16.msra.mxu0 0
      %682 = vmatprep.subr.bf16.mxu0 0
      %683 = vmatpush1.bf16.msra.mxu0 0
      %684 = vmatprep.subr.bf16.mxu0 0
      %685 = vmatpush1.bf16.msra.mxu0 0
      %686 = vmatprep.subr.bf16.mxu0 0
      %687 = vmatpush1.bf16.msra.mxu0 0
      %688 = vmatprep.mubr.bf16.mxu0 0
      %689 = vmatmul.mubr.bf16.gmra.mrb[0].mxu0 %v654
      %v690 = vpop.f32.mrb[0].mxu0
      %v691 = vadd.f32 0.0, %v690
      %v692 = vpop.f32.mrb[0].mxu0
      %v693 = vpop.f32.mrb[0].mxu0
      %v694 = vadd.f32 0.0, %v693
      %v695 = vpop.f32.mrb[0].mxu0
      %696 = vdwg.mxu0
      %v697 = vld [vmem:[%s5] sm:$0x1]
      %v699 = vlaneseq
      %v700 = vshrl.u32 %v699, 7
      %v701 = vsub.s32 0, %v700
      %v702 = vrot.slane %v697, %v701
      %v704 = vmul.f32 %v691, %v702
      %v705 = vmul.f32 %v694, %v702
      %s706 = scalar_lea.vmem %s1, 8
      %v707 = vld [vmem:[%s706] sm:$0xf]
      %v708 = vld [vmem:[%s706 + $0x4] sm:$0xf]
      %v711 = vunpack.c.l.b16 %v707
      %v712 = vunpack.c.l.b16 %v708
      %v713 = vpack.c.b16 %v712, %v711
      %v715 = vsel %vm652, %v713, 0
      %717 = vmatprep.subr.bf16.mxu0 0
      %718 = vmatpush1.bf16.msra.mxu0 %v641
      %719 = vmatprep.subr.bf16.mxu0 0
      %720 = vmatpush1.bf16.msra.mxu0 %v642
      %721 = vmatprep.subr.bf16.mxu0 0
      %722 = vmatpush1.bf16.msra.mxu0 %v643
      %723 = vmatprep.subr.bf16.mxu0 0
      %724 = vmatpush1.bf16.msra.mxu0 %v644
      %725 = vmatprep.subr.bf16.mxu0 0
      %726 = vmatpush1.bf16.msra.mxu0 0
      %727 = vmatprep.subr.bf16.mxu0 0
      %728 = vmatpush1.bf16.msra.mxu0 0
      %729 = vmatprep.subr.bf16.mxu0 0
      %730 = vmatpush1.bf16.msra.mxu0 0
      %731 = vmatprep.subr.bf16.mxu0 0
      %732 = vmatpush1.bf16.msra.mxu0 0
      %733 = vmatprep.subr.bf16.mxu0 0
      %734 = vmatpush1.bf16.msra.mxu0 0
      %735 = vmatprep.subr.bf16.mxu0 0
      %736 = vmatpush1.bf16.msra.mxu0 0
      %737 = vmatprep.subr.bf16.mxu0 0
      %738 = vmatpush1.bf16.msra.mxu0 0
      %739 = vmatprep.subr.bf16.mxu0 0
      %740 = vmatpush1.bf16.msra.mxu0 0
      %741 = vmatprep.subr.bf16.mxu0 0
      %742 = vmatpush1.bf16.msra.mxu0 0
      %743 = vmatprep.subr.bf16.mxu0 0
      %744 = vmatpush1.bf16.msra.mxu0 0
      %745 = vmatprep.subr.bf16.mxu0 0
      %746 = vmatpush1.bf16.msra.mxu0 0
      %747 = vmatprep.subr.bf16.mxu0 0
      %748 = vmatpush1.bf16.msra.mxu0 0
      %749 = vmatprep.mubr.bf16.mxu0 0
      %750 = vmatmul.mubr.bf16.gmra.mrb[0].mxu0 %v715
      %v751 = vpop.f32.mrb[0].mxu0
      %v752 = vadd.f32 0.0, %v751
      %v753 = vpop.f32.mrb[0].mxu0
      %v754 = vpop.f32.mrb[0].mxu0
      %v755 = vadd.f32 0.0, %v754
      %v756 = vpop.f32.mrb[0].mxu0
      %757 = vdwg.mxu0
      %s758 = scalar_lea.vmem %s5, 1
      %v759 = vld [vmem:[%s758] sm:$0x1]
      %v761 = vlaneseq
      %v762 = vshrl.u32 %v761, 7
      %v763 = vsub.s32 0, %v762
      %v764 = vrot.slane %v759, %v763
      %v766 = vmul.f32 %v752, %v764
      %v767 = vmul.f32 %v755, %v764
      %v768 = vadd.f32 %v704, %v766
      %v769 = vadd.f32 %v705, %v767
      %s770 = scalar_lea.vmem %s1, 16
      %v771 = vld [vmem:[%s770] sm:$0xf]
      %v772 = vld [vmem:[%s770 + $0x4] sm:$0xf]
      %v775 = vunpack.c.l.b16 %v771
      %v776 = vunpack.c.l.b16 %v772
      %v777 = vpack.c.b16 %v776, %v775
      %v779 = vsel %vm652, %v777, 0
      %781 = vmatprep.subr.bf16.mxu0 0
      %782 = vmatpush1.bf16.msra.mxu0 %v641
      %783 = vmatprep.subr.bf16.mxu0 0
      %784 = vmatpush1.bf16.msra.mxu0 %v642
      %785 = vmatprep.subr.bf16.mxu0 0
      %786 = vmatpush1.bf16.msra.mxu0 %v643
      %787 = vmatprep.subr.bf16.mxu0 0
      %788 = vmatpush1.bf16.msra.mxu0 %v644
      %789 = vmatprep.subr.bf16.mxu0 0
      %790 = vmatpush1.bf16.msra.mxu0 0
      %791 = vmatprep.subr.bf16.mxu0 0
      %792 = vmatpush1.bf16.msra.mxu0 0
      %793 = vmatprep.subr.bf16.mxu0 0
      %794 = vmatpush1.bf16.msra.mxu0 0
      %795 = vmatprep.subr.bf16.mxu0 0
      %796 = vmatpush1.bf16.msra.mxu0 0
      %797 = vmatprep.subr.bf16.mxu0 0
      %798 = vmatpush1.bf16.msra.mxu0 0
      %799 = vmatprep.subr.bf16.mxu0 0
      %800 = vmatpush1.bf16.msra.mxu0 0
      %801 = vmatprep.subr.bf16.mxu0 0
      %802 = vmatpush1.bf16.msra.mxu0 0
      %803 = vmatprep.subr.bf16.mxu0 0
      %804 = vmatpush1.bf16.msra.mxu0 0
      %805 = vmatprep.subr.bf16.mxu0 0
      %806 = vmatpush1.bf16.msra.mxu0 0
      %807 = vmatprep.subr.bf16.mxu0 0
      %808 = vmatpush1.bf16.msra.mxu0 0
      %809 = vmatprep.subr.bf16.mxu0 0
      %810 = vmatpush1.bf16.msra.mxu0 0
      %811 = vmatprep.subr.bf16.mxu0 0
      %812 = vmatpush1.bf16.msra.mxu0 0
      %813 = vmatprep.mubr.bf16.mxu0 0
      %814 = vmatmul.mubr.bf16.gmra.mrb[0].mxu0 %v779
      %v815 = vpop.f32.mrb[0].mxu0
      %v816 = vadd.f32 0.0, %v815
      %v817 = vpop.f32.mrb[0].mxu0
      %v818 = vpop.f32.mrb[0].mxu0
      %v819 = vadd.f32 0.0, %v818
      %v820 = vpop.f32.mrb[0].mxu0
      %821 = vdwg.mxu0
      %s822 = scalar_lea.vmem %s5, 2
      %v823 = vld [vmem:[%s822] sm:$0x1]
      %v825 = vlaneseq
      %v826 = vshrl.u32 %v825, 7
      %v827 = vsub.s32 0, %v826
      %v828 = vrot.slane %v823, %v827
      %v830 = vmul.f32 %v816, %v828
      %v831 = vmul.f32 %v819, %v828
      %v832 = vadd.f32 %v768, %v830
      %v833 = vadd.f32 %v769, %v831
      %s834 = scalar_lea.vmem %s1, 24
      %v835 = vld [vmem:[%s834] sm:$0xf]
      %v836 = vld [vmem:[%s834 + $0x4] sm:$0xf]
      %v839 = vunpack.c.l.b16 %v835
      %v840 = vunpack.c.l.b16 %v836
      %v841 = vpack.c.b16 %v840, %v839
      %v843 = vsel %vm652, %v841, 0
      %845 = vmatprep.subr.bf16.mxu0 0
      %846 = vmatpush1.bf16.msra.mxu0 %v641
      %847 = vmatprep.subr.bf16.mxu0 0
      %848 = vmatpush1.bf16.msra.mxu0 %v642
      %849 = vmatprep.subr.bf16.mxu0 0
      %850 = vmatpush1.bf16.msra.mxu0 %v643
      %851 = vmatprep.subr.bf16.mxu0 0
      %852 = vmatpush1.bf16.msra.mxu0 %v644
      %853 = vmatprep.subr.bf16.mxu0 0
      %854 = vmatpush1.bf16.msra.mxu0 0
      %855 = vmatprep.subr.bf16.mxu0 0
      %856 = vmatpush1.bf16.msra.mxu0 0
      %857 = vmatprep.subr.bf16.mxu0 0
      %858 = vmatpush1.bf16.msra.mxu0 0
      %859 = vmatprep.subr.bf16.mxu0 0
      %860 = vmatpush1.bf16.msra.mxu0 0
      %861 = vmatprep.subr.bf16.mxu0 0
      %862 = vmatpush1.bf16.msra.mxu0 0
      %863 = vmatprep.subr.bf16.mxu0 0
      %864 = vmatpush1.bf16.msra.mxu0 0
      %865 = vmatprep.subr.bf16.mxu0 0
      %866 = vmatpush1.bf16.msra.mxu0 0
      %867 = vmatprep.subr.bf16.mxu0 0
      %868 = vmatpush1.bf16.msra.mxu0 0
      %869 = vmatprep.subr.bf16.mxu0 0
      %870 = vmatpush1.bf16.msra.mxu0 0
      %871 = vmatprep.subr.bf16.mxu0 0
      %872 = vmatpush1.bf16.msra.mxu0 0
      %873 = vmatprep.subr.bf16.mxu0 0
      %874 = vmatpush1.bf16.msra.mxu0 0
      %875 = vmatprep.subr.bf16.mxu0 0
      %876 = vmatpush1.bf16.msra.mxu0 0
      %877 = vmatprep.mubr.bf16.mxu0 0
      %878 = vmatmul.mubr.bf16.gmra.mrb[0].mxu0 %v843
      %v879 = vpop.f32.mrb[0].mxu0
      %v880 = vadd.f32 0.0, %v879
      %v881 = vpop.f32.mrb[0].mxu0
      %v882 = vpop.f32.mrb[0].mxu0
      %v883 = vadd.f32 0.0, %v882
      %v884 = vpop.f32.mrb[0].mxu0
      %885 = vdwg.mxu0
      %s886 = scalar_lea.vmem %s5, 3
      %v887 = vld [vmem:[%s886] sm:$0x1]
      %v889 = vlaneseq
      %v890 = vshrl.u32 %v889, 7
      %v891 = vsub.s32 0, %v890
      %v892 = vrot.slane %v887, %v891
      %v894 = vmul.f32 %v880, %v892
      %v895 = vmul.f32 %v883, %v892
      %v896 = vadd.f32 %v832, %v894
      %v897 = vadd.f32 %v833, %v895
      %s898 = scalar_lea.vmem %s1, 32
      %v899 = vld [vmem:[%s898] sm:$0xf]
      %v900 = vld [vmem:[%s898 + $0x4] sm:$0xf]
      %v903 = vunpack.c.l.b16 %v899
      %v904 = vunpack.c.l.b16 %v900
      %v905 = vpack.c.b16 %v904, %v903
      %v907 = vsel %vm652, %v905, 0
      %909 = vmatprep.subr.bf16.mxu0 0
      %910 = vmatpush1.bf16.msra.mxu0 %v641
      %911 = vmatprep.subr.bf16.mxu0 0
      %912 = vmatpush1.bf16.msra.mxu0 %v642
      %913 = vmatprep.subr.bf16.mxu0 0
      %914 = vmatpush1.bf16.msra.mxu0 %v643
      %915 = vmatprep.subr.bf16.mxu0 0
      %916 = vmatpush1.bf16.msra.mxu0 %v644
      %917 = vmatprep.subr.bf16.mxu0 0
      %918 = vmatpush1.bf16.msra.mxu0 0
      %919 = vmatprep.subr.bf16.mxu0 0
      %920 = vmatpush1.bf16.msra.mxu0 0
      %921 = vmatprep.subr.bf16.mxu0 0
      %922 = vmatpush1.bf16.msra.mxu0 0
      %923 = vmatprep.subr.bf16.mxu0 0
      %924 = vmatpush1.bf16.msra.mxu0 0
      %925 = vmatprep.subr.bf16.mxu0 0
      %926 = vmatpush1.bf16.msra.mxu0 0
      %927 = vmatprep.subr.bf16.mxu0 0
      %928 = vmatpush1.bf16.msra.mxu0 0
      %929 = vmatprep.subr.bf16.mxu0 0
      %930 = vmatpush1.bf16.msra.mxu0 0
      %931 = vmatprep.subr.bf16.mxu0 0
      %932 = vmatpush1.bf16.msra.mxu0 0
      %933 = vmatprep.subr.bf16.mxu0 0
      %934 = vmatpush1.bf16.msra.mxu0 0
      %935 = vmatprep.subr.bf16.mxu0 0
      %936 = vmatpush1.bf16.msra.mxu0 0
      %937 = vmatprep.subr.bf16.mxu0 0
      %938 = vmatpush1.bf16.msra.mxu0 0
      %939 = vmatprep.subr.bf16.mxu0 0
      %940 = vmatpush1.bf16.msra.mxu0 0
      %941 = vmatprep.mubr.bf16.mxu0 0
      %942 = vmatmul.mubr.bf16.gmra.mrb[0].mxu0 %v907
      %v943 = vpop.f32.mrb[0].mxu0
      %v944 = vadd.f32 0.0, %v943
      %v945 = vpop.f32.mrb[0].mxu0
      %v946 = vpop.f32.mrb[0].mxu0
      %v947 = vadd.f32 0.0, %v946
      %v948 = vpop.f32.mrb[0].mxu0
      %949 = vdwg.mxu0
      %s950 = scalar_lea.vmem %s5, 4
      %v951 = vld [vmem:[%s950] sm:$0x1]
      %v953 = vlaneseq
      %v954 = vshrl.u32 %v953, 7
      %v955 = vsub.s32 0, %v954
      %v956 = vrot.slane %v951, %v955
      %v958 = vmul.f32 %v944, %v956
      %v959 = vmul.f32 %v947, %v956
      %v960 = vadd.f32 %v896, %v958
      %v961 = vadd.f32 %v897, %v959
      %s962 = scalar_lea.vmem %s1, 40
      %v963 = vld [vmem:[%s962] sm:$0xf]
      %v964 = vld [vmem:[%s962 + $0x4] sm:$0xf]
      %v967 = vunpack.c.l.b16 %v963
      %v968 = vunpack.c.l.b16 %v964
      %v969 = vpack.c.b16 %v968, %v967
      %v971 = vsel %vm652, %v969, 0
      %973 = vmatprep.subr.bf16.mxu0 0
      %974 = vmatpush1.bf16.msra.mxu0 %v641
      %975 = vmatprep.subr.bf16.mxu0 0
      %976 = vmatpush1.bf16.msra.mxu0 %v642
      %977 = vmatprep.subr.bf16.mxu0 0
      %978 = vmatpush1.bf16.msra.mxu0 %v643
      %979 = vmatprep.subr.bf16.mxu0 0
      %980 = vmatpush1.bf16.msra.mxu0 %v644
      %981 = vmatprep.subr.bf16.mxu0 0
      %982 = vmatpush1.bf16.msra.mxu0 0
      %983 = vmatprep.subr.bf16.mxu0 0
      %984 = vmatpush1.bf16.msra.mxu0 0
      %985 = vmatprep.subr.bf16.mxu0 0
      %986 = vmatpush1.bf16.msra.mxu0 0
      %987 = vmatprep.subr.bf16.mxu0 0
      %988 = vmatpush1.bf16.msra.mxu0 0
      %989 = vmatprep.subr.bf16.mxu0 0
      %990 = vmatpush1.bf16.msra.mxu0 0
      %991 = vmatprep.subr.bf16.mxu0 0
      %992 = vmatpush1.bf16.msra.mxu0 0
      %993 = vmatprep.subr.bf16.mxu0 0
      %994 = vmatpush1.bf16.msra.mxu0 0
      %995 = vmatprep.subr.bf16.mxu0 0
      %996 = vmatpush1.bf16.msra.mxu0 0
      %997 = vmatprep.subr.bf16.mxu0 0
      %998 = vmatpush1.bf16.msra.mxu0 0
      %999 = vmatprep.subr.bf16.mxu0 0
      %1000 = vmatpush1.bf16.msra.mxu0 0
      %1001 = vmatprep.subr.bf16.mxu0 0
      %1002 = vmatpush1.bf16.msra.mxu0 0
      %1003 = vmatprep.subr.bf16.mxu0 0
      %1004 = vmatpush1.bf16.msra.mxu0 0
      %1005 = vmatprep.mubr.bf16.mxu0 0
      %1006 = vmatmul.mubr.bf16.gmra.mrb[0].mxu0 %v971
      %v1007 = vpop.f32.mrb[0].mxu0
      %v1008 = vadd.f32 0.0, %v1007
      %v1009 = vpop.f32.mrb[0].mxu0
      %v1010 = vpop.f32.mrb[0].mxu0
      %v1011 = vadd.f32 0.0, %v1010
      %v1012 = vpop.f32.mrb[0].mxu0
      %1013 = vdwg.mxu0
      %s1014 = scalar_lea.vmem %s5, 5
      %v1015 = vld [vmem:[%s1014] sm:$0x1]
      %v1017 = vlaneseq
      %v1018 = vshrl.u32 %v1017, 7
      %v1019 = vsub.s32 0, %v1018
      %v1020 = vrot.slane %v1015, %v1019
      %v1022 = vmul.f32 %v1008, %v1020
      %v1023 = vmul.f32 %v1011, %v1020
      %v1024 = vadd.f32 %v960, %v1022
      %v1025 = vadd.f32 %v961, %v1023
      %s1026 = scalar_lea.vmem %s1, 48
      %v1027 = vld [vmem:[%s1026] sm:$0xf]
      %v1028 = vld [vmem:[%s1026 + $0x4] sm:$0xf]
      %v1031 = vunpack.c.l.b16 %v1027
      %v1032 = vunpack.c.l.b16 %v1028
      %v1033 = vpack.c.b16 %v1032, %v1031
      %v1035 = vsel %vm652, %v1033, 0
      %1037 = vmatprep.subr.bf16.mxu0 0
      %1038 = vmatpush1.bf16.msra.mxu0 %v641
      %1039 = vmatprep.subr.bf16.mxu0 0
      %1040 = vmatpush1.bf16.msra.mxu0 %v642
      %1041 = vmatprep.subr.bf16.mxu0 0
      %1042 = vmatpush1.bf16.msra.mxu0 %v643
      %1043 = vmatprep.subr.bf16.mxu0 0
      %1044 = vmatpush1.bf16.msra.mxu0 %v644
      %1045 = vmatprep.subr.bf16.mxu0 0
      %1046 = vmatpush1.bf16.msra.mxu0 0
      %1047 = vmatprep.subr.bf16.mxu0 0
      %1048 = vmatpush1.bf16.msra.mxu0 0
      %1049 = vmatprep.subr.bf16.mxu0 0
      %1050 = vmatpush1.bf16.msra.mxu0 0
      %1051 = vmatprep.subr.bf16.mxu0 0
      %1052 = vmatpush1.bf16.msra.mxu0 0
      %1053 = vmatprep.subr.bf16.mxu0 0
      %1054 = vmatpush1.bf16.msra.mxu0 0
      %1055 = vmatprep.subr.bf16.mxu0 0
      %1056 = vmatpush1.bf16.msra.mxu0 0
      %1057 = vmatprep.subr.bf16.mxu0 0
      %1058 = vmatpush1.bf16.msra.mxu0 0
      %1059 = vmatprep.subr.bf16.mxu0 0
      %1060 = vmatpush1.bf16.msra.mxu0 0
      %1061 = vmatprep.subr.bf16.mxu0 0
      %1062 = vmatpush1.bf16.msra.mxu0 0
      %1063 = vmatprep.subr.bf16.mxu0 0
      %1064 = vmatpush1.bf16.msra.mxu0 0
      %1065 = vmatprep.subr.bf16.mxu0 0
      %1066 = vmatpush1.bf16.msra.mxu0 0
      %1067 = vmatprep.subr.bf16.mxu0 0
      %1068 = vmatpush1.bf16.msra.mxu0 0
      %1069 = vmatprep.mubr.bf16.mxu0 0
      %1070 = vmatmul.mubr.bf16.gmra.mrb[0].mxu0 %v1035
      %v1071 = vpop.f32.mrb[0].mxu0
      %v1072 = vadd.f32 0.0, %v1071
      %v1073 = vpop.f32.mrb[0].mxu0
      %v1074 = vpop.f32.mrb[0].mxu0
      %v1075 = vadd.f32 0.0, %v1074
      %v1076 = vpop.f32.mrb[0].mxu0
      %1077 = vdwg.mxu0
      %s1078 = scalar_lea.vmem %s5, 6
      %v1079 = vld [vmem:[%s1078] sm:$0x1]
      %v1081 = vlaneseq
      %v1082 = vshrl.u32 %v1081, 7
      %v1083 = vsub.s32 0, %v1082
      %v1084 = vrot.slane %v1079, %v1083
      %v1086 = vmul.f32 %v1072, %v1084
      %v1087 = vmul.f32 %v1075, %v1084
      %v1088 = vadd.f32 %v1024, %v1086
      %v1089 = vadd.f32 %v1025, %v1087
      %s1090 = scalar_lea.vmem %s1, 56
      %v1091 = vld [vmem:[%s1090] sm:$0xf]
      %v1092 = vld [vmem:[%s1090 + $0x4] sm:$0xf]
      %v1095 = vunpack.c.l.b16 %v1091
      %v1096 = vunpack.c.l.b16 %v1092
      %v1097 = vpack.c.b16 %v1096, %v1095
      %v1099 = vsel %vm652, %v1097, 0
      %1101 = vmatprep.subr.bf16.mxu0 0
      %1102 = vmatpush1.bf16.msra.mxu0 %v641
      %1103 = vmatprep.subr.bf16.mxu0 0
      %1104 = vmatpush1.bf16.msra.mxu0 %v642
      %1105 = vmatprep.subr.bf16.mxu0 0
      %1106 = vmatpush1.bf16.msra.mxu0 %v643
      %1107 = vmatprep.subr.bf16.mxu0 0
      %1108 = vmatpush1.bf16.msra.mxu0 %v644
      %1109 = vmatprep.subr.bf16.mxu0 0
      %1110 = vmatpush1.bf16.msra.mxu0 0
      %1111 = vmatprep.subr.bf16.mxu0 0
      %1112 = vmatpush1.bf16.msra.mxu0 0
      %1113 = vmatprep.subr.bf16.mxu0 0
      %1114 = vmatpush1.bf16.msra.mxu0 0
      %1115 = vmatprep.subr.bf16.mxu0 0
      %1116 = vmatpush1.bf16.msra.mxu0 0
      %1117 = vmatprep.subr.bf16.mxu0 0
      %1118 = vmatpush1.bf16.msra.mxu0 0
      %1119 = vmatprep.subr.bf16.mxu0 0
      %1120 = vmatpush1.bf16.msra.mxu0 0
      %1121 = vmatprep.subr.bf16.mxu0 0
      %1122 = vmatpush1.bf16.msra.mxu0 0
      %1123 = vmatprep.subr.bf16.mxu0 0
      %1124 = vmatpush1.bf16.msra.mxu0 0
      %1125 = vmatprep.subr.bf16.mxu0 0
      %1126 = vmatpush1.bf16.msra.mxu0 0
      %1127 = vmatprep.subr.bf16.mxu0 0
      %1128 = vmatpush1.bf16.msra.mxu0 0
      %1129 = vmatprep.subr.bf16.mxu0 0
      %1130 = vmatpush1.bf16.msra.mxu0 0
      %1131 = vmatprep.subr.bf16.mxu0 0
      %1132 = vmatpush1.bf16.msra.mxu0 0
      %1133 = vmatprep.mubr.bf16.mxu0 0
      %1134 = vmatmul.mubr.bf16.gmra.mrb[0].mxu0 %v1099
      %v1135 = vpop.f32.mrb[0].mxu0
      %v1136 = vadd.f32 0.0, %v1135
      %v1137 = vpop.f32.mrb[0].mxu0
      %v1138 = vpop.f32.mrb[0].mxu0
      %v1139 = vadd.f32 0.0, %v1138
      %v1140 = vpop.f32.mrb[0].mxu0
      %1141 = vdwg.mxu0
      %s1142 = scalar_lea.vmem %s5, 7
      %v1143 = vld [vmem:[%s1142] sm:$0x1]
      %v1145 = vlaneseq
      %v1146 = vshrl.u32 %v1145, 7
      %v1147 = vsub.s32 0, %v1146
      %v1148 = vrot.slane %v1143, %v1147
      %v1150 = vmul.f32 %v1136, %v1148
      %v1151 = vmul.f32 %v1139, %v1148
      %v1152 = vadd.f32 %v1088, %v1150
      %v1153 = vadd.f32 %v1089, %v1151
      %s1154 = scalar_lea.vmem %s1, 64
      %v1155 = vld [vmem:[%s1154] sm:$0xf]
      %v1156 = vld [vmem:[%s1154 + $0x4] sm:$0xf]
      %v1159 = vunpack.c.l.b16 %v1155
      %v1160 = vunpack.c.l.b16 %v1156
      %v1161 = vpack.c.b16 %v1160, %v1159
      %v1163 = vsel %vm652, %v1161, 0
      %1165 = vmatprep.subr.bf16.mxu0 0
      %1166 = vmatpush1.bf16.msra.mxu0 %v641
      %1167 = vmatprep.subr.bf16.mxu0 0
      %1168 = vmatpush1.bf16.msra.mxu0 %v642
      %1169 = vmatprep.subr.bf16.mxu0 0
      %1170 = vmatpush1.bf16.msra.mxu0 %v643
      %1171 = vmatprep.subr.bf16.mxu0 0
      %1172 = vmatpush1.bf16.msra.mxu0 %v644
      %1173 = vmatprep.subr.bf16.mxu0 0
      %1174 = vmatpush1.bf16.msra.mxu0 0
      %1175 = vmatprep.subr.bf16.mxu0 0
      %1176 = vmatpush1.bf16.msra.mxu0 0
      %1177 = vmatprep.subr.bf16.mxu0 0
      %1178 = vmatpush1.bf16.msra.mxu0 0
      %1179 = vmatprep.subr.bf16.mxu0 0
      %1180 = vmatpush1.bf16.msra.mxu0 0
      %1181 = vmatprep.subr.bf16.mxu0 0
      %1182 = vmatpush1.bf16.msra.mxu0 0
      %1183 = vmatprep.subr.bf16.mxu0 0
      %1184 = vmatpush1.bf16.msra.mxu0 0
      %1185 = vmatprep.subr.bf16.mxu0 0
      %1186 = vmatpush1.bf16.msra.mxu0 0
      %1187 = vmatprep.subr.bf16.mxu0 0
      %1188 = vmatpush1.bf16.msra.mxu0 0
      %1189 = vmatprep.subr.bf16.mxu0 0
      %1190 = vmatpush1.bf16.msra.mxu0 0
      %1191 = vmatprep.subr.bf16.mxu0 0
      %1192 = vmatpush1.bf16.msra.mxu0 0
      %1193 = vmatprep.subr.bf16.mxu0 0
      %1194 = vmatpush1.bf16.msra.mxu0 0
      %1195 = vmatprep.subr.bf16.mxu0 0
      %1196 = vmatpush1.bf16.msra.mxu0 0
      %1197 = vmatprep.mubr.bf16.mxu0 0
      %1198 = vmatmul.mubr.bf16.gmra.mrb[0].mxu0 %v1163
      %v1199 = vpop.f32.mrb[0].mxu0
      %v1200 = vadd.f32 0.0, %v1199
      %v1201 = vpop.f32.mrb[0].mxu0
      %v1202 = vpop.f32.mrb[0].mxu0
      %v1203 = vadd.f32 0.0, %v1202
      %v1204 = vpop.f32.mrb[0].mxu0
      %1205 = vdwg.mxu0
      %s1206 = scalar_lea.vmem %s5, 8
      %v1207 = vld [vmem:[%s1206] sm:$0x1]
      %v1209 = vlaneseq
      %v1210 = vshrl.u32 %v1209, 7
      %v1211 = vsub.s32 0, %v1210
      %v1212 = vrot.slane %v1207, %v1211
      %v1214 = vmul.f32 %v1200, %v1212
      %v1215 = vmul.f32 %v1203, %v1212
      %v1216 = vadd.f32 %v1152, %v1214
      %v1217 = vadd.f32 %v1153, %v1215
      %v1218 = vld [vmem:[%s6] sm:$0x1]
      %v1220 = vlaneseq
      %v1221 = vshrl.u32 %v1220, 7
      %v1222 = vsub.s32 0, %v1221
      %v1223 = vrot.slane %v1218, %v1222
      %v1225 = vmul.f32 %v1216, %v1223
      %v1226 = vmul.f32 %v1217, %v1223
      %v1227 = vld [vmem:[%s7] sm:$0x1]
      %v1229 = vlaneseq
      %v1230 = vshrl.u32 %v1229, 7
      %v1231 = vsub.s32 0, %v1230
      %v1232 = vrot.slane %v1227, %v1231
      %v1234 = vadd.f32 %v1225, %v1232
      %v1235 = vadd.f32 %v1226, %v1232
      %v1236 = vmax.f32 %v1234, 0.0
      %v1237 = vmax.f32 %v1235, 0.0
      %v1238 = vpack.c.bf16 %v1237, %v1236
      %v1239 = vld [vmem:[%s8] sm:$0xf]
      %v1240 = vld [vmem:[%s8 + $0x4] sm:$0xf]
      %v1241 = vld [vmem:[%s8 + $0x8] sm:$0xf]
      %v1242 = vld [vmem:[%s8 + $0xc] sm:$0xf]
      %v1243 = vld [vmem:[%s8 + $0x10] sm:$0xf]
      %v1244 = vld [vmem:[%s8 + $0x14] sm:$0xf]
      %v1245 = vld [vmem:[%s8 + $0x18] sm:$0xf]
      %v1246 = vld [vmem:[%s8 + $0x1c] sm:$0xf]
      %v1247 = vld [vmem:[%s8 + $0x20] sm:$0xf]
      %v1248 = vld [vmem:[%s8 + $0x24] sm:$0xf]
      %v1249 = vld [vmem:[%s8 + $0x28] sm:$0xf]
      %v1250 = vld [vmem:[%s8 + $0x2c] sm:$0xf]
      %v1251 = vld [vmem:[%s8 + $0x30] sm:$0xf]
      %v1252 = vld [vmem:[%s8 + $0x34] sm:$0xf]
      %v1253 = vld [vmem:[%s8 + $0x38] sm:$0xf]
      %v1254 = vld [vmem:[%s8 + $0x3c] sm:$0xf]
      %v1271 = vunpack.c.l.b16 %v1239
      %v1272 = vunpack.c.l.b16 %v1240
      %v1273 = vunpack.c.l.b16 %v1241
      %v1274 = vunpack.c.l.b16 %v1242
      %v1275 = vunpack.c.l.b16 %v1243
      %v1276 = vunpack.c.l.b16 %v1244
      %v1277 = vunpack.c.l.b16 %v1245
      %v1278 = vunpack.c.l.b16 %v1246
      %v1279 = vunpack.c.l.b16 %v1247
      %v1280 = vunpack.c.l.b16 %v1248
      %v1281 = vunpack.c.l.b16 %v1249
      %v1282 = vunpack.c.l.b16 %v1250
      %v1283 = vunpack.c.l.b16 %v1251
      %v1284 = vunpack.c.l.b16 %v1252
      %v1285 = vunpack.c.l.b16 %v1253
      %v1286 = vunpack.c.l.b16 %v1254
      %v1287 = vpack.c.b16 %v1272, %v1271
      %v1288 = vpack.c.b16 %v1274, %v1273
      %v1289 = vpack.c.b16 %v1276, %v1275
      %v1290 = vpack.c.b16 %v1278, %v1277
      %v1291 = vpack.c.b16 %v1280, %v1279
      %v1292 = vpack.c.b16 %v1282, %v1281
      %v1293 = vpack.c.b16 %v1284, %v1283
      %v1294 = vpack.c.b16 %v1286, %v1285
      %1303 = vmatprep.subr.bf16.mxu0 0
      %1304 = vmatpush1.bf16.msra.mxu0 %v1287
      %1305 = vmatprep.subr.bf16.mxu0 0
      %1306 = vmatpush1.bf16.msra.mxu0 %v1288
      %1307 = vmatprep.subr.bf16.mxu0 0
      %1308 = vmatpush1.bf16.msra.mxu0 %v1289
      %1309 = vmatprep.subr.bf16.mxu0 0
      %1310 = vmatpush1.bf16.msra.mxu0 %v1290
      %1311 = vmatprep.subr.bf16.mxu0 0
      %1312 = vmatpush1.bf16.msra.mxu0 %v1291
      %1313 = vmatprep.subr.bf16.mxu0 0
      %1314 = vmatpush1.bf16.msra.mxu0 %v1292
      %1315 = vmatprep.subr.bf16.mxu0 0
      %1316 = vmatpush1.bf16.msra.mxu0 %v1293
      %1317 = vmatprep.subr.bf16.mxu0 0
      %1318 = vmatpush1.bf16.msra.mxu0 %v1294
      %1319 = vmatprep.subr.bf16.mxu0 0
      %1320 = vmatpush1.bf16.msra.mxu0 0
      %1321 = vmatprep.subr.bf16.mxu0 0
      %1322 = vmatpush1.bf16.msra.mxu0 0
      %1323 = vmatprep.subr.bf16.mxu0 0
      %1324 = vmatpush1.bf16.msra.mxu0 0
      %1325 = vmatprep.subr.bf16.mxu0 0
      %1326 = vmatpush1.bf16.msra.mxu0 0
      %1327 = vmatprep.subr.bf16.mxu0 0
      %1328 = vmatpush1.bf16.msra.mxu0 0
      %1329 = vmatprep.subr.bf16.mxu0 0
      %1330 = vmatpush1.bf16.msra.mxu0 0
      %1331 = vmatprep.subr.bf16.mxu0 0
      %1332 = vmatpush1.bf16.msra.mxu0 0
      %1333 = vmatprep.subr.bf16.mxu0 0
      %1334 = vmatpush1.bf16.msra.mxu0 0
      %1335 = vmatprep.mubr.bf16.mxu0 0
      %1336 = vmatmul.mubr.bf16.gmra.mrb[0].mxu0 %v1238
      %v1337 = vpop.f32.mrb[0].mxu0
      %v1338 = vadd.f32 0.0, %v1337
      %v1339 = vpop.f32.mrb[0].mxu0
      %v1340 = vpop.f32.mrb[0].mxu0
      %v1341 = vadd.f32 0.0, %v1340
      %v1342 = vpop.f32.mrb[0].mxu0
      %1343 = vdwg.mxu0
      %v1344 = vld [vmem:[%s9] sm:$0x1]
      %v1346 = vlaneseq
      %v1347 = vshrl.u32 %v1346, 7
      %v1348 = vsub.s32 0, %v1347
      %v1349 = vrot.slane %v1344, %v1348
      %v1351 = vmul.f32 %v1338, %v1349
      %v1352 = vmul.f32 %v1341, %v1349
      %v1353 = vld [vmem:[%s10] sm:$0x1]
      %v1355 = vlaneseq
      %v1356 = vshrl.u32 %v1355, 7
      %v1357 = vsub.s32 0, %v1356
      %v1358 = vrot.slane %v1353, %v1357
      %v1360 = vadd.f32 %v1351, %v1358
      %v1361 = vadd.f32 %v1352, %v1358
      %v1362 = vld [vmem:[%s11] sm:$0xf]
      %v1363 = vld [vmem:[%s11 + $0x4] sm:$0xf]
      %v1366 = vunpack.c.l.b16 %v1362
      %v1367 = vunpack.c.l.b16 %v1363
      %v1368 = vpack.c.b16 %v1367, %v1366
      %v1370 = vsel %vm652, %v1368, 0
      %1372 = vmatprep.subr.bf16.mxu0 0
      %1373 = vmatpush1.bf16.msra.mxu0 %v482
      %1374 = vmatprep.subr.bf16.mxu0 0
      %1375 = vmatpush1.bf16.msra.mxu0 %v483
      %1376 = vmatprep.subr.bf16.mxu0 0
      %1377 = vmatpush1.bf16.msra.mxu0 %v484
      %1378 = vmatprep.subr.bf16.mxu0 0
      %1379 = vmatpush1.bf16.msra.mxu0 %v485
      %1380 = vmatprep.subr.bf16.mxu0 0
      %1381 = vmatpush1.bf16.msra.mxu0 0
      %1382 = vmatprep.subr.bf16.mxu0 0
      %1383 = vmatpush1.bf16.msra.mxu0 0
      %1384 = vmatprep.subr.bf16.mxu0 0
      %1385 = vmatpush1.bf16.msra.mxu0 0
      %1386 = vmatprep.subr.bf16.mxu0 0
      %1387 = vmatpush1.bf16.msra.mxu0 0
      %1388 = vmatprep.subr.bf16.mxu0 0
      %1389 = vmatpush1.bf16.msra.mxu0 0
      %1390 = vmatprep.subr.bf16.mxu0 0
      %1391 = vmatpush1.bf16.msra.mxu0 0
      %1392 = vmatprep.subr.bf16.mxu0 0
      %1393 = vmatpush1.bf16.msra.mxu0 0
      %1394 = vmatprep.subr.bf16.mxu0 0
      %1395 = vmatpush1.bf16.msra.mxu0 0
      %1396 = vmatprep.subr.bf16.mxu0 0
      %1397 = vmatpush1.bf16.msra.mxu0 0
      %1398 = vmatprep.subr.bf16.mxu0 0
      %1399 = vmatpush1.bf16.msra.mxu0 0
      %1400 = vmatprep.subr.bf16.mxu0 0
      %1401 = vmatpush1.bf16.msra.mxu0 0
      %1402 = vmatprep.subr.bf16.mxu0 0
      %1403 = vmatpush1.bf16.msra.mxu0 0
      %1404 = vmatprep.mubr.bf16.mxu0 0
      %1405 = vmatmul.mubr.bf16.gmra.mrb[0].mxu0 %v1370
      %v1406 = vpop.f32.mrb[0].mxu0
      %v1407 = vadd.f32 0.0, %v1406
      %v1408 = vpop.f32.mrb[0].mxu0
      %v1409 = vpop.f32.mrb[0].mxu0
      %v1410 = vadd.f32 0.0, %v1409
      %v1411 = vpop.f32.mrb[0].mxu0
      %1412 = vdwg.mxu0
      %v1413 = vmul.f32 %v1407, 0.11111111
      %v1414 = vmul.f32 %v1410, 0.11111111
      %v1415 = vpack.c.bf16 %v1414, %v1413
      %v1416 = vld [vmem:[%s12] sm:$0xf]
      %v1417 = vld [vmem:[%s12 + $0x4] sm:$0xf]
      %v1418 = vld [vmem:[%s12 + $0x8] sm:$0xf]
      %v1419 = vld [vmem:[%s12 + $0xc] sm:$0xf]
      %v1420 = vld [vmem:[%s12 + $0x10] sm:$0xf]
      %v1421 = vld [vmem:[%s12 + $0x14] sm:$0xf]
      %v1422 = vld [vmem:[%s12 + $0x18] sm:$0xf]
      %v1423 = vld [vmem:[%s12 + $0x1c] sm:$0xf]
      %v1424 = vld [vmem:[%s12 + $0x20] sm:$0xf]
      %v1425 = vld [vmem:[%s12 + $0x24] sm:$0xf]
      %v1426 = vld [vmem:[%s12 + $0x28] sm:$0xf]
      %v1427 = vld [vmem:[%s12 + $0x2c] sm:$0xf]
      %v1428 = vld [vmem:[%s12 + $0x30] sm:$0xf]
      %v1429 = vld [vmem:[%s12 + $0x34] sm:$0xf]
      %v1430 = vld [vmem:[%s12 + $0x38] sm:$0xf]
      %v1431 = vld [vmem:[%s12 + $0x3c] sm:$0xf]
      %v1448 = vunpack.c.l.b16 %v1416
      %v1449 = vunpack.c.l.b16 %v1417
      %v1450 = vunpack.c.l.b16 %v1418
      %v1451 = vunpack.c.l.b16 %v1419
      %v1452 = vunpack.c.l.b16 %v1420
      %v1453 = vunpack.c.l.b16 %v1421
      %v1454 = vunpack.c.l.b16 %v1422
      %v1455 = vunpack.c.l.b16 %v1423
      %v1456 = vunpack.c.l.b16 %v1424
      %v1457 = vunpack.c.l.b16 %v1425
      %v1458 = vunpack.c.l.b16 %v1426
      %v1459 = vunpack.c.l.b16 %v1427
      %v1460 = vunpack.c.l.b16 %v1428
      %v1461 = vunpack.c.l.b16 %v1429
      %v1462 = vunpack.c.l.b16 %v1430
      %v1463 = vunpack.c.l.b16 %v1431
      %v1464 = vpack.c.b16 %v1449, %v1448
      %v1465 = vpack.c.b16 %v1451, %v1450
      %v1466 = vpack.c.b16 %v1453, %v1452
      %v1467 = vpack.c.b16 %v1455, %v1454
      %v1468 = vpack.c.b16 %v1457, %v1456
      %v1469 = vpack.c.b16 %v1459, %v1458
      %v1470 = vpack.c.b16 %v1461, %v1460
      %v1471 = vpack.c.b16 %v1463, %v1462
      %1480 = vmatprep.subr.bf16.mxu0 0
      %1481 = vmatpush1.bf16.msra.mxu0 %v1464
      %1482 = vmatprep.subr.bf16.mxu0 0
      %1483 = vmatpush1.bf16.msra.mxu0 %v1465
      %1484 = vmatprep.subr.bf16.mxu0 0
      %1485 = vmatpush1.bf16.msra.mxu0 %v1466
      %1486 = vmatprep.subr.bf16.mxu0 0
      %1487 = vmatpush1.bf16.msra.mxu0 %v1467
      %1488 = vmatprep.subr.bf16.mxu0 0
      %1489 = vmatpush1.bf16.msra.mxu0 %v1468
      %1490 = vmatprep.subr.bf16.mxu0 0
      %1491 = vmatpush1.bf16.msra.mxu0 %v1469
      %1492 = vmatprep.subr.bf16.mxu0 0
      %1493 = vmatpush1.bf16.msra.mxu0 %v1470
      %1494 = vmatprep.subr.bf16.mxu0 0
      %1495 = vmatpush1.bf16.msra.mxu0 %v1471
      %1496 = vmatprep.subr.bf16.mxu0 0
      %1497 = vmatpush1.bf16.msra.mxu0 0
      %1498 = vmatprep.subr.bf16.mxu0 0
      %1499 = vmatpush1.bf16.msra.mxu0 0
      %1500 = vmatprep.subr.bf16.mxu0 0
      %1501 = vmatpush1.bf16.msra.mxu0 0
      %1502 = vmatprep.subr.bf16.mxu0 0
      %1503 = vmatpush1.bf16.msra.mxu0 0
      %1504 = vmatprep.subr.bf16.mxu0 0
      %1505 = vmatpush1.bf16.msra.mxu0 0
      %1506 = vmatprep.subr.bf16.mxu0 0
      %1507 = vmatpush1.bf16.msra.mxu0 0
      %1508 = vmatprep.subr.bf16.mxu0 0
      %1509 = vmatpush1.bf16.msra.mxu0 0
      %1510 = vmatprep.subr.bf16.mxu0 0
      %1511 = vmatpush1.bf16.msra.mxu0 0
      %1512 = vmatprep.mubr.bf16.mxu0 0
      %1513 = vmatmul.mubr.bf16.gmra.mrb[0].mxu0 %v1415
      %v1514 = vpop.f32.mrb[0].mxu0
      %v1515 = vadd.f32 0.0, %v1514
      %v1516 = vpop.f32.mrb[0].mxu0
      %v1517 = vpop.f32.mrb[0].mxu0
      %v1518 = vadd.f32 0.0, %v1517
      %v1519 = vpop.f32.mrb[0].mxu0
      %1520 = vdwg.mxu0
      %v1521 = vadd.f32 %v1360, %v1515
      %v1522 = vadd.f32 %v1361, %v1518
      %v1523 = vmax.f32 %v1521, 0.0
      %v1524 = vmax.f32 %v1522, 0.0
      %v1525 = vpack.c.bf16 %v1524, %v1523
      %v1527 = vunpack.c.l.b16 %v1525
      %v1528 = vunpack.c.h.b16 %v1525
      %v1529 = vpack.c.b16 %v1527, %v1527
      %v1530 = vpack.c.b16 %v1528, %v1528
      %1533 = vst [vmem:[%s440] sm:$0xf] %v1529
      %1534 = vst [vmem:[%s440 + $0x4] sm:$0xf] %v1530
      %p1535 = scmp.lt.s32.totalorder %s24, 1
      %s1536 = scalar_select %p1535, %s24, 1
      %s1537 = smul.addr %s1536, 2
      %s1538 = smul.addr %s1537, 4
      %s1539 = scalar_lea.vmem %s13, %s1538
      // Predicated region
      $region73: #{shufflenet_forward.8} parent=71 // pred_check
        %p1540 = pneg %p320
      $region74: #{shufflenet_forward.8} parent=71 // pred_check_branch
        %1542 = sbr.rel (%p1540) target = $region76
      $region75: #{shufflenet_forward.8} parent=71 // pred_region
        _
      $region76: #{shufflenet_forward.8} parent=71 // pred_fallthru
        _
    $region72: #{shufflenet_forward.8} parent=5 // pred_fallthru
      _
    %p1543 = scmp.le.s32.totalorder 2, %s19
    // Predicated region
    $region77: #{shufflenet_forward.8} parent=5 // pred_check
      %p1544 = pneg %p1543
    $region78: #{shufflenet_forward.8} parent=5 // pred_check_branch
      %1546 = sbr.rel (%p1544) target = $region80
    $region79: #{shufflenet_forward.8} parent=5 // pred_region
      %s1547 = ssub.s32 %s19, 2
      // Predicated region
      $region81: #{shufflenet_forward.8} parent=79 // pred_check
        %p1548 = pneg %p326
      $region82: #{shufflenet_forward.8} parent=79 // pred_check_branch
        %1550 = sbr.rel (%p1548) target = $region84
      $region83: #{shufflenet_forward.8} parent=79 // pred_region
        %p1551 = scmp.lt.s32.totalorder %s25, 1
        %s1552 = scalar_select %p1551, %s25, 1
        %s1553 = smul.addr %s1552, 2
        %s1554 = smul.addr %s1553, 4
        %s1555 = scalar_lea.vmem %s13, %s1554
      $region84: #{shufflenet_forward.8} parent=79 // pred_fallthru
        _
    $region80: #{shufflenet_forward.8} parent=5 // pred_fallthru
      _
  $region6: #{shufflenet_forward.8} parent=0 // loop_footer
    %s23 = sadd.s32 1, %s19
  $region7: #{shufflenet_forward.8} parent=0 // loop_footer_branch
    %18 = sbr.rel target = $region3
  $region8: #{shufflenet_forward.8} parent=0 // loop_exit
    _

// kernel: shufflenet_forward.7
$region0: #{shufflenet_forward.7}
  #allocation0 [shape = 'u32[]', space=smem, size = 0x4, offset = 0x4, fixed_abs, tag = 'smem constant byte address 0x4 - core index']
  #allocation1 [shape = 'u32[144,128]{1,0:T(1,128)}', space=vmem, size = 0x12000, scoped, tag = 'internal scratch']
  %s0 = inlined_call_operand.vmem [shape: bf16[2,256,128], index: 0, kind: input, shape index: {}]
  %s1 = inlined_call_operand.vmem [shape: bf16[9,64,256], index: 1, kind: input, shape index: {}]
  %s2 = inlined_call_operand.vmem [shape: bf16[128,128], index: 2, kind: input, shape index: {}]
  %s3 = inlined_call_operand.vmem [shape: f32[1,128], index: 3, kind: input, shape index: {}]
  %s4 = inlined_call_operand.vmem [shape: f32[1,128], index: 4, kind: input, shape index: {}]
  %s5 = inlined_call_operand.vmem [shape: f32[9,1,128], index: 5, kind: input, shape index: {}]
  %s6 = inlined_call_operand.vmem [shape: f32[1,128], index: 6, kind: input, shape index: {}]
  %s7 = inlined_call_operand.vmem [shape: f32[1,128], index: 7, kind: input, shape index: {}]
  %s8 = inlined_call_operand.vmem [shape: bf16[128,128], index: 8, kind: input, shape index: {}]
  %s9 = inlined_call_operand.vmem [shape: f32[1,128], index: 9, kind: input, shape index: {}]
  %s10 = inlined_call_operand.vmem [shape: f32[1,128], index: 10, kind: input, shape index: {}]
  %s11 = inlined_call_operand.vmem [shape: bf16[64,256], index: 11, kind: input, shape index: {}]
  %s12 = inlined_call_operand.vmem [shape: bf16[128,128], index: 12, kind: input, shape index: {}]
  %s13 = inlined_call_operand.vmem [shape: bf16[2,64,128], index: 13, kind: output, shape index: {}]
  %s14 = sld [smem:[#allocation0]]
  $region85: #{shufflenet_forward.7} parent=0
    _
  %s16 = ssub.s32 1, %s14
  %s17 = scalar_select 0, %s16, %s14
  loop: start=0, step=1, limit=4
  $region2: #{shufflenet_forward.7} parent=0 // loop_pre_header
    _
  $region3: #{shufflenet_forward.7} parent=0 // loop_header
    %s19 = sphi 0, %s23
    %p20 = scmp.ge.s32.totalorder %s19, 4
    %s29 = sphi 0, %s31
    %s32 = sphi 0, %s29
    %s33 = sphi 0, %s32
    %s49 = sphi 0, %s33
    %s53 = sphi 0, %s53
    %s55 = sphi 0, %s53
    %s56 = sphi 0, %s55
    %s70 = sphi 0, %s56
    %s74 = sphi 0, %s74
    %s76 = sphi 0, %s74
    %s77 = sphi 0, %s76
    %s91 = sphi 0, %s77
    %s95 = sphi 0, %s95
    %s97 = sphi 0, %s95
    %s98 = sphi 0, %s97
    %s112 = sphi 0, %s98
    %s116 = sphi 0, %s116
    %s118 = sphi 0, %s116
    %s119 = sphi 0, %s118
    %s133 = sphi 0, %s119
    %s137 = sphi 0, %s137
    %s139 = sphi 0, %s137
    %s140 = sphi 0, %s139
    %s154 = sphi 0, %s140
    %s158 = sphi 0, %s158
    %s160 = sphi 0, %s158
    %s161 = sphi 0, %s160
    %s175 = sphi 0, %s161
    %s179 = sphi 0, %s179
    %s181 = sphi 0, %s179
    %s182 = sphi 0, %s181
    %s196 = sphi 0, %s182
    %s200 = sphi 0, %s200
    %s202 = sphi 0, %s200
    %s203 = sphi 0, %s202
    %s217 = sphi 0, %s203
    %s221 = sphi 0, %s221
    %s223 = sphi 0, %s221
    %s224 = sphi 0, %s223
    %s238 = sphi 0, %s224
    %s242 = sphi 0, %s242
    %s244 = sphi 0, %s242
    %s245 = sphi 0, %s244
    %s259 = sphi 0, %s245
    %s263 = sphi 0, %s263
    %s265 = sphi 0, %s263
    %s266 = sphi 0, %s265
    %s280 = sphi 0, %s266
    %s284 = sphi 0, %s284
    %s286 = sphi 0, %s284
    %s287 = sphi 0, %s286
    %s301 = sphi 0, %s287
    %s307 = sphi 0, %s309
    %s310 = sphi 0, %s307
    %s311 = sphi 0, %s310
    %s327 = sphi 0, %s311
  $region4: #{shufflenet_forward.7} parent=0 // loop_header_branch
    %22 = sbr.rel (%p20) target = $region8
  $region5: #{shufflenet_forward.7} parent=0 // loop_body
    %s24 = ssub.s32 %s19, 1
    %s25 = ssub.s32 %s19, 2
    %s26 = sadd.s32 %s19, 1
    %s27 = ssub.s32 %s19, %s26
    %p28 = scmp.eq.s32.totalorder %s27, 0
    %s30 = sadd.s32 %s29, 1
    %s31 = scalar_select %p28, %s29, %s30
    %p34 = pneg %p28
    %p35 = scmp.eq.s32.totalorder %s19, 1
    %p36 = por %p34, %p35
    %p37 = scmp.ne.s32.totalorder %s29, %s32
    %p38 = scmp.eq.s32.totalorder %s19, 0
    %p39 = por %p37, %p38
    %p40 = scmp.ne.s32.totalorder %s29, %s32
    %p41 = scmp.eq.s32.totalorder %s24, 1
    %p42 = por %p40, %p41
    %p43 = scmp.ne.s32.totalorder %s32, %s33
    %p44 = scmp.eq.s32.totalorder %s24, 0
    %p45 = por %p43, %p44
    %p46 = scmp.ne.s32.totalorder %s32, %s33
    %p47 = scmp.eq.s32.totalorder %s25, 1
    %p48 = por %p46, %p47
    %p50 = scmp.ne.s32.totalorder %s33, %s49
    %p51 = scmp.eq.s32.totalorder %s25, 0
    %p52 = por %p50, %p51
    %s54 = sadd.s32 %s53, 1
    %p57 = scmp.eq.s32.totalorder %s19, 1
    %p58 = scmp.ne.s32.totalorder %s53, %s55
    %p59 = scmp.eq.s32.totalorder %s19, 0
    %p60 = por %p58, %p59
    %p61 = scmp.ne.s32.totalorder %s53, %s55
    %p62 = scmp.eq.s32.totalorder %s24, 1
    %p63 = por %p61, %p62
    %p64 = scmp.ne.s32.totalorder %s55, %s56
    %p65 = scmp.eq.s32.totalorder %s24, 0
    %p66 = por %p64, %p65
    %p67 = scmp.ne.s32.totalorder %s55, %s56
    %p68 = scmp.eq.s32.totalorder %s25, 1
    %p69 = por %p67, %p68
    %p71 = scmp.ne.s32.totalorder %s56, %s70
    %p72 = scmp.eq.s32.totalorder %s25, 0
    %p73 = por %p71, %p72
    %s75 = sadd.s32 %s74, 1
    %p78 = scmp.eq.s32.totalorder %s19, 1
    %p79 = scmp.ne.s32.totalorder %s74, %s76
    %p80 = scmp.eq.s32.totalorder %s19, 0
    %p81 = por %p79, %p80
    %p82 = scmp.ne.s32.totalorder %s74, %s76
    %p83 = scmp.eq.s32.totalorder %s24, 1
    %p84 = por %p82, %p83
    %p85 = scmp.ne.s32.totalorder %s76, %s77
    %p86 = scmp.eq.s32.totalorder %s24, 0
    %p87 = por %p85, %p86
    %p88 = scmp.ne.s32.totalorder %s76, %s77
    %p89 = scmp.eq.s32.totalorder %s25, 1
    %p90 = por %p88, %p89
    %p92 = scmp.ne.s32.totalorder %s77, %s91
    %p93 = scmp.eq.s32.totalorder %s25, 0
    %p94 = por %p92, %p93
    %s96 = sadd.s32 %s95, 1
    %p99 = scmp.eq.s32.totalorder %s19, 1
    %p100 = scmp.ne.s32.totalorder %s95, %s97
    %p101 = scmp.eq.s32.totalorder %s19, 0
    %p102 = por %p100, %p101
    %p103 = scmp.ne.s32.totalorder %s95, %s97
    %p104 = scmp.eq.s32.totalorder %s24, 1
    %p105 = por %p103, %p104
    %p106 = scmp.ne.s32.totalorder %s97, %s98
    %p107 = scmp.eq.s32.totalorder %s24, 0
    %p108 = por %p106, %p107
    %p109 = scmp.ne.s32.totalorder %s97, %s98
    %p110 = scmp.eq.s32.totalorder %s25, 1
    %p111 = por %p109, %p110
    %p113 = scmp.ne.s32.totalorder %s98, %s112
    %p114 = scmp.eq.s32.totalorder %s25, 0
    %p115 = por %p113, %p114
    %s117 = sadd.s32 %s116, 1
    %p120 = scmp.eq.s32.totalorder %s19, 1
    %p121 = scmp.ne.s32.totalorder %s116, %s118
    %p122 = scmp.eq.s32.totalorder %s19, 0
    %p123 = por %p121, %p122
    %p124 = scmp.ne.s32.totalorder %s116, %s118
    %p125 = scmp.eq.s32.totalorder %s24, 1
    %p126 = por %p124, %p125
    %p127 = scmp.ne.s32.totalorder %s118, %s119
    %p128 = scmp.eq.s32.totalorder %s24, 0
    %p129 = por %p127, %p128
    %p130 = scmp.ne.s32.totalorder %s118, %s119
    %p131 = scmp.eq.s32.totalorder %s25, 1
    %p132 = por %p130, %p131
    %p134 = scmp.ne.s32.totalorder %s119, %s133
    %p135 = scmp.eq.s32.totalorder %s25, 0
    %p136 = por %p134, %p135
    %s138 = sadd.s32 %s137, 1
    %p141 = scmp.eq.s32.totalorder %s19, 1
    %p142 = scmp.ne.s32.totalorder %s137, %s139
    %p143 = scmp.eq.s32.totalorder %s19, 0
    %p144 = por %p142, %p143
    %p145 = scmp.ne.s32.totalorder %s137, %s139
    %p146 = scmp.eq.s32.totalorder %s24, 1
    %p147 = por %p145, %p146
    %p148 = scmp.ne.s32.totalorder %s139, %s140
    %p149 = scmp.eq.s32.totalorder %s24, 0
    %p150 = por %p148, %p149
    %p151 = scmp.ne.s32.totalorder %s139, %s140
    %p152 = scmp.eq.s32.totalorder %s25, 1
    %p153 = por %p151, %p152
    %p155 = scmp.ne.s32.totalorder %s140, %s154
    %p156 = scmp.eq.s32.totalorder %s25, 0
    %p157 = por %p155, %p156
    %s159 = sadd.s32 %s158, 1
    %p162 = scmp.eq.s32.totalorder %s19, 1
    %p163 = scmp.ne.s32.totalorder %s158, %s160
    %p164 = scmp.eq.s32.totalorder %s19, 0
    %p165 = por %p163, %p164
    %p166 = scmp.ne.s32.totalorder %s158, %s160
    %p167 = scmp.eq.s32.totalorder %s24, 1
    %p168 = por %p166, %p167
    %p169 = scmp.ne.s32.totalorder %s160, %s161
    %p170 = scmp.eq.s32.totalorder %s24, 0
    %p171 = por %p169, %p170
    %p172 = scmp.ne.s32.totalorder %s160, %s161
    %p173 = scmp.eq.s32.totalorder %s25, 1
    %p174 = por %p172, %p173
    %p176 = scmp.ne.s32.totalorder %s161, %s175
    %p177 = scmp.eq.s32.totalorder %s25, 0
    %p178 = por %p176, %p177
    %s180 = sadd.s32 %s179, 1
    %p183 = scmp.eq.s32.totalorder %s19, 1
    %p184 = scmp.ne.s32.totalorder %s179, %s181
    %p185 = scmp.eq.s32.totalorder %s19, 0
    %p186 = por %p184, %p185
    %p187 = scmp.ne.s32.totalorder %s179, %s181
    %p188 = scmp.eq.s32.totalorder %s24, 1
    %p189 = por %p187, %p188
    %p190 = scmp.ne.s32.totalorder %s181, %s182
    %p191 = scmp.eq.s32.totalorder %s24, 0
    %p192 = por %p190, %p191
    %p193 = scmp.ne.s32.totalorder %s181, %s182
    %p194 = scmp.eq.s32.totalorder %s25, 1
    %p195 = por %p193, %p194
    %p197 = scmp.ne.s32.totalorder %s182, %s196
    %p198 = scmp.eq.s32.totalorder %s25, 0
    %p199 = por %p197, %p198
    %s201 = sadd.s32 %s200, 1
    %p204 = scmp.eq.s32.totalorder %s19, 1
    %p205 = scmp.ne.s32.totalorder %s200, %s202
    %p206 = scmp.eq.s32.totalorder %s19, 0
    %p207 = por %p205, %p206
    %p208 = scmp.ne.s32.totalorder %s200, %s202
    %p209 = scmp.eq.s32.totalorder %s24, 1
    %p210 = por %p208, %p209
    %p211 = scmp.ne.s32.totalorder %s202, %s203
    %p212 = scmp.eq.s32.totalorder %s24, 0
    %p213 = por %p211, %p212
    %p214 = scmp.ne.s32.totalorder %s202, %s203
    %p215 = scmp.eq.s32.totalorder %s25, 1
    %p216 = por %p214, %p215
    %p218 = scmp.ne.s32.totalorder %s203, %s217
    %p219 = scmp.eq.s32.totalorder %s25, 0
    %p220 = por %p218, %p219
    %s222 = sadd.s32 %s221, 1
    %p225 = scmp.eq.s32.totalorder %s19, 1
    %p226 = scmp.ne.s32.totalorder %s221, %s223
    %p227 = scmp.eq.s32.totalorder %s19, 0
    %p228 = por %p226, %p227
    %p229 = scmp.ne.s32.totalorder %s221, %s223
    %p230 = scmp.eq.s32.totalorder %s24, 1
    %p231 = por %p229, %p230
    %p232 = scmp.ne.s32.totalorder %s223, %s224
    %p233 = scmp.eq.s32.totalorder %s24, 0
    %p234 = por %p232, %p233
    %p235 = scmp.ne.s32.totalorder %s223, %s224
    %p236 = scmp.eq.s32.totalorder %s25, 1
    %p237 = por %p235, %p236
    %p239 = scmp.ne.s32.totalorder %s224, %s238
    %p240 = scmp.eq.s32.totalorder %s25, 0
    %p241 = por %p239, %p240
    %s243 = sadd.s32 %s242, 1
    %p246 = scmp.eq.s32.totalorder %s19, 1
    %p247 = scmp.ne.s32.totalorder %s242, %s244
    %p248 = scmp.eq.s32.totalorder %s19, 0
    %p249 = por %p247, %p248
    %p250 = scmp.ne.s32.totalorder %s242, %s244
    %p251 = scmp.eq.s32.totalorder %s24, 1
    %p252 = por %p250, %p251
    %p253 = scmp.ne.s32.totalorder %s244, %s245
    %p254 = scmp.eq.s32.totalorder %s24, 0
    %p255 = por %p253, %p254
    %p256 = scmp.ne.s32.totalorder %s244, %s245
    %p257 = scmp.eq.s32.totalorder %s25, 1
    %p258 = por %p256, %p257
    %p260 = scmp.ne.s32.totalorder %s245, %s259
    %p261 = scmp.eq.s32.totalorder %s25, 0
    %p262 = por %p260, %p261
    %s264 = sadd.s32 %s263, 1
    %p267 = scmp.eq.s32.totalorder %s19, 1
    %p268 = scmp.ne.s32.totalorder %s263, %s265
    %p269 = scmp.eq.s32.totalorder %s19, 0
    %p270 = por %p268, %p269
    %p271 = scmp.ne.s32.totalorder %s263, %s265
    %p272 = scmp.eq.s32.totalorder %s24, 1
    %p273 = por %p271, %p272
    %p274 = scmp.ne.s32.totalorder %s265, %s266
    %p275 = scmp.eq.s32.totalorder %s24, 0
    %p276 = por %p274, %p275
    %p277 = scmp.ne.s32.totalorder %s265, %s266
    %p278 = scmp.eq.s32.totalorder %s25, 1
    %p279 = por %p277, %p278
    %p281 = scmp.ne.s32.totalorder %s266, %s280
    %p282 = scmp.eq.s32.totalorder %s25, 0
    %p283 = por %p281, %p282
    %s285 = sadd.s32 %s284, 1
    %p288 = scmp.eq.s32.totalorder %s19, 1
    %p289 = scmp.ne.s32.totalorder %s284, %s286
    %p290 = scmp.eq.s32.totalorder %s19, 0
    %p291 = por %p289, %p290
    %p292 = scmp.ne.s32.totalorder %s284, %s286
    %p293 = scmp.eq.s32.totalorder %s24, 1
    %p294 = por %p292, %p293
    %p295 = scmp.ne.s32.totalorder %s286, %s287
    %p296 = scmp.eq.s32.totalorder %s24, 0
    %p297 = por %p295, %p296
    %p298 = scmp.ne.s32.totalorder %s286, %s287
    %p299 = scmp.eq.s32.totalorder %s25, 1
    %p300 = por %p298, %p299
    %p302 = scmp.ne.s32.totalorder %s287, %s301
    %p303 = scmp.eq.s32.totalorder %s25, 0
    %p304 = por %p302, %p303
    %s305 = ssub.s32 %s19, %s26
    %p306 = scmp.eq.s32.totalorder %s305, 0
    %s308 = sadd.s32 %s307, 1
    %s309 = scalar_select %p306, %s307, %s308
    %p312 = pneg %p306
    %p313 = scmp.eq.s32.totalorder %s19, 1
    %p314 = por %p312, %p313
    %p315 = scmp.ne.s32.totalorder %s307, %s310
    %p316 = scmp.eq.s32.totalorder %s19, 0
    %p317 = por %p315, %p316
    %p318 = scmp.ne.s32.totalorder %s307, %s310
    %p319 = scmp.eq.s32.totalorder %s24, 1
    %p320 = por %p318, %p319
    %p321 = scmp.ne.s32.totalorder %s310, %s311
    %p322 = scmp.eq.s32.totalorder %s24, 0
    %p323 = por %p321, %p322
    %p324 = scmp.ne.s32.totalorder %s310, %s311
    %p325 = scmp.eq.s32.totalorder %s25, 1
    %p326 = por %p324, %p325
    %p328 = scmp.ne.s32.totalorder %s311, %s327
    %p329 = scmp.eq.s32.totalorder %s25, 0
    %p330 = por %p328, %p329
    %p331 = scmp.le.s32.totalorder 1, %s19
    %p332 = scmp.lt.s32.totalorder %s19, 3
    %p333 = pnand %p331, %p332
    %p334 = pneg %p333
    // Predicated region
    $region9: #{shufflenet_forward.7} parent=5 // pred_check
      _
    $region10: #{shufflenet_forward.7} parent=5 // pred_check_branch
      %336 = sbr.rel (%p333) target = $region12
    $region11: #{shufflenet_forward.7} parent=5 // pred_region
      %s337 = ssub.s32 %s19, 1
      // Predicated region
      $region13: #{shufflenet_forward.7} parent=11 // pred_check
        %p338 = pneg %p66
      $region14: #{shufflenet_forward.7} parent=11 // pred_check_branch
        %340 = sbr.rel (%p338) target = $region16
      $region15: #{shufflenet_forward.7} parent=11 // pred_region
        _
      $region16: #{shufflenet_forward.7} parent=11 // pred_fallthru
        _
      // Predicated region
      $region17: #{shufflenet_forward.7} parent=11 // pred_check
        %p341 = pneg %p87
      $region18: #{shufflenet_forward.7} parent=11 // pred_check_branch
        %343 = sbr.rel (%p341) target = $region20
      $region19: #{shufflenet_forward.7} parent=11 // pred_region
        _
      $region20: #{shufflenet_forward.7} parent=11 // pred_fallthru
        _
      // Predicated region
      $region21: #{shufflenet_forward.7} parent=11 // pred_check
        %p344 = pneg %p108
      $region22: #{shufflenet_forward.7} parent=11 // pred_check_branch
        %346 = sbr.rel (%p344) target = $region24
      $region23: #{shufflenet_forward.7} parent=11 // pred_region
        _
      $region24: #{shufflenet_forward.7} parent=11 // pred_fallthru
        _
      // Predicated region
      $region25: #{shufflenet_forward.7} parent=11 // pred_check
        %p347 = pneg %p129
      $region26: #{shufflenet_forward.7} parent=11 // pred_check_branch
        %349 = sbr.rel (%p347) target = $region28
      $region27: #{shufflenet_forward.7} parent=11 // pred_region
        _
      $region28: #{shufflenet_forward.7} parent=11 // pred_fallthru
        _
      // Predicated region
      $region29: #{shufflenet_forward.7} parent=11 // pred_check
        %p350 = pneg %p150
      $region30: #{shufflenet_forward.7} parent=11 // pred_check_branch
        %352 = sbr.rel (%p350) target = $region32
      $region31: #{shufflenet_forward.7} parent=11 // pred_region
        _
      $region32: #{shufflenet_forward.7} parent=11 // pred_fallthru
        _
      // Predicated region
      $region33: #{shufflenet_forward.7} parent=11 // pred_check
        %p353 = pneg %p171
      $region34: #{shufflenet_forward.7} parent=11 // pred_check_branch
        %355 = sbr.rel (%p353) target = $region36
      $region35: #{shufflenet_forward.7} parent=11 // pred_region
        _
      $region36: #{shufflenet_forward.7} parent=11 // pred_fallthru
        _
      // Predicated region
      $region37: #{shufflenet_forward.7} parent=11 // pred_check
        %p356 = pneg %p192
      $region38: #{shufflenet_forward.7} parent=11 // pred_check_branch
        %358 = sbr.rel (%p356) target = $region40
      $region39: #{shufflenet_forward.7} parent=11 // pred_region
        _
      $region40: #{shufflenet_forward.7} parent=11 // pred_fallthru
        _
      // Predicated region
      $region41: #{shufflenet_forward.7} parent=11 // pred_check
        %p359 = pneg %p213
      $region42: #{shufflenet_forward.7} parent=11 // pred_check_branch
        %361 = sbr.rel (%p359) target = $region44
      $region43: #{shufflenet_forward.7} parent=11 // pred_region
        _
      $region44: #{shufflenet_forward.7} parent=11 // pred_fallthru
        _
      // Predicated region
      $region45: #{shufflenet_forward.7} parent=11 // pred_check
        %p362 = pneg %p234
      $region46: #{shufflenet_forward.7} parent=11 // pred_check_branch
        %364 = sbr.rel (%p362) target = $region48
      $region47: #{shufflenet_forward.7} parent=11 // pred_region
        _
      $region48: #{shufflenet_forward.7} parent=11 // pred_fallthru
        _
      // Predicated region
      $region49: #{shufflenet_forward.7} parent=11 // pred_check
        %p365 = pneg %p255
      $region50: #{shufflenet_forward.7} parent=11 // pred_check_branch
        %367 = sbr.rel (%p365) target = $region52
      $region51: #{shufflenet_forward.7} parent=11 // pred_region
        _
      $region52: #{shufflenet_forward.7} parent=11 // pred_fallthru
        _
      // Predicated region
      $region53: #{shufflenet_forward.7} parent=11 // pred_check
        %p368 = pneg %p276
      $region54: #{shufflenet_forward.7} parent=11 // pred_check_branch
        %370 = sbr.rel (%p368) target = $region56
      $region55: #{shufflenet_forward.7} parent=11 // pred_region
        _
      $region56: #{shufflenet_forward.7} parent=11 // pred_fallthru
        _
      // Predicated region
      $region57: #{shufflenet_forward.7} parent=11 // pred_check
        %p371 = pneg %p297
      $region58: #{shufflenet_forward.7} parent=11 // pred_check_branch
        %373 = sbr.rel (%p371) target = $region60
      $region59: #{shufflenet_forward.7} parent=11 // pred_region
        _
      $region60: #{shufflenet_forward.7} parent=11 // pred_fallthru
        _
    $region12: #{shufflenet_forward.7} parent=5 // pred_fallthru
      _
    %p374 = scmp.lt.s32.totalorder %s19, 2
    // Predicated region
    $region61: #{shufflenet_forward.7} parent=5 // pred_check
      %p375 = pneg %p374
    $region62: #{shufflenet_forward.7} parent=5 // pred_check_branch
      %377 = sbr.rel (%p375) target = $region64
    $region63: #{shufflenet_forward.7} parent=5 // pred_region
      // Predicated region
      $region65: #{shufflenet_forward.7} parent=63 // pred_check
        %p378 = pneg %p39
      $region66: #{shufflenet_forward.7} parent=63 // pred_check_branch
        %380 = sbr.rel (%p378) target = $region68
      $region67: #{shufflenet_forward.7} parent=63 // pred_region
        %p381 = scmp.lt.s32.totalorder %s19, 1
        %s382 = scalar_select %p381, %s19, 1
        %s383 = smul.addr %s382, 32
        %s384 = smul.addr %s383, 4
        %s385 = scalar_lea.vmem %s0, %s384
      $region68: #{shufflenet_forward.7} parent=63 // pred_fallthru
        _
    $region64: #{shufflenet_forward.7} parent=5 // pred_fallthru
      _
    %p386 = scmp.le.s32.totalorder 1, %s19
    %p387 = scmp.lt.s32.totalorder %s19, 3
    %p388 = pnand %p386, %p387
    %p389 = pneg %p388
    // Predicated region
    $region69: #{shufflenet_forward.7} parent=5 // pred_check
      _
    $region70: #{shufflenet_forward.7} parent=5 // pred_check_branch
      %391 = sbr.rel (%p388) target = $region72
    $region71: #{shufflenet_forward.7} parent=5 // pred_region
      %s392 = ssub.s32 %s19, 1
      %p393 = scmp.lt.s32.totalorder %s24, 1
      %s394 = scalar_select %p393, %s24, 1
      %s395 = smul.addr %s394, 32
      %s396 = smul.addr %s395, 4
      %s397 = scalar_lea.vmem %s0, %s396
      %p398 = pneg %p45
      %p399 = pneg %p42
      %p400 = pneg %p66
      %p401 = pneg %p63
      %p402 = pneg %p87
      %p403 = pneg %p84
      %p404 = pneg %p108
      %p405 = pneg %p105
      %p406 = pneg %p129
      %p407 = pneg %p126
      %p408 = pneg %p150
      %p409 = pneg %p147
      %p410 = pneg %p171
      %p411 = pneg %p168
      %p412 = pneg %p192
      %p413 = pneg %p189
      %p414 = pneg %p213
      %p415 = pneg %p210
      %p416 = pneg %p234
      %p417 = pneg %p231
      %p418 = pneg %p255
      %p419 = pneg %p252
      %p420 = pneg %p276
      %p421 = pneg %p273
      %p422 = pneg %p297
      %p423 = pneg %p294
      %p424 = pneg %p323
      %p425 = pneg %p320
      %p426 = scmp.lt.s32.totalorder %s24, 1
      %s427 = scalar_select %p426, %s24, 1
      %s428 = smul.addr %s427, 8
      %s429 = smul.addr %s428, 4
      %s430 = scalar_lea.vmem %s13, %s429
      %p431 = scmp.lt.s32.totalorder %s24, 1
      %s432 = scalar_select %p431, %s24, 1
      %s433 = smul.addr %s432, 32
      %s434 = smul.addr %s433, 4
      %s435 = scalar_lea.vmem %s0, %s434
      %p436 = scmp.lt.s32.totalorder %s24, 1
      %s437 = scalar_select %p436, %s24, 1
      %s438 = smul.addr %s437, 8
      %s439 = smul.addr %s438, 4
      %s440 = scalar_lea.vmem %s13, %s439
      %v442 = vld [vmem:[%s435] sm:$0xf]
      %v443 = vld [vmem:[%s435 + $0x4] sm:$0xf]
      %v444 = vld [vmem:[%s435 + $0x8] sm:$0xf]
      %v445 = vld [vmem:[%s435 + $0xc] sm:$0xf]
      %v446 = vld [vmem:[%s435 + $0x10] sm:$0xf]
      %v447 = vld [vmem:[%s435 + $0x14] sm:$0xf]
      %v448 = vld [vmem:[%s435 + $0x18] sm:$0xf]
      %v449 = vld [vmem:[%s435 + $0x1c] sm:$0xf]
      %v450 = vld [vmem:[%s435 + $0x20] sm:$0xf]
      %v451 = vld [vmem:[%s435 + $0x24] sm:$0xf]
      %v452 = vld [vmem:[%s435 + $0x28] sm:$0xf]
      %v453 = vld [vmem:[%s435 + $0x2c] sm:$0xf]
      %v454 = vld [vmem:[%s435 + $0x30] sm:$0xf]
      %v455 = vld [vmem:[%s435 + $0x34] sm:$0xf]
      %v456 = vld [vmem:[%s435 + $0x38] sm:$0xf]
      %v457 = vld [vmem:[%s435 + $0x3c] sm:$0xf]
      %v458 = vld [vmem:[%s435 + $0x40] sm:$0xf]
      %v459 = vld [vmem:[%s435 + $0x44] sm:$0xf]
      %v460 = vld [vmem:[%s435 + $0x48] sm:$0xf]
      %v461 = vld [vmem:[%s435 + $0x4c] sm:$0xf]
      %v462 = vld [vmem:[%s435 + $0x50] sm:$0xf]
      %v463 = vld [vmem:[%s435 + $0x54] sm:$0xf]
      %v464 = vld [vmem:[%s435 + $0x58] sm:$0xf]
      %v465 = vld [vmem:[%s435 + $0x5c] sm:$0xf]
      %v466 = vld [vmem:[%s435 + $0x60] sm:$0xf]
      %v467 = vld [vmem:[%s435 + $0x64] sm:$0xf]
      %v468 = vld [vmem:[%s435 + $0x68] sm:$0xf]
      %v469 = vld [vmem:[%s435 + $0x6c] sm:$0xf]
      %v470 = vld [vmem:[%s435 + $0x70] sm:$0xf]
      %v471 = vld [vmem:[%s435 + $0x74] sm:$0xf]
      %v472 = vld [vmem:[%s435 + $0x78] sm:$0xf]
      %v473 = vld [vmem:[%s435 + $0x7c] sm:$0xf]
      %v474 = vld [vmem:[%s2] sm:$0xf]
      %v475 = vld [vmem:[%s2 + $0x4] sm:$0xf]
      %v476 = vld [vmem:[%s2 + $0x8] sm:$0xf]
      %v477 = vld [vmem:[%s2 + $0xc] sm:$0xf]
      %v478 = vld [vmem:[%s2 + $0x10] sm:$0xf]
      %v479 = vld [vmem:[%s2 + $0x14] sm:$0xf]
      %v480 = vld [vmem:[%s2 + $0x18] sm:$0xf]
      %v481 = vld [vmem:[%s2 + $0x1c] sm:$0xf]
      %v482 = vld [vmem:[%s2 + $0x20] sm:$0xf]
      %v483 = vld [vmem:[%s2 + $0x24] sm:$0xf]
      %v484 = vld [vmem:[%s2 + $0x28] sm:$0xf]
      %v485 = vld [vmem:[%s2 + $0x2c] sm:$0xf]
      %v486 = vld [vmem:[%s2 + $0x30] sm:$0xf]
      %v487 = vld [vmem:[%s2 + $0x34] sm:$0xf]
      %v488 = vld [vmem:[%s2 + $0x38] sm:$0xf]
      %v489 = vld [vmem:[%s2 + $0x3c] sm:$0xf]
      %v522 = vunpack.c.l.b16 %v442
      %v523 = vunpack.c.l.b16 %v443
      %v524 = vunpack.c.l.b16 %v444
      %v525 = vunpack.c.l.b16 %v445
      %v526 = vunpack.c.l.b16 %v446
      %v527 = vunpack.c.l.b16 %v447
      %v528 = vunpack.c.l.b16 %v448
      %v529 = vunpack.c.l.b16 %v449
      %v530 = vunpack.c.l.b16 %v450
      %v531 = vunpack.c.l.b16 %v451
      %v532 = vunpack.c.l.b16 %v452
      %v533 = vunpack.c.l.b16 %v453
      %v534 = vunpack.c.l.b16 %v454
      %v535 = vunpack.c.l.b16 %v455
      %v536 = vunpack.c.l.b16 %v456
      %v537 = vunpack.c.l.b16 %v457
      %v538 = vunpack.c.l.b16 %v458
      %v539 = vunpack.c.l.b16 %v459
      %v540 = vunpack.c.l.b16 %v460
      %v541 = vunpack.c.l.b16 %v461
      %v542 = vunpack.c.l.b16 %v462
      %v543 = vunpack.c.l.b16 %v463
      %v544 = vunpack.c.l.b16 %v464
      %v545 = vunpack.c.l.b16 %v465
      %v546 = vunpack.c.l.b16 %v466
      %v547 = vunpack.c.l.b16 %v467
      %v548 = vunpack.c.l.b16 %v468
      %v549 = vunpack.c.l.b16 %v469
      %v550 = vunpack.c.l.b16 %v470
      %v551 = vunpack.c.l.b16 %v471
      %v552 = vunpack.c.l.b16 %v472
      %v553 = vunpack.c.l.b16 %v473
      %v554 = vpack.c.b16 %v523, %v522
      %v555 = vpack.c.b16 %v525, %v524
      %v556 = vpack.c.b16 %v527, %v526
      %v557 = vpack.c.b16 %v529, %v528
      %v558 = vpack.c.b16 %v531, %v530
      %v559 = vpack.c.b16 %v533, %v532
      %v560 = vpack.c.b16 %v535, %v534
      %v561 = vpack.c.b16 %v537, %v536
      %v562 = vpack.c.b16 %v539, %v538
      %v563 = vpack.c.b16 %v541, %v540
      %v564 = vpack.c.b16 %v543, %v542
      %v565 = vpack.c.b16 %v545, %v544
      %v566 = vpack.c.b16 %v547, %v546
      %v567 = vpack.c.b16 %v549, %v548
      %v568 = vpack.c.b16 %v551, %v550
      %v569 = vpack.c.b16 %v553, %v552
      %v602 = vunpack.c.l.b16 %v474
      %v603 = vunpack.c.l.b16 %v475
      %v604 = vunpack.c.l.b16 %v476
      %v605 = vunpack.c.l.b16 %v477
      %v606 = vunpack.c.l.b16 %v478
      %v607 = vunpack.c.l.b16 %v479
      %v608 = vunpack.c.l.b16 %v480
      %v609 = vunpack.c.l.b16 %v481
      %v610 = vunpack.c.l.b16 %v482
      %v611 = vunpack.c.l.b16 %v483
      %v612 = vunpack.c.l.b16 %v484
      %v613 = vunpack.c.l.b16 %v485
      %v614 = vunpack.c.l.b16 %v486
      %v615 = vunpack.c.l.b16 %v487
      %v616 = vunpack.c.l.b16 %v488
      %v617 = vunpack.c.l.b16 %v489
      %v618 = vpack.c.b16 %v603, %v602
      %v619 = vpack.c.b16 %v605, %v604
      %v620 = vpack.c.b16 %v607, %v606
      %v621 = vpack.c.b16 %v609, %v608
      %v622 = vpack.c.b16 %v611, %v610
      %v623 = vpack.c.b16 %v613, %v612
      %v624 = vpack.c.b16 %v615, %v614
      %v625 = vpack.c.b16 %v617, %v616
      %634 = vmatprep.subr.bf16.mxu0 0
      %635 = vmatpush1.bf16.msra.mxu0 %v618
      %636 = vmatprep.subr.bf16.mxu0 0
      %637 = vmatpush1.bf16.msra.mxu0 %v619
      %638 = vmatprep.subr.bf16.mxu0 0
      %639 = vmatpush1.bf16.msra.mxu0 %v620
      %640 = vmatprep.subr.bf16.mxu0 0
      %641 = vmatpush1.bf16.msra.mxu0 %v621
      %642 = vmatprep.subr.bf16.mxu0 0
      %643 = vmatpush1.bf16.msra.mxu0 %v622
      %644 = vmatprep.subr.bf16.mxu0 0
      %645 = vmatpush1.bf16.msra.mxu0 %v623
      %646 = vmatprep.subr.bf16.mxu0 0
      %647 = vmatpush1.bf16.msra.mxu0 %v624
      %648 = vmatprep.subr.bf16.mxu0 0
      %649 = vmatpush1.bf16.msra.mxu0 %v625
      %650 = vmatprep.subr.bf16.mxu0 0
      %651 = vmatpush1.bf16.msra.mxu0 0
      %652 = vmatprep.subr.bf16.mxu0 0
      %653 = vmatpush1.bf16.msra.mxu0 0
      %654 = vmatprep.subr.bf16.mxu0 0
      %655 = vmatpush1.bf16.msra.mxu0 0
      %656 = vmatprep.subr.bf16.mxu0 0
      %657 = vmatpush1.bf16.msra.mxu0 0
      %658 = vmatprep.subr.bf16.mxu0 0
      %659 = vmatpush1.bf16.msra.mxu0 0
      %660 = vmatprep.subr.bf16.mxu0 0
      %661 = vmatpush1.bf16.msra.mxu0 0
      %662 = vmatprep.subr.bf16.mxu0 0
      %663 = vmatpush1.bf16.msra.mxu0 0
      %664 = vmatprep.subr.bf16.mxu0 0
      %665 = vmatpush1.bf16.msra.mxu0 0
      %666 = vmatprep.mubr.bf16.mxu0 0
      %667 = vmatmul.mubr.bf16.gmra.mrb[0].mxu0 %v554
      %v668 = vpop.f32.mrb[0].mxu0
      %v669 = vadd.f32 0.0, %v668
      %v670 = vpop.f32.mrb[0].mxu0
      %v671 = vpop.f32.mrb[0].mxu0
      %v672 = vadd.f32 0.0, %v671
      %v673 = vpop.f32.mrb[0].mxu0
      %674 = vmatprep.mubr.bf16.mxu0 0
      %675 = vmatmul.mubr.bf16.gmra.mrb[0].mxu0 %v555
      %v676 = vpop.f32.mrb[0].mxu0
      %v677 = vadd.f32 0.0, %v676
      %v678 = vpop.f32.mrb[0].mxu0
      %v679 = vpop.f32.mrb[0].mxu0
      %v680 = vadd.f32 0.0, %v679
      %v681 = vpop.f32.mrb[0].mxu0
      %682 = vmatprep.mubr.bf16.mxu0 0
      %683 = vmatmul.mubr.bf16.gmra.mrb[0].mxu0 %v556
      %v684 = vpop.f32.mrb[0].mxu0
      %v685 = vadd.f32 0.0, %v684
      %v686 = vpop.f32.mrb[0].mxu0
      %v687 = vpop.f32.mrb[0].mxu0
      %v688 = vadd.f32 0.0, %v687
      %v689 = vpop.f32.mrb[0].mxu0
      %690 = vmatprep.mubr.bf16.mxu0 0
      %691 = vmatmul.mubr.bf16.gmra.mrb[0].mxu0 %v557
      %v692 = vpop.f32.mrb[0].mxu0
      %v693 = vadd.f32 0.0, %v692
      %v694 = vpop.f32.mrb[0].mxu0
      %v695 = vpop.f32.mrb[0].mxu0
      %v696 = vadd.f32 0.0, %v695
      %v697 = vpop.f32.mrb[0].mxu0
      %698 = vmatprep.mubr.bf16.mxu0 0
      %699 = vmatmul.mubr.bf16.gmra.mrb[0].mxu0 %v558
      %v700 = vpop.f32.mrb[0].mxu0
      %v701 = vadd.f32 0.0, %v700
      %v702 = vpop.f32.mrb[0].mxu0
      %v703 = vpop.f32.mrb[0].mxu0
      %v704 = vadd.f32 0.0, %v703
      %v705 = vpop.f32.mrb[0].mxu0
      %706 = vmatprep.mubr.bf16.mxu0 0
      %707 = vmatmul.mubr.bf16.gmra.mrb[0].mxu0 %v559
      %v708 = vpop.f32.mrb[0].mxu0
      %v709 = vadd.f32 0.0, %v708
      %v710 = vpop.f32.mrb[0].mxu0
      %v711 = vpop.f32.mrb[0].mxu0
      %v712 = vadd.f32 0.0, %v711
      %v713 = vpop.f32.mrb[0].mxu0
      %714 = vmatprep.mubr.bf16.mxu0 0
      %715 = vmatmul.mubr.bf16.gmra.mrb[0].mxu0 %v560
      %v716 = vpop.f32.mrb[0].mxu0
      %v717 = vadd.f32 0.0, %v716
      %v718 = vpop.f32.mrb[0].mxu0
      %v719 = vpop.f32.mrb[0].mxu0
      %v720 = vadd.f32 0.0, %v719
      %v721 = vpop.f32.mrb[0].mxu0
      %722 = vmatprep.mubr.bf16.mxu0 0
      %723 = vmatmul.mubr.bf16.gmra.mrb[0].mxu0 %v561
      %v724 = vpop.f32.mrb[0].mxu0
      %v725 = vadd.f32 0.0, %v724
      %v726 = vpop.f32.mrb[0].mxu0
      %v727 = vpop.f32.mrb[0].mxu0
      %v728 = vadd.f32 0.0, %v727
      %v729 = vpop.f32.mrb[0].mxu0
      %730 = vmatprep.mubr.bf16.mxu0 0
      %731 = vmatmul.mubr.bf16.gmra.mrb[0].mxu0 %v562
      %v732 = vpop.f32.mrb[0].mxu0
      %v733 = vadd.f32 0.0, %v732
      %v734 = vpop.f32.mrb[0].mxu0
      %v735 = vpop.f32.mrb[0].mxu0
      %v736 = vadd.f32 0.0, %v735
      %v737 = vpop.f32.mrb[0].mxu0
      %738 = vmatprep.mubr.bf16.mxu0 0
      %739 = vmatmul.mubr.bf16.gmra.mrb[0].mxu0 %v563
      %v740 = vpop.f32.mrb[0].mxu0
      %v741 = vadd.f32 0.0, %v740
      %v742 = vpop.f32.mrb[0].mxu0
      %v743 = vpop.f32.mrb[0].mxu0
      %v744 = vadd.f32 0.0, %v743
      %v745 = vpop.f32.mrb[0].mxu0
      %746 = vmatprep.mubr.bf16.mxu0 0
      %747 = vmatmul.mubr.bf16.gmra.mrb[0].mxu0 %v564
      %v748 = vpop.f32.mrb[0].mxu0
      %v749 = vadd.f32 0.0, %v748
      %v750 = vpop.f32.mrb[0].mxu0
      %v751 = vpop.f32.mrb[0].mxu0
      %v752 = vadd.f32 0.0, %v751
      %v753 = vpop.f32.mrb[0].mxu0
      %754 = vmatprep.mubr.bf16.mxu0 0
      %755 = vmatmul.mubr.bf16.gmra.mrb[0].mxu0 %v565
      %v756 = vpop.f32.mrb[0].mxu0
      %v757 = vadd.f32 0.0, %v756
      %v758 = vpop.f32.mrb[0].mxu0
      %v759 = vpop.f32.mrb[0].mxu0
      %v760 = vadd.f32 0.0, %v759
      %v761 = vpop.f32.mrb[0].mxu0
      %762 = vmatprep.mubr.bf16.mxu0 0
      %763 = vmatmul.mubr.bf16.gmra.mrb[0].mxu0 %v566
      %v764 = vpop.f32.mrb[0].mxu0
      %v765 = vadd.f32 0.0, %v764
      %v766 = vpop.f32.mrb[0].mxu0
      %v767 = vpop.f32.mrb[0].mxu0
      %v768 = vadd.f32 0.0, %v767
      %v769 = vpop.f32.mrb[0].mxu0
      %770 = vmatprep.mubr.bf16.mxu0 0
      %771 = vmatmul.mubr.bf16.gmra.mrb[0].mxu0 %v567
      %v772 = vpop.f32.mrb[0].mxu0
      %v773 = vadd.f32 0.0, %v772
      %v774 = vpop.f32.mrb[0].mxu0
      %v775 = vpop.f32.mrb[0].mxu0
      %v776 = vadd.f32 0.0, %v775
      %v777 = vpop.f32.mrb[0].mxu0
      %778 = vmatprep.mubr.bf16.mxu0 0
      %779 = vmatmul.mubr.bf16.gmra.mrb[0].mxu0 %v568
      %v780 = vpop.f32.mrb[0].mxu0
      %v781 = vadd.f32 0.0, %v780
      %v782 = vpop.f32.mrb[0].mxu0
      %v783 = vpop.f32.mrb[0].mxu0
      %v784 = vadd.f32 0.0, %v783
      %v785 = vpop.f32.mrb[0].mxu0
      %786 = vmatprep.mubr.bf16.mxu0 0
      %787 = vmatmul.mubr.bf16.gmra.mrb[0].mxu0 %v569
      %v788 = vpop.f32.mrb[0].mxu0
      %v789 = vadd.f32 0.0, %v788
      %v790 = vpop.f32.mrb[0].mxu0
      %v791 = vpop.f32.mrb[0].mxu0
      %v792 = vadd.f32 0.0, %v791
      %v793 = vpop.f32.mrb[0].mxu0
      %794 = vdwg.mxu0
      %v795 = vld [vmem:[%s3] sm:$0x1]
      %v797 = vlaneseq
      %v798 = vshrl.u32 %v797, 7
      %v799 = vsub.s32 0, %v798
      %v800 = vrot.slane %v795, %v799
      %v802 = vmul.f32 %v669, %v800
      %v803 = vmul.f32 %v672, %v800
      %v804 = vmul.f32 %v677, %v800
      %v805 = vmul.f32 %v680, %v800
      %v806 = vmul.f32 %v685, %v800
      %v807 = vmul.f32 %v688, %v800
      %v808 = vmul.f32 %v693, %v800
      %v809 = vmul.f32 %v696, %v800
      %v810 = vmul.f32 %v701, %v800
      %v811 = vmul.f32 %v704, %v800
      %v812 = vmul.f32 %v709, %v800
      %v813 = vmul.f32 %v712, %v800
      %v814 = vmul.f32 %v717, %v800
      %v815 = vmul.f32 %v720, %v800
      %v816 = vmul.f32 %v725, %v800
      %v817 = vmul.f32 %v728, %v800
      %v818 = vmul.f32 %v733, %v800
      %v819 = vmul.f32 %v736, %v800
      %v820 = vmul.f32 %v741, %v800
      %v821 = vmul.f32 %v744, %v800
      %v822 = vmul.f32 %v749, %v800
      %v823 = vmul.f32 %v752, %v800
      %v824 = vmul.f32 %v757, %v800
      %v825 = vmul.f32 %v760, %v800
      %v826 = vmul.f32 %v765, %v800
      %v827 = vmul.f32 %v768, %v800
      %v828 = vmul.f32 %v773, %v800
      %v829 = vmul.f32 %v776, %v800
      %v830 = vmul.f32 %v781, %v800
      %v831 = vmul.f32 %v784, %v800
      %v832 = vmul.f32 %v789, %v800
      %v833 = vmul.f32 %v792, %v800
      %v834 = vld [vmem:[%s4] sm:$0x1]
      %v836 = vlaneseq
      %v837 = vshrl.u32 %v836, 7
      %v838 = vsub.s32 0, %v837
      %v839 = vrot.slane %v834, %v838
      %v841 = vadd.f32 %v802, %v839
      %v842 = vadd.f32 %v803, %v839
      %v843 = vadd.f32 %v804, %v839
      %v844 = vadd.f32 %v805, %v839
      %v845 = vadd.f32 %v806, %v839
      %v846 = vadd.f32 %v807, %v839
      %v847 = vadd.f32 %v808, %v839
      %v848 = vadd.f32 %v809, %v839
      %v849 = vadd.f32 %v810, %v839
      %v850 = vadd.f32 %v811, %v839
      %v851 = vadd.f32 %v812, %v839
      %v852 = vadd.f32 %v813, %v839
      %v853 = vadd.f32 %v814, %v839
      %v854 = vadd.f32 %v815, %v839
      %v855 = vadd.f32 %v816, %v839
      %v856 = vadd.f32 %v817, %v839
      %v857 = vadd.f32 %v818, %v839
      %v858 = vadd.f32 %v819, %v839
      %v859 = vadd.f32 %v820, %v839
      %v860 = vadd.f32 %v821, %v839
      %v861 = vadd.f32 %v822, %v839
      %v862 = vadd.f32 %v823, %v839
      %v863 = vadd.f32 %v824, %v839
      %v864 = vadd.f32 %v825, %v839
      %v865 = vadd.f32 %v826, %v839
      %v866 = vadd.f32 %v827, %v839
      %v867 = vadd.f32 %v828, %v839
      %v868 = vadd.f32 %v829, %v839
      %v869 = vadd.f32 %v830, %v839
      %v870 = vadd.f32 %v831, %v839
      %v871 = vadd.f32 %v832, %v839
      %v872 = vadd.f32 %v833, %v839
      %v873 = vmax.f32 %v841, 0.0
      %v874 = vmax.f32 %v842, 0.0
      %v875 = vmax.f32 %v843, 0.0
      %v876 = vmax.f32 %v844, 0.0
      %v877 = vmax.f32 %v845, 0.0
      %v878 = vmax.f32 %v846, 0.0
      %v879 = vmax.f32 %v847, 0.0
      %v880 = vmax.f32 %v848, 0.0
      %v881 = vmax.f32 %v849, 0.0
      %v882 = vmax.f32 %v850, 0.0
      %v883 = vmax.f32 %v851, 0.0
      %v884 = vmax.f32 %v852, 0.0
      %v885 = vmax.f32 %v853, 0.0
      %v886 = vmax.f32 %v854, 0.0
      %v887 = vmax.f32 %v855, 0.0
      %v888 = vmax.f32 %v856, 0.0
      %v889 = vmax.f32 %v857, 0.0
      %v890 = vmax.f32 %v858, 0.0
      %v891 = vmax.f32 %v859, 0.0
      %v892 = vmax.f32 %v860, 0.0
      %v893 = vmax.f32 %v861, 0.0
      %v894 = vmax.f32 %v862, 0.0
      %v895 = vmax.f32 %v863, 0.0
      %v896 = vmax.f32 %v864, 0.0
      %v897 = vmax.f32 %v865, 0.0
      %v898 = vmax.f32 %v866, 0.0
      %v899 = vmax.f32 %v867, 0.0
      %v900 = vmax.f32 %v868, 0.0
      %v901 = vmax.f32 %v869, 0.0
      %v902 = vmax.f32 %v870, 0.0
      %v903 = vmax.f32 %v871, 0.0
      %v904 = vmax.f32 %v872, 0.0
      %v905 = vpack.c.bf16 %v874, %v873
      %v906 = vpack.c.bf16 %v876, %v875
      %v907 = vpack.c.bf16 %v878, %v877
      %v908 = vpack.c.bf16 %v880, %v879
      %v909 = vpack.c.bf16 %v882, %v881
      %v910 = vpack.c.bf16 %v884, %v883
      %v911 = vpack.c.bf16 %v886, %v885
      %v912 = vpack.c.bf16 %v888, %v887
      %v913 = vpack.c.bf16 %v890, %v889
      %v914 = vpack.c.bf16 %v892, %v891
      %v915 = vpack.c.bf16 %v894, %v893
      %v916 = vpack.c.bf16 %v896, %v895
      %v917 = vpack.c.bf16 %v898, %v897
      %v918 = vpack.c.bf16 %v900, %v899
      %v919 = vpack.c.bf16 %v902, %v901
      %v920 = vpack.c.bf16 %v904, %v903
      %v921 = vld [vmem:[%s1] sm:$0xff]
      %v922 = vld [vmem:[%s1 + $0x8] sm:$0xff]
      %v923 = vld [vmem:[%s1 + $0x10] sm:$0xff]
      %v924 = vld [vmem:[%s1 + $0x18] sm:$0xff]
      %v925 = vld [vmem:[%s1 + $0x20] sm:$0xff]
      %v926 = vld [vmem:[%s1 + $0x28] sm:$0xff]
      %v927 = vld [vmem:[%s1 + $0x30] sm:$0xff]
      %v928 = vld [vmem:[%s1 + $0x38] sm:$0xff]
      %v937 = vunpack.c.l.b16 %v921
      %v938 = vunpack.c.h.b16 %v921
      %v939 = vunpack.c.l.b16 %v922
      %v940 = vunpack.c.h.b16 %v922
      %v941 = vunpack.c.l.b16 %v923
      %v942 = vunpack.c.h.b16 %v923
      %v943 = vunpack.c.l.b16 %v924
      %v944 = vunpack.c.h.b16 %v924
      %v945 = vunpack.c.l.b16 %v925
      %v946 = vunpack.c.h.b16 %v925
      %v947 = vunpack.c.l.b16 %v926
      %v948 = vunpack.c.h.b16 %v926
      %v949 = vunpack.c.l.b16 %v927
      %v950 = vunpack.c.h.b16 %v927
      %v951 = vunpack.c.l.b16 %v928
      %v952 = vunpack.c.h.b16 %v928
      %v953 = vpack.c.b16 %v939, %v937
      %v954 = vpack.c.b16 %v940, %v938
      %v955 = vpack.c.b16 %v943, %v941
      %v956 = vpack.c.b16 %v944, %v942
      %v957 = vpack.c.b16 %v947, %v945
      %v958 = vpack.c.b16 %v948, %v946
      %v959 = vpack.c.b16 %v951, %v949
      %v960 = vpack.c.b16 %v952, %v950
      %969 = vmatprep.subr.bf16.mxu0 0
      %970 = vmatpush1.bf16.msra.mxu0 %v905
      %971 = vmatprep.subr.bf16.mxu0 0
      %972 = vmatpush1.bf16.msra.mxu0 %v906
      %973 = vmatprep.subr.bf16.mxu0 0
      %974 = vmatpush1.bf16.msra.mxu0 %v907
      %975 = vmatprep.subr.bf16.mxu0 0
      %976 = vmatpush1.bf16.msra.mxu0 %v908
      %977 = vmatprep.subr.bf16.mxu0 0
      %978 = vmatpush1.bf16.msra.mxu0 %v909
      %979 = vmatprep.subr.bf16.mxu0 0
      %980 = vmatpush1.bf16.msra.mxu0 %v910
      %981 = vmatprep.subr.bf16.mxu0 0
      %982 = vmatpush1.bf16.msra.mxu0 %v911
      %983 = vmatprep.subr.bf16.mxu0 0
      %984 = vmatpush1.bf16.msra.mxu0 %v912
      %985 = vmatprep.subr.bf16.mxu0 0
      %986 = vmatpush1.bf16.msra.mxu0 %v913
      %987 = vmatprep.subr.bf16.mxu0 0
      %988 = vmatpush1.bf16.msra.mxu0 %v914
      %989 = vmatprep.subr.bf16.mxu0 0
      %990 = vmatpush1.bf16.msra.mxu0 %v915
      %991 = vmatprep.subr.bf16.mxu0 0
      %992 = vmatpush1.bf16.msra.mxu0 %v916
      %993 = vmatprep.subr.bf16.mxu0 0
      %994 = vmatpush1.bf16.msra.mxu0 %v917
      %995 = vmatprep.subr.bf16.mxu0 0
      %996 = vmatpush1.bf16.msra.mxu0 %v918
      %997 = vmatprep.subr.bf16.mxu0 0
      %998 = vmatpush1.bf16.msra.mxu0 %v919
      %999 = vmatprep.subr.bf16.mxu0 0
      %1000 = vmatpush1.bf16.msra.mxu0 %v920
      %1001 = vmatprep.mubr.bf16.mxu0 %v954
      %1002 = vmatmul.mubr.bf16.gmra.mrb[0].mxu0 %v953
      %v1003 = vpop.f32.mrb[0].mxu0
      %v1004 = vadd.f32 0.0, %v1003
      %v1005 = vpop.f32.mrb[0].mxu0
      %v1006 = vpop.f32.mrb[0].mxu0
      %v1007 = vadd.f32 0.0, %v1006
      %v1008 = vpop.f32.mrb[0].mxu0
      %1009 = vmatprep.mubr.bf16.mxu0 %v956
      %1010 = vmatmul.mubr.bf16.gmra.mrb[0].mxu0 %v955
      %v1011 = vpop.f32.mrb[0].mxu0
      %v1012 = vadd.f32 0.0, %v1011
      %v1013 = vpop.f32.mrb[0].mxu0
      %v1014 = vpop.f32.mrb[0].mxu0
      %v1015 = vadd.f32 0.0, %v1014
      %v1016 = vpop.f32.mrb[0].mxu0
      %1017 = vmatprep.mubr.bf16.mxu0 %v958
      %1018 = vmatmul.mubr.bf16.gmra.mrb[0].mxu0 %v957
      %v1019 = vpop.f32.mrb[0].mxu0
      %v1020 = vadd.f32 0.0, %v1019
      %v1021 = vpop.f32.mrb[0].mxu0
      %v1022 = vpop.f32.mrb[0].mxu0
      %v1023 = vadd.f32 0.0, %v1022
      %v1024 = vpop.f32.mrb[0].mxu0
      %1025 = vmatprep.mubr.bf16.mxu0 %v960
      %1026 = vmatmul.mubr.bf16.gmra.mrb[0].mxu0 %v959
      %v1027 = vpop.f32.mrb[0].mxu0
      %v1028 = vadd.f32 0.0, %v1027
      %v1029 = vpop.f32.mrb[0].mxu0
      %v1030 = vpop.f32.mrb[0].mxu0
      %v1031 = vadd.f32 0.0, %v1030
      %v1032 = vpop.f32.mrb[0].mxu0
      %1033 = vdwg.mxu0
      %v1034 = vld [vmem:[%s5] sm:$0x1]
      %v1036 = vlaneseq
      %v1037 = vshrl.u32 %v1036, 7
      %v1038 = vsub.s32 0, %v1037
      %v1039 = vrot.slane %v1034, %v1038
      %v1041 = vmul.f32 %v1004, %v1039
      %v1042 = vmul.f32 %v1007, %v1039
      %v1043 = vmul.f32 %v1012, %v1039
      %v1044 = vmul.f32 %v1015, %v1039
      %v1045 = vmul.f32 %v1020, %v1039
      %v1046 = vmul.f32 %v1023, %v1039
      %v1047 = vmul.f32 %v1028, %v1039
      %v1048 = vmul.f32 %v1031, %v1039
      %s1049 = scalar_lea.vmem %s1, 64
      %v1050 = vld [vmem:[%s1049] sm:$0xff]
      %v1051 = vld [vmem:[%s1049 + $0x8] sm:$0xff]
      %v1052 = vld [vmem:[%s1049 + $0x10] sm:$0xff]
      %v1053 = vld [vmem:[%s1049 + $0x18] sm:$0xff]
      %v1054 = vld [vmem:[%s1049 + $0x20] sm:$0xff]
      %v1055 = vld [vmem:[%s1049 + $0x28] sm:$0xff]
      %v1056 = vld [vmem:[%s1049 + $0x30] sm:$0xff]
      %v1057 = vld [vmem:[%s1049 + $0x38] sm:$0xff]
      %v1066 = vunpack.c.l.b16 %v1050
      %v1067 = vunpack.c.h.b16 %v1050
      %v1068 = vunpack.c.l.b16 %v1051
      %v1069 = vunpack.c.h.b16 %v1051
      %v1070 = vunpack.c.l.b16 %v1052
      %v1071 = vunpack.c.h.b16 %v1052
      %v1072 = vunpack.c.l.b16 %v1053
      %v1073 = vunpack.c.h.b16 %v1053
      %v1074 = vunpack.c.l.b16 %v1054
      %v1075 = vunpack.c.h.b16 %v1054
      %v1076 = vunpack.c.l.b16 %v1055
      %v1077 = vunpack.c.h.b16 %v1055
      %v1078 = vunpack.c.l.b16 %v1056
      %v1079 = vunpack.c.h.b16 %v1056
      %v1080 = vunpack.c.l.b16 %v1057
      %v1081 = vunpack.c.h.b16 %v1057
      %v1082 = vpack.c.b16 %v1068, %v1066
      %v1083 = vpack.c.b16 %v1069, %v1067
      %v1084 = vpack.c.b16 %v1072, %v1070
      %v1085 = vpack.c.b16 %v1073, %v1071
      %v1086 = vpack.c.b16 %v1076, %v1074
      %v1087 = vpack.c.b16 %v1077, %v1075
      %v1088 = vpack.c.b16 %v1080, %v1078
      %v1089 = vpack.c.b16 %v1081, %v1079
      %1098 = vmatprep.subr.bf16.mxu0 0
      %1099 = vmatpush1.bf16.msra.mxu0 %v905
      %1100 = vmatprep.subr.bf16.mxu0 0
      %1101 = vmatpush1.bf16.msra.mxu0 %v906
      %1102 = vmatprep.subr.bf16.mxu0 0
      %1103 = vmatpush1.bf16.msra.mxu0 %v907
      %1104 = vmatprep.subr.bf16.mxu0 0
      %1105 = vmatpush1.bf16.msra.mxu0 %v908
      %1106 = vmatprep.subr.bf16.mxu0 0
      %1107 = vmatpush1.bf16.msra.mxu0 %v909
      %1108 = vmatprep.subr.bf16.mxu0 0
      %1109 = vmatpush1.bf16.msra.mxu0 %v910
      %1110 = vmatprep.subr.bf16.mxu0 0
      %1111 = vmatpush1.bf16.msra.mxu0 %v911
      %1112 = vmatprep.subr.bf16.mxu0 0
      %1113 = vmatpush1.bf16.msra.mxu0 %v912
      %1114 = vmatprep.subr.bf16.mxu0 0
      %1115 = vmatpush1.bf16.msra.mxu0 %v913
      %1116 = vmatprep.subr.bf16.mxu0 0
      %1117 = vmatpush1.bf16.msra.mxu0 %v914
      %1118 = vmatprep.subr.bf16.mxu0 0
      %1119 = vmatpush1.bf16.msra.mxu0 %v915
      %1120 = vmatprep.subr.bf16.mxu0 0
      %1121 = vmatpush1.bf16.msra.mxu0 %v916
      %1122 = vmatprep.subr.bf16.mxu0 0
      %1123 = vmatpush1.bf16.msra.mxu0 %v917
      %1124 = vmatprep.subr.bf16.mxu0 0
      %1125 = vmatpush1.bf16.msra.mxu0 %v918
      %1126 = vmatprep.subr.bf16.mxu0 0
      %1127 = vmatpush1.bf16.msra.mxu0 %v919
      %1128 = vmatprep.subr.bf16.mxu0 0
      %1129 = vmatpush1.bf16.msra.mxu0 %v920
      %1130 = vmatprep.mubr.bf16.mxu0 %v1083
      %1131 = vmatmul.mubr.bf16.gmra.mrb[0].mxu0 %v1082
      %v1132 = vpop.f32.mrb[0].mxu0
      %v1133 = vadd.f32 0.0, %v1132
      %v1134 = vpop.f32.mrb[0].mxu0
      %v1135 = vpop.f32.mrb[0].mxu0
      %v1136 = vadd.f32 0.0, %v1135
      %v1137 = vpop.f32.mrb[0].mxu0
      %1138 = vmatprep.mubr.bf16.mxu0 %v1085
      %1139 = vmatmul.mubr.bf16.gmra.mrb[0].mxu0 %v1084
      %v1140 = vpop.f32.mrb[0].mxu0
      %v1141 = vadd.f32 0.0, %v1140
      %v1142 = vpop.f32.mrb[0].mxu0
      %v1143 = vpop.f32.mrb[0].mxu0
      %v1144 = vadd.f32 0.0, %v1143
      %v1145 = vpop.f32.mrb[0].mxu0
      %1146 = vmatprep.mubr.bf16.mxu0 %v1087
      %1147 = vmatmul.mubr.bf16.gmra.mrb[0].mxu0 %v1086
      %v1148 = vpop.f32.mrb[0].mxu0
      %v1149 = vadd.f32 0.0, %v1148
      %v1150 = vpop.f32.mrb[0].mxu0
      %v1151 = vpop.f32.mrb[0].mxu0
      %v1152 = vadd.f32 0.0, %v1151
      %v1153 = vpop.f32.mrb[0].mxu0
      %1154 = vmatprep.mubr.bf16.mxu0 %v1089
      %1155 = vmatmul.mubr.bf16.gmra.mrb[0].mxu0 %v1088
      %v1156 = vpop.f32.mrb[0].mxu0
      %v1157 = vadd.f32 0.0, %v1156
      %v1158 = vpop.f32.mrb[0].mxu0
      %v1159 = vpop.f32.mrb[0].mxu0
      %v1160 = vadd.f32 0.0, %v1159
      %v1161 = vpop.f32.mrb[0].mxu0
      %1162 = vdwg.mxu0
      %s1163 = scalar_lea.vmem %s5, 1
      %v1164 = vld [vmem:[%s1163] sm:$0x1]
      %v1166 = vlaneseq
      %v1167 = vshrl.u32 %v1166, 7
      %v1168 = vsub.s32 0, %v1167
      %v1169 = vrot.slane %v1164, %v1168
      %v1171 = vmul.f32 %v1133, %v1169
      %v1172 = vmul.f32 %v1136, %v1169
      %v1173 = vmul.f32 %v1141, %v1169
      %v1174 = vmul.f32 %v1144, %v1169
      %v1175 = vmul.f32 %v1149, %v1169
      %v1176 = vmul.f32 %v1152, %v1169
      %v1177 = vmul.f32 %v1157, %v1169
      %v1178 = vmul.f32 %v1160, %v1169
      %v1179 = vadd.f32 %v1041, %v1171
      %v1180 = vadd.f32 %v1042, %v1172
      %v1181 = vadd.f32 %v1043, %v1173
      %v1182 = vadd.f32 %v1044, %v1174
      %v1183 = vadd.f32 %v1045, %v1175
      %v1184 = vadd.f32 %v1046, %v1176
      %v1185 = vadd.f32 %v1047, %v1177
      %v1186 = vadd.f32 %v1048, %v1178
      %s1187 = scalar_lea.vmem %s1, 128
      %v1188 = vld [vmem:[%s1187] sm:$0xff]
      %v1189 = vld [vmem:[%s1187 + $0x8] sm:$0xff]
      %v1190 = vld [vmem:[%s1187 + $0x10] sm:$0xff]
      %v1191 = vld [vmem:[%s1187 + $0x18] sm:$0xff]
      %v1192 = vld [vmem:[%s1187 + $0x20] sm:$0xff]
      %v1193 = vld [vmem:[%s1187 + $0x28] sm:$0xff]
      %v1194 = vld [vmem:[%s1187 + $0x30] sm:$0xff]
      %v1195 = vld [vmem:[%s1187 + $0x38] sm:$0xff]
      %v1204 = vunpack.c.l.b16 %v1188
      %v1205 = vunpack.c.h.b16 %v1188
      %v1206 = vunpack.c.l.b16 %v1189
      %v1207 = vunpack.c.h.b16 %v1189
      %v1208 = vunpack.c.l.b16 %v1190
      %v1209 = vunpack.c.h.b16 %v1190
      %v1210 = vunpack.c.l.b16 %v1191
      %v1211 = vunpack.c.h.b16 %v1191
      %v1212 = vunpack.c.l.b16 %v1192
      %v1213 = vunpack.c.h.b16 %v1192
      %v1214 = vunpack.c.l.b16 %v1193
      %v1215 = vunpack.c.h.b16 %v1193
      %v1216 = vunpack.c.l.b16 %v1194
      %v1217 = vunpack.c.h.b16 %v1194
      %v1218 = vunpack.c.l.b16 %v1195
      %v1219 = vunpack.c.h.b16 %v1195
      %v1220 = vpack.c.b16 %v1206, %v1204
      %v1221 = vpack.c.b16 %v1207, %v1205
      %v1222 = vpack.c.b16 %v1210, %v1208
      %v1223 = vpack.c.b16 %v1211, %v1209
      %v1224 = vpack.c.b16 %v1214, %v1212
      %v1225 = vpack.c.b16 %v1215, %v1213
      %v1226 = vpack.c.b16 %v1218, %v1216
      %v1227 = vpack.c.b16 %v1219, %v1217
      %1236 = vmatprep.subr.bf16.mxu0 0
      %1237 = vmatpush1.bf16.msra.mxu0 %v905
      %1238 = vmatprep.subr.bf16.mxu0 0
      %1239 = vmatpush1.bf16.msra.mxu0 %v906
      %1240 = vmatprep.subr.bf16.mxu0 0
      %1241 = vmatpush1.bf16.msra.mxu0 %v907
      %1242 = vmatprep.subr.bf16.mxu0 0
      %1243 = vmatpush1.bf16.msra.mxu0 %v908
      %1244 = vmatprep.subr.bf16.mxu0 0
      %1245 = vmatpush1.bf16.msra.mxu0 %v909
      %1246 = vmatprep.subr.bf16.mxu0 0
      %1247 = vmatpush1.bf16.msra.mxu0 %v910
      %1248 = vmatprep.subr.bf16.mxu0 0
      %1249 = vmatpush1.bf16.msra.mxu0 %v911
      %1250 = vmatprep.subr.bf16.mxu0 0
      %1251 = vmatpush1.bf16.msra.mxu0 %v912
      %1252 = vmatprep.subr.bf16.mxu0 0
      %1253 = vmatpush1.bf16.msra.mxu0 %v913
      %1254 = vmatprep.subr.bf16.mxu0 0
      %1255 = vmatpush1.bf16.msra.mxu0 %v914
      %1256 = vmatprep.subr.bf16.mxu0 0
      %1257 = vmatpush1.bf16.msra.mxu0 %v915
      %1258 = vmatprep.subr.bf16.mxu0 0
      %1259 = vmatpush1.bf16.msra.mxu0 %v916
      %1260 = vmatprep.subr.bf16.mxu0 0
      %1261 = vmatpush1.bf16.msra.mxu0 %v917
      %1262 = vmatprep.subr.bf16.mxu0 0
      %1263 = vmatpush1.bf16.msra.mxu0 %v918
      %1264 = vmatprep.subr.bf16.mxu0 0
      %1265 = vmatpush1.bf16.msra.mxu0 %v919
      %1266 = vmatprep.subr.bf16.mxu0 0
      %1267 = vmatpush1.bf16.msra.mxu0 %v920
      %1268 = vmatprep.mubr.bf16.mxu0 %v1221
      %1269 = vmatmul.mubr.bf16.gmra.mrb[0].mxu0 %v1220
      %v1270 = vpop.f32.mrb[0].mxu0
      %v1271 = vadd.f32 0.0, %v1270
      %v1272 = vpop.f32.mrb[0].mxu0
      %v1273 = vpop.f32.mrb[0].mxu0
      %v1274 = vadd.f32 0.0, %v1273
      %v1275 = vpop.f32.mrb[0].mxu0
      %1276 = vmatprep.mubr.bf16.mxu0 %v1223
      %1277 = vmatmul.mubr.bf16.gmra.mrb[0].mxu0 %v1222
      %v1278 = vpop.f32.mrb[0].mxu0
      %v1279 = vadd.f32 0.0, %v1278
      %v1280 = vpop.f32.mrb[0].mxu0
      %v1281 = vpop.f32.mrb[0].mxu0
      %v1282 = vadd.f32 0.0, %v1281
      %v1283 = vpop.f32.mrb[0].mxu0
      %1284 = vmatprep.mubr.bf16.mxu0 %v1225
      %1285 = vmatmul.mubr.bf16.gmra.mrb[0].mxu0 %v1224
      %v1286 = vpop.f32.mrb[0].mxu0
      %v1287 = vadd.f32 0.0, %v1286
      %v1288 = vpop.f32.mrb[0].mxu0
      %v1289 = vpop.f32.mrb[0].mxu0
      %v1290 = vadd.f32 0.0, %v1289
      %v1291 = vpop.f32.mrb[0].mxu0
      %1292 = vmatprep.mubr.bf16.mxu0 %v1227
      %1293 = vmatmul.mubr.bf16.gmra.mrb[0].mxu0 %v1226
      %v1294 = vpop.f32.mrb[0].mxu0
      %v1295 = vadd.f32 0.0, %v1294
      %v1296 = vpop.f32.mrb[0].mxu0
      %v1297 = vpop.f32.mrb[0].mxu0
      %v1298 = vadd.f32 0.0, %v1297
      %v1299 = vpop.f32.mrb[0].mxu0
      %1300 = vdwg.mxu0
      %s1301 = scalar_lea.vmem %s5, 2
      %v1302 = vld [vmem:[%s1301] sm:$0x1]
      %v1304 = vlaneseq
      %v1305 = vshrl.u32 %v1304, 7
      %v1306 = vsub.s32 0, %v1305
      %v1307 = vrot.slane %v1302, %v1306
      %v1309 = vmul.f32 %v1271, %v1307
      %v1310 = vmul.f32 %v1274, %v1307
      %v1311 = vmul.f32 %v1279, %v1307
      %v1312 = vmul.f32 %v1282, %v1307
      %v1313 = vmul.f32 %v1287, %v1307
      %v1314 = vmul.f32 %v1290, %v1307
      %v1315 = vmul.f32 %v1295, %v1307
      %v1316 = vmul.f32 %v1298, %v1307
      %v1317 = vadd.f32 %v1179, %v1309
      %v1318 = vadd.f32 %v1180, %v1310
      %v1319 = vadd.f32 %v1181, %v1311
      %v1320 = vadd.f32 %v1182, %v1312
      %v1321 = vadd.f32 %v1183, %v1313
      %v1322 = vadd.f32 %v1184, %v1314
      %v1323 = vadd.f32 %v1185, %v1315
      %v1324 = vadd.f32 %v1186, %v1316
      %s1325 = scalar_lea.vmem %s1, 192
      %v1326 = vld [vmem:[%s1325] sm:$0xff]
      %v1327 = vld [vmem:[%s1325 + $0x8] sm:$0xff]
      %v1328 = vld [vmem:[%s1325 + $0x10] sm:$0xff]
      %v1329 = vld [vmem:[%s1325 + $0x18] sm:$0xff]
      %v1330 = vld [vmem:[%s1325 + $0x20] sm:$0xff]
      %v1331 = vld [vmem:[%s1325 + $0x28] sm:$0xff]
      %v1332 = vld [vmem:[%s1325 + $0x30] sm:$0xff]
      %v1333 = vld [vmem:[%s1325 + $0x38] sm:$0xff]
      %v1342 = vunpack.c.l.b16 %v1326
      %v1343 = vunpack.c.h.b16 %v1326
      %v1344 = vunpack.c.l.b16 %v1327
      %v1345 = vunpack.c.h.b16 %v1327
      %v1346 = vunpack.c.l.b16 %v1328
      %v1347 = vunpack.c.h.b16 %v1328
      %v1348 = vunpack.c.l.b16 %v1329
      %v1349 = vunpack.c.h.b16 %v1329
      %v1350 = vunpack.c.l.b16 %v1330
      %v1351 = vunpack.c.h.b16 %v1330
      %v1352 = vunpack.c.l.b16 %v1331
      %v1353 = vunpack.c.h.b16 %v1331
      %v1354 = vunpack.c.l.b16 %v1332
      %v1355 = vunpack.c.h.b16 %v1332
      %v1356 = vunpack.c.l.b16 %v1333
      %v1357 = vunpack.c.h.b16 %v1333
      %v1358 = vpack.c.b16 %v1344, %v1342
      %v1359 = vpack.c.b16 %v1345, %v1343
      %v1360 = vpack.c.b16 %v1348, %v1346
      %v1361 = vpack.c.b16 %v1349, %v1347
      %v1362 = vpack.c.b16 %v1352, %v1350
      %v1363 = vpack.c.b16 %v1353, %v1351
      %v1364 = vpack.c.b16 %v1356, %v1354
      %v1365 = vpack.c.b16 %v1357, %v1355
      %1374 = vmatprep.subr.bf16.mxu0 0
      %1375 = vmatpush1.bf16.msra.mxu0 %v905
      %1376 = vmatprep.subr.bf16.mxu0 0
      %1377 = vmatpush1.bf16.msra.mxu0 %v906
      %1378 = vmatprep.subr.bf16.mxu0 0
      %1379 = vmatpush1.bf16.msra.mxu0 %v907
      %1380 = vmatprep.subr.bf16.mxu0 0
      %1381 = vmatpush1.bf16.msra.mxu0 %v908
      %1382 = vmatprep.subr.bf16.mxu0 0
      %1383 = vmatpush1.bf16.msra.mxu0 %v909
      %1384 = vmatprep.subr.bf16.mxu0 0
      %1385 = vmatpush1.bf16.msra.mxu0 %v910
      %1386 = vmatprep.subr.bf16.mxu0 0
      %1387 = vmatpush1.bf16.msra.mxu0 %v911
      %1388 = vmatprep.subr.bf16.mxu0 0
      %1389 = vmatpush1.bf16.msra.mxu0 %v912
      %1390 = vmatprep.subr.bf16.mxu0 0
      %1391 = vmatpush1.bf16.msra.mxu0 %v913
      %1392 = vmatprep.subr.bf16.mxu0 0
      %1393 = vmatpush1.bf16.msra.mxu0 %v914
      %1394 = vmatprep.subr.bf16.mxu0 0
      %1395 = vmatpush1.bf16.msra.mxu0 %v915
      %1396 = vmatprep.subr.bf16.mxu0 0
      %1397 = vmatpush1.bf16.msra.mxu0 %v916
      %1398 = vmatprep.subr.bf16.mxu0 0
      %1399 = vmatpush1.bf16.msra.mxu0 %v917
      %1400 = vmatprep.subr.bf16.mxu0 0
      %1401 = vmatpush1.bf16.msra.mxu0 %v918
      %1402 = vmatprep.subr.bf16.mxu0 0
      %1403 = vmatpush1.bf16.msra.mxu0 %v919
      %1404 = vmatprep.subr.bf16.mxu0 0
      %1405 = vmatpush1.bf16.msra.mxu0 %v920
      %1406 = vmatprep.mubr.bf16.mxu0 %v1359
      %1407 = vmatmul.mubr.bf16.gmra.mrb[0].mxu0 %v1358
      %v1408 = vpop.f32.mrb[0].mxu0
      %v1409 = vadd.f32 0.0, %v1408
      %v1410 = vpop.f32.mrb[0].mxu0
      %v1411 = vpop.f32.mrb[0].mxu0
      %v1412 = vadd.f32 0.0, %v1411
      %v1413 = vpop.f32.mrb[0].mxu0
      %1414 = vmatprep.mubr.bf16.mxu0 %v1361
      %1415 = vmatmul.mubr.bf16.gmra.mrb[0].mxu0 %v1360
      %v1416 = vpop.f32.mrb[0].mxu0
      %v1417 = vadd.f32 0.0, %v1416
      %v1418 = vpop.f32.mrb[0].mxu0
      %v1419 = vpop.f32.mrb[0].mxu0
      %v1420 = vadd.f32 0.0, %v1419
      %v1421 = vpop.f32.mrb[0].mxu0
      %1422 = vmatprep.mubr.bf16.mxu0 %v1363
      %1423 = vmatmul.mubr.bf16.gmra.mrb[0].mxu0 %v1362
      %v1424 = vpop.f32.mrb[0].mxu0
      %v1425 = vadd.f32 0.0, %v1424
      %v1426 = vpop.f32.mrb[0].mxu0
      %v1427 = vpop.f32.mrb[0].mxu0
      %v1428 = vadd.f32 0.0, %v1427
      %v1429 = vpop.f32.mrb[0].mxu0
      %1430 = vmatprep.mubr.bf16.mxu0 %v1365
      %1431 = vmatmul.mubr.bf16.gmra.mrb[0].mxu0 %v1364
      %v1432 = vpop.f32.mrb[0].mxu0
      %v1433 = vadd.f32 0.0, %v1432
      %v1434 = vpop.f32.mrb[0].mxu0
      %v1435 = vpop.f32.mrb[0].mxu0
      %v1436 = vadd.f32 0.0, %v1435
      %v1437 = vpop.f32.mrb[0].mxu0
      %1438 = vdwg.mxu0
      %s1439 = scalar_lea.vmem %s5, 3
      %v1440 = vld [vmem:[%s1439] sm:$0x1]
      %v1442 = vlaneseq
      %v1443 = vshrl.u32 %v1442, 7
      %v1444 = vsub.s32 0, %v1443
      %v1445 = vrot.slane %v1440, %v1444
      %v1447 = vmul.f32 %v1409, %v1445
      %v1448 = vmul.f32 %v1412, %v1445
      %v1449 = vmul.f32 %v1417, %v1445
      %v1450 = vmul.f32 %v1420, %v1445
      %v1451 = vmul.f32 %v1425, %v1445
      %v1452 = vmul.f32 %v1428, %v1445
      %v1453 = vmul.f32 %v1433, %v1445
      %v1454 = vmul.f32 %v1436, %v1445
      %v1455 = vadd.f32 %v1317, %v1447
      %v1456 = vadd.f32 %v1318, %v1448
      %v1457 = vadd.f32 %v1319, %v1449
      %v1458 = vadd.f32 %v1320, %v1450
      %v1459 = vadd.f32 %v1321, %v1451
      %v1460 = vadd.f32 %v1322, %v1452
      %v1461 = vadd.f32 %v1323, %v1453
      %v1462 = vadd.f32 %v1324, %v1454
      %s1463 = scalar_lea.vmem %s1, 256
      %v1464 = vld [vmem:[%s1463] sm:$0xff]
      %v1465 = vld [vmem:[%s1463 + $0x8] sm:$0xff]
      %v1466 = vld [vmem:[%s1463 + $0x10] sm:$0xff]
      %v1467 = vld [vmem:[%s1463 + $0x18] sm:$0xff]
      %v1468 = vld [vmem:[%s1463 + $0x20] sm:$0xff]
      %v1469 = vld [vmem:[%s1463 + $0x28] sm:$0xff]
      %v1470 = vld [vmem:[%s1463 + $0x30] sm:$0xff]
      %v1471 = vld [vmem:[%s1463 + $0x38] sm:$0xff]
      %v1480 = vunpack.c.l.b16 %v1464
      %v1481 = vunpack.c.h.b16 %v1464
      %v1482 = vunpack.c.l.b16 %v1465
      %v1483 = vunpack.c.h.b16 %v1465
      %v1484 = vunpack.c.l.b16 %v1466
      %v1485 = vunpack.c.h.b16 %v1466
      %v1486 = vunpack.c.l.b16 %v1467
      %v1487 = vunpack.c.h.b16 %v1467
      %v1488 = vunpack.c.l.b16 %v1468
      %v1489 = vunpack.c.h.b16 %v1468
      %v1490 = vunpack.c.l.b16 %v1469
      %v1491 = vunpack.c.h.b16 %v1469
      %v1492 = vunpack.c.l.b16 %v1470
      %v1493 = vunpack.c.h.b16 %v1470
      %v1494 = vunpack.c.l.b16 %v1471
      %v1495 = vunpack.c.h.b16 %v1471
      %v1496 = vpack.c.b16 %v1482, %v1480
      %v1497 = vpack.c.b16 %v1483, %v1481
      %v1498 = vpack.c.b16 %v1486, %v1484
      %v1499 = vpack.c.b16 %v1487, %v1485
      %v1500 = vpack.c.b16 %v1490, %v1488
      %v1501 = vpack.c.b16 %v1491, %v1489
      %v1502 = vpack.c.b16 %v1494, %v1492
      %v1503 = vpack.c.b16 %v1495, %v1493
      %1512 = vmatprep.subr.bf16.mxu0 0
      %1513 = vmatpush1.bf16.msra.mxu0 %v905
      %1514 = vmatprep.subr.bf16.mxu0 0
      %1515 = vmatpush1.bf16.msra.mxu0 %v906
      %1516 = vmatprep.subr.bf16.mxu0 0
      %1517 = vmatpush1.bf16.msra.mxu0 %v907
      %1518 = vmatprep.subr.bf16.mxu0 0
      %1519 = vmatpush1.bf16.msra.mxu0 %v908
      %1520 = vmatprep.subr.bf16.mxu0 0
      %1521 = vmatpush1.bf16.msra.mxu0 %v909
      %1522 = vmatprep.subr.bf16.mxu0 0
      %1523 = vmatpush1.bf16.msra.mxu0 %v910
      %1524 = vmatprep.subr.bf16.mxu0 0
      %1525 = vmatpush1.bf16.msra.mxu0 %v911
      %1526 = vmatprep.subr.bf16.mxu0 0
      %1527 = vmatpush1.bf16.msra.mxu0 %v912
      %1528 = vmatprep.subr.bf16.mxu0 0
      %1529 = vmatpush1.bf16.msra.mxu0 %v913
      %1530 = vmatprep.subr.bf16.mxu0 0
      %1531 = vmatpush1.bf16.msra.mxu0 %v914
      %1532 = vmatprep.subr.bf16.mxu0 0
      %1533 = vmatpush1.bf16.msra.mxu0 %v915
      %1534 = vmatprep.subr.bf16.mxu0 0
      %1535 = vmatpush1.bf16.msra.mxu0 %v916
      %1536 = vmatprep.subr.bf16.mxu0 0
      %1537 = vmatpush1.bf16.msra.mxu0 %v917
      %1538 = vmatprep.subr.bf16.mxu0 0
      %1539 = vmatpush1.bf16.msra.mxu0 %v918
      %1540 = vmatprep.subr.bf16.mxu0 0
      %1541 = vmatpush1.bf16.msra.mxu0 %v919
      %1542 = vmatprep.subr.bf16.mxu0 0
      %1543 = vmatpush1.bf16.msra.mxu0 %v920
      %1544 = vmatprep.mubr.bf16.mxu0 %v1497
      %1545 = vmatmul.mubr.bf16.gmra.mrb[0].mxu0 %v1496
      %v1546 = vpop.f32.mrb[0].mxu0
      %v1547 = vadd.f32 0.0, %v1546
      %v1548 = vpop.f32.mrb[0].mxu0
      %v1549 = vpop.f32.mrb[0].mxu0
      %v1550 = vadd.f32 0.0, %v1549
      %v1551 = vpop.f32.mrb[0].mxu0
      %1552 = vmatprep.mubr.bf16.mxu0 %v1499
      %1553 = vmatmul.mubr.bf16.gmra.mrb[0].mxu0 %v1498
      %v1554 = vpop.f32.mrb[0].mxu0
      %v1555 = vadd.f32 0.0, %v1554
      %v1556 = vpop.f32.mrb[0].mxu0
      %v1557 = vpop.f32.mrb[0].mxu0
      %v1558 = vadd.f32 0.0, %v1557
      %v1559 = vpop.f32.mrb[0].mxu0
      %1560 = vmatprep.mubr.bf16.mxu0 %v1501
      %1561 = vmatmul.mubr.bf16.gmra.mrb[0].mxu0 %v1500
      %v1562 = vpop.f32.mrb[0].mxu0
      %v1563 = vadd.f32 0.0, %v1562
      %v1564 = vpop.f32.mrb[0].mxu0
      %v1565 = vpop.f32.mrb[0].mxu0
      %v1566 = vadd.f32 0.0, %v1565
      %v1567 = vpop.f32.mrb[0].mxu0
      %1568 = vmatprep.mubr.bf16.mxu0 %v1503
      %1569 = vmatmul.mubr.bf16.gmra.mrb[0].mxu0 %v1502
      %v1570 = vpop.f32.mrb[0].mxu0
      %v1571 = vadd.f32 0.0, %v1570
      %v1572 = vpop.f32.mrb[0].mxu0
      %v1573 = vpop.f32.mrb[0].mxu0
      %v1574 = vadd.f32 0.0, %v1573
      %v1575 = vpop.f32.mrb[0].mxu0
      %1576 = vdwg.mxu0
      %s1577 = scalar_lea.vmem %s5, 4
      %v1578 = vld [vmem:[%s1577] sm:$0x1]
      %v1580 = vlaneseq
      %v1581 = vshrl.u32 %v1580, 7
      %v1582 = vsub.s32 0, %v1581
      %v1583 = vrot.slane %v1578, %v1582
      %v1585 = vmul.f32 %v1547, %v1583
      %v1586 = vmul.f32 %v1550, %v1583
      %v1587 = vmul.f32 %v1555, %v1583
      %v1588 = vmul.f32 %v1558, %v1583
      %v1589 = vmul.f32 %v1563, %v1583
      %v1590 = vmul.f32 %v1566, %v1583
      %v1591 = vmul.f32 %v1571, %v1583
      %v1592 = vmul.f32 %v1574, %v1583
      %v1593 = vadd.f32 %v1455, %v1585
      %v1594 = vadd.f32 %v1456, %v1586
      %v1595 = vadd.f32 %v1457, %v1587
      %v1596 = vadd.f32 %v1458, %v1588
      %v1597 = vadd.f32 %v1459, %v1589
      %v1598 = vadd.f32 %v1460, %v1590
      %v1599 = vadd.f32 %v1461, %v1591
      %v1600 = vadd.f32 %v1462, %v1592
      %s1601 = scalar_lea.vmem %s1, 320
      %v1602 = vld [vmem:[%s1601] sm:$0xff]
      %v1603 = vld [vmem:[%s1601 + $0x8] sm:$0xff]
      %v1604 = vld [vmem:[%s1601 + $0x10] sm:$0xff]
      %v1605 = vld [vmem:[%s1601 + $0x18] sm:$0xff]
      %v1606 = vld [vmem:[%s1601 + $0x20] sm:$0xff]
      %v1607 = vld [vmem:[%s1601 + $0x28] sm:$0xff]
      %v1608 = vld [vmem:[%s1601 + $0x30] sm:$0xff]
      %v1609 = vld [vmem:[%s1601 + $0x38] sm:$0xff]
      %v1618 = vunpack.c.l.b16 %v1602
      %v1619 = vunpack.c.h.b16 %v1602
      %v1620 = vunpack.c.l.b16 %v1603
      %v1621 = vunpack.c.h.b16 %v1603
      %v1622 = vunpack.c.l.b16 %v1604
      %v1623 = vunpack.c.h.b16 %v1604
      %v1624 = vunpack.c.l.b16 %v1605
      %v1625 = vunpack.c.h.b16 %v1605
      %v1626 = vunpack.c.l.b16 %v1606
      %v1627 = vunpack.c.h.b16 %v1606
      %v1628 = vunpack.c.l.b16 %v1607
      %v1629 = vunpack.c.h.b16 %v1607
      %v1630 = vunpack.c.l.b16 %v1608
      %v1631 = vunpack.c.h.b16 %v1608
      %v1632 = vunpack.c.l.b16 %v1609
      %v1633 = vunpack.c.h.b16 %v1609
      %v1634 = vpack.c.b16 %v1620, %v1618
      %v1635 = vpack.c.b16 %v1621, %v1619
      %v1636 = vpack.c.b16 %v1624, %v1622
      %v1637 = vpack.c.b16 %v1625, %v1623
      %v1638 = vpack.c.b16 %v1628, %v1626
      %v1639 = vpack.c.b16 %v1629, %v1627
      %v1640 = vpack.c.b16 %v1632, %v1630
      %v1641 = vpack.c.b16 %v1633, %v1631
      %1650 = vmatprep.subr.bf16.mxu0 0
      %1651 = vmatpush1.bf16.msra.mxu0 %v905
      %1652 = vmatprep.subr.bf16.mxu0 0
      %1653 = vmatpush1.bf16.msra.mxu0 %v906
      %1654 = vmatprep.subr.bf16.mxu0 0
      %1655 = vmatpush1.bf16.msra.mxu0 %v907
      %1656 = vmatprep.subr.bf16.mxu0 0
      %1657 = vmatpush1.bf16.msra.mxu0 %v908
      %1658 = vmatprep.subr.bf16.mxu0 0
      %1659 = vmatpush1.bf16.msra.mxu0 %v909
      %1660 = vmatprep.subr.bf16.mxu0 0
      %1661 = vmatpush1.bf16.msra.mxu0 %v910
      %1662 = vmatprep.subr.bf16.mxu0 0
      %1663 = vmatpush1.bf16.msra.mxu0 %v911
      %1664 = vmatprep.subr.bf16.mxu0 0
      %1665 = vmatpush1.bf16.msra.mxu0 %v912
      %1666 = vmatprep.subr.bf16.mxu0 0
      %1667 = vmatpush1.bf16.msra.mxu0 %v913
      %1668 = vmatprep.subr.bf16.mxu0 0
      %1669 = vmatpush1.bf16.msra.mxu0 %v914
      %1670 = vmatprep.subr.bf16.mxu0 0
      %1671 = vmatpush1.bf16.msra.mxu0 %v915
      %1672 = vmatprep.subr.bf16.mxu0 0
      %1673 = vmatpush1.bf16.msra.mxu0 %v916
      %1674 = vmatprep.subr.bf16.mxu0 0
      %1675 = vmatpush1.bf16.msra.mxu0 %v917
      %1676 = vmatprep.subr.bf16.mxu0 0
      %1677 = vmatpush1.bf16.msra.mxu0 %v918
      %1678 = vmatprep.subr.bf16.mxu0 0
      %1679 = vmatpush1.bf16.msra.mxu0 %v919
      %1680 = vmatprep.subr.bf16.mxu0 0
      %1681 = vmatpush1.bf16.msra.mxu0 %v920
      %1682 = vmatprep.mubr.bf16.mxu0 %v1635
      %1683 = vmatmul.mubr.bf16.gmra.mrb[0].mxu0 %v1634
      %v1684 = vpop.f32.mrb[0].mxu0
      %v1685 = vadd.f32 0.0, %v1684
      %v1686 = vpop.f32.mrb[0].mxu0
      %v1687 = vpop.f32.mrb[0].mxu0
      %v1688 = vadd.f32 0.0, %v1687
      %v1689 = vpop.f32.mrb[0].mxu0
      %1690 = vmatprep.mubr.bf16.mxu0 %v1637
      %1691 = vmatmul.mubr.bf16.gmra.mrb[0].mxu0 %v1636
      %v1692 = vpop.f32.mrb[0].mxu0
      %v1693 = vadd.f32 0.0, %v1692
      %v1694 = vpop.f32.mrb[0].mxu0
      %v1695 = vpop.f32.mrb[0].mxu0
      %v1696 = vadd.f32 0.0, %v1695
      %v1697 = vpop.f32.mrb[0].mxu0
      %1698 = vmatprep.mubr.bf16.mxu0 %v1639
      %1699 = vmatmul.mubr.bf16.gmra.mrb[0].mxu0 %v1638
      %v1700 = vpop.f32.mrb[0].mxu0
      %v1701 = vadd.f32 0.0, %v1700
      %v1702 = vpop.f32.mrb[0].mxu0
      %v1703 = vpop.f32.mrb[0].mxu0
      %v1704 = vadd.f32 0.0, %v1703
      %v1705 = vpop.f32.mrb[0].mxu0
      %1706 = vmatprep.mubr.bf16.mxu0 %v1641
      %1707 = vmatmul.mubr.bf16.gmra.mrb[0].mxu0 %v1640
      %v1708 = vpop.f32.mrb[0].mxu0
      %v1709 = vadd.f32 0.0, %v1708
      %v1710 = vpop.f32.mrb[0].mxu0
      %v1711 = vpop.f32.mrb[0].mxu0
      %v1712 = vadd.f32 0.0, %v1711
      %v1713 = vpop.f32.mrb[0].mxu0
      %1714 = vdwg.mxu0
      %s1715 = scalar_lea.vmem %s5, 5
      %v1716 = vld [vmem:[%s1715] sm:$0x1]
      %v1718 = vlaneseq
      %v1719 = vshrl.u32 %v1718, 7
      %v1720 = vsub.s32 0, %v1719
      %v1721 = vrot.slane %v1716, %v1720
      %v1723 = vmul.f32 %v1685, %v1721
      %v1724 = vmul.f32 %v1688, %v1721
      %v1725 = vmul.f32 %v1693, %v1721
      %v1726 = vmul.f32 %v1696, %v1721
      %v1727 = vmul.f32 %v1701, %v1721
      %v1728 = vmul.f32 %v1704, %v1721
      %v1729 = vmul.f32 %v1709, %v1721
      %v1730 = vmul.f32 %v1712, %v1721
      %v1731 = vadd.f32 %v1593, %v1723
      %v1732 = vadd.f32 %v1594, %v1724
      %v1733 = vadd.f32 %v1595, %v1725
      %v1734 = vadd.f32 %v1596, %v1726
      %v1735 = vadd.f32 %v1597, %v1727
      %v1736 = vadd.f32 %v1598, %v1728
      %v1737 = vadd.f32 %v1599, %v1729
      %v1738 = vadd.f32 %v1600, %v1730
      %s1739 = scalar_lea.vmem %s1, 384
      %v1740 = vld [vmem:[%s1739] sm:$0xff]
      %v1741 = vld [vmem:[%s1739 + $0x8] sm:$0xff]
      %v1742 = vld [vmem:[%s1739 + $0x10] sm:$0xff]
      %v1743 = vld [vmem:[%s1739 + $0x18] sm:$0xff]
      %v1744 = vld [vmem:[%s1739 + $0x20] sm:$0xff]
      %v1745 = vld [vmem:[%s1739 + $0x28] sm:$0xff]
      %v1746 = vld [vmem:[%s1739 + $0x30] sm:$0xff]
      %v1747 = vld [vmem:[%s1739 + $0x38] sm:$0xff]
      %v1756 = vunpack.c.l.b16 %v1740
      %v1757 = vunpack.c.h.b16 %v1740
      %v1758 = vunpack.c.l.b16 %v1741
      %v1759 = vunpack.c.h.b16 %v1741
      %v1760 = vunpack.c.l.b16 %v1742
      %v1761 = vunpack.c.h.b16 %v1742
      %v1762 = vunpack.c.l.b16 %v1743
      %v1763 = vunpack.c.h.b16 %v1743
      %v1764 = vunpack.c.l.b16 %v1744
      %v1765 = vunpack.c.h.b16 %v1744
      %v1766 = vunpack.c.l.b16 %v1745
      %v1767 = vunpack.c.h.b16 %v1745
      %v1768 = vunpack.c.l.b16 %v1746
      %v1769 = vunpack.c.h.b16 %v1746
      %v1770 = vunpack.c.l.b16 %v1747
      %v1771 = vunpack.c.h.b16 %v1747
      %v1772 = vpack.c.b16 %v1758, %v1756
      %v1773 = vpack.c.b16 %v1759, %v1757
      %v1774 = vpack.c.b16 %v1762, %v1760
      %v1775 = vpack.c.b16 %v1763, %v1761
      %v1776 = vpack.c.b16 %v1766, %v1764
      %v1777 = vpack.c.b16 %v1767, %v1765
      %v1778 = vpack.c.b16 %v1770, %v1768
      %v1779 = vpack.c.b16 %v1771, %v1769
      %1788 = vmatprep.subr.bf16.mxu0 0
      %1789 = vmatpush1.bf16.msra.mxu0 %v905
      %1790 = vmatprep.subr.bf16.mxu0 0
      %1791 = vmatpush1.bf16.msra.mxu0 %v906
      %1792 = vmatprep.subr.bf16.mxu0 0
      %1793 = vmatpush1.bf16.msra.mxu0 %v907
      %1794 = vmatprep.subr.bf16.mxu0 0
      %1795 = vmatpush1.bf16.msra.mxu0 %v908
      %1796 = vmatprep.subr.bf16.mxu0 0
      %1797 = vmatpush1.bf16.msra.mxu0 %v909
      %1798 = vmatprep.subr.bf16.mxu0 0
      %1799 = vmatpush1.bf16.msra.mxu0 %v910
      %1800 = vmatprep.subr.bf16.mxu0 0
      %1801 = vmatpush1.bf16.msra.mxu0 %v911
      %1802 = vmatprep.subr.bf16.mxu0 0
      %1803 = vmatpush1.bf16.msra.mxu0 %v912
      %1804 = vmatprep.subr.bf16.mxu0 0
      %1805 = vmatpush1.bf16.msra.mxu0 %v913
      %1806 = vmatprep.subr.bf16.mxu0 0
      %1807 = vmatpush1.bf16.msra.mxu0 %v914
      %1808 = vmatprep.subr.bf16.mxu0 0
      %1809 = vmatpush1.bf16.msra.mxu0 %v915
      %1810 = vmatprep.subr.bf16.mxu0 0
      %1811 = vmatpush1.bf16.msra.mxu0 %v916
      %1812 = vmatprep.subr.bf16.mxu0 0
      %1813 = vmatpush1.bf16.msra.mxu0 %v917
      %1814 = vmatprep.subr.bf16.mxu0 0
      %1815 = vmatpush1.bf16.msra.mxu0 %v918
      %1816 = vmatprep.subr.bf16.mxu0 0
      %1817 = vmatpush1.bf16.msra.mxu0 %v919
      %1818 = vmatprep.subr.bf16.mxu0 0
      %1819 = vmatpush1.bf16.msra.mxu0 %v920
      %1820 = vmatprep.mubr.bf16.mxu0 %v1773
      %1821 = vmatmul.mubr.bf16.gmra.mrb[0].mxu0 %v1772
      %v1822 = vpop.f32.mrb[0].mxu0
      %v1823 = vadd.f32 0.0, %v1822
      %v1824 = vpop.f32.mrb[0].mxu0
      %v1825 = vpop.f32.mrb[0].mxu0
      %v1826 = vadd.f32 0.0, %v1825
      %v1827 = vpop.f32.mrb[0].mxu0
      %1828 = vmatprep.mubr.bf16.mxu0 %v1775
      %1829 = vmatmul.mubr.bf16.gmra.mrb[0].mxu0 %v1774
      %v1830 = vpop.f32.mrb[0].mxu0
      %v1831 = vadd.f32 0.0, %v1830
      %v1832 = vpop.f32.mrb[0].mxu0
      %v1833 = vpop.f32.mrb[0].mxu0
      %v1834 = vadd.f32 0.0, %v1833
      %v1835 = vpop.f32.mrb[0].mxu0
      %1836 = vmatprep.mubr.bf16.mxu0 %v1777
      %1837 = vmatmul.mubr.bf16.gmra.mrb[0].mxu0 %v1776
      %v1838 = vpop.f32.mrb[0].mxu0
      %v1839 = vadd.f32 0.0, %v1838
      %v1840 = vpop.f32.mrb[0].mxu0
      %v1841 = vpop.f32.mrb[0].mxu0
      %v1842 = vadd.f32 0.0, %v1841
      %v1843 = vpop.f32.mrb[0].mxu0
      %1844 = vmatprep.mubr.bf16.mxu0 %v1779
      %1845 = vmatmul.mubr.bf16.gmra.mrb[0].mxu0 %v1778
      %v1846 = vpop.f32.mrb[0].mxu0
      %v1847 = vadd.f32 0.0, %v1846
      %v1848 = vpop.f32.mrb[0].mxu0
      %v1849 = vpop.f32.mrb[0].mxu0
      %v1850 = vadd.f32 0.0, %v1849
      %v1851 = vpop.f32.mrb[0].mxu0
      %1852 = vdwg.mxu0
      %s1853 = scalar_lea.vmem %s5, 6
      %v1854 = vld [vmem:[%s1853] sm:$0x1]
      %v1856 = vlaneseq
      %v1857 = vshrl.u32 %v1856, 7
      %v1858 = vsub.s32 0, %v1857
      %v1859 = vrot.slane %v1854, %v1858
      %v1861 = vmul.f32 %v1823, %v1859
      %v1862 = vmul.f32 %v1826, %v1859
      %v1863 = vmul.f32 %v1831, %v1859
      %v1864 = vmul.f32 %v1834, %v1859
      %v1865 = vmul.f32 %v1839, %v1859
      %v1866 = vmul.f32 %v1842, %v1859
      %v1867 = vmul.f32 %v1847, %v1859
      %v1868 = vmul.f32 %v1850, %v1859
      %v1869 = vadd.f32 %v1731, %v1861
      %v1870 = vadd.f32 %v1732, %v1862
      %v1871 = vadd.f32 %v1733, %v1863
      %v1872 = vadd.f32 %v1734, %v1864
      %v1873 = vadd.f32 %v1735, %v1865
      %v1874 = vadd.f32 %v1736, %v1866
      %v1875 = vadd.f32 %v1737, %v1867
      %v1876 = vadd.f32 %v1738, %v1868
      %s1877 = scalar_lea.vmem %s1, 448
      %v1878 = vld [vmem:[%s1877] sm:$0xff]
      %v1879 = vld [vmem:[%s1877 + $0x8] sm:$0xff]
      %v1880 = vld [vmem:[%s1877 + $0x10] sm:$0xff]
      %v1881 = vld [vmem:[%s1877 + $0x18] sm:$0xff]
      %v1882 = vld [vmem:[%s1877 + $0x20] sm:$0xff]
      %v1883 = vld [vmem:[%s1877 + $0x28] sm:$0xff]
      %v1884 = vld [vmem:[%s1877 + $0x30] sm:$0xff]
      %v1885 = vld [vmem:[%s1877 + $0x38] sm:$0xff]
      %v1894 = vunpack.c.l.b16 %v1878
      %v1895 = vunpack.c.h.b16 %v1878
      %v1896 = vunpack.c.l.b16 %v1879
      %v1897 = vunpack.c.h.b16 %v1879
      %v1898 = vunpack.c.l.b16 %v1880
      %v1899 = vunpack.c.h.b16 %v1880
      %v1900 = vunpack.c.l.b16 %v1881
      %v1901 = vunpack.c.h.b16 %v1881
      %v1902 = vunpack.c.l.b16 %v1882
      %v1903 = vunpack.c.h.b16 %v1882
      %v1904 = vunpack.c.l.b16 %v1883
      %v1905 = vunpack.c.h.b16 %v1883
      %v1906 = vunpack.c.l.b16 %v1884
      %v1907 = vunpack.c.h.b16 %v1884
      %v1908 = vunpack.c.l.b16 %v1885
      %v1909 = vunpack.c.h.b16 %v1885
      %v1910 = vpack.c.b16 %v1896, %v1894
      %v1911 = vpack.c.b16 %v1897, %v1895
      %v1912 = vpack.c.b16 %v1900, %v1898
      %v1913 = vpack.c.b16 %v1901, %v1899
      %v1914 = vpack.c.b16 %v1904, %v1902
      %v1915 = vpack.c.b16 %v1905, %v1903
      %v1916 = vpack.c.b16 %v1908, %v1906
      %v1917 = vpack.c.b16 %v1909, %v1907
      %1926 = vmatprep.subr.bf16.mxu0 0
      %1927 = vmatpush1.bf16.msra.mxu0 %v905
      %1928 = vmatprep.subr.bf16.mxu0 0
      %1929 = vmatpush1.bf16.msra.mxu0 %v906
      %1930 = vmatprep.subr.bf16.mxu0 0
      %1931 = vmatpush1.bf16.msra.mxu0 %v907
      %1932 = vmatprep.subr.bf16.mxu0 0
      %1933 = vmatpush1.bf16.msra.mxu0 %v908
      %1934 = vmatprep.subr.bf16.mxu0 0
      %1935 = vmatpush1.bf16.msra.mxu0 %v909
      %1936 = vmatprep.subr.bf16.mxu0 0
      %1937 = vmatpush1.bf16.msra.mxu0 %v910
      %1938 = vmatprep.subr.bf16.mxu0 0
      %1939 = vmatpush1.bf16.msra.mxu0 %v911
      %1940 = vmatprep.subr.bf16.mxu0 0
      %1941 = vmatpush1.bf16.msra.mxu0 %v912
      %1942 = vmatprep.subr.bf16.mxu0 0
      %1943 = vmatpush1.bf16.msra.mxu0 %v913
      %1944 = vmatprep.subr.bf16.mxu0 0
      %1945 = vmatpush1.bf16.msra.mxu0 %v914
      %1946 = vmatprep.subr.bf16.mxu0 0
      %1947 = vmatpush1.bf16.msra.mxu0 %v915
      %1948 = vmatprep.subr.bf16.mxu0 0
      %1949 = vmatpush1.bf16.msra.mxu0 %v916
      %1950 = vmatprep.subr.bf16.mxu0 0
      %1951 = vmatpush1.bf16.msra.mxu0 %v917
      %1952 = vmatprep.subr.bf16.mxu0 0
      %1953 = vmatpush1.bf16.msra.mxu0 %v918
      %1954 = vmatprep.subr.bf16.mxu0 0
      %1955 = vmatpush1.bf16.msra.mxu0 %v919
      %1956 = vmatprep.subr.bf16.mxu0 0
      %1957 = vmatpush1.bf16.msra.mxu0 %v920
      %1958 = vmatprep.mubr.bf16.mxu0 %v1911
      %1959 = vmatmul.mubr.bf16.gmra.mrb[0].mxu0 %v1910
      %v1960 = vpop.f32.mrb[0].mxu0
      %v1961 = vadd.f32 0.0, %v1960
      %v1962 = vpop.f32.mrb[0].mxu0
      %v1963 = vpop.f32.mrb[0].mxu0
      %v1964 = vadd.f32 0.0, %v1963
      %v1965 = vpop.f32.mrb[0].mxu0
      %1966 = vmatprep.mubr.bf16.mxu0 %v1913
      %1967 = vmatmul.mubr.bf16.gmra.mrb[0].mxu0 %v1912
      %v1968 = vpop.f32.mrb[0].mxu0
      %v1969 = vadd.f32 0.0, %v1968
      %v1970 = vpop.f32.mrb[0].mxu0
      %v1971 = vpop.f32.mrb[0].mxu0
      %v1972 = vadd.f32 0.0, %v1971
      %v1973 = vpop.f32.mrb[0].mxu0
      %1974 = vmatprep.mubr.bf16.mxu0 %v1915
      %1975 = vmatmul.mubr.bf16.gmra.mrb[0].mxu0 %v1914
      %v1976 = vpop.f32.mrb[0].mxu0
      %v1977 = vadd.f32 0.0, %v1976
      %v1978 = vpop.f32.mrb[0].mxu0
      %v1979 = vpop.f32.mrb[0].mxu0
      %v1980 = vadd.f32 0.0, %v1979
      %v1981 = vpop.f32.mrb[0].mxu0
      %1982 = vmatprep.mubr.bf16.mxu0 %v1917
      %1983 = vmatmul.mubr.bf16.gmra.mrb[0].mxu0 %v1916
      %v1984 = vpop.f32.mrb[0].mxu0
      %v1985 = vadd.f32 0.0, %v1984
      %v1986 = vpop.f32.mrb[0].mxu0
      %v1987 = vpop.f32.mrb[0].mxu0
      %v1988 = vadd.f32 0.0, %v1987
      %v1989 = vpop.f32.mrb[0].mxu0
      %1990 = vdwg.mxu0
      %s1991 = scalar_lea.vmem %s5, 7
      %v1992 = vld [vmem:[%s1991] sm:$0x1]
      %v1994 = vlaneseq
      %v1995 = vshrl.u32 %v1994, 7
      %v1996 = vsub.s32 0, %v1995
      %v1997 = vrot.slane %v1992, %v1996
      %v1999 = vmul.f32 %v1961, %v1997
      %v2000 = vmul.f32 %v1964, %v1997
      %v2001 = vmul.f32 %v1969, %v1997
      %v2002 = vmul.f32 %v1972, %v1997
      %v2003 = vmul.f32 %v1977, %v1997
      %v2004 = vmul.f32 %v1980, %v1997
      %v2005 = vmul.f32 %v1985, %v1997
      %v2006 = vmul.f32 %v1988, %v1997
      %v2007 = vadd.f32 %v1869, %v1999
      %v2008 = vadd.f32 %v1870, %v2000
      %v2009 = vadd.f32 %v1871, %v2001
      %v2010 = vadd.f32 %v1872, %v2002
      %v2011 = vadd.f32 %v1873, %v2003
      %v2012 = vadd.f32 %v1874, %v2004
      %v2013 = vadd.f32 %v1875, %v2005
      %v2014 = vadd.f32 %v1876, %v2006
      %s2015 = scalar_lea.vmem %s1, 512
      %v2016 = vld [vmem:[%s2015] sm:$0xff]
      %v2017 = vld [vmem:[%s2015 + $0x8] sm:$0xff]
      %v2018 = vld [vmem:[%s2015 + $0x10] sm:$0xff]
      %v2019 = vld [vmem:[%s2015 + $0x18] sm:$0xff]
      %v2020 = vld [vmem:[%s2015 + $0x20] sm:$0xff]
      %v2021 = vld [vmem:[%s2015 + $0x28] sm:$0xff]
      %v2022 = vld [vmem:[%s2015 + $0x30] sm:$0xff]
      %v2023 = vld [vmem:[%s2015 + $0x38] sm:$0xff]
      %v2032 = vunpack.c.l.b16 %v2016
      %v2033 = vunpack.c.h.b16 %v2016
      %v2034 = vunpack.c.l.b16 %v2017
      %v2035 = vunpack.c.h.b16 %v2017
      %v2036 = vunpack.c.l.b16 %v2018
      %v2037 = vunpack.c.h.b16 %v2018
      %v2038 = vunpack.c.l.b16 %v2019
      %v2039 = vunpack.c.h.b16 %v2019
      %v2040 = vunpack.c.l.b16 %v2020
      %v2041 = vunpack.c.h.b16 %v2020
      %v2042 = vunpack.c.l.b16 %v2021
      %v2043 = vunpack.c.h.b16 %v2021
      %v2044 = vunpack.c.l.b16 %v2022
      %v2045 = vunpack.c.h.b16 %v2022
      %v2046 = vunpack.c.l.b16 %v2023
      %v2047 = vunpack.c.h.b16 %v2023
      %v2048 = vpack.c.b16 %v2034, %v2032
      %v2049 = vpack.c.b16 %v2035, %v2033
      %v2050 = vpack.c.b16 %v2038, %v2036
      %v2051 = vpack.c.b16 %v2039, %v2037
      %v2052 = vpack.c.b16 %v2042, %v2040
      %v2053 = vpack.c.b16 %v2043, %v2041
      %v2054 = vpack.c.b16 %v2046, %v2044
      %v2055 = vpack.c.b16 %v2047, %v2045
      %2064 = vmatprep.subr.bf16.mxu0 0
      %2065 = vmatpush1.bf16.msra.mxu0 %v905
      %2066 = vmatprep.subr.bf16.mxu0 0
      %2067 = vmatpush1.bf16.msra.mxu0 %v906
      %2068 = vmatprep.subr.bf16.mxu0 0
      %2069 = vmatpush1.bf16.msra.mxu0 %v907
      %2070 = vmatprep.subr.bf16.mxu0 0
      %2071 = vmatpush1.bf16.msra.mxu0 %v908
      %2072 = vmatprep.subr.bf16.mxu0 0
      %2073 = vmatpush1.bf16.msra.mxu0 %v909
      %2074 = vmatprep.subr.bf16.mxu0 0
      %2075 = vmatpush1.bf16.msra.mxu0 %v910
      %2076 = vmatprep.subr.bf16.mxu0 0
      %2077 = vmatpush1.bf16.msra.mxu0 %v911
      %2078 = vmatprep.subr.bf16.mxu0 0
      %2079 = vmatpush1.bf16.msra.mxu0 %v912
      %2080 = vmatprep.subr.bf16.mxu0 0
      %2081 = vmatpush1.bf16.msra.mxu0 %v913
      %2082 = vmatprep.subr.bf16.mxu0 0
      %2083 = vmatpush1.bf16.msra.mxu0 %v914
      %2084 = vmatprep.subr.bf16.mxu0 0
      %2085 = vmatpush1.bf16.msra.mxu0 %v915
      %2086 = vmatprep.subr.bf16.mxu0 0
      %2087 = vmatpush1.bf16.msra.mxu0 %v916
      %2088 = vmatprep.subr.bf16.mxu0 0
      %2089 = vmatpush1.bf16.msra.mxu0 %v917
      %2090 = vmatprep.subr.bf16.mxu0 0
      %2091 = vmatpush1.bf16.msra.mxu0 %v918
      %2092 = vmatprep.subr.bf16.mxu0 0
      %2093 = vmatpush1.bf16.msra.mxu0 %v919
      %2094 = vmatprep.subr.bf16.mxu0 0
      %2095 = vmatpush1.bf16.msra.mxu0 %v920
      %2096 = vmatprep.mubr.bf16.mxu0 %v2049
      %2097 = vmatmul.mubr.bf16.gmra.mrb[0].mxu0 %v2048
      %v2098 = vpop.f32.mrb[0].mxu0
      %v2099 = vadd.f32 0.0, %v2098
      %v2100 = vpop.f32.mrb[0].mxu0
      %v2101 = vpop.f32.mrb[0].mxu0
      %v2102 = vadd.f32 0.0, %v2101
      %v2103 = vpop.f32.mrb[0].mxu0
      %2104 = vmatprep.mubr.bf16.mxu0 %v2051
      %2105 = vmatmul.mubr.bf16.gmra.mrb[0].mxu0 %v2050
      %v2106 = vpop.f32.mrb[0].mxu0
      %v2107 = vadd.f32 0.0, %v2106
      %v2108 = vpop.f32.mrb[0].mxu0
      %v2109 = vpop.f32.mrb[0].mxu0
      %v2110 = vadd.f32 0.0, %v2109
      %v2111 = vpop.f32.mrb[0].mxu0
      %2112 = vmatprep.mubr.bf16.mxu0 %v2053
      %2113 = vmatmul.mubr.bf16.gmra.mrb[0].mxu0 %v2052
      %v2114 = vpop.f32.mrb[0].mxu0
      %v2115 = vadd.f32 0.0, %v2114
      %v2116 = vpop.f32.mrb[0].mxu0
      %v2117 = vpop.f32.mrb[0].mxu0
      %v2118 = vadd.f32 0.0, %v2117
      %v2119 = vpop.f32.mrb[0].mxu0
      %2120 = vmatprep.mubr.bf16.mxu0 %v2055
      %2121 = vmatmul.mubr.bf16.gmra.mrb[0].mxu0 %v2054
      %v2122 = vpop.f32.mrb[0].mxu0
      %v2123 = vadd.f32 0.0, %v2122
      %v2124 = vpop.f32.mrb[0].mxu0
      %v2125 = vpop.f32.mrb[0].mxu0
      %v2126 = vadd.f32 0.0, %v2125
      %v2127 = vpop.f32.mrb[0].mxu0
      %2128 = vdwg.mxu0
      %s2129 = scalar_lea.vmem %s5, 8
      %v2130 = vld [vmem:[%s2129] sm:$0x1]
      %v2132 = vlaneseq
      %v2133 = vshrl.u32 %v2132, 7
      %v2134 = vsub.s32 0, %v2133
      %v2135 = vrot.slane %v2130, %v2134
      %v2137 = vmul.f32 %v2099, %v2135
      %v2138 = vmul.f32 %v2102, %v2135
      %v2139 = vmul.f32 %v2107, %v2135
      %v2140 = vmul.f32 %v2110, %v2135
      %v2141 = vmul.f32 %v2115, %v2135
      %v2142 = vmul.f32 %v2118, %v2135
      %v2143 = vmul.f32 %v2123, %v2135
      %v2144 = vmul.f32 %v2126, %v2135
      %v2145 = vadd.f32 %v2007, %v2137
      %v2146 = vadd.f32 %v2008, %v2138
      %v2147 = vadd.f32 %v2009, %v2139
      %v2148 = vadd.f32 %v2010, %v2140
      %v2149 = vadd.f32 %v2011, %v2141
      %v2150 = vadd.f32 %v2012, %v2142
      %v2151 = vadd.f32 %v2013, %v2143
      %v2152 = vadd.f32 %v2014, %v2144
      %v2153 = vld [vmem:[%s6] sm:$0x1]
      %v2155 = vlaneseq
      %v2156 = vshrl.u32 %v2155, 7
      %v2157 = vsub.s32 0, %v2156
      %v2158 = vrot.slane %v2153, %v2157
      %v2160 = vmul.f32 %v2145, %v2158
      %v2161 = vmul.f32 %v2146, %v2158
      %v2162 = vmul.f32 %v2147, %v2158
      %v2163 = vmul.f32 %v2148, %v2158
      %v2164 = vmul.f32 %v2149, %v2158
      %v2165 = vmul.f32 %v2150, %v2158
      %v2166 = vmul.f32 %v2151, %v2158
      %v2167 = vmul.f32 %v2152, %v2158
      %v2168 = vld [vmem:[%s7] sm:$0x1]
      %v2170 = vlaneseq
      %v2171 = vshrl.u32 %v2170, 7
      %v2172 = vsub.s32 0, %v2171
      %v2173 = vrot.slane %v2168, %v2172
      %v2175 = vadd.f32 %v2160, %v2173
      %v2176 = vadd.f32 %v2161, %v2173
      %v2177 = vadd.f32 %v2162, %v2173
      %v2178 = vadd.f32 %v2163, %v2173
      %v2179 = vadd.f32 %v2164, %v2173
      %v2180 = vadd.f32 %v2165, %v2173
      %v2181 = vadd.f32 %v2166, %v2173
      %v2182 = vadd.f32 %v2167, %v2173
      %v2183 = vmax.f32 %v2175, 0.0
      %v2184 = vmax.f32 %v2176, 0.0
      %v2185 = vmax.f32 %v2177, 0.0
      %v2186 = vmax.f32 %v2178, 0.0
      %v2187 = vmax.f32 %v2179, 0.0
      %v2188 = vmax.f32 %v2180, 0.0
      %v2189 = vmax.f32 %v2181, 0.0
      %v2190 = vmax.f32 %v2182, 0.0
      %v2191 = vpack.c.bf16 %v2184, %v2183
      %v2192 = vpack.c.bf16 %v2186, %v2185
      %v2193 = vpack.c.bf16 %v2188, %v2187
      %v2194 = vpack.c.bf16 %v2190, %v2189
      %v2195 = vld [vmem:[%s8] sm:$0xf]
      %v2196 = vld [vmem:[%s8 + $0x4] sm:$0xf]
      %v2197 = vld [vmem:[%s8 + $0x8] sm:$0xf]
      %v2198 = vld [vmem:[%s8 + $0xc] sm:$0xf]
      %v2199 = vld [vmem:[%s8 + $0x10] sm:$0xf]
      %v2200 = vld [vmem:[%s8 + $0x14] sm:$0xf]
      %v2201 = vld [vmem:[%s8 + $0x18] sm:$0xf]
      %v2202 = vld [vmem:[%s8 + $0x1c] sm:$0xf]
      %v2203 = vld [vmem:[%s8 + $0x20] sm:$0xf]
      %v2204 = vld [vmem:[%s8 + $0x24] sm:$0xf]
      %v2205 = vld [vmem:[%s8 + $0x28] sm:$0xf]
      %v2206 = vld [vmem:[%s8 + $0x2c] sm:$0xf]
      %v2207 = vld [vmem:[%s8 + $0x30] sm:$0xf]
      %v2208 = vld [vmem:[%s8 + $0x34] sm:$0xf]
      %v2209 = vld [vmem:[%s8 + $0x38] sm:$0xf]
      %v2210 = vld [vmem:[%s8 + $0x3c] sm:$0xf]
      %v2227 = vunpack.c.l.b16 %v2195
      %v2228 = vunpack.c.l.b16 %v2196
      %v2229 = vunpack.c.l.b16 %v2197
      %v2230 = vunpack.c.l.b16 %v2198
      %v2231 = vunpack.c.l.b16 %v2199
      %v2232 = vunpack.c.l.b16 %v2200
      %v2233 = vunpack.c.l.b16 %v2201
      %v2234 = vunpack.c.l.b16 %v2202
      %v2235 = vunpack.c.l.b16 %v2203
      %v2236 = vunpack.c.l.b16 %v2204
      %v2237 = vunpack.c.l.b16 %v2205
      %v2238 = vunpack.c.l.b16 %v2206
      %v2239 = vunpack.c.l.b16 %v2207
      %v2240 = vunpack.c.l.b16 %v2208
      %v2241 = vunpack.c.l.b16 %v2209
      %v2242 = vunpack.c.l.b16 %v2210
      %v2243 = vpack.c.b16 %v2228, %v2227
      %v2244 = vpack.c.b16 %v2230, %v2229
      %v2245 = vpack.c.b16 %v2232, %v2231
      %v2246 = vpack.c.b16 %v2234, %v2233
      %v2247 = vpack.c.b16 %v2236, %v2235
      %v2248 = vpack.c.b16 %v2238, %v2237
      %v2249 = vpack.c.b16 %v2240, %v2239
      %v2250 = vpack.c.b16 %v2242, %v2241
      %2259 = vmatprep.subr.bf16.mxu0 0
      %2260 = vmatpush1.bf16.msra.mxu0 %v2243
      %2261 = vmatprep.subr.bf16.mxu0 0
      %2262 = vmatpush1.bf16.msra.mxu0 %v2244
      %2263 = vmatprep.subr.bf16.mxu0 0
      %2264 = vmatpush1.bf16.msra.mxu0 %v2245
      %2265 = vmatprep.subr.bf16.mxu0 0
      %2266 = vmatpush1.bf16.msra.mxu0 %v2246
      %2267 = vmatprep.subr.bf16.mxu0 0
      %2268 = vmatpush1.bf16.msra.mxu0 %v2247
      %2269 = vmatprep.subr.bf16.mxu0 0
      %2270 = vmatpush1.bf16.msra.mxu0 %v2248
      %2271 = vmatprep.subr.bf16.mxu0 0
      %2272 = vmatpush1.bf16.msra.mxu0 %v2249
      %2273 = vmatprep.subr.bf16.mxu0 0
      %2274 = vmatpush1.bf16.msra.mxu0 %v2250
      %2275 = vmatprep.subr.bf16.mxu0 0
      %2276 = vmatpush1.bf16.msra.mxu0 0
      %2277 = vmatprep.subr.bf16.mxu0 0
      %2278 = vmatpush1.bf16.msra.mxu0 0
      %2279 = vmatprep.subr.bf16.mxu0 0
      %2280 = vmatpush1.bf16.msra.mxu0 0
      %2281 = vmatprep.subr.bf16.mxu0 0
      %2282 = vmatpush1.bf16.msra.mxu0 0
      %2283 = vmatprep.subr.bf16.mxu0 0
      %2284 = vmatpush1.bf16.msra.mxu0 0
      %2285 = vmatprep.subr.bf16.mxu0 0
      %2286 = vmatpush1.bf16.msra.mxu0 0
      %2287 = vmatprep.subr.bf16.mxu0 0
      %2288 = vmatpush1.bf16.msra.mxu0 0
      %2289 = vmatprep.subr.bf16.mxu0 0
      %2290 = vmatpush1.bf16.msra.mxu0 0
      %2291 = vmatprep.mubr.bf16.mxu0 0
      %2292 = vmatmul.mubr.bf16.gmra.mrb[0].mxu0 %v2191
      %v2293 = vpop.f32.mrb[0].mxu0
      %v2294 = vadd.f32 0.0, %v2293
      %v2295 = vpop.f32.mrb[0].mxu0
      %v2296 = vpop.f32.mrb[0].mxu0
      %v2297 = vadd.f32 0.0, %v2296
      %v2298 = vpop.f32.mrb[0].mxu0
      %2299 = vmatprep.mubr.bf16.mxu0 0
      %2300 = vmatmul.mubr.bf16.gmra.mrb[0].mxu0 %v2192
      %v2301 = vpop.f32.mrb[0].mxu0
      %v2302 = vadd.f32 0.0, %v2301
      %v2303 = vpop.f32.mrb[0].mxu0
      %v2304 = vpop.f32.mrb[0].mxu0
      %v2305 = vadd.f32 0.0, %v2304
      %v2306 = vpop.f32.mrb[0].mxu0
      %2307 = vmatprep.mubr.bf16.mxu0 0
      %2308 = vmatmul.mubr.bf16.gmra.mrb[0].mxu0 %v2193
      %v2309 = vpop.f32.mrb[0].mxu0
      %v2310 = vadd.f32 0.0, %v2309
      %v2311 = vpop.f32.mrb[0].mxu0
      %v2312 = vpop.f32.mrb[0].mxu0
      %v2313 = vadd.f32 0.0, %v2312
      %v2314 = vpop.f32.mrb[0].mxu0
      %2315 = vmatprep.mubr.bf16.mxu0 0
      %2316 = vmatmul.mubr.bf16.gmra.mrb[0].mxu0 %v2194
      %v2317 = vpop.f32.mrb[0].mxu0
      %v2318 = vadd.f32 0.0, %v2317
      %v2319 = vpop.f32.mrb[0].mxu0
      %v2320 = vpop.f32.mrb[0].mxu0
      %v2321 = vadd.f32 0.0, %v2320
      %v2322 = vpop.f32.mrb[0].mxu0
      %2323 = vdwg.mxu0
      %v2324 = vld [vmem:[%s9] sm:$0x1]
      %v2326 = vlaneseq
      %v2327 = vshrl.u32 %v2326, 7
      %v2328 = vsub.s32 0, %v2327
      %v2329 = vrot.slane %v2324, %v2328
      %v2331 = vmul.f32 %v2294, %v2329
      %v2332 = vmul.f32 %v2297, %v2329
      %v2333 = vmul.f32 %v2302, %v2329
      %v2334 = vmul.f32 %v2305, %v2329
      %v2335 = vmul.f32 %v2310, %v2329
      %v2336 = vmul.f32 %v2313, %v2329
      %v2337 = vmul.f32 %v2318, %v2329
      %v2338 = vmul.f32 %v2321, %v2329
      %v2339 = vld [vmem:[%s10] sm:$0x1]
      %v2341 = vlaneseq
      %v2342 = vshrl.u32 %v2341, 7
      %v2343 = vsub.s32 0, %v2342
      %v2344 = vrot.slane %v2339, %v2343
      %v2346 = vadd.f32 %v2331, %v2344
      %v2347 = vadd.f32 %v2332, %v2344
      %v2348 = vadd.f32 %v2333, %v2344
      %v2349 = vadd.f32 %v2334, %v2344
      %v2350 = vadd.f32 %v2335, %v2344
      %v2351 = vadd.f32 %v2336, %v2344
      %v2352 = vadd.f32 %v2337, %v2344
      %v2353 = vadd.f32 %v2338, %v2344
      %v2354 = vld [vmem:[%s11] sm:$0xff]
      %v2355 = vld [vmem:[%s11 + $0x8] sm:$0xff]
      %v2356 = vld [vmem:[%s11 + $0x10] sm:$0xff]
      %v2357 = vld [vmem:[%s11 + $0x18] sm:$0xff]
      %v2358 = vld [vmem:[%s11 + $0x20] sm:$0xff]
      %v2359 = vld [vmem:[%s11 + $0x28] sm:$0xff]
      %v2360 = vld [vmem:[%s11 + $0x30] sm:$0xff]
      %v2361 = vld [vmem:[%s11 + $0x38] sm:$0xff]
      %v2370 = vunpack.c.l.b16 %v2354
      %v2371 = vunpack.c.h.b16 %v2354
      %v2372 = vunpack.c.l.b16 %v2355
      %v2373 = vunpack.c.h.b16 %v2355
      %v2374 = vunpack.c.l.b16 %v2356
      %v2375 = vunpack.c.h.b16 %v2356
      %v2376 = vunpack.c.l.b16 %v2357
      %v2377 = vunpack.c.h.b16 %v2357
      %v2378 = vunpack.c.l.b16 %v2358
      %v2379 = vunpack.c.h.b16 %v2358
      %v2380 = vunpack.c.l.b16 %v2359
      %v2381 = vunpack.c.h.b16 %v2359
      %v2382 = vunpack.c.l.b16 %v2360
      %v2383 = vunpack.c.h.b16 %v2360
      %v2384 = vunpack.c.l.b16 %v2361
      %v2385 = vunpack.c.h.b16 %v2361
      %v2386 = vpack.c.b16 %v2372, %v2370
      %v2387 = vpack.c.b16 %v2373, %v2371
      %v2388 = vpack.c.b16 %v2376, %v2374
      %v2389 = vpack.c.b16 %v2377, %v2375
      %v2390 = vpack.c.b16 %v2380, %v2378
      %v2391 = vpack.c.b16 %v2381, %v2379
      %v2392 = vpack.c.b16 %v2384, %v2382
      %v2393 = vpack.c.b16 %v2385, %v2383
      %2402 = vmatprep.subr.bf16.mxu0 0
      %2403 = vmatpush1.bf16.msra.mxu0 %v554
      %2404 = vmatprep.subr.bf16.mxu0 0
      %2405 = vmatpush1.bf16.msra.mxu0 %v555
      %2406 = vmatprep.subr.bf16.mxu0 0
      %2407 = vmatpush1.bf16.msra.mxu0 %v556
      %2408 = vmatprep.subr.bf16.mxu0 0
      %2409 = vmatpush1.bf16.msra.mxu0 %v557
      %2410 = vmatprep.subr.bf16.mxu0 0
      %2411 = vmatpush1.bf16.msra.mxu0 %v558
      %2412 = vmatprep.subr.bf16.mxu0 0
      %2413 = vmatpush1.bf16.msra.mxu0 %v559
      %2414 = vmatprep.subr.bf16.mxu0 0
      %2415 = vmatpush1.bf16.msra.mxu0 %v560
      %2416 = vmatprep.subr.bf16.mxu0 0
      %2417 = vmatpush1.bf16.msra.mxu0 %v561
      %2418 = vmatprep.subr.bf16.mxu0 0
      %2419 = vmatpush1.bf16.msra.mxu0 %v562
      %2420 = vmatprep.subr.bf16.mxu0 0
      %2421 = vmatpush1.bf16.msra.mxu0 %v563
      %2422 = vmatprep.subr.bf16.mxu0 0
      %2423 = vmatpush1.bf16.msra.mxu0 %v564
      %2424 = vmatprep.subr.bf16.mxu0 0
      %2425 = vmatpush1.bf16.msra.mxu0 %v565
      %2426 = vmatprep.subr.bf16.mxu0 0
      %2427 = vmatpush1.bf16.msra.mxu0 %v566
      %2428 = vmatprep.subr.bf16.mxu0 0
      %2429 = vmatpush1.bf16.msra.mxu0 %v567
      %2430 = vmatprep.subr.bf16.mxu0 0
      %2431 = vmatpush1.bf16.msra.mxu0 %v568
      %2432 = vmatprep.subr.bf16.mxu0 0
      %2433 = vmatpush1.bf16.msra.mxu0 %v569
      %2434 = vmatprep.mubr.bf16.mxu0 %v2387
      %2435 = vmatmul.mubr.bf16.gmra.mrb[0].mxu0 %v2386
      %v2436 = vpop.f32.mrb[0].mxu0
      %v2437 = vadd.f32 0.0, %v2436
      %v2438 = vpop.f32.mrb[0].mxu0
      %v2439 = vpop.f32.mrb[0].mxu0
      %v2440 = vadd.f32 0.0, %v2439
      %v2441 = vpop.f32.mrb[0].mxu0
      %2442 = vmatprep.mubr.bf16.mxu0 %v2389
      %2443 = vmatmul.mubr.bf16.gmra.mrb[0].mxu0 %v2388
      %v2444 = vpop.f32.mrb[0].mxu0
      %v2445 = vadd.f32 0.0, %v2444
      %v2446 = vpop.f32.mrb[0].mxu0
      %v2447 = vpop.f32.mrb[0].mxu0
      %v2448 = vadd.f32 0.0, %v2447
      %v2449 = vpop.f32.mrb[0].mxu0
      %2450 = vmatprep.mubr.bf16.mxu0 %v2391
      %2451 = vmatmul.mubr.bf16.gmra.mrb[0].mxu0 %v2390
      %v2452 = vpop.f32.mrb[0].mxu0
      %v2453 = vadd.f32 0.0, %v2452
      %v2454 = vpop.f32.mrb[0].mxu0
      %v2455 = vpop.f32.mrb[0].mxu0
      %v2456 = vadd.f32 0.0, %v2455
      %v2457 = vpop.f32.mrb[0].mxu0
      %2458 = vmatprep.mubr.bf16.mxu0 %v2393
      %2459 = vmatmul.mubr.bf16.gmra.mrb[0].mxu0 %v2392
      %v2460 = vpop.f32.mrb[0].mxu0
      %v2461 = vadd.f32 0.0, %v2460
      %v2462 = vpop.f32.mrb[0].mxu0
      %v2463 = vpop.f32.mrb[0].mxu0
      %v2464 = vadd.f32 0.0, %v2463
      %v2465 = vpop.f32.mrb[0].mxu0
      %2466 = vdwg.mxu0
      %v2467 = vmul.f32 %v2437, 0.11111111
      %v2468 = vmul.f32 %v2440, 0.11111111
      %v2469 = vmul.f32 %v2445, 0.11111111
      %v2470 = vmul.f32 %v2448, 0.11111111
      %v2471 = vmul.f32 %v2453, 0.11111111
      %v2472 = vmul.f32 %v2456, 0.11111111
      %v2473 = vmul.f32 %v2461, 0.11111111
      %v2474 = vmul.f32 %v2464, 0.11111111
      %v2475 = vpack.c.bf16 %v2468, %v2467
      %v2476 = vpack.c.bf16 %v2470, %v2469
      %v2477 = vpack.c.bf16 %v2472, %v2471
      %v2478 = vpack.c.bf16 %v2474, %v2473
      %v2479 = vld [vmem:[%s12] sm:$0xf]
      %v2480 = vld [vmem:[%s12 + $0x4] sm:$0xf]
      %v2481 = vld [vmem:[%s12 + $0x8] sm:$0xf]
      %v2482 = vld [vmem:[%s12 + $0xc] sm:$0xf]
      %v2483 = vld [vmem:[%s12 + $0x10] sm:$0xf]
      %v2484 = vld [vmem:[%s12 + $0x14] sm:$0xf]
      %v2485 = vld [vmem:[%s12 + $0x18] sm:$0xf]
      %v2486 = vld [vmem:[%s12 + $0x1c] sm:$0xf]
      %v2487 = vld [vmem:[%s12 + $0x20] sm:$0xf]
      %v2488 = vld [vmem:[%s12 + $0x24] sm:$0xf]
      %v2489 = vld [vmem:[%s12 + $0x28] sm:$0xf]
      %v2490 = vld [vmem:[%s12 + $0x2c] sm:$0xf]
      %v2491 = vld [vmem:[%s12 + $0x30] sm:$0xf]
      %v2492 = vld [vmem:[%s12 + $0x34] sm:$0xf]
      %v2493 = vld [vmem:[%s12 + $0x38] sm:$0xf]
      %v2494 = vld [vmem:[%s12 + $0x3c] sm:$0xf]
      %v2511 = vunpack.c.l.b16 %v2479
      %v2512 = vunpack.c.l.b16 %v2480
      %v2513 = vunpack.c.l.b16 %v2481
      %v2514 = vunpack.c.l.b16 %v2482
      %v2515 = vunpack.c.l.b16 %v2483
      %v2516 = vunpack.c.l.b16 %v2484
      %v2517 = vunpack.c.l.b16 %v2485
      %v2518 = vunpack.c.l.b16 %v2486
      %v2519 = vunpack.c.l.b16 %v2487
      %v2520 = vunpack.c.l.b16 %v2488
      %v2521 = vunpack.c.l.b16 %v2489
      %v2522 = vunpack.c.l.b16 %v2490
      %v2523 = vunpack.c.l.b16 %v2491
      %v2524 = vunpack.c.l.b16 %v2492
      %v2525 = vunpack.c.l.b16 %v2493
      %v2526 = vunpack.c.l.b16 %v2494
      %v2527 = vpack.c.b16 %v2512, %v2511
      %v2528 = vpack.c.b16 %v2514, %v2513
      %v2529 = vpack.c.b16 %v2516, %v2515
      %v2530 = vpack.c.b16 %v2518, %v2517
      %v2531 = vpack.c.b16 %v2520, %v2519
      %v2532 = vpack.c.b16 %v2522, %v2521
      %v2533 = vpack.c.b16 %v2524, %v2523
      %v2534 = vpack.c.b16 %v2526, %v2525
      %2543 = vmatprep.subr.bf16.mxu0 0
      %2544 = vmatpush1.bf16.msra.mxu0 %v2527
      %2545 = vmatprep.subr.bf16.mxu0 0
      %2546 = vmatpush1.bf16.msra.mxu0 %v2528
      %2547 = vmatprep.subr.bf16.mxu0 0
      %2548 = vmatpush1.bf16.msra.mxu0 %v2529
      %2549 = vmatprep.subr.bf16.mxu0 0
      %2550 = vmatpush1.bf16.msra.mxu0 %v2530
      %2551 = vmatprep.subr.bf16.mxu0 0
      %2552 = vmatpush1.bf16.msra.mxu0 %v2531
      %2553 = vmatprep.subr.bf16.mxu0 0
      %2554 = vmatpush1.bf16.msra.mxu0 %v2532
      %2555 = vmatprep.subr.bf16.mxu0 0
      %2556 = vmatpush1.bf16.msra.mxu0 %v2533
      %2557 = vmatprep.subr.bf16.mxu0 0
      %2558 = vmatpush1.bf16.msra.mxu0 %v2534
      %2559 = vmatprep.subr.bf16.mxu0 0
      %2560 = vmatpush1.bf16.msra.mxu0 0
      %2561 = vmatprep.subr.bf16.mxu0 0
      %2562 = vmatpush1.bf16.msra.mxu0 0
      %2563 = vmatprep.subr.bf16.mxu0 0
      %2564 = vmatpush1.bf16.msra.mxu0 0
      %2565 = vmatprep.subr.bf16.mxu0 0
      %2566 = vmatpush1.bf16.msra.mxu0 0
      %2567 = vmatprep.subr.bf16.mxu0 0
      %2568 = vmatpush1.bf16.msra.mxu0 0
      %2569 = vmatprep.subr.bf16.mxu0 0
      %2570 = vmatpush1.bf16.msra.mxu0 0
      %2571 = vmatprep.subr.bf16.mxu0 0
      %2572 = vmatpush1.bf16.msra.mxu0 0
      %2573 = vmatprep.subr.bf16.mxu0 0
      %2574 = vmatpush1.bf16.msra.mxu0 0
      %2575 = vmatprep.mubr.bf16.mxu0 0
      %2576 = vmatmul.mubr.bf16.gmra.mrb[0].mxu0 %v2475
      %v2577 = vpop.f32.mrb[0].mxu0
      %v2578 = vadd.f32 0.0, %v2577
      %v2579 = vpop.f32.mrb[0].mxu0
      %v2580 = vpop.f32.mrb[0].mxu0
      %v2581 = vadd.f32 0.0, %v2580
      %v2582 = vpop.f32.mrb[0].mxu0
      %2583 = vmatprep.mubr.bf16.mxu0 0
      %2584 = vmatmul.mubr.bf16.gmra.mrb[0].mxu0 %v2476
      %v2585 = vpop.f32.mrb[0].mxu0
      %v2586 = vadd.f32 0.0, %v2585
      %v2587 = vpop.f32.mrb[0].mxu0
      %v2588 = vpop.f32.mrb[0].mxu0
      %v2589 = vadd.f32 0.0, %v2588
      %v2590 = vpop.f32.mrb[0].mxu0
      %2591 = vmatprep.mubr.bf16.mxu0 0
      %2592 = vmatmul.mubr.bf16.gmra.mrb[0].mxu0 %v2477
      %v2593 = vpop.f32.mrb[0].mxu0
      %v2594 = vadd.f32 0.0, %v2593
      %v2595 = vpop.f32.mrb[0].mxu0
      %v2596 = vpop.f32.mrb[0].mxu0
      %v2597 = vadd.f32 0.0, %v2596
      %v2598 = vpop.f32.mrb[0].mxu0
      %2599 = vmatprep.mubr.bf16.mxu0 0
      %2600 = vmatmul.mubr.bf16.gmra.mrb[0].mxu0 %v2478
      %v2601 = vpop.f32.mrb[0].mxu0
      %v2602 = vadd.f32 0.0, %v2601
      %v2603 = vpop.f32.mrb[0].mxu0
      %v2604 = vpop.f32.mrb[0].mxu0
      %v2605 = vadd.f32 0.0, %v2604
      %v2606 = vpop.f32.mrb[0].mxu0
      %2607 = vdwg.mxu0
      %v2608 = vadd.f32 %v2346, %v2578
      %v2609 = vadd.f32 %v2347, %v2581
      %v2610 = vadd.f32 %v2348, %v2586
      %v2611 = vadd.f32 %v2349, %v2589
      %v2612 = vadd.f32 %v2350, %v2594
      %v2613 = vadd.f32 %v2351, %v2597
      %v2614 = vadd.f32 %v2352, %v2602
      %v2615 = vadd.f32 %v2353, %v2605
      %v2616 = vmax.f32 %v2608, 0.0
      %v2617 = vmax.f32 %v2609, 0.0
      %v2618 = vmax.f32 %v2610, 0.0
      %v2619 = vmax.f32 %v2611, 0.0
      %v2620 = vmax.f32 %v2612, 0.0
      %v2621 = vmax.f32 %v2613, 0.0
      %v2622 = vmax.f32 %v2614, 0.0
      %v2623 = vmax.f32 %v2615, 0.0
      %v2624 = vpack.c.bf16 %v2617, %v2616
      %v2625 = vpack.c.bf16 %v2619, %v2618
      %v2626 = vpack.c.bf16 %v2621, %v2620
      %v2627 = vpack.c.bf16 %v2623, %v2622
      %v2632 = vunpack.c.l.b16 %v2624
      %v2633 = vunpack.c.h.b16 %v2624
      %v2634 = vunpack.c.l.b16 %v2625
      %v2635 = vunpack.c.h.b16 %v2625
      %v2636 = vunpack.c.l.b16 %v2626
      %v2637 = vunpack.c.h.b16 %v2626
      %v2638 = vunpack.c.l.b16 %v2627
      %v2639 = vunpack.c.h.b16 %v2627
      %v2640 = vpack.c.b16 %v2632, %v2632
      %v2641 = vpack.c.b16 %v2633, %v2633
      %v2642 = vpack.c.b16 %v2634, %v2634
      %v2643 = vpack.c.b16 %v2635, %v2635
      %v2644 = vpack.c.b16 %v2636, %v2636
      %v2645 = vpack.c.b16 %v2637, %v2637
      %v2646 = vpack.c.b16 %v2638, %v2638
      %v2647 = vpack.c.b16 %v2639, %v2639
      %2656 = vst [vmem:[%s440] sm:$0xf] %v2640
      %2657 = vst [vmem:[%s440 + $0x4] sm:$0xf] %v2641
      %2658 = vst [vmem:[%s440 + $0x8] sm:$0xf] %v2642
      %2659 = vst [vmem:[%s440 + $0xc] sm:$0xf] %v2643
      %2660 = vst [vmem:[%s440 + $0x10] sm:$0xf] %v2644
      %2661 = vst [vmem:[%s440 + $0x14] sm:$0xf] %v2645
      %2662 = vst [vmem:[%s440 + $0x18] sm:$0xf] %v2646
      %2663 = vst [vmem:[%s440 + $0x1c] sm:$0xf] %v2647
      %p2664 = scmp.lt.s32.totalorder %s24, 1
      %s2665 = scalar_select %p2664, %s24, 1
      %s2666 = smul.addr %s2665, 8
      %s2667 = smul.addr %s2666, 4
      %s2668 = scalar_lea.vmem %s13, %s2667
      // Predicated region
      $region73: #{shufflenet_forward.7} parent=71 // pred_check
        %p2669 = pneg %p320
      $region74: #{shufflenet_forward.7} parent=71 // pred_check_branch
        %2671 = sbr.rel (%p2669) target = $region76
      $region75: #{shufflenet_forward.7} parent=71 // pred_region
        _
      $region76: #{shufflenet_forward.7} parent=71 // pred_fallthru
        _
    $region72: #{shufflenet_forward.7} parent=5 // pred_fallthru
      _
    %p2672 = scmp.le.s32.totalorder 2, %s19
    // Predicated region
    $region77: #{shufflenet_forward.7} parent=5 // pred_check
      %p2673 = pneg %p2672
    $region78: #{shufflenet_forward.7} parent=5 // pred_check_branch
      %2675 = sbr.rel (%p2673) target = $region80
    $region79: #{shufflenet_forward.7} parent=5 // pred_region
      %s2676 = ssub.s32 %s19, 2
      // Predicated region
      $region81: #{shufflenet_forward.7} parent=79 // pred_check
        %p2677 = pneg %p326
      $region82: #{shufflenet_forward.7} parent=79 // pred_check_branch
        %2679 = sbr.rel (%p2677) target = $region84
      $region83: #{shufflenet_forward.7} parent=79 // pred_region
        %p2680 = scmp.lt.s32.totalorder %s25, 1
        %s2681 = scalar_select %p2680, %s25, 1
        %s2682 = smul.addr %s2681, 8
        %s2683 = smul.addr %s2682, 4
        %s2684 = scalar_lea.vmem %s13, %s2683
      $region84: #{shufflenet_forward.7} parent=79 // pred_fallthru
        _
    $region80: #{shufflenet_forward.7} parent=5 // pred_fallthru
      _
  $region6: #{shufflenet_forward.7} parent=0 // loop_footer
    %s23 = sadd.s32 1, %s19
  $region7: #{shufflenet_forward.7} parent=0 // loop_footer_branch
    %18 = sbr.rel target = $region3
  $region8: #{shufflenet_forward.7} parent=0 // loop_exit
    _

// kernel: shufflenet_forward.10
$region0: #{shufflenet_forward.10}
  #allocation0 [shape = 'u32[]', space=smem, size = 0x4, offset = 0x4, fixed_abs, tag = 'smem constant byte address 0x4 - core index']
  #allocation1 [shape = 'u32[144,128]{1,0:T(1,128)}', space=vmem, size = 0x12000, scoped, tag = 'internal scratch']
  %s0 = inlined_call_operand.vmem [shape: bf16[2,16,128], index: 0, kind: input, shape index: {}]
  %s1 = inlined_call_operand.vmem [shape: bf16[9,4,16], index: 1, kind: input, shape index: {}]
  %s2 = inlined_call_operand.vmem [shape: bf16[128,128], index: 2, kind: input, shape index: {}]
  %s3 = inlined_call_operand.vmem [shape: f32[1,128], index: 3, kind: input, shape index: {}]
  %s4 = inlined_call_operand.vmem [shape: f32[1,128], index: 4, kind: input, shape index: {}]
  %s5 = inlined_call_operand.vmem [shape: f32[9,1,128], index: 5, kind: input, shape index: {}]
  %s6 = inlined_call_operand.vmem [shape: f32[1,128], index: 6, kind: input, shape index: {}]
  %s7 = inlined_call_operand.vmem [shape: f32[1,128], index: 7, kind: input, shape index: {}]
  %s8 = inlined_call_operand.vmem [shape: bf16[128,256], index: 8, kind: input, shape index: {}]
  %s9 = inlined_call_operand.vmem [shape: f32[1,256], index: 9, kind: input, shape index: {}]
  %s10 = inlined_call_operand.vmem [shape: f32[1,256], index: 10, kind: input, shape index: {}]
  %s11 = inlined_call_operand.vmem [shape: bf16[4,16], index: 11, kind: input, shape index: {}]
  %s12 = inlined_call_operand.vmem [shape: bf16[128,256], index: 12, kind: input, shape index: {}]
  %s13 = inlined_call_operand.vmem [shape: bf16[2,4,256], index: 13, kind: output, shape index: {}]
  %s14 = sld [smem:[#allocation0]]
  $region85: #{shufflenet_forward.10} parent=0
    _
  %s16 = ssub.s32 1, %s14
  %s17 = scalar_select 0, %s16, %s14
  loop: start=0, step=1, limit=4
  $region2: #{shufflenet_forward.10} parent=0 // loop_pre_header
    _
  $region3: #{shufflenet_forward.10} parent=0 // loop_header
    %s19 = sphi 0, %s23
    %p20 = scmp.ge.s32.totalorder %s19, 4
    %s29 = sphi 0, %s31
    %s32 = sphi 0, %s29
    %s33 = sphi 0, %s32
    %s49 = sphi 0, %s33
    %s53 = sphi 0, %s53
    %s55 = sphi 0, %s53
    %s56 = sphi 0, %s55
    %s70 = sphi 0, %s56
    %s74 = sphi 0, %s74
    %s76 = sphi 0, %s74
    %s77 = sphi 0, %s76
    %s91 = sphi 0, %s77
    %s95 = sphi 0, %s95
    %s97 = sphi 0, %s95
    %s98 = sphi 0, %s97
    %s112 = sphi 0, %s98
    %s116 = sphi 0, %s116
    %s118 = sphi 0, %s116
    %s119 = sphi 0, %s118
    %s133 = sphi 0, %s119
    %s137 = sphi 0, %s137
    %s139 = sphi 0, %s137
    %s140 = sphi 0, %s139
    %s154 = sphi 0, %s140
    %s158 = sphi 0, %s158
    %s160 = sphi 0, %s158
    %s161 = sphi 0, %s160
    %s175 = sphi 0, %s161
    %s179 = sphi 0, %s179
    %s181 = sphi 0, %s179
    %s182 = sphi 0, %s181
    %s196 = sphi 0, %s182
    %s200 = sphi 0, %s200
    %s202 = sphi 0, %s200
    %s203 = sphi 0, %s202
    %s217 = sphi 0, %s203
    %s221 = sphi 0, %s221
    %s223 = sphi 0, %s221
    %s224 = sphi 0, %s223
    %s238 = sphi 0, %s224
    %s242 = sphi 0, %s242
    %s244 = sphi 0, %s242
    %s245 = sphi 0, %s244
    %s259 = sphi 0, %s245
    %s263 = sphi 0, %s263
    %s265 = sphi 0, %s263
    %s266 = sphi 0, %s265
    %s280 = sphi 0, %s266
    %s284 = sphi 0, %s284
    %s286 = sphi 0, %s284
    %s287 = sphi 0, %s286
    %s301 = sphi 0, %s287
    %s307 = sphi 0, %s309
    %s310 = sphi 0, %s307
    %s311 = sphi 0, %s310
    %s327 = sphi 0, %s311
  $region4: #{shufflenet_forward.10} parent=0 // loop_header_branch
    %22 = sbr.rel (%p20) target = $region8
  $region5: #{shufflenet_forward.10} parent=0 // loop_body
    %s24 = ssub.s32 %s19, 1
    %s25 = ssub.s32 %s19, 2
    %s26 = sadd.s32 %s19, 1
    %s27 = ssub.s32 %s19, %s26
    %p28 = scmp.eq.s32.totalorder %s27, 0
    %s30 = sadd.s32 %s29, 1
    %s31 = scalar_select %p28, %s29, %s30
    %p34 = pneg %p28
    %p35 = scmp.eq.s32.totalorder %s19, 1
    %p36 = por %p34, %p35
    %p37 = scmp.ne.s32.totalorder %s29, %s32
    %p38 = scmp.eq.s32.totalorder %s19, 0
    %p39 = por %p37, %p38
    %p40 = scmp.ne.s32.totalorder %s29, %s32
    %p41 = scmp.eq.s32.totalorder %s24, 1
    %p42 = por %p40, %p41
    %p43 = scmp.ne.s32.totalorder %s32, %s33
    %p44 = scmp.eq.s32.totalorder %s24, 0
    %p45 = por %p43, %p44
    %p46 = scmp.ne.s32.totalorder %s32, %s33
    %p47 = scmp.eq.s32.totalorder %s25, 1
    %p48 = por %p46, %p47
    %p50 = scmp.ne.s32.totalorder %s33, %s49
    %p51 = scmp.eq.s32.totalorder %s25, 0
    %p52 = por %p50, %p51
    %s54 = sadd.s32 %s53, 1
    %p57 = scmp.eq.s32.totalorder %s19, 1
    %p58 = scmp.ne.s32.totalorder %s53, %s55
    %p59 = scmp.eq.s32.totalorder %s19, 0
    %p60 = por %p58, %p59
    %p61 = scmp.ne.s32.totalorder %s53, %s55
    %p62 = scmp.eq.s32.totalorder %s24, 1
    %p63 = por %p61, %p62
    %p64 = scmp.ne.s32.totalorder %s55, %s56
    %p65 = scmp.eq.s32.totalorder %s24, 0
    %p66 = por %p64, %p65
    %p67 = scmp.ne.s32.totalorder %s55, %s56
    %p68 = scmp.eq.s32.totalorder %s25, 1
    %p69 = por %p67, %p68
    %p71 = scmp.ne.s32.totalorder %s56, %s70
    %p72 = scmp.eq.s32.totalorder %s25, 0
    %p73 = por %p71, %p72
    %s75 = sadd.s32 %s74, 1
    %p78 = scmp.eq.s32.totalorder %s19, 1
    %p79 = scmp.ne.s32.totalorder %s74, %s76
    %p80 = scmp.eq.s32.totalorder %s19, 0
    %p81 = por %p79, %p80
    %p82 = scmp.ne.s32.totalorder %s74, %s76
    %p83 = scmp.eq.s32.totalorder %s24, 1
    %p84 = por %p82, %p83
    %p85 = scmp.ne.s32.totalorder %s76, %s77
    %p86 = scmp.eq.s32.totalorder %s24, 0
    %p87 = por %p85, %p86
    %p88 = scmp.ne.s32.totalorder %s76, %s77
    %p89 = scmp.eq.s32.totalorder %s25, 1
    %p90 = por %p88, %p89
    %p92 = scmp.ne.s32.totalorder %s77, %s91
    %p93 = scmp.eq.s32.totalorder %s25, 0
    %p94 = por %p92, %p93
    %s96 = sadd.s32 %s95, 1
    %p99 = scmp.eq.s32.totalorder %s19, 1
    %p100 = scmp.ne.s32.totalorder %s95, %s97
    %p101 = scmp.eq.s32.totalorder %s19, 0
    %p102 = por %p100, %p101
    %p103 = scmp.ne.s32.totalorder %s95, %s97
    %p104 = scmp.eq.s32.totalorder %s24, 1
    %p105 = por %p103, %p104
    %p106 = scmp.ne.s32.totalorder %s97, %s98
    %p107 = scmp.eq.s32.totalorder %s24, 0
    %p108 = por %p106, %p107
    %p109 = scmp.ne.s32.totalorder %s97, %s98
    %p110 = scmp.eq.s32.totalorder %s25, 1
    %p111 = por %p109, %p110
    %p113 = scmp.ne.s32.totalorder %s98, %s112
    %p114 = scmp.eq.s32.totalorder %s25, 0
    %p115 = por %p113, %p114
    %s117 = sadd.s32 %s116, 1
    %p120 = scmp.eq.s32.totalorder %s19, 1
    %p121 = scmp.ne.s32.totalorder %s116, %s118
    %p122 = scmp.eq.s32.totalorder %s19, 0
    %p123 = por %p121, %p122
    %p124 = scmp.ne.s32.totalorder %s116, %s118
    %p125 = scmp.eq.s32.totalorder %s24, 1
    %p126 = por %p124, %p125
    %p127 = scmp.ne.s32.totalorder %s118, %s119
    %p128 = scmp.eq.s32.totalorder %s24, 0
    %p129 = por %p127, %p128
    %p130 = scmp.ne.s32.totalorder %s118, %s119
    %p131 = scmp.eq.s32.totalorder %s25, 1
    %p132 = por %p130, %p131
    %p134 = scmp.ne.s32.totalorder %s119, %s133
    %p135 = scmp.eq.s32.totalorder %s25, 0
    %p136 = por %p134, %p135
    %s138 = sadd.s32 %s137, 1
    %p141 = scmp.eq.s32.totalorder %s19, 1
    %p142 = scmp.ne.s32.totalorder %s137, %s139
    %p143 = scmp.eq.s32.totalorder %s19, 0
    %p144 = por %p142, %p143
    %p145 = scmp.ne.s32.totalorder %s137, %s139
    %p146 = scmp.eq.s32.totalorder %s24, 1
    %p147 = por %p145, %p146
    %p148 = scmp.ne.s32.totalorder %s139, %s140
    %p149 = scmp.eq.s32.totalorder %s24, 0
    %p150 = por %p148, %p149
    %p151 = scmp.ne.s32.totalorder %s139, %s140
    %p152 = scmp.eq.s32.totalorder %s25, 1
    %p153 = por %p151, %p152
    %p155 = scmp.ne.s32.totalorder %s140, %s154
    %p156 = scmp.eq.s32.totalorder %s25, 0
    %p157 = por %p155, %p156
    %s159 = sadd.s32 %s158, 1
    %p162 = scmp.eq.s32.totalorder %s19, 1
    %p163 = scmp.ne.s32.totalorder %s158, %s160
    %p164 = scmp.eq.s32.totalorder %s19, 0
    %p165 = por %p163, %p164
    %p166 = scmp.ne.s32.totalorder %s158, %s160
    %p167 = scmp.eq.s32.totalorder %s24, 1
    %p168 = por %p166, %p167
    %p169 = scmp.ne.s32.totalorder %s160, %s161
    %p170 = scmp.eq.s32.totalorder %s24, 0
    %p171 = por %p169, %p170
    %p172 = scmp.ne.s32.totalorder %s160, %s161
    %p173 = scmp.eq.s32.totalorder %s25, 1
    %p174 = por %p172, %p173
    %p176 = scmp.ne.s32.totalorder %s161, %s175
    %p177 = scmp.eq.s32.totalorder %s25, 0
    %p178 = por %p176, %p177
    %s180 = sadd.s32 %s179, 1
    %p183 = scmp.eq.s32.totalorder %s19, 1
    %p184 = scmp.ne.s32.totalorder %s179, %s181
    %p185 = scmp.eq.s32.totalorder %s19, 0
    %p186 = por %p184, %p185
    %p187 = scmp.ne.s32.totalorder %s179, %s181
    %p188 = scmp.eq.s32.totalorder %s24, 1
    %p189 = por %p187, %p188
    %p190 = scmp.ne.s32.totalorder %s181, %s182
    %p191 = scmp.eq.s32.totalorder %s24, 0
    %p192 = por %p190, %p191
    %p193 = scmp.ne.s32.totalorder %s181, %s182
    %p194 = scmp.eq.s32.totalorder %s25, 1
    %p195 = por %p193, %p194
    %p197 = scmp.ne.s32.totalorder %s182, %s196
    %p198 = scmp.eq.s32.totalorder %s25, 0
    %p199 = por %p197, %p198
    %s201 = sadd.s32 %s200, 1
    %p204 = scmp.eq.s32.totalorder %s19, 1
    %p205 = scmp.ne.s32.totalorder %s200, %s202
    %p206 = scmp.eq.s32.totalorder %s19, 0
    %p207 = por %p205, %p206
    %p208 = scmp.ne.s32.totalorder %s200, %s202
    %p209 = scmp.eq.s32.totalorder %s24, 1
    %p210 = por %p208, %p209
    %p211 = scmp.ne.s32.totalorder %s202, %s203
    %p212 = scmp.eq.s32.totalorder %s24, 0
    %p213 = por %p211, %p212
    %p214 = scmp.ne.s32.totalorder %s202, %s203
    %p215 = scmp.eq.s32.totalorder %s25, 1
    %p216 = por %p214, %p215
    %p218 = scmp.ne.s32.totalorder %s203, %s217
    %p219 = scmp.eq.s32.totalorder %s25, 0
    %p220 = por %p218, %p219
    %s222 = sadd.s32 %s221, 1
    %p225 = scmp.eq.s32.totalorder %s19, 1
    %p226 = scmp.ne.s32.totalorder %s221, %s223
    %p227 = scmp.eq.s32.totalorder %s19, 0
    %p228 = por %p226, %p227
    %p229 = scmp.ne.s32.totalorder %s221, %s223
    %p230 = scmp.eq.s32.totalorder %s24, 1
    %p231 = por %p229, %p230
    %p232 = scmp.ne.s32.totalorder %s223, %s224
    %p233 = scmp.eq.s32.totalorder %s24, 0
    %p234 = por %p232, %p233
    %p235 = scmp.ne.s32.totalorder %s223, %s224
    %p236 = scmp.eq.s32.totalorder %s25, 1
    %p237 = por %p235, %p236
    %p239 = scmp.ne.s32.totalorder %s224, %s238
    %p240 = scmp.eq.s32.totalorder %s25, 0
    %p241 = por %p239, %p240
    %s243 = sadd.s32 %s242, 1
    %p246 = scmp.eq.s32.totalorder %s19, 1
    %p247 = scmp.ne.s32.totalorder %s242, %s244
    %p248 = scmp.eq.s32.totalorder %s19, 0
    %p249 = por %p247, %p248
    %p250 = scmp.ne.s32.totalorder %s242, %s244
    %p251 = scmp.eq.s32.totalorder %s24, 1
    %p252 = por %p250, %p251
    %p253 = scmp.ne.s32.totalorder %s244, %s245
    %p254 = scmp.eq.s32.totalorder %s24, 0
    %p255 = por %p253, %p254
    %p256 = scmp.ne.s32.totalorder %s244, %s245
    %p257 = scmp.eq.s32.totalorder %s25, 1
    %p258 = por %p256, %p257
    %p260 = scmp.ne.s32.totalorder %s245, %s259
    %p261 = scmp.eq.s32.totalorder %s25, 0
    %p262 = por %p260, %p261
    %s264 = sadd.s32 %s263, 1
    %p267 = scmp.eq.s32.totalorder %s19, 1
    %p268 = scmp.ne.s32.totalorder %s263, %s265
    %p269 = scmp.eq.s32.totalorder %s19, 0
    %p270 = por %p268, %p269
    %p271 = scmp.ne.s32.totalorder %s263, %s265
    %p272 = scmp.eq.s32.totalorder %s24, 1
    %p273 = por %p271, %p272
    %p274 = scmp.ne.s32.totalorder %s265, %s266
    %p275 = scmp.eq.s32.totalorder %s24, 0
    %p276 = por %p274, %p275
    %p277 = scmp.ne.s32.totalorder %s265, %s266
    %p278 = scmp.eq.s32.totalorder %s25, 1
    %p279 = por %p277, %p278
    %p281 = scmp.ne.s32.totalorder %s266, %s280
    %p282 = scmp.eq.s32.totalorder %s25, 0
    %p283 = por %p281, %p282
    %s285 = sadd.s32 %s284, 1
    %p288 = scmp.eq.s32.totalorder %s19, 1
    %p289 = scmp.ne.s32.totalorder %s284, %s286
    %p290 = scmp.eq.s32.totalorder %s19, 0
    %p291 = por %p289, %p290
    %p292 = scmp.ne.s32.totalorder %s284, %s286
    %p293 = scmp.eq.s32.totalorder %s24, 1
    %p294 = por %p292, %p293
    %p295 = scmp.ne.s32.totalorder %s286, %s287
    %p296 = scmp.eq.s32.totalorder %s24, 0
    %p297 = por %p295, %p296
    %p298 = scmp.ne.s32.totalorder %s286, %s287
    %p299 = scmp.eq.s32.totalorder %s25, 1
    %p300 = por %p298, %p299
    %p302 = scmp.ne.s32.totalorder %s287, %s301
    %p303 = scmp.eq.s32.totalorder %s25, 0
    %p304 = por %p302, %p303
    %s305 = ssub.s32 %s19, %s26
    %p306 = scmp.eq.s32.totalorder %s305, 0
    %s308 = sadd.s32 %s307, 1
    %s309 = scalar_select %p306, %s307, %s308
    %p312 = pneg %p306
    %p313 = scmp.eq.s32.totalorder %s19, 1
    %p314 = por %p312, %p313
    %p315 = scmp.ne.s32.totalorder %s307, %s310
    %p316 = scmp.eq.s32.totalorder %s19, 0
    %p317 = por %p315, %p316
    %p318 = scmp.ne.s32.totalorder %s307, %s310
    %p319 = scmp.eq.s32.totalorder %s24, 1
    %p320 = por %p318, %p319
    %p321 = scmp.ne.s32.totalorder %s310, %s311
    %p322 = scmp.eq.s32.totalorder %s24, 0
    %p323 = por %p321, %p322
    %p324 = scmp.ne.s32.totalorder %s310, %s311
    %p325 = scmp.eq.s32.totalorder %s25, 1
    %p326 = por %p324, %p325
    %p328 = scmp.ne.s32.totalorder %s311, %s327
    %p329 = scmp.eq.s32.totalorder %s25, 0
    %p330 = por %p328, %p329
    %p331 = scmp.le.s32.totalorder 1, %s19
    %p332 = scmp.lt.s32.totalorder %s19, 3
    %p333 = pnand %p331, %p332
    %p334 = pneg %p333
    // Predicated region
    $region9: #{shufflenet_forward.10} parent=5 // pred_check
      _
    $region10: #{shufflenet_forward.10} parent=5 // pred_check_branch
      %336 = sbr.rel (%p333) target = $region12
    $region11: #{shufflenet_forward.10} parent=5 // pred_region
      %s337 = ssub.s32 %s19, 1
      // Predicated region
      $region13: #{shufflenet_forward.10} parent=11 // pred_check
        %p338 = pneg %p66
      $region14: #{shufflenet_forward.10} parent=11 // pred_check_branch
        %340 = sbr.rel (%p338) target = $region16
      $region15: #{shufflenet_forward.10} parent=11 // pred_region
        _
      $region16: #{shufflenet_forward.10} parent=11 // pred_fallthru
        _
      // Predicated region
      $region17: #{shufflenet_forward.10} parent=11 // pred_check
        %p341 = pneg %p87
      $region18: #{shufflenet_forward.10} parent=11 // pred_check_branch
        %343 = sbr.rel (%p341) target = $region20
      $region19: #{shufflenet_forward.10} parent=11 // pred_region
        _
      $region20: #{shufflenet_forward.10} parent=11 // pred_fallthru
        _
      // Predicated region
      $region21: #{shufflenet_forward.10} parent=11 // pred_check
        %p344 = pneg %p108
      $region22: #{shufflenet_forward.10} parent=11 // pred_check_branch
        %346 = sbr.rel (%p344) target = $region24
      $region23: #{shufflenet_forward.10} parent=11 // pred_region
        _
      $region24: #{shufflenet_forward.10} parent=11 // pred_fallthru
        _
      // Predicated region
      $region25: #{shufflenet_forward.10} parent=11 // pred_check
        %p347 = pneg %p129
      $region26: #{shufflenet_forward.10} parent=11 // pred_check_branch
        %349 = sbr.rel (%p347) target = $region28
      $region27: #{shufflenet_forward.10} parent=11 // pred_region
        _
      $region28: #{shufflenet_forward.10} parent=11 // pred_fallthru
        _
      // Predicated region
      $region29: #{shufflenet_forward.10} parent=11 // pred_check
        %p350 = pneg %p150
      $region30: #{shufflenet_forward.10} parent=11 // pred_check_branch
        %352 = sbr.rel (%p350) target = $region32
      $region31: #{shufflenet_forward.10} parent=11 // pred_region
        _
      $region32: #{shufflenet_forward.10} parent=11 // pred_fallthru
        _
      // Predicated region
      $region33: #{shufflenet_forward.10} parent=11 // pred_check
        %p353 = pneg %p171
      $region34: #{shufflenet_forward.10} parent=11 // pred_check_branch
        %355 = sbr.rel (%p353) target = $region36
      $region35: #{shufflenet_forward.10} parent=11 // pred_region
        _
      $region36: #{shufflenet_forward.10} parent=11 // pred_fallthru
        _
      // Predicated region
      $region37: #{shufflenet_forward.10} parent=11 // pred_check
        %p356 = pneg %p192
      $region38: #{shufflenet_forward.10} parent=11 // pred_check_branch
        %358 = sbr.rel (%p356) target = $region40
      $region39: #{shufflenet_forward.10} parent=11 // pred_region
        _
      $region40: #{shufflenet_forward.10} parent=11 // pred_fallthru
        _
      // Predicated region
      $region41: #{shufflenet_forward.10} parent=11 // pred_check
        %p359 = pneg %p213
      $region42: #{shufflenet_forward.10} parent=11 // pred_check_branch
        %361 = sbr.rel (%p359) target = $region44
      $region43: #{shufflenet_forward.10} parent=11 // pred_region
        _
      $region44: #{shufflenet_forward.10} parent=11 // pred_fallthru
        _
      // Predicated region
      $region45: #{shufflenet_forward.10} parent=11 // pred_check
        %p362 = pneg %p234
      $region46: #{shufflenet_forward.10} parent=11 // pred_check_branch
        %364 = sbr.rel (%p362) target = $region48
      $region47: #{shufflenet_forward.10} parent=11 // pred_region
        _
      $region48: #{shufflenet_forward.10} parent=11 // pred_fallthru
        _
      // Predicated region
      $region49: #{shufflenet_forward.10} parent=11 // pred_check
        %p365 = pneg %p255
      $region50: #{shufflenet_forward.10} parent=11 // pred_check_branch
        %367 = sbr.rel (%p365) target = $region52
      $region51: #{shufflenet_forward.10} parent=11 // pred_region
        _
      $region52: #{shufflenet_forward.10} parent=11 // pred_fallthru
        _
      // Predicated region
      $region53: #{shufflenet_forward.10} parent=11 // pred_check
        %p368 = pneg %p276
      $region54: #{shufflenet_forward.10} parent=11 // pred_check_branch
        %370 = sbr.rel (%p368) target = $region56
      $region55: #{shufflenet_forward.10} parent=11 // pred_region
        _
      $region56: #{shufflenet_forward.10} parent=11 // pred_fallthru
        _
      // Predicated region
      $region57: #{shufflenet_forward.10} parent=11 // pred_check
        %p371 = pneg %p297
      $region58: #{shufflenet_forward.10} parent=11 // pred_check_branch
        %373 = sbr.rel (%p371) target = $region60
      $region59: #{shufflenet_forward.10} parent=11 // pred_region
        _
      $region60: #{shufflenet_forward.10} parent=11 // pred_fallthru
        _
    $region12: #{shufflenet_forward.10} parent=5 // pred_fallthru
      _
    %p374 = scmp.lt.s32.totalorder %s19, 2
    // Predicated region
    $region61: #{shufflenet_forward.10} parent=5 // pred_check
      %p375 = pneg %p374
    $region62: #{shufflenet_forward.10} parent=5 // pred_check_branch
      %377 = sbr.rel (%p375) target = $region64
    $region63: #{shufflenet_forward.10} parent=5 // pred_region
      // Predicated region
      $region65: #{shufflenet_forward.10} parent=63 // pred_check
        %p378 = pneg %p39
      $region66: #{shufflenet_forward.10} parent=63 // pred_check_branch
        %380 = sbr.rel (%p378) target = $region68
      $region67: #{shufflenet_forward.10} parent=63 // pred_region
        %p381 = scmp.lt.s32.totalorder %s19, 1
        %s382 = scalar_select %p381, %s19, 1
        %s383 = smul.addr %s382, 2
        %s384 = smul.addr %s383, 4
        %s385 = scalar_lea.vmem %s0, %s384
      $region68: #{shufflenet_forward.10} parent=63 // pred_fallthru
        _
    $region64: #{shufflenet_forward.10} parent=5 // pred_fallthru
      _
    %p386 = scmp.le.s32.totalorder 1, %s19
    %p387 = scmp.lt.s32.totalorder %s19, 3
    %p388 = pnand %p386, %p387
    %p389 = pneg %p388
    // Predicated region
    $region69: #{shufflenet_forward.10} parent=5 // pred_check
      _
    $region70: #{shufflenet_forward.10} parent=5 // pred_check_branch
      %391 = sbr.rel (%p388) target = $region72
    $region71: #{shufflenet_forward.10} parent=5 // pred_region
      %s392 = ssub.s32 %s19, 1
      %p393 = scmp.lt.s32.totalorder %s24, 1
      %s394 = scalar_select %p393, %s24, 1
      %s395 = smul.addr %s394, 2
      %s396 = smul.addr %s395, 4
      %s397 = scalar_lea.vmem %s0, %s396
      %p398 = pneg %p45
      %p399 = pneg %p42
      %p400 = pneg %p66
      %p401 = pneg %p63
      %p402 = pneg %p87
      %p403 = pneg %p84
      %p404 = pneg %p108
      %p405 = pneg %p105
      %p406 = pneg %p129
      %p407 = pneg %p126
      %p408 = pneg %p150
      %p409 = pneg %p147
      %p410 = pneg %p171
      %p411 = pneg %p168
      %p412 = pneg %p192
      %p413 = pneg %p189
      %p414 = pneg %p213
      %p415 = pneg %p210
      %p416 = pneg %p234
      %p417 = pneg %p231
      %p418 = pneg %p255
      %p419 = pneg %p252
      %p420 = pneg %p276
      %p421 = pneg %p273
      %p422 = pneg %p297
      %p423 = pneg %p294
      %p424 = pneg %p323
      %p425 = pneg %p320
      %p426 = scmp.lt.s32.totalorder %s24, 1
      %s427 = scalar_select %p426, %s24, 1
      %s428 = smul.addr %s427, 2
      %s429 = smul.addr %s428, 2
      %s430 = scalar_lea.vmem %s13, %s429
      %p431 = scmp.lt.s32.totalorder %s24, 1
      %s432 = scalar_select %p431, %s24, 1
      %s433 = smul.addr %s432, 2
      %s434 = smul.addr %s433, 4
      %s435 = scalar_lea.vmem %s0, %s434
      %p436 = scmp.lt.s32.totalorder %s24, 1
      %s437 = scalar_select %p436, %s24, 1
      %s438 = smul.addr %s437, 2
      %s439 = smul.addr %s438, 2
      %s440 = scalar_lea.vmem %s13, %s439
      %v442 = vld [vmem:[%s435] sm:$0xf]
      %v443 = vld [vmem:[%s435 + $0x4] sm:$0xf]
      %v444 = vld [vmem:[%s2] sm:$0xf]
      %v445 = vld [vmem:[%s2 + $0x4] sm:$0xf]
      %v446 = vld [vmem:[%s2 + $0x8] sm:$0xf]
      %v447 = vld [vmem:[%s2 + $0xc] sm:$0xf]
      %v448 = vld [vmem:[%s2 + $0x10] sm:$0xf]
      %v449 = vld [vmem:[%s2 + $0x14] sm:$0xf]
      %v450 = vld [vmem:[%s2 + $0x18] sm:$0xf]
      %v451 = vld [vmem:[%s2 + $0x1c] sm:$0xf]
      %v452 = vld [vmem:[%s2 + $0x20] sm:$0xf]
      %v453 = vld [vmem:[%s2 + $0x24] sm:$0xf]
      %v454 = vld [vmem:[%s2 + $0x28] sm:$0xf]
      %v455 = vld [vmem:[%s2 + $0x2c] sm:$0xf]
      %v456 = vld [vmem:[%s2 + $0x30] sm:$0xf]
      %v457 = vld [vmem:[%s2 + $0x34] sm:$0xf]
      %v458 = vld [vmem:[%s2 + $0x38] sm:$0xf]
      %v459 = vld [vmem:[%s2 + $0x3c] sm:$0xf]
      %v462 = vunpack.c.l.b16 %v442
      %v463 = vunpack.c.l.b16 %v443
      %v464 = vpack.c.b16 %v463, %v462
      %v482 = vunpack.c.l.b16 %v444
      %v483 = vunpack.c.l.b16 %v445
      %v484 = vunpack.c.l.b16 %v446
      %v485 = vunpack.c.l.b16 %v447
      %v486 = vunpack.c.l.b16 %v448
      %v487 = vunpack.c.l.b16 %v449
      %v488 = vunpack.c.l.b16 %v450
      %v489 = vunpack.c.l.b16 %v451
      %v490 = vunpack.c.l.b16 %v452
      %v491 = vunpack.c.l.b16 %v453
      %v492 = vunpack.c.l.b16 %v454
      %v493 = vunpack.c.l.b16 %v455
      %v494 = vunpack.c.l.b16 %v456
      %v495 = vunpack.c.l.b16 %v457
      %v496 = vunpack.c.l.b16 %v458
      %v497 = vunpack.c.l.b16 %v459
      %v498 = vpack.c.b16 %v483, %v482
      %v499 = vpack.c.b16 %v485, %v484
      %v500 = vpack.c.b16 %v487, %v486
      %v501 = vpack.c.b16 %v489, %v488
      %v502 = vpack.c.b16 %v491, %v490
      %v503 = vpack.c.b16 %v493, %v492
      %v504 = vpack.c.b16 %v495, %v494
      %v505 = vpack.c.b16 %v497, %v496
      %514 = vmatprep.subr.bf16.mxu0 0
      %515 = vmatpush1.bf16.msra.mxu0 %v498
      %516 = vmatprep.subr.bf16.mxu0 0
      %517 = vmatpush1.bf16.msra.mxu0 %v499
      %518 = vmatprep.subr.bf16.mxu0 0
      %519 = vmatpush1.bf16.msra.mxu0 %v500
      %520 = vmatprep.subr.bf16.mxu0 0
      %521 = vmatpush1.bf16.msra.mxu0 %v501
      %522 = vmatprep.subr.bf16.mxu0 0
      %523 = vmatpush1.bf16.msra.mxu0 %v502
      %524 = vmatprep.subr.bf16.mxu0 0
      %525 = vmatpush1.bf16.msra.mxu0 %v503
      %526 = vmatprep.subr.bf16.mxu0 0
      %527 = vmatpush1.bf16.msra.mxu0 %v504
      %528 = vmatprep.subr.bf16.mxu0 0
      %529 = vmatpush1.bf16.msra.mxu0 %v505
      %530 = vmatprep.subr.bf16.mxu0 0
      %531 = vmatpush1.bf16.msra.mxu0 0
      %532 = vmatprep.subr.bf16.mxu0 0
      %533 = vmatpush1.bf16.msra.mxu0 0
      %534 = vmatprep.subr.bf16.mxu0 0
      %535 = vmatpush1.bf16.msra.mxu0 0
      %536 = vmatprep.subr.bf16.mxu0 0
      %537 = vmatpush1.bf16.msra.mxu0 0
      %538 = vmatprep.subr.bf16.mxu0 0
      %539 = vmatpush1.bf16.msra.mxu0 0
      %540 = vmatprep.subr.bf16.mxu0 0
      %541 = vmatpush1.bf16.msra.mxu0 0
      %542 = vmatprep.subr.bf16.mxu0 0
      %543 = vmatpush1.bf16.msra.mxu0 0
      %544 = vmatprep.subr.bf16.mxu0 0
      %545 = vmatpush1.bf16.msra.mxu0 0
      %546 = vmatprep.mubr.bf16.mxu0 0
      %547 = vmatmul.mubr.bf16.gmra.mrb[0].mxu0 %v464
      %v548 = vpop.f32.mrb[0].mxu0
      %v549 = vadd.f32 0.0, %v548
      %v550 = vpop.f32.mrb[0].mxu0
      %v551 = vpop.f32.mrb[0].mxu0
      %v552 = vadd.f32 0.0, %v551
      %v553 = vpop.f32.mrb[0].mxu0
      %554 = vdwg.mxu0
      %v555 = vld [vmem:[%s3] sm:$0x1]
      %v557 = vlaneseq
      %v558 = vshrl.u32 %v557, 7
      %v559 = vsub.s32 0, %v558
      %v560 = vrot.slane %v555, %v559
      %v562 = vmul.f32 %v549, %v560
      %v563 = vmul.f32 %v552, %v560
      %v564 = vld [vmem:[%s4] sm:$0x1]
      %v566 = vlaneseq
      %v567 = vshrl.u32 %v566, 7
      %v568 = vsub.s32 0, %v567
      %v569 = vrot.slane %v564, %v568
      %v571 = vadd.f32 %v562, %v569
      %v572 = vadd.f32 %v563, %v569
      %v573 = vmax.f32 %v571, 0.0
      %v574 = vmax.f32 %v572, 0.0
      %v575 = vpack.c.bf16 %v574, %v573
      %v576 = vld [vmem:[%s1] sm:$0x3]
      %vm577 = vcmask 130048
      %v579 = vsel %vm577, %v576, 0
      %581 = vmatprep.subr.bf16.mxu0 0
      %582 = vmatpush1.bf16.msra.mxu0 %v575
      %583 = vmatprep.subr.bf16.mxu0 0
      %584 = vmatpush1.bf16.msra.mxu0 0
      %585 = vmatprep.subr.bf16.mxu0 0
      %586 = vmatpush1.bf16.msra.mxu0 0
      %587 = vmatprep.subr.bf16.mxu0 0
      %588 = vmatpush1.bf16.msra.mxu0 0
      %589 = vmatprep.subr.bf16.mxu0 0
      %590 = vmatpush1.bf16.msra.mxu0 0
      %591 = vmatprep.subr.bf16.mxu0 0
      %592 = vmatpush1.bf16.msra.mxu0 0
      %593 = vmatprep.subr.bf16.mxu0 0
      %594 = vmatpush1.bf16.msra.mxu0 0
      %595 = vmatprep.subr.bf16.mxu0 0
      %596 = vmatpush1.bf16.msra.mxu0 0
      %597 = vmatprep.subr.bf16.mxu0 0
      %598 = vmatpush1.bf16.msra.mxu0 0
      %599 = vmatprep.subr.bf16.mxu0 0
      %600 = vmatpush1.bf16.msra.mxu0 0
      %601 = vmatprep.subr.bf16.mxu0 0
      %602 = vmatpush1.bf16.msra.mxu0 0
      %603 = vmatprep.subr.bf16.mxu0 0
      %604 = vmatpush1.bf16.msra.mxu0 0
      %605 = vmatprep.subr.bf16.mxu0 0
      %606 = vmatpush1.bf16.msra.mxu0 0
      %607 = vmatprep.subr.bf16.mxu0 0
      %608 = vmatpush1.bf16.msra.mxu0 0
      %609 = vmatprep.subr.bf16.mxu0 0
      %610 = vmatpush1.bf16.msra.mxu0 0
      %611 = vmatprep.subr.bf16.mxu0 0
      %612 = vmatpush1.bf16.msra.mxu0 0
      %613 = vmatprep.mubr.bf16.mxu0 0
      %614 = vmatmul.mubr.bf16.gmra.mrb[0].mxu0 %v579
      %v615 = vpop.f32.mrb[0].mxu0
      %v616 = vadd.f32 0.0, %v615
      %v617 = vpop.f32.mrb[0].mxu0
      %v618 = vpop.f32.mrb[0].mxu0
      %v619 = vpop.f32.mrb[0].mxu0
      %620 = vdwg.mxu0
      %v621 = vld [vmem:[%s5] sm:$0x1]
      %v623 = vlaneseq
      %v624 = vshrl.u32 %v623, 7
      %v625 = vsub.s32 0, %v624
      %v626 = vrot.slane %v621, %v625
      %v628 = vmul.f32 %v616, %v626
      %s629 = scalar_lea.vmem %s1, 2
      %v630 = vld [vmem:[%s629] sm:$0x3]
      %v632 = vsel %vm577, %v630, 0
      %634 = vmatprep.subr.bf16.mxu0 0
      %635 = vmatpush1.bf16.msra.mxu0 %v575
      %636 = vmatprep.subr.bf16.mxu0 0
      %637 = vmatpush1.bf16.msra.mxu0 0
      %638 = vmatprep.subr.bf16.mxu0 0
      %639 = vmatpush1.bf16.msra.mxu0 0
      %640 = vmatprep.subr.bf16.mxu0 0
      %641 = vmatpush1.bf16.msra.mxu0 0
      %642 = vmatprep.subr.bf16.mxu0 0
      %643 = vmatpush1.bf16.msra.mxu0 0
      %644 = vmatprep.subr.bf16.mxu0 0
      %645 = vmatpush1.bf16.msra.mxu0 0
      %646 = vmatprep.subr.bf16.mxu0 0
      %647 = vmatpush1.bf16.msra.mxu0 0
      %648 = vmatprep.subr.bf16.mxu0 0
      %649 = vmatpush1.bf16.msra.mxu0 0
      %650 = vmatprep.subr.bf16.mxu0 0
      %651 = vmatpush1.bf16.msra.mxu0 0
      %652 = vmatprep.subr.bf16.mxu0 0
      %653 = vmatpush1.bf16.msra.mxu0 0
      %654 = vmatprep.subr.bf16.mxu0 0
      %655 = vmatpush1.bf16.msra.mxu0 0
      %656 = vmatprep.subr.bf16.mxu0 0
      %657 = vmatpush1.bf16.msra.mxu0 0
      %658 = vmatprep.subr.bf16.mxu0 0
      %659 = vmatpush1.bf16.msra.mxu0 0
      %660 = vmatprep.subr.bf16.mxu0 0
      %661 = vmatpush1.bf16.msra.mxu0 0
      %662 = vmatprep.subr.bf16.mxu0 0
      %663 = vmatpush1.bf16.msra.mxu0 0
      %664 = vmatprep.subr.bf16.mxu0 0
      %665 = vmatpush1.bf16.msra.mxu0 0
      %666 = vmatprep.mubr.bf16.mxu0 0
      %667 = vmatmul.mubr.bf16.gmra.mrb[0].mxu0 %v632
      %v668 = vpop.f32.mrb[0].mxu0
      %v669 = vadd.f32 0.0, %v668
      %v670 = vpop.f32.mrb[0].mxu0
      %v671 = vpop.f32.mrb[0].mxu0
      %v672 = vpop.f32.mrb[0].mxu0
      %673 = vdwg.mxu0
      %s674 = scalar_lea.vmem %s5, 1
      %v675 = vld [vmem:[%s674] sm:$0x1]
      %v677 = vlaneseq
      %v678 = vshrl.u32 %v677, 7
      %v679 = vsub.s32 0, %v678
      %v680 = vrot.slane %v675, %v679
      %v682 = vmul.f32 %v669, %v680
      %v683 = vadd.f32 %v628, %v682
      %s684 = scalar_lea.vmem %s1, 4
      %v685 = vld [vmem:[%s684] sm:$0x3]
      %v687 = vsel %vm577, %v685, 0
      %689 = vmatprep.subr.bf16.mxu0 0
      %690 = vmatpush1.bf16.msra.mxu0 %v575
      %691 = vmatprep.subr.bf16.mxu0 0
      %692 = vmatpush1.bf16.msra.mxu0 0
      %693 = vmatprep.subr.bf16.mxu0 0
      %694 = vmatpush1.bf16.msra.mxu0 0
      %695 = vmatprep.subr.bf16.mxu0 0
      %696 = vmatpush1.bf16.msra.mxu0 0
      %697 = vmatprep.subr.bf16.mxu0 0
      %698 = vmatpush1.bf16.msra.mxu0 0
      %699 = vmatprep.subr.bf16.mxu0 0
      %700 = vmatpush1.bf16.msra.mxu0 0
      %701 = vmatprep.subr.bf16.mxu0 0
      %702 = vmatpush1.bf16.msra.mxu0 0
      %703 = vmatprep.subr.bf16.mxu0 0
      %704 = vmatpush1.bf16.msra.mxu0 0
      %705 = vmatprep.subr.bf16.mxu0 0
      %706 = vmatpush1.bf16.msra.mxu0 0
      %707 = vmatprep.subr.bf16.mxu0 0
      %708 = vmatpush1.bf16.msra.mxu0 0
      %709 = vmatprep.subr.bf16.mxu0 0
      %710 = vmatpush1.bf16.msra.mxu0 0
      %711 = vmatprep.subr.bf16.mxu0 0
      %712 = vmatpush1.bf16.msra.mxu0 0
      %713 = vmatprep.subr.bf16.mxu0 0
      %714 = vmatpush1.bf16.msra.mxu0 0
      %715 = vmatprep.subr.bf16.mxu0 0
      %716 = vmatpush1.bf16.msra.mxu0 0
      %717 = vmatprep.subr.bf16.mxu0 0
      %718 = vmatpush1.bf16.msra.mxu0 0
      %719 = vmatprep.subr.bf16.mxu0 0
      %720 = vmatpush1.bf16.msra.mxu0 0
      %721 = vmatprep.mubr.bf16.mxu0 0
      %722 = vmatmul.mubr.bf16.gmra.mrb[0].mxu0 %v687
      %v723 = vpop.f32.mrb[0].mxu0
      %v724 = vadd.f32 0.0, %v723
      %v725 = vpop.f32.mrb[0].mxu0
      %v726 = vpop.f32.mrb[0].mxu0
      %v727 = vpop.f32.mrb[0].mxu0
      %728 = vdwg.mxu0
      %s729 = scalar_lea.vmem %s5, 2
      %v730 = vld [vmem:[%s729] sm:$0x1]
      %v732 = vlaneseq
      %v733 = vshrl.u32 %v732, 7
      %v734 = vsub.s32 0, %v733
      %v735 = vrot.slane %v730, %v734
      %v737 = vmul.f32 %v724, %v735
      %v738 = vadd.f32 %v683, %v737
      %s739 = scalar_lea.vmem %s1, 6
      %v740 = vld [vmem:[%s739] sm:$0x3]
      %v742 = vsel %vm577, %v740, 0
      %744 = vmatprep.subr.bf16.mxu0 0
      %745 = vmatpush1.bf16.msra.mxu0 %v575
      %746 = vmatprep.subr.bf16.mxu0 0
      %747 = vmatpush1.bf16.msra.mxu0 0
      %748 = vmatprep.subr.bf16.mxu0 0
      %749 = vmatpush1.bf16.msra.mxu0 0
      %750 = vmatprep.subr.bf16.mxu0 0
      %751 = vmatpush1.bf16.msra.mxu0 0
      %752 = vmatprep.subr.bf16.mxu0 0
      %753 = vmatpush1.bf16.msra.mxu0 0
      %754 = vmatprep.subr.bf16.mxu0 0
      %755 = vmatpush1.bf16.msra.mxu0 0
      %756 = vmatprep.subr.bf16.mxu0 0
      %757 = vmatpush1.bf16.msra.mxu0 0
      %758 = vmatprep.subr.bf16.mxu0 0
      %759 = vmatpush1.bf16.msra.mxu0 0
      %760 = vmatprep.subr.bf16.mxu0 0
      %761 = vmatpush1.bf16.msra.mxu0 0
      %762 = vmatprep.subr.bf16.mxu0 0
      %763 = vmatpush1.bf16.msra.mxu0 0
      %764 = vmatprep.subr.bf16.mxu0 0
      %765 = vmatpush1.bf16.msra.mxu0 0
      %766 = vmatprep.subr.bf16.mxu0 0
      %767 = vmatpush1.bf16.msra.mxu0 0
      %768 = vmatprep.subr.bf16.mxu0 0
      %769 = vmatpush1.bf16.msra.mxu0 0
      %770 = vmatprep.subr.bf16.mxu0 0
      %771 = vmatpush1.bf16.msra.mxu0 0
      %772 = vmatprep.subr.bf16.mxu0 0
      %773 = vmatpush1.bf16.msra.mxu0 0
      %774 = vmatprep.subr.bf16.mxu0 0
      %775 = vmatpush1.bf16.msra.mxu0 0
      %776 = vmatprep.mubr.bf16.mxu0 0
      %777 = vmatmul.mubr.bf16.gmra.mrb[0].mxu0 %v742
      %v778 = vpop.f32.mrb[0].mxu0
      %v779 = vadd.f32 0.0, %v778
      %v780 = vpop.f32.mrb[0].mxu0
      %v781 = vpop.f32.mrb[0].mxu0
      %v782 = vpop.f32.mrb[0].mxu0
      %783 = vdwg.mxu0
      %s784 = scalar_lea.vmem %s5, 3
      %v785 = vld [vmem:[%s784] sm:$0x1]
      %v787 = vlaneseq
      %v788 = vshrl.u32 %v787, 7
      %v789 = vsub.s32 0, %v788
      %v790 = vrot.slane %v785, %v789
      %v792 = vmul.f32 %v779, %v790
      %v793 = vadd.f32 %v738, %v792
      %s794 = scalar_lea.vmem %s1, 8
      %v795 = vld [vmem:[%s794] sm:$0x3]
      %v797 = vsel %vm577, %v795, 0
      %799 = vmatprep.subr.bf16.mxu0 0
      %800 = vmatpush1.bf16.msra.mxu0 %v575
      %801 = vmatprep.subr.bf16.mxu0 0
      %802 = vmatpush1.bf16.msra.mxu0 0
      %803 = vmatprep.subr.bf16.mxu0 0
      %804 = vmatpush1.bf16.msra.mxu0 0
      %805 = vmatprep.subr.bf16.mxu0 0
      %806 = vmatpush1.bf16.msra.mxu0 0
      %807 = vmatprep.subr.bf16.mxu0 0
      %808 = vmatpush1.bf16.msra.mxu0 0
      %809 = vmatprep.subr.bf16.mxu0 0
      %810 = vmatpush1.bf16.msra.mxu0 0
      %811 = vmatprep.subr.bf16.mxu0 0
      %812 = vmatpush1.bf16.msra.mxu0 0
      %813 = vmatprep.subr.bf16.mxu0 0
      %814 = vmatpush1.bf16.msra.mxu0 0
      %815 = vmatprep.subr.bf16.mxu0 0
      %816 = vmatpush1.bf16.msra.mxu0 0
      %817 = vmatprep.subr.bf16.mxu0 0
      %818 = vmatpush1.bf16.msra.mxu0 0
      %819 = vmatprep.subr.bf16.mxu0 0
      %820 = vmatpush1.bf16.msra.mxu0 0
      %821 = vmatprep.subr.bf16.mxu0 0
      %822 = vmatpush1.bf16.msra.mxu0 0
      %823 = vmatprep.subr.bf16.mxu0 0
      %824 = vmatpush1.bf16.msra.mxu0 0
      %825 = vmatprep.subr.bf16.mxu0 0
      %826 = vmatpush1.bf16.msra.mxu0 0
      %827 = vmatprep.subr.bf16.mxu0 0
      %828 = vmatpush1.bf16.msra.mxu0 0
      %829 = vmatprep.subr.bf16.mxu0 0
      %830 = vmatpush1.bf16.msra.mxu0 0
      %831 = vmatprep.mubr.bf16.mxu0 0
      %832 = vmatmul.mubr.bf16.gmra.mrb[0].mxu0 %v797
      %v833 = vpop.f32.mrb[0].mxu0
      %v834 = vadd.f32 0.0, %v833
      %v835 = vpop.f32.mrb[0].mxu0
      %v836 = vpop.f32.mrb[0].mxu0
      %v837 = vpop.f32.mrb[0].mxu0
      %838 = vdwg.mxu0
      %s839 = scalar_lea.vmem %s5, 4
      %v840 = vld [vmem:[%s839] sm:$0x1]
      %v842 = vlaneseq
      %v843 = vshrl.u32 %v842, 7
      %v844 = vsub.s32 0, %v843
      %v845 = vrot.slane %v840, %v844
      %v847 = vmul.f32 %v834, %v845
      %v848 = vadd.f32 %v793, %v847
      %s849 = scalar_lea.vmem %s1, 10
      %v850 = vld [vmem:[%s849] sm:$0x3]
      %v852 = vsel %vm577, %v850, 0
      %854 = vmatprep.subr.bf16.mxu0 0
      %855 = vmatpush1.bf16.msra.mxu0 %v575
      %856 = vmatprep.subr.bf16.mxu0 0
      %857 = vmatpush1.bf16.msra.mxu0 0
      %858 = vmatprep.subr.bf16.mxu0 0
      %859 = vmatpush1.bf16.msra.mxu0 0
      %860 = vmatprep.subr.bf16.mxu0 0
      %861 = vmatpush1.bf16.msra.mxu0 0
      %862 = vmatprep.subr.bf16.mxu0 0
      %863 = vmatpush1.bf16.msra.mxu0 0
      %864 = vmatprep.subr.bf16.mxu0 0
      %865 = vmatpush1.bf16.msra.mxu0 0
      %866 = vmatprep.subr.bf16.mxu0 0
      %867 = vmatpush1.bf16.msra.mxu0 0
      %868 = vmatprep.subr.bf16.mxu0 0
      %869 = vmatpush1.bf16.msra.mxu0 0
      %870 = vmatprep.subr.bf16.mxu0 0
      %871 = vmatpush1.bf16.msra.mxu0 0
      %872 = vmatprep.subr.bf16.mxu0 0
      %873 = vmatpush1.bf16.msra.mxu0 0
      %874 = vmatprep.subr.bf16.mxu0 0
      %875 = vmatpush1.bf16.msra.mxu0 0
      %876 = vmatprep.subr.bf16.mxu0 0
      %877 = vmatpush1.bf16.msra.mxu0 0
      %878 = vmatprep.subr.bf16.mxu0 0
      %879 = vmatpush1.bf16.msra.mxu0 0
      %880 = vmatprep.subr.bf16.mxu0 0
      %881 = vmatpush1.bf16.msra.mxu0 0
      %882 = vmatprep.subr.bf16.mxu0 0
      %883 = vmatpush1.bf16.msra.mxu0 0
      %884 = vmatprep.subr.bf16.mxu0 0
      %885 = vmatpush1.bf16.msra.mxu0 0
      %886 = vmatprep.mubr.bf16.mxu0 0
      %887 = vmatmul.mubr.bf16.gmra.mrb[0].mxu0 %v852
      %v888 = vpop.f32.mrb[0].mxu0
      %v889 = vadd.f32 0.0, %v888
      %v890 = vpop.f32.mrb[0].mxu0
      %v891 = vpop.f32.mrb[0].mxu0
      %v892 = vpop.f32.mrb[0].mxu0
      %893 = vdwg.mxu0
      %s894 = scalar_lea.vmem %s5, 5
      %v895 = vld [vmem:[%s894] sm:$0x1]
      %v897 = vlaneseq
      %v898 = vshrl.u32 %v897, 7
      %v899 = vsub.s32 0, %v898
      %v900 = vrot.slane %v895, %v899
      %v902 = vmul.f32 %v889, %v900
      %v903 = vadd.f32 %v848, %v902
      %s904 = scalar_lea.vmem %s1, 12
      %v905 = vld [vmem:[%s904] sm:$0x3]
      %v907 = vsel %vm577, %v905, 0
      %909 = vmatprep.subr.bf16.mxu0 0
      %910 = vmatpush1.bf16.msra.mxu0 %v575
      %911 = vmatprep.subr.bf16.mxu0 0
      %912 = vmatpush1.bf16.msra.mxu0 0
      %913 = vmatprep.subr.bf16.mxu0 0
      %914 = vmatpush1.bf16.msra.mxu0 0
      %915 = vmatprep.subr.bf16.mxu0 0
      %916 = vmatpush1.bf16.msra.mxu0 0
      %917 = vmatprep.subr.bf16.mxu0 0
      %918 = vmatpush1.bf16.msra.mxu0 0
      %919 = vmatprep.subr.bf16.mxu0 0
      %920 = vmatpush1.bf16.msra.mxu0 0
      %921 = vmatprep.subr.bf16.mxu0 0
      %922 = vmatpush1.bf16.msra.mxu0 0
      %923 = vmatprep.subr.bf16.mxu0 0
      %924 = vmatpush1.bf16.msra.mxu0 0
      %925 = vmatprep.subr.bf16.mxu0 0
      %926 = vmatpush1.bf16.msra.mxu0 0
      %927 = vmatprep.subr.bf16.mxu0 0
      %928 = vmatpush1.bf16.msra.mxu0 0
      %929 = vmatprep.subr.bf16.mxu0 0
      %930 = vmatpush1.bf16.msra.mxu0 0
      %931 = vmatprep.subr.bf16.mxu0 0
      %932 = vmatpush1.bf16.msra.mxu0 0
      %933 = vmatprep.subr.bf16.mxu0 0
      %934 = vmatpush1.bf16.msra.mxu0 0
      %935 = vmatprep.subr.bf16.mxu0 0
      %936 = vmatpush1.bf16.msra.mxu0 0
      %937 = vmatprep.subr.bf16.mxu0 0
      %938 = vmatpush1.bf16.msra.mxu0 0
      %939 = vmatprep.subr.bf16.mxu0 0
      %940 = vmatpush1.bf16.msra.mxu0 0
      %941 = vmatprep.mubr.bf16.mxu0 0
      %942 = vmatmul.mubr.bf16.gmra.mrb[0].mxu0 %v907
      %v943 = vpop.f32.mrb[0].mxu0
      %v944 = vadd.f32 0.0, %v943
      %v945 = vpop.f32.mrb[0].mxu0
      %v946 = vpop.f32.mrb[0].mxu0
      %v947 = vpop.f32.mrb[0].mxu0
      %948 = vdwg.mxu0
      %s949 = scalar_lea.vmem %s5, 6
      %v950 = vld [vmem:[%s949] sm:$0x1]
      %v952 = vlaneseq
      %v953 = vshrl.u32 %v952, 7
      %v954 = vsub.s32 0, %v953
      %v955 = vrot.slane %v950, %v954
      %v957 = vmul.f32 %v944, %v955
      %v958 = vadd.f32 %v903, %v957
      %s959 = scalar_lea.vmem %s1, 14
      %v960 = vld [vmem:[%s959] sm:$0x3]
      %v962 = vsel %vm577, %v960, 0
      %964 = vmatprep.subr.bf16.mxu0 0
      %965 = vmatpush1.bf16.msra.mxu0 %v575
      %966 = vmatprep.subr.bf16.mxu0 0
      %967 = vmatpush1.bf16.msra.mxu0 0
      %968 = vmatprep.subr.bf16.mxu0 0
      %969 = vmatpush1.bf16.msra.mxu0 0
      %970 = vmatprep.subr.bf16.mxu0 0
      %971 = vmatpush1.bf16.msra.mxu0 0
      %972 = vmatprep.subr.bf16.mxu0 0
      %973 = vmatpush1.bf16.msra.mxu0 0
      %974 = vmatprep.subr.bf16.mxu0 0
      %975 = vmatpush1.bf16.msra.mxu0 0
      %976 = vmatprep.subr.bf16.mxu0 0
      %977 = vmatpush1.bf16.msra.mxu0 0
      %978 = vmatprep.subr.bf16.mxu0 0
      %979 = vmatpush1.bf16.msra.mxu0 0
      %980 = vmatprep.subr.bf16.mxu0 0
      %981 = vmatpush1.bf16.msra.mxu0 0
      %982 = vmatprep.subr.bf16.mxu0 0
      %983 = vmatpush1.bf16.msra.mxu0 0
      %984 = vmatprep.subr.bf16.mxu0 0
      %985 = vmatpush1.bf16.msra.mxu0 0
      %986 = vmatprep.subr.bf16.mxu0 0
      %987 = vmatpush1.bf16.msra.mxu0 0
      %988 = vmatprep.subr.bf16.mxu0 0
      %989 = vmatpush1.bf16.msra.mxu0 0
      %990 = vmatprep.subr.bf16.mxu0 0
      %991 = vmatpush1.bf16.msra.mxu0 0
      %992 = vmatprep.subr.bf16.mxu0 0
      %993 = vmatpush1.bf16.msra.mxu0 0
      %994 = vmatprep.subr.bf16.mxu0 0
      %995 = vmatpush1.bf16.msra.mxu0 0
      %996 = vmatprep.mubr.bf16.mxu0 0
      %997 = vmatmul.mubr.bf16.gmra.mrb[0].mxu0 %v962
      %v998 = vpop.f32.mrb[0].mxu0
      %v999 = vadd.f32 0.0, %v998
      %v1000 = vpop.f32.mrb[0].mxu0
      %v1001 = vpop.f32.mrb[0].mxu0
      %v1002 = vpop.f32.mrb[0].mxu0
      %1003 = vdwg.mxu0
      %s1004 = scalar_lea.vmem %s5, 7
      %v1005 = vld [vmem:[%s1004] sm:$0x1]
      %v1007 = vlaneseq
      %v1008 = vshrl.u32 %v1007, 7
      %v1009 = vsub.s32 0, %v1008
      %v1010 = vrot.slane %v1005, %v1009
      %v1012 = vmul.f32 %v999, %v1010
      %v1013 = vadd.f32 %v958, %v1012
      %s1014 = scalar_lea.vmem %s1, 16
      %v1015 = vld [vmem:[%s1014] sm:$0x3]
      %v1017 = vsel %vm577, %v1015, 0
      %1019 = vmatprep.subr.bf16.mxu0 0
      %1020 = vmatpush1.bf16.msra.mxu0 %v575
      %1021 = vmatprep.subr.bf16.mxu0 0
      %1022 = vmatpush1.bf16.msra.mxu0 0
      %1023 = vmatprep.subr.bf16.mxu0 0
      %1024 = vmatpush1.bf16.msra.mxu0 0
      %1025 = vmatprep.subr.bf16.mxu0 0
      %1026 = vmatpush1.bf16.msra.mxu0 0
      %1027 = vmatprep.subr.bf16.mxu0 0
      %1028 = vmatpush1.bf16.msra.mxu0 0
      %1029 = vmatprep.subr.bf16.mxu0 0
      %1030 = vmatpush1.bf16.msra.mxu0 0
      %1031 = vmatprep.subr.bf16.mxu0 0
      %1032 = vmatpush1.bf16.msra.mxu0 0
      %1033 = vmatprep.subr.bf16.mxu0 0
      %1034 = vmatpush1.bf16.msra.mxu0 0
      %1035 = vmatprep.subr.bf16.mxu0 0
      %1036 = vmatpush1.bf16.msra.mxu0 0
      %1037 = vmatprep.subr.bf16.mxu0 0
      %1038 = vmatpush1.bf16.msra.mxu0 0
      %1039 = vmatprep.subr.bf16.mxu0 0
      %1040 = vmatpush1.bf16.msra.mxu0 0
      %1041 = vmatprep.subr.bf16.mxu0 0
      %1042 = vmatpush1.bf16.msra.mxu0 0
      %1043 = vmatprep.subr.bf16.mxu0 0
      %1044 = vmatpush1.bf16.msra.mxu0 0
      %1045 = vmatprep.subr.bf16.mxu0 0
      %1046 = vmatpush1.bf16.msra.mxu0 0
      %1047 = vmatprep.subr.bf16.mxu0 0
      %1048 = vmatpush1.bf16.msra.mxu0 0
      %1049 = vmatprep.subr.bf16.mxu0 0
      %1050 = vmatpush1.bf16.msra.mxu0 0
      %1051 = vmatprep.mubr.bf16.mxu0 0
      %1052 = vmatmul.mubr.bf16.gmra.mrb[0].mxu0 %v1017
      %v1053 = vpop.f32.mrb[0].mxu0
      %v1054 = vadd.f32 0.0, %v1053
      %v1055 = vpop.f32.mrb[0].mxu0
      %v1056 = vpop.f32.mrb[0].mxu0
      %v1057 = vpop.f32.mrb[0].mxu0
      %1058 = vdwg.mxu0
      %s1059 = scalar_lea.vmem %s5, 8
      %v1060 = vld [vmem:[%s1059] sm:$0x1]
      %v1062 = vlaneseq
      %v1063 = vshrl.u32 %v1062, 7
      %v1064 = vsub.s32 0, %v1063
      %v1065 = vrot.slane %v1060, %v1064
      %v1067 = vmul.f32 %v1054, %v1065
      %v1068 = vadd.f32 %v1013, %v1067
      %v1069 = vld [vmem:[%s6] sm:$0x1]
      %v1071 = vlaneseq
      %v1072 = vshrl.u32 %v1071, 7
      %v1073 = vsub.s32 0, %v1072
      %v1074 = vrot.slane %v1069, %v1073
      %v1076 = vmul.f32 %v1068, %v1074
      %v1077 = vld [vmem:[%s7] sm:$0x1]
      %v1079 = vlaneseq
      %v1080 = vshrl.u32 %v1079, 7
      %v1081 = vsub.s32 0, %v1080
      %v1082 = vrot.slane %v1077, %v1081
      %v1084 = vadd.f32 %v1076, %v1082
      %v1085 = vmax.f32 %v1084, 0.0
      %v1086 = vpack.c.bf16 %v1085, %v1085
      %v1087 = vld [vmem:[%s8] sm:$0xff]
      %v1088 = vld [vmem:[%s8 + $0x8] sm:$0xff]
      %v1089 = vld [vmem:[%s8 + $0x10] sm:$0xff]
      %v1090 = vld [vmem:[%s8 + $0x18] sm:$0xff]
      %v1091 = vld [vmem:[%s8 + $0x20] sm:$0xff]
      %v1092 = vld [vmem:[%s8 + $0x28] sm:$0xff]
      %v1093 = vld [vmem:[%s8 + $0x30] sm:$0xff]
      %v1094 = vld [vmem:[%s8 + $0x38] sm:$0xff]
      %v1095 = vld [vmem:[%s8 + $0x40] sm:$0xff]
      %v1096 = vld [vmem:[%s8 + $0x48] sm:$0xff]
      %v1097 = vld [vmem:[%s8 + $0x50] sm:$0xff]
      %v1098 = vld [vmem:[%s8 + $0x58] sm:$0xff]
      %v1099 = vld [vmem:[%s8 + $0x60] sm:$0xff]
      %v1100 = vld [vmem:[%s8 + $0x68] sm:$0xff]
      %v1101 = vld [vmem:[%s8 + $0x70] sm:$0xff]
      %v1102 = vld [vmem:[%s8 + $0x78] sm:$0xff]
      %v1119 = vunpack.c.l.b16 %v1087
      %v1120 = vunpack.c.h.b16 %v1087
      %v1121 = vunpack.c.l.b16 %v1088
      %v1122 = vunpack.c.h.b16 %v1088
      %v1123 = vunpack.c.l.b16 %v1089
      %v1124 = vunpack.c.h.b16 %v1089
      %v1125 = vunpack.c.l.b16 %v1090
      %v1126 = vunpack.c.h.b16 %v1090
      %v1127 = vunpack.c.l.b16 %v1091
      %v1128 = vunpack.c.h.b16 %v1091
      %v1129 = vunpack.c.l.b16 %v1092
      %v1130 = vunpack.c.h.b16 %v1092
      %v1131 = vunpack.c.l.b16 %v1093
      %v1132 = vunpack.c.h.b16 %v1093
      %v1133 = vunpack.c.l.b16 %v1094
      %v1134 = vunpack.c.h.b16 %v1094
      %v1135 = vunpack.c.l.b16 %v1095
      %v1136 = vunpack.c.h.b16 %v1095
      %v1137 = vunpack.c.l.b16 %v1096
      %v1138 = vunpack.c.h.b16 %v1096
      %v1139 = vunpack.c.l.b16 %v1097
      %v1140 = vunpack.c.h.b16 %v1097
      %v1141 = vunpack.c.l.b16 %v1098
      %v1142 = vunpack.c.h.b16 %v1098
      %v1143 = vunpack.c.l.b16 %v1099
      %v1144 = vunpack.c.h.b16 %v1099
      %v1145 = vunpack.c.l.b16 %v1100
      %v1146 = vunpack.c.h.b16 %v1100
      %v1147 = vunpack.c.l.b16 %v1101
      %v1148 = vunpack.c.h.b16 %v1101
      %v1149 = vunpack.c.l.b16 %v1102
      %v1150 = vunpack.c.h.b16 %v1102
      %v1151 = vpack.c.b16 %v1121, %v1119
      %v1152 = vpack.c.b16 %v1122, %v1120
      %v1153 = vpack.c.b16 %v1125, %v1123
      %v1154 = vpack.c.b16 %v1126, %v1124
      %v1155 = vpack.c.b16 %v1129, %v1127
      %v1156 = vpack.c.b16 %v1130, %v1128
      %v1157 = vpack.c.b16 %v1133, %v1131
      %v1158 = vpack.c.b16 %v1134, %v1132
      %v1159 = vpack.c.b16 %v1137, %v1135
      %v1160 = vpack.c.b16 %v1138, %v1136
      %v1161 = vpack.c.b16 %v1141, %v1139
      %v1162 = vpack.c.b16 %v1142, %v1140
      %v1163 = vpack.c.b16 %v1145, %v1143
      %v1164 = vpack.c.b16 %v1146, %v1144
      %v1165 = vpack.c.b16 %v1149, %v1147
      %v1166 = vpack.c.b16 %v1150, %v1148
      %1183 = vmatprep.subr.bf16.mxu0 %v1152
      %1184 = vmatpush1.bf16.msra.mxu0 %v1151
      %1185 = vmatprep.subr.bf16.mxu0 %v1154
      %1186 = vmatpush1.bf16.msra.mxu0 %v1153
      %1187 = vmatprep.subr.bf16.mxu0 %v1156
      %1188 = vmatpush1.bf16.msra.mxu0 %v1155
      %1189 = vmatprep.subr.bf16.mxu0 %v1158
      %1190 = vmatpush1.bf16.msra.mxu0 %v1157
      %1191 = vmatprep.subr.bf16.mxu0 %v1160
      %1192 = vmatpush1.bf16.msra.mxu0 %v1159
      %1193 = vmatprep.subr.bf16.mxu0 %v1162
      %1194 = vmatpush1.bf16.msra.mxu0 %v1161
      %1195 = vmatprep.subr.bf16.mxu0 %v1164
      %1196 = vmatpush1.bf16.msra.mxu0 %v1163
      %1197 = vmatprep.subr.bf16.mxu0 %v1166
      %1198 = vmatpush1.bf16.msra.mxu0 %v1165
      %1199 = vmatprep.subr.bf16.mxu0 0
      %1200 = vmatpush1.bf16.msra.mxu0 0
      %1201 = vmatprep.subr.bf16.mxu0 0
      %1202 = vmatpush1.bf16.msra.mxu0 0
      %1203 = vmatprep.subr.bf16.mxu0 0
      %1204 = vmatpush1.bf16.msra.mxu0 0
      %1205 = vmatprep.subr.bf16.mxu0 0
      %1206 = vmatpush1.bf16.msra.mxu0 0
      %1207 = vmatprep.subr.bf16.mxu0 0
      %1208 = vmatpush1.bf16.msra.mxu0 0
      %1209 = vmatprep.subr.bf16.mxu0 0
      %1210 = vmatpush1.bf16.msra.mxu0 0
      %1211 = vmatprep.subr.bf16.mxu0 0
      %1212 = vmatpush1.bf16.msra.mxu0 0
      %1213 = vmatprep.subr.bf16.mxu0 0
      %1214 = vmatpush1.bf16.msra.mxu0 0
      %1215 = vmatprep.mubr.bf16.mxu0 0
      %1216 = vmatmul.mubr.bf16.gmra.mrb[0].mxu0 %v1086
      %v1217 = vpop.f32.mrb[0].mxu0
      %v1218 = vadd.f32 0.0, %v1217
      %v1219 = vpop.f32.mrb[0].mxu0
      %v1220 = vadd.f32 0.0, %v1219
      %v1221 = vpop.f32.mrb[0].mxu0
      %v1222 = vpop.f32.mrb[0].mxu0
      %1223 = vdwg.mxu0
      %v1224 = vld [vmem:[%s9] sm:$0x3]
      %v1226 = vlaneseq
      %v1227 = vshrl.u32 %v1226, 7
      %v1228 = vsub.s32 0, %v1227
      %v1229 = vrot.slane %v1224, %v1228
      %v1230 = vlaneseq
      %v1231 = vshrl.u32 %v1230, 7
      %v1232 = vsub.s32 1, %v1231
      %v1233 = vrot.slane %v1224, %v1232
      %v1236 = vmul.f32 %v1218, %v1229
      %v1237 = vmul.f32 %v1220, %v1233
      %v1238 = vld [vmem:[%s10] sm:$0x3]
      %v1240 = vlaneseq
      %v1241 = vshrl.u32 %v1240, 7
      %v1242 = vsub.s32 0, %v1241
      %v1243 = vrot.slane %v1238, %v1242
      %v1244 = vlaneseq
      %v1245 = vshrl.u32 %v1244, 7
      %v1246 = vsub.s32 1, %v1245
      %v1247 = vrot.slane %v1238, %v1246
      %v1250 = vadd.f32 %v1236, %v1243
      %v1251 = vadd.f32 %v1237, %v1247
      %v1252 = vld [vmem:[%s11] sm:$0x3]
      %v1254 = vsel %vm577, %v1252, 0
      %1256 = vmatprep.subr.bf16.mxu0 0
      %1257 = vmatpush1.bf16.msra.mxu0 %v464
      %1258 = vmatprep.subr.bf16.mxu0 0
      %1259 = vmatpush1.bf16.msra.mxu0 0
      %1260 = vmatprep.subr.bf16.mxu0 0
      %1261 = vmatpush1.bf16.msra.mxu0 0
      %1262 = vmatprep.subr.bf16.mxu0 0
      %1263 = vmatpush1.bf16.msra.mxu0 0
      %1264 = vmatprep.subr.bf16.mxu0 0
      %1265 = vmatpush1.bf16.msra.mxu0 0
      %1266 = vmatprep.subr.bf16.mxu0 0
      %1267 = vmatpush1.bf16.msra.mxu0 0
      %1268 = vmatprep.subr.bf16.mxu0 0
      %1269 = vmatpush1.bf16.msra.mxu0 0
      %1270 = vmatprep.subr.bf16.mxu0 0
      %1271 = vmatpush1.bf16.msra.mxu0 0
      %1272 = vmatprep.subr.bf16.mxu0 0
      %1273 = vmatpush1.bf16.msra.mxu0 0
      %1274 = vmatprep.subr.bf16.mxu0 0
      %1275 = vmatpush1.bf16.msra.mxu0 0
      %1276 = vmatprep.subr.bf16.mxu0 0
      %1277 = vmatpush1.bf16.msra.mxu0 0
      %1278 = vmatprep.subr.bf16.mxu0 0
      %1279 = vmatpush1.bf16.msra.mxu0 0
      %1280 = vmatprep.subr.bf16.mxu0 0
      %1281 = vmatpush1.bf16.msra.mxu0 0
      %1282 = vmatprep.subr.bf16.mxu0 0
      %1283 = vmatpush1.bf16.msra.mxu0 0
      %1284 = vmatprep.subr.bf16.mxu0 0
      %1285 = vmatpush1.bf16.msra.mxu0 0
      %1286 = vmatprep.subr.bf16.mxu0 0
      %1287 = vmatpush1.bf16.msra.mxu0 0
      %1288 = vmatprep.mubr.bf16.mxu0 0
      %1289 = vmatmul.mubr.bf16.gmra.mrb[0].mxu0 %v1254
      %v1290 = vpop.f32.mrb[0].mxu0
      %v1291 = vadd.f32 0.0, %v1290
      %v1292 = vpop.f32.mrb[0].mxu0
      %v1293 = vpop.f32.mrb[0].mxu0
      %v1294 = vpop.f32.mrb[0].mxu0
      %1295 = vdwg.mxu0
      %v1296 = vmul.f32 %v1291, 0.11111111
      %v1297 = vpack.c.bf16 %v1296, %v1296
      %v1298 = vld [vmem:[%s12] sm:$0xff]
      %v1299 = vld [vmem:[%s12 + $0x8] sm:$0xff]
      %v1300 = vld [vmem:[%s12 + $0x10] sm:$0xff]
      %v1301 = vld [vmem:[%s12 + $0x18] sm:$0xff]
      %v1302 = vld [vmem:[%s12 + $0x20] sm:$0xff]
      %v1303 = vld [vmem:[%s12 + $0x28] sm:$0xff]
      %v1304 = vld [vmem:[%s12 + $0x30] sm:$0xff]
      %v1305 = vld [vmem:[%s12 + $0x38] sm:$0xff]
      %v1306 = vld [vmem:[%s12 + $0x40] sm:$0xff]
      %v1307 = vld [vmem:[%s12 + $0x48] sm:$0xff]
      %v1308 = vld [vmem:[%s12 + $0x50] sm:$0xff]
      %v1309 = vld [vmem:[%s12 + $0x58] sm:$0xff]
      %v1310 = vld [vmem:[%s12 + $0x60] sm:$0xff]
      %v1311 = vld [vmem:[%s12 + $0x68] sm:$0xff]
      %v1312 = vld [vmem:[%s12 + $0x70] sm:$0xff]
      %v1313 = vld [vmem:[%s12 + $0x78] sm:$0xff]
      %v1330 = vunpack.c.l.b16 %v1298
      %v1331 = vunpack.c.h.b16 %v1298
      %v1332 = vunpack.c.l.b16 %v1299
      %v1333 = vunpack.c.h.b16 %v1299
      %v1334 = vunpack.c.l.b16 %v1300
      %v1335 = vunpack.c.h.b16 %v1300
      %v1336 = vunpack.c.l.b16 %v1301
      %v1337 = vunpack.c.h.b16 %v1301
      %v1338 = vunpack.c.l.b16 %v1302
      %v1339 = vunpack.c.h.b16 %v1302
      %v1340 = vunpack.c.l.b16 %v1303
      %v1341 = vunpack.c.h.b16 %v1303
      %v1342 = vunpack.c.l.b16 %v1304
      %v1343 = vunpack.c.h.b16 %v1304
      %v1344 = vunpack.c.l.b16 %v1305
      %v1345 = vunpack.c.h.b16 %v1305
      %v1346 = vunpack.c.l.b16 %v1306
      %v1347 = vunpack.c.h.b16 %v1306
      %v1348 = vunpack.c.l.b16 %v1307
      %v1349 = vunpack.c.h.b16 %v1307
      %v1350 = vunpack.c.l.b16 %v1308
      %v1351 = vunpack.c.h.b16 %v1308
      %v1352 = vunpack.c.l.b16 %v1309
      %v1353 = vunpack.c.h.b16 %v1309
      %v1354 = vunpack.c.l.b16 %v1310
      %v1355 = vunpack.c.h.b16 %v1310
      %v1356 = vunpack.c.l.b16 %v1311
      %v1357 = vunpack.c.h.b16 %v1311
      %v1358 = vunpack.c.l.b16 %v1312
      %v1359 = vunpack.c.h.b16 %v1312
      %v1360 = vunpack.c.l.b16 %v1313
      %v1361 = vunpack.c.h.b16 %v1313
      %v1362 = vpack.c.b16 %v1332, %v1330
      %v1363 = vpack.c.b16 %v1333, %v1331
      %v1364 = vpack.c.b16 %v1336, %v1334
      %v1365 = vpack.c.b16 %v1337, %v1335
      %v1366 = vpack.c.b16 %v1340, %v1338
      %v1367 = vpack.c.b16 %v1341, %v1339
      %v1368 = vpack.c.b16 %v1344, %v1342
      %v1369 = vpack.c.b16 %v1345, %v1343
      %v1370 = vpack.c.b16 %v1348, %v1346
      %v1371 = vpack.c.b16 %v1349, %v1347
      %v1372 = vpack.c.b16 %v1352, %v1350
      %v1373 = vpack.c.b16 %v1353, %v1351
      %v1374 = vpack.c.b16 %v1356, %v1354
      %v1375 = vpack.c.b16 %v1357, %v1355
      %v1376 = vpack.c.b16 %v1360, %v1358
      %v1377 = vpack.c.b16 %v1361, %v1359
      %1394 = vmatprep.subr.bf16.mxu0 %v1363
      %1395 = vmatpush1.bf16.msra.mxu0 %v1362
      %1396 = vmatprep.subr.bf16.mxu0 %v1365
      %1397 = vmatpush1.bf16.msra.mxu0 %v1364
      %1398 = vmatprep.subr.bf16.mxu0 %v1367
      %1399 = vmatpush1.bf16.msra.mxu0 %v1366
      %1400 = vmatprep.subr.bf16.mxu0 %v1369
      %1401 = vmatpush1.bf16.msra.mxu0 %v1368
      %1402 = vmatprep.subr.bf16.mxu0 %v1371
      %1403 = vmatpush1.bf16.msra.mxu0 %v1370
      %1404 = vmatprep.subr.bf16.mxu0 %v1373
      %1405 = vmatpush1.bf16.msra.mxu0 %v1372
      %1406 = vmatprep.subr.bf16.mxu0 %v1375
      %1407 = vmatpush1.bf16.msra.mxu0 %v1374
      %1408 = vmatprep.subr.bf16.mxu0 %v1377
      %1409 = vmatpush1.bf16.msra.mxu0 %v1376
      %1410 = vmatprep.subr.bf16.mxu0 0
      %1411 = vmatpush1.bf16.msra.mxu0 0
      %1412 = vmatprep.subr.bf16.mxu0 0
      %1413 = vmatpush1.bf16.msra.mxu0 0
      %1414 = vmatprep.subr.bf16.mxu0 0
      %1415 = vmatpush1.bf16.msra.mxu0 0
      %1416 = vmatprep.subr.bf16.mxu0 0
      %1417 = vmatpush1.bf16.msra.mxu0 0
      %1418 = vmatprep.subr.bf16.mxu0 0
      %1419 = vmatpush1.bf16.msra.mxu0 0
      %1420 = vmatprep.subr.bf16.mxu0 0
      %1421 = vmatpush1.bf16.msra.mxu0 0
      %1422 = vmatprep.subr.bf16.mxu0 0
      %1423 = vmatpush1.bf16.msra.mxu0 0
      %1424 = vmatprep.subr.bf16.mxu0 0
      %1425 = vmatpush1.bf16.msra.mxu0 0
      %1426 = vmatprep.mubr.bf16.mxu0 0
      %1427 = vmatmul.mubr.bf16.gmra.mrb[0].mxu0 %v1297
      %v1428 = vpop.f32.mrb[0].mxu0
      %v1429 = vadd.f32 0.0, %v1428
      %v1430 = vpop.f32.mrb[0].mxu0
      %v1431 = vadd.f32 0.0, %v1430
      %v1432 = vpop.f32.mrb[0].mxu0
      %v1433 = vpop.f32.mrb[0].mxu0
      %1434 = vdwg.mxu0
      %v1435 = vadd.f32 %v1250, %v1429
      %v1436 = vadd.f32 %v1251, %v1431
      %v1437 = vmax.f32 %v1435, 0.0
      %v1438 = vmax.f32 %v1436, 0.0
      %v1439 = vpack.c.bf16 %v1437, %v1437
      %v1440 = vpack.c.bf16 %v1438, %v1438
      %v1443 = vcombine.low %v1439, %v1440
      %v1445 = vunpack.c.l.s4 1983009808
      %v1446 = vunpack.c.0.s8 %v1445
      %v1447 = vlaneseq
      %v1448 = vshrl.u32 %v1447, 7
      %v1449 = vsub.s32 %v1446, %v1448
      %v1450 = vrot.slane %v1443, %v1449
      %1452 = vst [vmem:[%s440] sm:$0xf] %v1450
      %p1453 = scmp.lt.s32.totalorder %s24, 1
      %s1454 = scalar_select %p1453, %s24, 1
      %s1455 = smul.addr %s1454, 2
      %s1456 = smul.addr %s1455, 2
      %s1457 = scalar_lea.vmem %s13, %s1456
      // Predicated region
      $region73: #{shufflenet_forward.10} parent=71 // pred_check
        %p1458 = pneg %p320
      $region74: #{shufflenet_forward.10} parent=71 // pred_check_branch
        %1460 = sbr.rel (%p1458) target = $region76
      $region75: #{shufflenet_forward.10} parent=71 // pred_region
        _
      $region76: #{shufflenet_forward.10} parent=71 // pred_fallthru
        _
    $region72: #{shufflenet_forward.10} parent=5 // pred_fallthru
      _
    %p1461 = scmp.le.s32.totalorder 2, %s19
    // Predicated region
    $region77: #{shufflenet_forward.10} parent=5 // pred_check
      %p1462 = pneg %p1461
    $region78: #{shufflenet_forward.10} parent=5 // pred_check_branch
      %1464 = sbr.rel (%p1462) target = $region80
    $region79: #{shufflenet_forward.10} parent=5 // pred_region
      %s1465 = ssub.s32 %s19, 2
      // Predicated region
      $region81: #{shufflenet_forward.10} parent=79 // pred_check
        %p1466 = pneg %p326
      $region82: #{shufflenet_forward.10} parent=79 // pred_check_branch
        %1468 = sbr.rel (%p1466) target = $region84
      $region83: #{shufflenet_forward.10} parent=79 // pred_region
        %p1469 = scmp.lt.s32.totalorder %s25, 1
        %s1470 = scalar_select %p1469, %s25, 1
        %s1471 = smul.addr %s1470, 2
        %s1472 = smul.addr %s1471, 2
        %s1473 = scalar_lea.vmem %s13, %s1472
      $region84: #{shufflenet_forward.10} parent=79 // pred_fallthru
        _
    $region80: #{shufflenet_forward.10} parent=5 // pred_fallthru
      _
  $region6: #{shufflenet_forward.10} parent=0 // loop_footer
    %s23 = sadd.s32 1, %s19
  $region7: #{shufflenet_forward.10} parent=0 // loop_footer_branch
    %18 = sbr.rel target = $region3
  $region8: #{shufflenet_forward.10} parent=0 // loop_exit
    _

// kernel: shufflenet_forward.11
$region0: #{shufflenet_forward.11}
  #allocation0 [shape = 'u32[]', space=smem, size = 0x4, offset = 0x4, fixed_abs, tag = 'smem constant byte address 0x4 - core index']
  #allocation1 [shape = 'u32[144,128]{1,0:T(1,128)}', space=vmem, size = 0x12000, scoped, tag = 'internal scratch']
  %s0 = inlined_call_operand.vmem [shape: bf16[2,4,256], index: 0, kind: input, shape index: {}]
  %s1 = inlined_call_operand.vmem [shape: bf16[256,10], index: 1, kind: input, shape index: {}]
  %s2 = inlined_call_operand.vmem [shape: f32[1,10], index: 2, kind: input, shape index: {}]
  %s3 = inlined_call_operand.hbm [shape: f32[2,10], index: 3, kind: output, shape index: {}]
  %s4 = sld [smem:[#allocation0]]
  $region22: #{shufflenet_forward.11} parent=0
    _
  %s6 = ssub.s32 1, %s4
  %s7 = scalar_select 0, %s6, %s4
  $region1: #{shufflenet_forward.11} parent=0
    #allocation2 [shape = 'u8[1024]{0}', space=vmem, size = 0x400, scoped, tag = 'output window, operand 0, single buffered']
    #allocation3 [shape = 's32[1]{0}', space=sflag, size = 0x4, scoped, tag = 'scoped memory for shufflenet_forward.11']
    %8 = vsyncpa [#allocation3], 0
    // Predicated region
    $region2: #{shufflenet_forward.11} parent=1 // pred_check
      _
    $region3: #{shufflenet_forward.11} parent=1 // pred_check_branch
      %10 = sbr.rel (0) target = $region5
    $region4: #{shufflenet_forward.11} parent=1 // pred_region
      _
    $region5: #{shufflenet_forward.11} parent=1 // pred_fallthru
      _
    // Predicated region
    $region6: #{shufflenet_forward.11} parent=1 // pred_check
      _
    $region7: #{shufflenet_forward.11} parent=1 // pred_check_branch
      %12 = sbr.rel (0) target = $region9
    $region8: #{shufflenet_forward.11} parent=1 // pred_region
      _
    $region9: #{shufflenet_forward.11} parent=1 // pred_fallthru
      _
    // Predicated region
    $region10: #{shufflenet_forward.11} parent=1 // pred_check
      _
    $region11: #{shufflenet_forward.11} parent=1 // pred_check_branch
      %14 = sbr.rel (0) target = $region13
    $region12: #{shufflenet_forward.11} parent=1 // pred_region
      _
    $region13: #{shufflenet_forward.11} parent=1 // pred_fallthru
      _
    %v16 = vld [vmem:[%s0] sm:$0xf]
    %v17 = vld [vmem:[%s0 + $0x4] sm:$0xf]
    %v18 = vunpack.c.l.bf16 %v16
    %v19 = vunpack.c.l.bf16 %v17
    %v22 = vcombine.high %v18, %v18
    %v23 = vcombine.high %v19, %v19
    %vm26 = vcmask 1043456
    %v27 = vsel %vm26, %v18, 0.0
    %v28 = vrot.slane %v27, 4
    %v29 = vadd.f32 %v27, %v28
    %v30 = vrot.slane %v29, 2
    %v31 = vadd.f32 %v29, %v30
    %v32 = vrot.slane %v31, 1
    %v33 = vadd.f32 %v31, %v32
    %v34 = vsel %vm26, %v22, 0.0
    %v35 = vrot.slane %v34, 4
    %v36 = vadd.f32 %v34, %v35
    %v37 = vrot.slane %v36, 2
    %v38 = vadd.f32 %v36, %v37
    %v39 = vrot.slane %v38, 1
    %v40 = vadd.f32 %v38, %v39
    %v41 = vsel %vm26, %v19, 0.0
    %v42 = vrot.slane %v41, 4
    %v43 = vadd.f32 %v41, %v42
    %v44 = vrot.slane %v43, 2
    %v45 = vadd.f32 %v43, %v44
    %v46 = vrot.slane %v45, 1
    %v47 = vadd.f32 %v45, %v46
    %v48 = vsel %vm26, %v23, 0.0
    %v49 = vrot.slane %v48, 4
    %v50 = vadd.f32 %v48, %v49
    %v51 = vrot.slane %v50, 2
    %v52 = vadd.f32 %v50, %v51
    %v53 = vrot.slane %v52, 1
    %v54 = vadd.f32 %v52, %v53
    %v55 = vrcp.pop 4.0
    %v56 = vmul.f32 %v33, %v55
    %v57 = vmul.f32 %v40, %v55
    %v58 = vmul.f32 %v47, %v55
    %v59 = vmul.f32 %v54, %v55
    %v60 = vpack.c.bf16 %v56, %v56
    %v61 = vpack.c.bf16 %v57, %v57
    %v62 = vpack.c.bf16 %v58, %v58
    %v63 = vpack.c.bf16 %v59, %v59
    %v64 = vld [vmem:[%s1] sm:$0xf]
    %v65 = vld [vmem:[%s1 + $0x4] sm:$0xf]
    %v66 = vld [vmem:[%s1 + $0x8] sm:$0xf]
    %v67 = vld [vmem:[%s1 + $0xc] sm:$0xf]
    %v68 = vld [vmem:[%s1 + $0x10] sm:$0xf]
    %v69 = vld [vmem:[%s1 + $0x14] sm:$0xf]
    %v70 = vld [vmem:[%s1 + $0x18] sm:$0xf]
    %v71 = vld [vmem:[%s1 + $0x1c] sm:$0xf]
    %v72 = vld [vmem:[%s1 + $0x20] sm:$0xf]
    %v73 = vld [vmem:[%s1 + $0x24] sm:$0xf]
    %v74 = vld [vmem:[%s1 + $0x28] sm:$0xf]
    %v75 = vld [vmem:[%s1 + $0x2c] sm:$0xf]
    %v76 = vld [vmem:[%s1 + $0x30] sm:$0xf]
    %v77 = vld [vmem:[%s1 + $0x34] sm:$0xf]
    %v78 = vld [vmem:[%s1 + $0x38] sm:$0xf]
    %v79 = vld [vmem:[%s1 + $0x3c] sm:$0xf]
    %v80 = vld [vmem:[%s1 + $0x40] sm:$0xf]
    %v81 = vld [vmem:[%s1 + $0x44] sm:$0xf]
    %v82 = vld [vmem:[%s1 + $0x48] sm:$0xf]
    %v83 = vld [vmem:[%s1 + $0x4c] sm:$0xf]
    %v84 = vld [vmem:[%s1 + $0x50] sm:$0xf]
    %v85 = vld [vmem:[%s1 + $0x54] sm:$0xf]
    %v86 = vld [vmem:[%s1 + $0x58] sm:$0xf]
    %v87 = vld [vmem:[%s1 + $0x5c] sm:$0xf]
    %v88 = vld [vmem:[%s1 + $0x60] sm:$0xf]
    %v89 = vld [vmem:[%s1 + $0x64] sm:$0xf]
    %v90 = vld [vmem:[%s1 + $0x68] sm:$0xf]
    %v91 = vld [vmem:[%s1 + $0x6c] sm:$0xf]
    %v92 = vld [vmem:[%s1 + $0x70] sm:$0xf]
    %v93 = vld [vmem:[%s1 + $0x74] sm:$0xf]
    %v94 = vld [vmem:[%s1 + $0x78] sm:$0xf]
    %v95 = vld [vmem:[%s1 + $0x7c] sm:$0xf]
    %v96 = vld [vmem:[%s2] sm:$0x1]
    %v98 = vlaneseq
    %v99 = vshrl.u32 %v98, 7
    %v100 = vsub.s32 0, %v99
    %v101 = vrot.slane %v96, %v100
    %v107 = vunpack.c.l.b16 %v60
    %v108 = vunpack.c.l.b16 %v61
    %v109 = vunpack.c.l.b16 %v62
    %v110 = vunpack.c.l.b16 %v63
    %vm111 = vcmask 1041409
    %v112 = vsel %vm111, %v109, %v107
    %v113 = vsel %vm111, %v110, %v108
    %v114 = vpack.c.b16 %v112, %v112
    %v115 = vpack.c.b16 %v113, %v113
    %v150 = vunpack.c.l.b16 %v64
    %v151 = vunpack.c.l.b16 %v65
    %v152 = vunpack.c.l.b16 %v66
    %v153 = vunpack.c.l.b16 %v67
    %v154 = vunpack.c.l.b16 %v68
    %v155 = vunpack.c.l.b16 %v69
    %v156 = vunpack.c.l.b16 %v70
    %v157 = vunpack.c.l.b16 %v71
    %v158 = vunpack.c.l.b16 %v72
    %v159 = vunpack.c.l.b16 %v73
    %v160 = vunpack.c.l.b16 %v74
    %v161 = vunpack.c.l.b16 %v75
    %v162 = vunpack.c.l.b16 %v76
    %v163 = vunpack.c.l.b16 %v77
    %v164 = vunpack.c.l.b16 %v78
    %v165 = vunpack.c.l.b16 %v79
    %v166 = vunpack.c.l.b16 %v80
    %v167 = vunpack.c.l.b16 %v81
    %v168 = vunpack.c.l.b16 %v82
    %v169 = vunpack.c.l.b16 %v83
    %v170 = vunpack.c.l.b16 %v84
    %v171 = vunpack.c.l.b16 %v85
    %v172 = vunpack.c.l.b16 %v86
    %v173 = vunpack.c.l.b16 %v87
    %v174 = vunpack.c.l.b16 %v88
    %v175 = vunpack.c.l.b16 %v89
    %v176 = vunpack.c.l.b16 %v90
    %v177 = vunpack.c.l.b16 %v91
    %v178 = vunpack.c.l.b16 %v92
    %v179 = vunpack.c.l.b16 %v93
    %v180 = vunpack.c.l.b16 %v94
    %v181 = vunpack.c.l.b16 %v95
    %v182 = vpack.c.b16 %v151, %v150
    %v183 = vpack.c.b16 %v153, %v152
    %v184 = vpack.c.b16 %v155, %v154
    %v185 = vpack.c.b16 %v157, %v156
    %v186 = vpack.c.b16 %v159, %v158
    %v187 = vpack.c.b16 %v161, %v160
    %v188 = vpack.c.b16 %v163, %v162
    %v189 = vpack.c.b16 %v165, %v164
    %v190 = vpack.c.b16 %v167, %v166
    %v191 = vpack.c.b16 %v169, %v168
    %v192 = vpack.c.b16 %v171, %v170
    %v193 = vpack.c.b16 %v173, %v172
    %v194 = vpack.c.b16 %v175, %v174
    %v195 = vpack.c.b16 %v177, %v176
    %v196 = vpack.c.b16 %v179, %v178
    %v197 = vpack.c.b16 %v181, %v180
    %214 = vmatprep.subr.bf16.mxu0 0
    %215 = vmatpush1.bf16.msra.mxu0 %v182
    %216 = vmatprep.subr.bf16.mxu0 0
    %217 = vmatpush1.bf16.msra.mxu0 %v183
    %218 = vmatprep.subr.bf16.mxu0 0
    %219 = vmatpush1.bf16.msra.mxu0 %v184
    %220 = vmatprep.subr.bf16.mxu0 0
    %221 = vmatpush1.bf16.msra.mxu0 %v185
    %222 = vmatprep.subr.bf16.mxu0 0
    %223 = vmatpush1.bf16.msra.mxu0 %v186
    %224 = vmatprep.subr.bf16.mxu0 0
    %225 = vmatpush1.bf16.msra.mxu0 %v187
    %226 = vmatprep.subr.bf16.mxu0 0
    %227 = vmatpush1.bf16.msra.mxu0 %v188
    %228 = vmatprep.subr.bf16.mxu0 0
    %229 = vmatpush1.bf16.msra.mxu0 %v189
    %230 = vmatprep.subr.bf16.mxu0 0
    %231 = vmatpush1.bf16.msra.mxu0 %v190
    %232 = vmatprep.subr.bf16.mxu0 0
    %233 = vmatpush1.bf16.msra.mxu0 %v191
    %234 = vmatprep.subr.bf16.mxu0 0
    %235 = vmatpush1.bf16.msra.mxu0 %v192
    %236 = vmatprep.subr.bf16.mxu0 0
    %237 = vmatpush1.bf16.msra.mxu0 %v193
    %238 = vmatprep.subr.bf16.mxu0 0
    %239 = vmatpush1.bf16.msra.mxu0 %v194
    %240 = vmatprep.subr.bf16.mxu0 0
    %241 = vmatpush1.bf16.msra.mxu0 %v195
    %242 = vmatprep.subr.bf16.mxu0 0
    %243 = vmatpush1.bf16.msra.mxu0 %v196
    %244 = vmatprep.subr.bf16.mxu0 0
    %245 = vmatpush1.bf16.msra.mxu0 %v197
    %246 = vmatprep.mubr.bf16.mxu0 %v115
    %247 = vmatmul.mubr.bf16.gmra.mrb[0].mxu0 %v114
    %v248 = vpop.f32.mrb[0].mxu0
    %v249 = vadd.f32 %v101, %v248
    %v250 = vpop.f32.mrb[0].mxu0
    %v251 = vpop.f32.mrb[0].mxu0
    %v252 = vpop.f32.mrb[0].mxu0
    %253 = vdwg.mxu0
    %vm254 = vcmask 74752
    %255 = vst.msk [vmem:[#allocation2] sm:$0x3] %vm254, %v249
    // Predicated region
    $region14: #{shufflenet_forward.11} parent=1 // pred_check
      _
    $region15: #{shufflenet_forward.11} parent=1 // pred_check_branch
      %257 = sbr.rel (0) target = $region17
    $region16: #{shufflenet_forward.11} parent=1 // pred_region
      %s259 = ssub.s32 32, 32
      %260 = vsyncadd [#allocation3], %s259
      %s262 = sshll.u32 [#allocation2], 4
      %s263 = int_to_ptr.vmem [resolvable:$true] %s262
      %265 = dma.vmem_to_hbm [thread:$0]  %s263, 32, %s3, [#allocation3]
    $region17: #{shufflenet_forward.11} parent=1 // pred_fallthru
      _
    // Predicated region
    $region18: #{shufflenet_forward.11} parent=1 // pred_check
      _
    $region19: #{shufflenet_forward.11} parent=1 // pred_check_branch
      %267 = sbr.rel (0) target = $region21
    $region20: #{shufflenet_forward.11} parent=1 // pred_region
      %268 = dma.done [#allocation3], 32
    $region21: #{shufflenet_forward.11} parent=1 // pred_fallthru
      _
    %269 = vsyncpa [#allocation3], 1

</llo_original>
